<compile_context>
chip_gen: v5e
topology: v5e:2x2
jax: 0.10.0
libtpu: 0.0.40
codegen_flags: <defaults>
</compile_context>

<pallas_src>
import jax
import jax.numpy as jnp
from jax.experimental import pallas as pl
from jax.experimental.pallas import tpu as pltpu

_CompilerParams = getattr(pltpu, "CompilerParams", None)
if _CompilerParams is None:  # fallback for older jax releases
    _CompilerParams = getattr(pltpu, "TPUCompilerParams")

# ----------------------------- layout constants ---------------------------- #
LANES = 128            # lane (channel) padding for all activations / weights
KIN1 = 32              # conv1 im2col K: 25 taps (1 input channel), padded to 32
PHASE = 200            # rows per pooling-phase block (196 valid, padded to 200)
M1 = 4 * PHASE         # conv1 output rows in the phase-major layout (=800)
M1_CHUNK = 160         # conv1 M tiling (5 chunks; result stays in vregs)
W2L = 14               # conv2 input raster width (pool1 output is 14x14)
M2 = 136               # conv2 output rows in the width-14 raster (last valid=135)
IN2_ROWS = 200         # pool1 output rows (196 valid)
FEAT_LANES = 25 * LANES  # flattened conv3 LHS: lane index = tap*128 + channel


# ------------------------------ fused kernel ------------------------------- #

def _fused_lenet_kernel(x_ref, w1_ref, b1_ref, w2_ref, b2_ref, w3_ref, b3_ref,
                        wf1_ref, bf1_ref, wf2_ref, bf2_ref,
                        out_ref,
                        acc1_ref, in2_ref, acc2_ref, feat_ref):
    f32 = jnp.float32
    bf16 = jnp.bfloat16

    # conv1 + ReLU: one im2col matmul (taps folded into K), tiled over M so the
    # f32 result never exceeds the vreg file.  Output lanes 6..127 are exact
    # zeros (zero weight columns + zero bias), which keeps every later padded
    # lane finite and zero without any scratch zero-init.
    for m0 in range(0, M1, M1_CHUNK):
        lhs = x_ref[0, pl.ds(m0, M1_CHUNK), :]                       # bf16 (160,32)
        c1 = jnp.dot(lhs, w1_ref[...], preferred_element_type=f32)   # f32 (160,128)
        acc1_ref[pl.ds(m0, M1_CHUNK), :] = jnp.maximum(c1 + b1_ref[...], 0.0)

    # pool1 (2x2/2): the host laid conv1 outputs out phase-major, so pooling is
    # a pure elementwise max of 4 contiguous slabs - no matmul, no strided ops.
    pooled = jnp.maximum(
        jnp.maximum(acc1_ref[pl.ds(0 * PHASE, 196), :],
                    acc1_ref[pl.ds(1 * PHASE, 196), :]),
        jnp.maximum(acc1_ref[pl.ds(2 * PHASE, 196), :],
                    acc1_ref[pl.ds(3 * PHASE, 196), :]))
    in2_ref[pl.ds(0, 196), :] = pooled            # 14x14 raster for conv2

    # conv2 + ReLU: 25 shifted bf16 matmuls, f32 accumulator held in vregs
    # (136x128 f32 = 17 vregs).  Raster rows with col>=10 are wrap-around
    # garbage but finite and never selected by pool2.
    acc = jnp.zeros((M2, LANES), f32)
    for ki in range(5):
        for kj in range(5):
            lhs = in2_ref[pl.ds(ki * W2L + kj, M2), :].astype(bf16)
            acc = acc + jnp.dot(lhs, w2_ref[ki * 5 + kj],
                                preferred_element_type=f32)
    acc2_ref[...] = jnp.maximum(acc + b2_ref[...], 0.0)

    # pool2 (5x5x16): 25 tiny 4-way maxes written straight into the
    # lane-flattened conv3 LHS row (lane = tap*128 + channel).
    for pr in range(5):
        for pc in range(5):
            base = 2 * pr * W2L + 2 * pc
            v = jnp.maximum(
                jnp.maximum(acc2_ref[pl.ds(base, 1), :],
                            acc2_ref[pl.ds(base + 1, 1), :]),
                jnp.maximum(acc2_ref[pl.ds(base + W2L, 1), :],
                            acc2_ref[pl.ds(base + W2L + 1, 1), :]))
            feat_ref[pl.ds(0, 1), pl.ds((pr * 5 + pc) * LANES, LANES)] = v

    # conv3 + ReLU as ONE K=3200 contraction (== flatten), then fc1 + fc2.
    flat = feat_ref[pl.ds(0, 1), :].astype(bf16)                     # (1, 3200)
    h = jnp.maximum(
        jnp.dot(flat, w3_ref[...], preferred_element_type=f32) + b3_ref[...],
        0.0)
    h = jnp.maximum(
        jnp.dot(h.astype(bf16), wf1_ref[...], preferred_element_type=f32)
        + bf1_ref[...], 0.0)
    logits = jnp.dot(h.astype(bf16), wf2_ref[...],
                     preferred_element_type=f32) + bf2_ref[...]
    out_ref[0] = logits.astype(out_ref.dtype)


# --------------------------- host-side packing ----------------------------- #

def pack_params(params):
    """One-time packing: transpose, lane-pad and bf16-cast every weight."""
    f32 = jnp.float32
    bf16 = jnp.bfloat16

    def bias(b):
        return jnp.zeros((1, LANES), f32).at[0, :b.shape[0]].set(b.astype(f32))

    # conv1 (6,1,5,5) -> tap-major (25,6), padded to (32,128).
    w1 = params["conv1_w"].reshape(6, 25).T.astype(f32)
    w1p = jnp.zeros((KIN1, LANES), f32).at[:25, :6].set(w1)

    # conv2 (16,6,5,5) -> per-tap (25,6,16), padded to (25,128,128).
    w2 = jnp.transpose(params["conv2_w"], (2, 3, 1, 0)).reshape(25, 6, 16)
    w2p = jnp.zeros((25, LANES, LANES), f32).at[:, :6, :16].set(w2.astype(f32))

    # conv3 (120,16,5,5) -> (25,16,120) stacked to (3200,128), rows matching
    # the kernel's flattened feat layout (lane = tap*128 + channel).
    w3 = jnp.transpose(params["conv3_w"], (2, 3, 1, 0)).reshape(25, 16, 120)
    w3p = (jnp.zeros((25, LANES, LANES), f32)
           .at[:, :16, :120].set(w3.astype(f32))
           .reshape(25 * LANES, LANES))

    def fc_w(w):  # torch (out,in) -> pre-transposed, lane-padded (128,128)
        o, i = w.shape
        return jnp.zeros((LANES, LANES), f32).at[:i, :o].set(w.T.astype(f32))

    return {
        "w1": w1p.astype(bf16), "b1": bias(params["conv1_b"]),
        "w2": w2p.astype(bf16), "b2": bias(params["conv2_b"]),
        "w3": w3p.astype(bf16), "b3": bias(params["conv3_b"]),
        "wf1": fc_w(params["fc1_w"]).astype(bf16), "bf1": bias(params["fc1_b"]),
        "wf2": fc_w(params["fc2_w"]).astype(bf16), "bf2": bias(params["fc2_b"]),
    }


def bayes_lenet5_forward(x, pk):
    """Forward pass of BayesLeNet5. x: (N, 1, 28, 28) f32 -> (N, 10) f32."""
    n = x.shape[0]
    # Boundary-only layout glue (host): pad to 32x32, 25-tap im2col so conv1's
    # taps live in K, and reorder output positions into 2x2-pooling phase
    # blocks so pool1 is contiguous elementwise max inside the kernel.
    xp = jnp.pad(x[:, 0].astype(jnp.float32), ((0, 0), (2, 2), (2, 2)))
    pats = jnp.stack([xp[:, ki:ki + 28, kj:kj + 28]
                      for ki in range(5) for kj in range(5)], axis=-1)
    pats = pats.reshape(n, 14, 2, 14, 2, 25)          # (N, pr, dy, pc, dx, tap)
    pats = jnp.transpose(pats, (0, 2, 4, 1, 3, 5))    # (N, dy, dx, pr, pc, tap)
    pats = pats.reshape(n, 4, 196, 25)
    pats = jnp.pad(pats, ((0, 0), (0, 0), (0, PHASE - 196), (0, KIN1 - 25)))
    xf = pats.reshape(n, M1, KIN1).astype(jnp.bfloat16)

    full2 = lambda s: pl.BlockSpec(s, lambda b: (0, 0))
    full3 = lambda s: pl.BlockSpec(s, lambda b: (0, 0, 0))

    grid_spec = pltpu.PrefetchScalarGridSpec(
        num_scalar_prefetch=0,
        grid=(n,),
        in_specs=[
            pl.BlockSpec((1, M1, KIN1), lambda b: (b, 0, 0)),
            full2(pk["w1"].shape), full2(pk["b1"].shape),
            full3(pk["w2"].shape), full2(pk["b2"].shape),
            full2(pk["w3"].shape), full2(pk["b3"].shape),
            full2(pk["wf1"].shape), full2(pk["bf1"].shape),
            full2(pk["wf2"].shape), full2(pk["bf2"].shape),
        ],
        out_specs=pl.BlockSpec((1, 1, LANES), lambda b: (b, 0, 0)),
        scratch_shapes=[
            pltpu.VMEM((M1, LANES), jnp.float32),        # conv1 out (phase-major)
            pltpu.VMEM((IN2_ROWS, LANES), jnp.float32),  # pool1 out (14-wide raster)
            pltpu.VMEM((M2, LANES), jnp.float32),        # conv2 out
            pltpu.VMEM((8, FEAT_LANES), jnp.float32),    # flattened conv3 LHS
        ],
    )
    out = pl.pallas_call(
        _fused_lenet_kernel,
        grid_spec=grid_spec,
        out_shape=jax.ShapeDtypeStruct((n, 1, LANES), jnp.float32),
        compiler_params=_CompilerParams(dimension_semantics=("parallel",)),
    )(xf, pk["w1"], pk["b1"], pk["w2"], pk["b2"], pk["w3"], pk["b3"],
      pk["wf1"], pk["bf1"], pk["wf2"], pk["bf2"])
    return out[:, 0, :10]                                # (N, 10)


def init_params(key):
    """Deterministic synthetic parameters with the module's shapes."""
    ks = jax.random.split(key, 10)

    def w(k, shape, scale):
        return (scale * jax.random.normal(k, shape)).astype(jnp.float32)

    return {
        "conv1_w": w(ks[0], (6, 1, 5, 5), 0.2),
        "conv1_b": w(ks[1], (6,), 0.05),
        "conv2_w": w(ks[2], (16, 6, 5, 5), 0.08),
        "conv2_b": w(ks[3], (16,), 0.05),
        "conv3_w": w(ks[4], (120, 16, 5, 5), 0.05),
        "conv3_b": w(ks[5], (120,), 0.05),
        "fc1_w": w(ks[6], (84, 120), 0.09),
        "fc1_b": w(ks[7], (84,), 0.05),
        "fc2_w": w(ks[8], (10, 84), 0.1),
        "fc2_b": w(ks[9], (10,), 0.05),
    }


if __name__ == "__main__":
    key = jax.random.PRNGKey(0)
    k_x, k_p = jax.random.split(key)
    # LeNet-5 geometry requires 28x28x1 input (conv3's 5x5 sees a 5x5 map).
    x = jax.random.normal(k_x, (2, 1, 28, 28), dtype=jnp.float32)
    params = init_params(k_p)
    packed = pack_params(params)   # one-time weight packing (outside the jit)

    fwd = jax.jit(bayes_lenet5_forward)
    out = jax.block_until_ready(fwd(x, packed))
    assert out.shape == (2, 10) and out.dtype == jnp.float32
    assert bool(jnp.all(jnp.isfinite(out)))
    print("KERNEL_OK")
</pallas_src>

<mosaic_0001>
module attributes {stable_mosaic.version = 11 : i64} {
  func.func @_fused_lenet_kernel(%arg0: i32, %arg1: memref<1x800x32xbf16, #tpu.memory_space<vmem>>, %arg2: memref<32x128xbf16, #tpu.memory_space<vmem>>, %arg3: memref<1x128xf32, #tpu.memory_space<vmem>>, %arg4: memref<25x128x128xbf16, #tpu.memory_space<vmem>>, %arg5: memref<1x128xf32, #tpu.memory_space<vmem>>, %arg6: memref<3200x128xbf16, #tpu.memory_space<vmem>>, %arg7: memref<1x128xf32, #tpu.memory_space<vmem>>, %arg8: memref<128x128xbf16, #tpu.memory_space<vmem>>, %arg9: memref<1x128xf32, #tpu.memory_space<vmem>>, %arg10: memref<128x128xbf16, #tpu.memory_space<vmem>>, %arg11: memref<1x128xf32, #tpu.memory_space<vmem>>, %arg12: memref<1x1x128xf32, #tpu.memory_space<vmem>>, %arg13: memref<800x128xf32, #tpu.memory_space<vmem>>, %arg14: memref<200x128xf32, #tpu.memory_space<vmem>>, %arg15: memref<136x128xf32, #tpu.memory_space<vmem>>, %arg16: memref<8x3200xf32, #tpu.memory_space<vmem>>) attributes {dimension_semantics = [#tpu.dimension_semantics<parallel>], iteration_bounds = array<i64: 2>, scalar_prefetch = 0 : i64, scratch_operands = 4 : i64, tpu.core_type = #tpu.core_type<tc>, window_params = [{transform_indices = @transform_0, window_bounds = array<i64: 1, 800, 32>}, {pipeline_mode = #tpu.pipeline_mode<synchronous>, transform_indices = @transform_1, window_bounds = array<i64: 32, 128>}, {pipeline_mode = #tpu.pipeline_mode<synchronous>, transform_indices = @transform_2, window_bounds = array<i64: 1, 128>}, {pipeline_mode = #tpu.pipeline_mode<synchronous>, transform_indices = @transform_3, window_bounds = array<i64: 25, 128, 128>}, {pipeline_mode = #tpu.pipeline_mode<synchronous>, transform_indices = @transform_4, window_bounds = array<i64: 1, 128>}, {pipeline_mode = #tpu.pipeline_mode<synchronous>, transform_indices = @transform_5, window_bounds = array<i64: 3200, 128>}, {pipeline_mode = #tpu.pipeline_mode<synchronous>, transform_indices = @transform_6, window_bounds = array<i64: 1, 128>}, {pipeline_mode = #tpu.pipeline_mode<synchronous>, transform_indices = @transform_7, window_bounds = array<i64: 128, 128>}, {pipeline_mode = #tpu.pipeline_mode<synchronous>, transform_indices = @transform_8, window_bounds = array<i64: 1, 128>}, {pipeline_mode = #tpu.pipeline_mode<synchronous>, transform_indices = @transform_9, window_bounds = array<i64: 128, 128>}, {pipeline_mode = #tpu.pipeline_mode<synchronous>, transform_indices = @transform_10, window_bounds = array<i64: 1, 128>}, {transform_indices = @transform_11, window_bounds = array<i64: 1, 1, 128>}]} {
    %c0 = arith.constant 0 : index
    %c0_0 = arith.constant 0 : index
    %c0_1 = arith.constant 0 : index
    %0 = vector.load %arg1[%c0, %c0_0, %c0_1] : memref<1x800x32xbf16, #tpu.memory_space<vmem>>, vector<1x160x32xbf16>
    %1 = vector.shape_cast %0 : vector<1x160x32xbf16> to vector<160x32xbf16>
    %c0_2 = arith.constant 0 : index
    %c0_3 = arith.constant 0 : index
    %2 = vector.load %arg2[%c0_2, %c0_3] : memref<32x128xbf16, #tpu.memory_space<vmem>>, vector<32x128xbf16>
    %cst = arith.constant dense<0.000000e+00> : vector<160x128xf32>
    %3 = tpu.matmul %1, %2, %cst {dimension_numbers = #tpu.dot_dimension_numbers<[1], [0], [0], [1], [0, 0, 1, 1], [], []>} : vector<160x32xbf16>, vector<32x128xbf16>, vector<160x128xf32> -> vector<160x128xf32>
    %c0_4 = arith.constant 0 : index
    %c0_5 = arith.constant 0 : index
    %4 = vector.load %arg3[%c0_4, %c0_5] : memref<1x128xf32, #tpu.memory_space<vmem>>, vector<1x128xf32>
    %5 = vector.broadcast %4 : vector<1x128xf32> to vector<160x128xf32>
    %6 = arith.addf %3, %5 : vector<160x128xf32>
    %cst_6 = arith.constant 0.000000e+00 : f32
    %7 = vector.broadcast %cst_6 : f32 to vector<160x128xf32>
    %8 = arith.maximumf %6, %7 : vector<160x128xf32>
    %c0_7 = arith.constant 0 : index
    %c0_8 = arith.constant 0 : index
    %9 = vector.load %arg13[%c0_7, %c0_8] : memref<800x128xf32, #tpu.memory_space<vmem>>, vector<160x128xf32>
    tpu.vector_store %arg13[%c0_7, %c0_8], %8 {strides = array<i32>} : memref<800x128xf32, #tpu.memory_space<vmem>>, vector<160x128xf32>,
    %c0_9 = arith.constant 0 : index
    %c160 = arith.constant 160 : index
    %c0_10 = arith.constant 0 : index
    %10 = vector.load %arg1[%c0_9, %c160, %c0_10] : memref<1x800x32xbf16, #tpu.memory_space<vmem>>, vector<1x160x32xbf16>
    %11 = vector.shape_cast %10 : vector<1x160x32xbf16> to vector<160x32xbf16>
    %c0_11 = arith.constant 0 : index
    %c0_12 = arith.constant 0 : index
    %12 = vector.load %arg2[%c0_11, %c0_12] : memref<32x128xbf16, #tpu.memory_space<vmem>>, vector<32x128xbf16>
    %cst_13 = arith.constant dense<0.000000e+00> : vector<160x128xf32>
    %13 = tpu.matmul %11, %12, %cst_13 {dimension_numbers = #tpu.dot_dimension_numbers<[1], [0], [0], [1], [0, 0, 1, 1], [], []>} : vector<160x32xbf16>, vector<32x128xbf16>, vector<160x128xf32> -> vector<160x128xf32>
    %c0_14 = arith.constant 0 : index
    %c0_15 = arith.constant 0 : index
    %14 = vector.load %arg3[%c0_14, %c0_15] : memref<1x128xf32, #tpu.memory_space<vmem>>, vector<1x128xf32>
    %15 = vector.broadcast %14 : vector<1x128xf32> to vector<160x128xf32>
    %16 = arith.addf %13, %15 : vector<160x128xf32>
    %cst_16 = arith.constant 0.000000e+00 : f32
    %17 = vector.broadcast %cst_16 : f32 to vector<160x128xf32>
    %18 = arith.maximumf %16, %17 : vector<160x128xf32>
    %c160_17 = arith.constant 160 : index
    %c0_18 = arith.constant 0 : index
    %19 = vector.load %arg13[%c160_17, %c0_18] : memref<800x128xf32, #tpu.memory_space<vmem>>, vector<160x128xf32>
    tpu.vector_store %arg13[%c160_17, %c0_18], %18 {strides = array<i32>} : memref<800x128xf32, #tpu.memory_space<vmem>>, vector<160x128xf32>,
    %c0_19 = arith.constant 0 : index
    %c320 = arith.constant 320 : index
    %c0_20 = arith.constant 0 : index
    %20 = vector.load %arg1[%c0_19, %c320, %c0_20] : memref<1x800x32xbf16, #tpu.memory_space<vmem>>, vector<1x160x32xbf16>
    %21 = vector.shape_cast %20 : vector<1x160x32xbf16> to vector<160x32xbf16>
    %c0_21 = arith.constant 0 : index
    %c0_22 = arith.constant 0 : index
    %22 = vector.load %arg2[%c0_21, %c0_22] : memref<32x128xbf16, #tpu.memory_space<vmem>>, vector<32x128xbf16>
    %cst_23 = arith.constant dense<0.000000e+00> : vector<160x128xf32>
    %23 = tpu.matmul %21, %22, %cst_23 {dimension_numbers = #tpu.dot_dimension_numbers<[1], [0], [0], [1], [0, 0, 1, 1], [], []>} : vector<160x32xbf16>, vector<32x128xbf16>, vector<160x128xf32> -> vector<160x128xf32>
    %c0_24 = arith.constant 0 : index
    %c0_25 = arith.constant 0 : index
    %24 = vector.load %arg3[%c0_24, %c0_25] : memref<1x128xf32, #tpu.memory_space<vmem>>, vector<1x128xf32>
    %25 = vector.broadcast %24 : vector<1x128xf32> to vector<160x128xf32>
    %26 = arith.addf %23, %25 : vector<160x128xf32>
    %cst_26 = arith.constant 0.000000e+00 : f32
    %27 = vector.broadcast %cst_26 : f32 to vector<160x128xf32>
    %28 = arith.maximumf %26, %27 : vector<160x128xf32>
    %c320_27 = arith.constant 320 : index
    %c0_28 = arith.constant 0 : index
    %29 = vector.load %arg13[%c320_27, %c0_28] : memref<800x128xf32, #tpu.memory_space<vmem>>, vector<160x128xf32>
    tpu.vector_store %arg13[%c320_27, %c0_28], %28 {strides = array<i32>} : memref<800x128xf32, #tpu.memory_space<vmem>>, vector<160x128xf32>,
    %c0_29 = arith.constant 0 : index
    %c480 = arith.constant 480 : index
    %c0_30 = arith.constant 0 : index
    %30 = vector.load %arg1[%c0_29, %c480, %c0_30] : memref<1x800x32xbf16, #tpu.memory_space<vmem>>, vector<1x160x32xbf16>
    %31 = vector.shape_cast %30 : vector<1x160x32xbf16> to vector<160x32xbf16>
    %c0_31 = arith.constant 0 : index
    %c0_32 = arith.constant 0 : index
    %32 = vector.load %arg2[%c0_31, %c0_32] : memref<32x128xbf16, #tpu.memory_space<vmem>>, vector<32x128xbf16>
    %cst_33 = arith.constant dense<0.000000e+00> : vector<160x128xf32>
    %33 = tpu.matmul %31, %32, %cst_33 {dimension_numbers = #tpu.dot_dimension_numbers<[1], [0], [0], [1], [0, 0, 1, 1], [], []>} : vector<160x32xbf16>, vector<32x128xbf16>, vector<160x128xf32> -> vector<160x128xf32>
    %c0_34 = arith.constant 0 : index
    %c0_35 = arith.constant 0 : index
    %34 = vector.load %arg3[%c0_34, %c0_35] : memref<1x128xf32, #tpu.memory_space<vmem>>, vector<1x128xf32>
    %35 = vector.broadcast %34 : vector<1x128xf32> to vector<160x128xf32>
    %36 = arith.addf %33, %35 : vector<160x128xf32>
    %cst_36 = arith.constant 0.000000e+00 : f32
    %37 = vector.broadcast %cst_36 : f32 to vector<160x128xf32>
    %38 = arith.maximumf %36, %37 : vector<160x128xf32>
    %c480_37 = arith.constant 480 : index
    %c0_38 = arith.constant 0 : index
    %39 = vector.load %arg13[%c480_37, %c0_38] : memref<800x128xf32, #tpu.memory_space<vmem>>, vector<160x128xf32>
    tpu.vector_store %arg13[%c480_37, %c0_38], %38 {strides = array<i32>} : memref<800x128xf32, #tpu.memory_space<vmem>>, vector<160x128xf32>,
    %c0_39 = arith.constant 0 : index
    %c640 = arith.constant 640 : index
    %c0_40 = arith.constant 0 : index
    %40 = vector.load %arg1[%c0_39, %c640, %c0_40] : memref<1x800x32xbf16, #tpu.memory_space<vmem>>, vector<1x160x32xbf16>
    %41 = vector.shape_cast %40 : vector<1x160x32xbf16> to vector<160x32xbf16>
    %c0_41 = arith.constant 0 : index
    %c0_42 = arith.constant 0 : index
    %42 = vector.load %arg2[%c0_41, %c0_42] : memref<32x128xbf16, #tpu.memory_space<vmem>>, vector<32x128xbf16>
    %cst_43 = arith.constant dense<0.000000e+00> : vector<160x128xf32>
    %43 = tpu.matmul %41, %42, %cst_43 {dimension_numbers = #tpu.dot_dimension_numbers<[1], [0], [0], [1], [0, 0, 1, 1], [], []>} : vector<160x32xbf16>, vector<32x128xbf16>, vector<160x128xf32> -> vector<160x128xf32>
    %c0_44 = arith.constant 0 : index
    %c0_45 = arith.constant 0 : index
    %44 = vector.load %arg3[%c0_44, %c0_45] : memref<1x128xf32, #tpu.memory_space<vmem>>, vector<1x128xf32>
    %45 = vector.broadcast %44 : vector<1x128xf32> to vector<160x128xf32>
    %46 = arith.addf %43, %45 : vector<160x128xf32>
    %cst_46 = arith.constant 0.000000e+00 : f32
    %47 = vector.broadcast %cst_46 : f32 to vector<160x128xf32>
    %48 = arith.maximumf %46, %47 : vector<160x128xf32>
    %c640_47 = arith.constant 640 : index
    %c0_48 = arith.constant 0 : index
    %49 = vector.load %arg13[%c640_47, %c0_48] : memref<800x128xf32, #tpu.memory_space<vmem>>, vector<160x128xf32>
    tpu.vector_store %arg13[%c640_47, %c0_48], %48 {strides = array<i32>} : memref<800x128xf32, #tpu.memory_space<vmem>>, vector<160x128xf32>,
    %c0_49 = arith.constant 0 : index
    %c0_50 = arith.constant 0 : index
    %50 = vector.load %arg13[%c0_49, %c0_50] : memref<800x128xf32, #tpu.memory_space<vmem>>, vector<196x128xf32>
    %c200 = arith.constant 200 : index
    %c0_51 = arith.constant 0 : index
    %51 = vector.load %arg13[%c200, %c0_51] : memref<800x128xf32, #tpu.memory_space<vmem>>, vector<196x128xf32>
    %52 = arith.maximumf %50, %51 : vector<196x128xf32>
    %c400 = arith.constant 400 : index
    %c0_52 = arith.constant 0 : index
    %53 = vector.load %arg13[%c400, %c0_52] : memref<800x128xf32, #tpu.memory_space<vmem>>, vector<196x128xf32>
    %c600 = arith.constant 600 : index
    %c0_53 = arith.constant 0 : index
    %54 = vector.load %arg13[%c600, %c0_53] : memref<800x128xf32, #tpu.memory_space<vmem>>, vector<196x128xf32>
    %55 = arith.maximumf %53, %54 : vector<196x128xf32>
    %56 = arith.maximumf %52, %55 : vector<196x128xf32>
    %c0_54 = arith.constant 0 : index
    %c0_55 = arith.constant 0 : index
    %57 = vector.load %arg14[%c0_54, %c0_55] : memref<200x128xf32, #tpu.memory_space<vmem>>, vector<196x128xf32>
    tpu.vector_store %arg14[%c0_54, %c0_55], %56 {strides = array<i32>} : memref<200x128xf32, #tpu.memory_space<vmem>>, vector<196x128xf32>,
    %cst_56 = arith.constant 0.000000e+00 : f32
    %58 = vector.broadcast %cst_56 : f32 to vector<136x128xf32>
    %c0_57 = arith.constant 0 : index
    %c0_58 = arith.constant 0 : index
    %59 = vector.load %arg14[%c0_57, %c0_58] : memref<200x128xf32, #tpu.memory_space<vmem>>, vector<136x128xf32>
    %60 = arith.truncf %59 : vector<136x128xf32> to vector<136x128xbf16>
    %c0_59 = arith.constant 0 : index
    %c0_60 = arith.constant 0 : index
    %c0_61 = arith.constant 0 : index
    %61 = vector.load %arg4[%c0_59, %c0_60, %c0_61] : memref<25x128x128xbf16, #tpu.memory_space<vmem>>, vector<1x128x128xbf16>
    %62 = vector.shape_cast %61 : vector<1x128x128xbf16> to vector<128x128xbf16>
    %cst_62 = arith.constant dense<0.000000e+00> : vector<136x128xf32>
    %63 = tpu.matmul %60, %62, %cst_62 {dimension_numbers = #tpu.dot_dimension_numbers<[1], [0], [0], [1], [0, 0, 1, 1], [], []>} : vector<136x128xbf16>, vector<128x128xbf16>, vector<136x128xf32> -> vector<136x128xf32>
    %64 = arith.addf %58, %63 : vector<136x128xf32>
    %c1 = arith.constant 1 : index
    %c0_63 = arith.constant 0 : index
    %65 = vector.load %arg14[%c1, %c0_63] : memref<200x128xf32, #tpu.memory_space<vmem>>, vector<136x128xf32>
    %66 = arith.truncf %65 : vector<136x128xf32> to vector<136x128xbf16>
    %c1_64 = arith.constant 1 : index
    %c0_65 = arith.constant 0 : index
    %c0_66 = arith.constant 0 : index
    %67 = vector.load %arg4[%c1_64, %c0_65, %c0_66] : memref<25x128x128xbf16, #tpu.memory_space<vmem>>, vector<1x128x128xbf16>
    %68 = vector.shape_cast %67 : vector<1x128x128xbf16> to vector<128x128xbf16>
    %cst_67 = arith.constant dense<0.000000e+00> : vector<136x128xf32>
    %69 = tpu.matmul %66, %68, %cst_67 {dimension_numbers = #tpu.dot_dimension_numbers<[1], [0], [0], [1], [0, 0, 1, 1], [], []>} : vector<136x128xbf16>, vector<128x128xbf16>, vector<136x128xf32> -> vector<136x128xf32>
    %70 = arith.addf %64, %69 : vector<136x128xf32>
    %c2 = arith.constant 2 : index
    %c0_68 = arith.constant 0 : index
    %71 = vector.load %arg14[%c2, %c0_68] : memref<200x128xf32, #tpu.memory_space<vmem>>, vector<136x128xf32>
    %72 = arith.truncf %71 : vector<136x128xf32> to vector<136x128xbf16>
    %c2_69 = arith.constant 2 : index
    %c0_70 = arith.constant 0 : index
    %c0_71 = arith.constant 0 : index
    %73 = vector.load %arg4[%c2_69, %c0_70, %c0_71] : memref<25x128x128xbf16, #tpu.memory_space<vmem>>, vector<1x128x128xbf16>
    %74 = vector.shape_cast %73 : vector<1x128x128xbf16> to vector<128x128xbf16>
    %cst_72 = arith.constant dense<0.000000e+00> : vector<136x128xf32>
    %75 = tpu.matmul %72, %74, %cst_72 {dimension_numbers = #tpu.dot_dimension_numbers<[1], [0], [0], [1], [0, 0, 1, 1], [], []>} : vector<136x128xbf16>, vector<128x128xbf16>, vector<136x128xf32> -> vector<136x128xf32>
    %76 = arith.addf %70, %75 : vector<136x128xf32>
    %c3 = arith.constant 3 : index
    %c0_73 = arith.constant 0 : index
    %77 = vector.load %arg14[%c3, %c0_73] : memref<200x128xf32, #tpu.memory_space<vmem>>, vector<136x128xf32>
    %78 = arith.truncf %77 : vector<136x128xf32> to vector<136x128xbf16>
    %c3_74 = arith.constant 3 : index
    %c0_75 = arith.constant 0 : index
    %c0_76 = arith.constant 0 : index
    %79 = vector.load %arg4[%c3_74, %c0_75, %c0_76] : memref<25x128x128xbf16, #tpu.memory_space<vmem>>, vector<1x128x128xbf16>
    %80 = vector.shape_cast %79 : vector<1x128x128xbf16> to vector<128x128xbf16>
    %cst_77 = arith.constant dense<0.000000e+00> : vector<136x128xf32>
    %81 = tpu.matmul %78, %80, %cst_77 {dimension_numbers = #tpu.dot_dimension_numbers<[1], [0], [0], [1], [0, 0, 1, 1], [], []>} : vector<136x128xbf16>, vector<128x128xbf16>, vector<136x128xf32> -> vector<136x128xf32>
    %82 = arith.addf %76, %81 : vector<136x128xf32>
    %c4 = arith.constant 4 : index
    %c0_78 = arith.constant 0 : index
    %83 = vector.load %arg14[%c4, %c0_78] : memref<200x128xf32, #tpu.memory_space<vmem>>, vector<136x128xf32>
    %84 = arith.truncf %83 : vector<136x128xf32> to vector<136x128xbf16>
    %c4_79 = arith.constant 4 : index
    %c0_80 = arith.constant 0 : index
    %c0_81 = arith.constant 0 : index
    %85 = vector.load %arg4[%c4_79, %c0_80, %c0_81] : memref<25x128x128xbf16, #tpu.memory_space<vmem>>, vector<1x128x128xbf16>
    %86 = vector.shape_cast %85 : vector<1x128x128xbf16> to vector<128x128xbf16>
    %cst_82 = arith.constant dense<0.000000e+00> : vector<136x128xf32>
    %87 = tpu.matmul %84, %86, %cst_82 {dimension_numbers = #tpu.dot_dimension_numbers<[1], [0], [0], [1], [0, 0, 1, 1], [], []>} : vector<136x128xbf16>, vector<128x128xbf16>, vector<136x128xf32> -> vector<136x128xf32>
    %88 = arith.addf %82, %87 : vector<136x128xf32>
    %c14 = arith.constant 14 : index
    %c0_83 = arith.constant 0 : index
    %89 = vector.load %arg14[%c14, %c0_83] : memref<200x128xf32, #tpu.memory_space<vmem>>, vector<136x128xf32>
    %90 = arith.truncf %89 : vector<136x128xf32> to vector<136x128xbf16>
    %c5 = arith.constant 5 : index
    %c0_84 = arith.constant 0 : index
    %c0_85 = arith.constant 0 : index
    %91 = vector.load %arg4[%c5, %c0_84, %c0_85] : memref<25x128x128xbf16, #tpu.memory_space<vmem>>, vector<1x128x128xbf16>
    %92 = vector.shape_cast %91 : vector<1x128x128xbf16> to vector<128x128xbf16>
    %cst_86 = arith.constant dense<0.000000e+00> : vector<136x128xf32>
    %93 = tpu.matmul %90, %92, %cst_86 {dimension_numbers = #tpu.dot_dimension_numbers<[1], [0], [0], [1], [0, 0, 1, 1], [], []>} : vector<136x128xbf16>, vector<128x128xbf16>, vector<136x128xf32> -> vector<136x128xf32>
    %94 = arith.addf %88, %93 : vector<136x128xf32>
    %c15 = arith.constant 15 : index
    %c0_87 = arith.constant 0 : index
    %95 = vector.load %arg14[%c15, %c0_87] : memref<200x128xf32, #tpu.memory_space<vmem>>, vector<136x128xf32>
    %96 = arith.truncf %95 : vector<136x128xf32> to vector<136x128xbf16>
    %c6 = arith.constant 6 : index
    %c0_88 = arith.constant 0 : index
    %c0_89 = arith.constant 0 : index
    %97 = vector.load %arg4[%c6, %c0_88, %c0_89] : memref<25x128x128xbf16, #tpu.memory_space<vmem>>, vector<1x128x128xbf16>
    %98 = vector.shape_cast %97 : vector<1x128x128xbf16> to vector<128x128xbf16>
    %cst_90 = arith.constant dense<0.000000e+00> : vector<136x128xf32>
    %99 = tpu.matmul %96, %98, %cst_90 {dimension_numbers = #tpu.dot_dimension_numbers<[1], [0], [0], [1], [0, 0, 1, 1], [], []>} : vector<136x128xbf16>, vector<128x128xbf16>, vector<136x128xf32> -> vector<136x128xf32>
    %100 = arith.addf %94, %99 : vector<136x128xf32>
    %c16 = arith.constant 16 : index
    %c0_91 = arith.constant 0 : index
    %101 = vector.load %arg14[%c16, %c0_91] : memref<200x128xf32, #tpu.memory_space<vmem>>, vector<136x128xf32>
    %102 = arith.truncf %101 : vector<136x128xf32> to vector<136x128xbf16>
    %c7 = arith.constant 7 : index
    %c0_92 = arith.constant 0 : index
    %c0_93 = arith.constant 0 : index
    %103 = vector.load %arg4[%c7, %c0_92, %c0_93] : memref<25x128x128xbf16, #tpu.memory_space<vmem>>, vector<1x128x128xbf16>
    %104 = vector.shape_cast %103 : vector<1x128x128xbf16> to vector<128x128xbf16>
    %cst_94 = arith.constant dense<0.000000e+00> : vector<136x128xf32>
    %105 = tpu.matmul %102, %104, %cst_94 {dimension_numbers = #tpu.dot_dimension_numbers<[1], [0], [0], [1], [0, 0, 1, 1], [], []>} : vector<136x128xbf16>, vector<128x128xbf16>, vector<136x128xf32> -> vector<136x128xf32>
    %106 = arith.addf %100, %105 : vector<136x128xf32>
    %c17 = arith.constant 17 : index
    %c0_95 = arith.constant 0 : index
    %107 = vector.load %arg14[%c17, %c0_95] : memref<200x128xf32, #tpu.memory_space<vmem>>, vector<136x128xf32>
    %108 = arith.truncf %107 : vector<136x128xf32> to vector<136x128xbf16>
    %c8 = arith.constant 8 : index
    %c0_96 = arith.constant 0 : index
    %c0_97 = arith.constant 0 : index
    %109 = vector.load %arg4[%c8, %c0_96, %c0_97] : memref<25x128x128xbf16, #tpu.memory_space<vmem>>, vector<1x128x128xbf16>
    %110 = vector.shape_cast %109 : vector<1x128x128xbf16> to vector<128x128xbf16>
    %cst_98 = arith.constant dense<0.000000e+00> : vector<136x128xf32>
    %111 = tpu.matmul %108, %110, %cst_98 {dimension_numbers = #tpu.dot_dimension_numbers<[1], [0], [0], [1], [0, 0, 1, 1], [], []>} : vector<136x128xbf16>, vector<128x128xbf16>, vector<136x128xf32> -> vector<136x128xf32>
    %112 = arith.addf %106, %111 : vector<136x128xf32>
    %c18 = arith.constant 18 : index
    %c0_99 = arith.constant 0 : index
    %113 = vector.load %arg14[%c18, %c0_99] : memref<200x128xf32, #tpu.memory_space<vmem>>, vector<136x128xf32>
    %114 = arith.truncf %113 : vector<136x128xf32> to vector<136x128xbf16>
    %c9 = arith.constant 9 : index
    %c0_100 = arith.constant 0 : index
    %c0_101 = arith.constant 0 : index
    %115 = vector.load %arg4[%c9, %c0_100, %c0_101] : memref<25x128x128xbf16, #tpu.memory_space<vmem>>, vector<1x128x128xbf16>
    %116 = vector.shape_cast %115 : vector<1x128x128xbf16> to vector<128x128xbf16>
    %cst_102 = arith.constant dense<0.000000e+00> : vector<136x128xf32>
    %117 = tpu.matmul %114, %116, %cst_102 {dimension_numbers = #tpu.dot_dimension_numbers<[1], [0], [0], [1], [0, 0, 1, 1], [], []>} : vector<136x128xbf16>, vector<128x128xbf16>, vector<136x128xf32> -> vector<136x128xf32>
    %118 = arith.addf %112, %117 : vector<136x128xf32>
    %c28 = arith.constant 28 : index
    %c0_103 = arith.constant 0 : index
    %119 = vector.load %arg14[%c28, %c0_103] : memref<200x128xf32, #tpu.memory_space<vmem>>, vector<136x128xf32>
    %120 = arith.truncf %119 : vector<136x128xf32> to vector<136x128xbf16>
    %c10 = arith.constant 10 : index
    %c0_104 = arith.constant 0 : index
    %c0_105 = arith.constant 0 : index
    %121 = vector.load %arg4[%c10, %c0_104, %c0_105] : memref<25x128x128xbf16, #tpu.memory_space<vmem>>, vector<1x128x128xbf16>
    %122 = vector.shape_cast %121 : vector<1x128x128xbf16> to vector<128x128xbf16>
    %cst_106 = arith.constant dense<0.000000e+00> : vector<136x128xf32>
    %123 = tpu.matmul %120, %122, %cst_106 {dimension_numbers = #tpu.dot_dimension_numbers<[1], [0], [0], [1], [0, 0, 1, 1], [], []>} : vector<136x128xbf16>, vector<128x128xbf16>, vector<136x128xf32> -> vector<136x128xf32>
    %124 = arith.addf %118, %123 : vector<136x128xf32>
    %c29 = arith.constant 29 : index
    %c0_107 = arith.constant 0 : index
    %125 = vector.load %arg14[%c29, %c0_107] : memref<200x128xf32, #tpu.memory_space<vmem>>, vector<136x128xf32>
    %126 = arith.truncf %125 : vector<136x128xf32> to vector<136x128xbf16>
    %c11 = arith.constant 11 : index
    %c0_108 = arith.constant 0 : index
    %c0_109 = arith.constant 0 : index
    %127 = vector.load %arg4[%c11, %c0_108, %c0_109] : memref<25x128x128xbf16, #tpu.memory_space<vmem>>, vector<1x128x128xbf16>
    %128 = vector.shape_cast %127 : vector<1x128x128xbf16> to vector<128x128xbf16>
    %cst_110 = arith.constant dense<0.000000e+00> : vector<136x128xf32>
    %129 = tpu.matmul %126, %128, %cst_110 {dimension_numbers = #tpu.dot_dimension_numbers<[1], [0], [0], [1], [0, 0, 1, 1], [], []>} : vector<136x128xbf16>, vector<128x128xbf16>, vector<136x128xf32> -> vector<136x128xf32>
    %130 = arith.addf %124, %129 : vector<136x128xf32>
    %c30 = arith.constant 30 : index
    %c0_111 = arith.constant 0 : index
    %131 = vector.load %arg14[%c30, %c0_111] : memref<200x128xf32, #tpu.memory_space<vmem>>, vector<136x128xf32>
    %132 = arith.truncf %131 : vector<136x128xf32> to vector<136x128xbf16>
    %c12 = arith.constant 12 : index
    %c0_112 = arith.constant 0 : index
    %c0_113 = arith.constant 0 : index
    %133 = vector.load %arg4[%c12, %c0_112, %c0_113] : memref<25x128x128xbf16, #tpu.memory_space<vmem>>, vector<1x128x128xbf16>
    %134 = vector.shape_cast %133 : vector<1x128x128xbf16> to vector<128x128xbf16>
    %cst_114 = arith.constant dense<0.000000e+00> : vector<136x128xf32>
    %135 = tpu.matmul %132, %134, %cst_114 {dimension_numbers = #tpu.dot_dimension_numbers<[1], [0], [0], [1], [0, 0, 1, 1], [], []>} : vector<136x128xbf16>, vector<128x128xbf16>, vector<136x128xf32> -> vector<136x128xf32>
    %136 = arith.addf %130, %135 : vector<136x128xf32>
    %c31 = arith.constant 31 : index
    %c0_115 = arith.constant 0 : index
    %137 = vector.load %arg14[%c31, %c0_115] : memref<200x128xf32, #tpu.memory_space<vmem>>, vector<136x128xf32>
    %138 = arith.truncf %137 : vector<136x128xf32> to vector<136x128xbf16>
    %c13 = arith.constant 13 : index
    %c0_116 = arith.constant 0 : index
    %c0_117 = arith.constant 0 : index
    %139 = vector.load %arg4[%c13, %c0_116, %c0_117] : memref<25x128x128xbf16, #tpu.memory_space<vmem>>, vector<1x128x128xbf16>
    %140 = vector.shape_cast %139 : vector<1x128x128xbf16> to vector<128x128xbf16>
    %cst_118 = arith.constant dense<0.000000e+00> : vector<136x128xf32>
    %141 = tpu.matmul %138, %140, %cst_118 {dimension_numbers = #tpu.dot_dimension_numbers<[1], [0], [0], [1], [0, 0, 1, 1], [], []>} : vector<136x128xbf16>, vector<128x128xbf16>, vector<136x128xf32> -> vector<136x128xf32>
    %142 = arith.addf %136, %141 : vector<136x128xf32>
    %c32 = arith.constant 32 : index
    %c0_119 = arith.constant 0 : index
    %143 = vector.load %arg14[%c32, %c0_119] : memref<200x128xf32, #tpu.memory_space<vmem>>, vector<136x128xf32>
    %144 = arith.truncf %143 : vector<136x128xf32> to vector<136x128xbf16>
    %c14_120 = arith.constant 14 : index
    %c0_121 = arith.constant 0 : index
    %c0_122 = arith.constant 0 : index
    %145 = vector.load %arg4[%c14_120, %c0_121, %c0_122] : memref<25x128x128xbf16, #tpu.memory_space<vmem>>, vector<1x128x128xbf16>
    %146 = vector.shape_cast %145 : vector<1x128x128xbf16> to vector<128x128xbf16>
    %cst_123 = arith.constant dense<0.000000e+00> : vector<136x128xf32>
    %147 = tpu.matmul %144, %146, %cst_123 {dimension_numbers = #tpu.dot_dimension_numbers<[1], [0], [0], [1], [0, 0, 1, 1], [], []>} : vector<136x128xbf16>, vector<128x128xbf16>, vector<136x128xf32> -> vector<136x128xf32>
    %148 = arith.addf %142, %147 : vector<136x128xf32>
    %c42 = arith.constant 42 : index
    %c0_124 = arith.constant 0 : index
    %149 = vector.load %arg14[%c42, %c0_124] : memref<200x128xf32, #tpu.memory_space<vmem>>, vector<136x128xf32>
    %150 = arith.truncf %149 : vector<136x128xf32> to vector<136x128xbf16>
    %c15_125 = arith.constant 15 : index
    %c0_126 = arith.constant 0 : index
    %c0_127 = arith.constant 0 : index
    %151 = vector.load %arg4[%c15_125, %c0_126, %c0_127] : memref<25x128x128xbf16, #tpu.memory_space<vmem>>, vector<1x128x128xbf16>
    %152 = vector.shape_cast %151 : vector<1x128x128xbf16> to vector<128x128xbf16>
    %cst_128 = arith.constant dense<0.000000e+00> : vector<136x128xf32>
    %153 = tpu.matmul %150, %152, %cst_128 {dimension_numbers = #tpu.dot_dimension_numbers<[1], [0], [0], [1], [0, 0, 1, 1], [], []>} : vector<136x128xbf16>, vector<128x128xbf16>, vector<136x128xf32> -> vector<136x128xf32>
    %154 = arith.addf %148, %153 : vector<136x128xf32>
    %c43 = arith.constant 43 : index
    %c0_129 = arith.constant 0 : index
    %155 = vector.load %arg14[%c43, %c0_129] : memref<200x128xf32, #tpu.memory_space<vmem>>, vector<136x128xf32>
    %156 = arith.truncf %155 : vector<136x128xf32> to vector<136x128xbf16>
    %c16_130 = arith.constant 16 : index
    %c0_131 = arith.constant 0 : index
    %c0_132 = arith.constant 0 : index
    %157 = vector.load %arg4[%c16_130, %c0_131, %c0_132] : memref<25x128x128xbf16, #tpu.memory_space<vmem>>, vector<1x128x128xbf16>
    %158 = vector.shape_cast %157 : vector<1x128x128xbf16> to vector<128x128xbf16>
    %cst_133 = arith.constant dense<0.000000e+00> : vector<136x128xf32>
    %159 = tpu.matmul %156, %158, %cst_133 {dimension_numbers = #tpu.dot_dimension_numbers<[1], [0], [0], [1], [0, 0, 1, 1], [], []>} : vector<136x128xbf16>, vector<128x128xbf16>, vector<136x128xf32> -> vector<136x128xf32>
    %160 = arith.addf %154, %159 : vector<136x128xf32>
    %c44 = arith.constant 44 : index
    %c0_134 = arith.constant 0 : index
    %161 = vector.load %arg14[%c44, %c0_134] : memref<200x128xf32, #tpu.memory_space<vmem>>, vector<136x128xf32>
    %162 = arith.truncf %161 : vector<136x128xf32> to vector<136x128xbf16>
    %c17_135 = arith.constant 17 : index
    %c0_136 = arith.constant 0 : index
    %c0_137 = arith.constant 0 : index
    %163 = vector.load %arg4[%c17_135, %c0_136, %c0_137] : memref<25x128x128xbf16, #tpu.memory_space<vmem>>, vector<1x128x128xbf16>
    %164 = vector.shape_cast %163 : vector<1x128x128xbf16> to vector<128x128xbf16>
    %cst_138 = arith.constant dense<0.000000e+00> : vector<136x128xf32>
    %165 = tpu.matmul %162, %164, %cst_138 {dimension_numbers = #tpu.dot_dimension_numbers<[1], [0], [0], [1], [0, 0, 1, 1], [], []>} : vector<136x128xbf16>, vector<128x128xbf16>, vector<136x128xf32> -> vector<136x128xf32>
    %166 = arith.addf %160, %165 : vector<136x128xf32>
    %c45 = arith.constant 45 : index
    %c0_139 = arith.constant 0 : index
    %167 = vector.load %arg14[%c45, %c0_139] : memref<200x128xf32, #tpu.memory_space<vmem>>, vector<136x128xf32>
    %168 = arith.truncf %167 : vector<136x128xf32> to vector<136x128xbf16>
    %c18_140 = arith.constant 18 : index
    %c0_141 = arith.constant 0 : index
    %c0_142 = arith.constant 0 : index
    %169 = vector.load %arg4[%c18_140, %c0_141, %c0_142] : memref<25x128x128xbf16, #tpu.memory_space<vmem>>, vector<1x128x128xbf16>
    %170 = vector.shape_cast %169 : vector<1x128x128xbf16> to vector<128x128xbf16>
    %cst_143 = arith.constant dense<0.000000e+00> : vector<136x128xf32>
    %171 = tpu.matmul %168, %170, %cst_143 {dimension_numbers = #tpu.dot_dimension_numbers<[1], [0], [0], [1], [0, 0, 1, 1], [], []>} : vector<136x128xbf16>, vector<128x128xbf16>, vector<136x128xf32> -> vector<136x128xf32>
    %172 = arith.addf %166, %171 : vector<136x128xf32>
    %c46 = arith.constant 46 : index
    %c0_144 = arith.constant 0 : index
    %173 = vector.load %arg14[%c46, %c0_144] : memref<200x128xf32, #tpu.memory_space<vmem>>, vector<136x128xf32>
    %174 = arith.truncf %173 : vector<136x128xf32> to vector<136x128xbf16>
    %c19 = arith.constant 19 : index
    %c0_145 = arith.constant 0 : index
    %c0_146 = arith.constant 0 : index
    %175 = vector.load %arg4[%c19, %c0_145, %c0_146] : memref<25x128x128xbf16, #tpu.memory_space<vmem>>, vector<1x128x128xbf16>
    %176 = vector.shape_cast %175 : vector<1x128x128xbf16> to vector<128x128xbf16>
    %cst_147 = arith.constant dense<0.000000e+00> : vector<136x128xf32>
    %177 = tpu.matmul %174, %176, %cst_147 {dimension_numbers = #tpu.dot_dimension_numbers<[1], [0], [0], [1], [0, 0, 1, 1], [], []>} : vector<136x128xbf16>, vector<128x128xbf16>, vector<136x128xf32> -> vector<136x128xf32>
    %178 = arith.addf %172, %177 : vector<136x128xf32>
    %c56 = arith.constant 56 : index
    %c0_148 = arith.constant 0 : index
    %179 = vector.load %arg14[%c56, %c0_148] : memref<200x128xf32, #tpu.memory_space<vmem>>, vector<136x128xf32>
    %180 = arith.truncf %179 : vector<136x128xf32> to vector<136x128xbf16>
    %c20 = arith.constant 20 : index
    %c0_149 = arith.constant 0 : index
    %c0_150 = arith.constant 0 : index
    %181 = vector.load %arg4[%c20, %c0_149, %c0_150] : memref<25x128x128xbf16, #tpu.memory_space<vmem>>, vector<1x128x128xbf16>
    %182 = vector.shape_cast %181 : vector<1x128x128xbf16> to vector<128x128xbf16>
    %cst_151 = arith.constant dense<0.000000e+00> : vector<136x128xf32>
    %183 = tpu.matmul %180, %182, %cst_151 {dimension_numbers = #tpu.dot_dimension_numbers<[1], [0], [0], [1], [0, 0, 1, 1], [], []>} : vector<136x128xbf16>, vector<128x128xbf16>, vector<136x128xf32> -> vector<136x128xf32>
    %184 = arith.addf %178, %183 : vector<136x128xf32>
    %c57 = arith.constant 57 : index
    %c0_152 = arith.constant 0 : index
    %185 = vector.load %arg14[%c57, %c0_152] : memref<200x128xf32, #tpu.memory_space<vmem>>, vector<136x128xf32>
    %186 = arith.truncf %185 : vector<136x128xf32> to vector<136x128xbf16>
    %c21 = arith.constant 21 : index
    %c0_153 = arith.constant 0 : index
    %c0_154 = arith.constant 0 : index
    %187 = vector.load %arg4[%c21, %c0_153, %c0_154] : memref<25x128x128xbf16, #tpu.memory_space<vmem>>, vector<1x128x128xbf16>
    %188 = vector.shape_cast %187 : vector<1x128x128xbf16> to vector<128x128xbf16>
    %cst_155 = arith.constant dense<0.000000e+00> : vector<136x128xf32>
    %189 = tpu.matmul %186, %188, %cst_155 {dimension_numbers = #tpu.dot_dimension_numbers<[1], [0], [0], [1], [0, 0, 1, 1], [], []>} : vector<136x128xbf16>, vector<128x128xbf16>, vector<136x128xf32> -> vector<136x128xf32>
    %190 = arith.addf %184, %189 : vector<136x128xf32>
    %c58 = arith.constant 58 : index
    %c0_156 = arith.constant 0 : index
    %191 = vector.load %arg14[%c58, %c0_156] : memref<200x128xf32, #tpu.memory_space<vmem>>, vector<136x128xf32>
    %192 = arith.truncf %191 : vector<136x128xf32> to vector<136x128xbf16>
    %c22 = arith.constant 22 : index
    %c0_157 = arith.constant 0 : index
    %c0_158 = arith.constant 0 : index
    %193 = vector.load %arg4[%c22, %c0_157, %c0_158] : memref<25x128x128xbf16, #tpu.memory_space<vmem>>, vector<1x128x128xbf16>
    %194 = vector.shape_cast %193 : vector<1x128x128xbf16> to vector<128x128xbf16>
    %cst_159 = arith.constant dense<0.000000e+00> : vector<136x128xf32>
    %195 = tpu.matmul %192, %194, %cst_159 {dimension_numbers = #tpu.dot_dimension_numbers<[1], [0], [0], [1], [0, 0, 1, 1], [], []>} : vector<136x128xbf16>, vector<128x128xbf16>, vector<136x128xf32> -> vector<136x128xf32>
    %196 = arith.addf %190, %195 : vector<136x128xf32>
    %c59 = arith.constant 59 : index
    %c0_160 = arith.constant 0 : index
    %197 = vector.load %arg14[%c59, %c0_160] : memref<200x128xf32, #tpu.memory_space<vmem>>, vector<136x128xf32>
    %198 = arith.truncf %197 : vector<136x128xf32> to vector<136x128xbf16>
    %c23 = arith.constant 23 : index
    %c0_161 = arith.constant 0 : index
    %c0_162 = arith.constant 0 : index
    %199 = vector.load %arg4[%c23, %c0_161, %c0_162] : memref<25x128x128xbf16, #tpu.memory_space<vmem>>, vector<1x128x128xbf16>
    %200 = vector.shape_cast %199 : vector<1x128x128xbf16> to vector<128x128xbf16>
    %cst_163 = arith.constant dense<0.000000e+00> : vector<136x128xf32>
    %201 = tpu.matmul %198, %200, %cst_163 {dimension_numbers = #tpu.dot_dimension_numbers<[1], [0], [0], [1], [0, 0, 1, 1], [], []>} : vector<136x128xbf16>, vector<128x128xbf16>, vector<136x128xf32> -> vector<136x128xf32>
    %202 = arith.addf %196, %201 : vector<136x128xf32>
    %c60 = arith.constant 60 : index
    %c0_164 = arith.constant 0 : index
    %203 = vector.load %arg14[%c60, %c0_164] : memref<200x128xf32, #tpu.memory_space<vmem>>, vector<136x128xf32>
    %204 = arith.truncf %203 : vector<136x128xf32> to vector<136x128xbf16>
    %c24 = arith.constant 24 : index
    %c0_165 = arith.constant 0 : index
    %c0_166 = arith.constant 0 : index
    %205 = vector.load %arg4[%c24, %c0_165, %c0_166] : memref<25x128x128xbf16, #tpu.memory_space<vmem>>, vector<1x128x128xbf16>
    %206 = vector.shape_cast %205 : vector<1x128x128xbf16> to vector<128x128xbf16>
    %cst_167 = arith.constant dense<0.000000e+00> : vector<136x128xf32>
    %207 = tpu.matmul %204, %206, %cst_167 {dimension_numbers = #tpu.dot_dimension_numbers<[1], [0], [0], [1], [0, 0, 1, 1], [], []>} : vector<136x128xbf16>, vector<128x128xbf16>, vector<136x128xf32> -> vector<136x128xf32>
    %208 = arith.addf %202, %207 : vector<136x128xf32>
    %c0_168 = arith.constant 0 : index
    %c0_169 = arith.constant 0 : index
    %209 = vector.load %arg5[%c0_168, %c0_169] : memref<1x128xf32, #tpu.memory_space<vmem>>, vector<1x128xf32>
    %210 = vector.broadcast %209 : vector<1x128xf32> to vector<136x128xf32>
    %211 = arith.addf %208, %210 : vector<136x128xf32>
    %cst_170 = arith.constant 0.000000e+00 : f32
    %212 = vector.broadcast %cst_170 : f32 to vector<136x128xf32>
    %213 = arith.maximumf %211, %212 : vector<136x128xf32>
    %c0_171 = arith.constant 0 : index
    %c0_172 = arith.constant 0 : index
    %214 = vector.load %arg15[%c0_171, %c0_172] : memref<136x128xf32, #tpu.memory_space<vmem>>, vector<136x128xf32>
    tpu.vector_store %arg15[%c0_171, %c0_172], %213 {strides = array<i32>} : memref<136x128xf32, #tpu.memory_space<vmem>>, vector<136x128xf32>,
    %c0_173 = arith.constant 0 : index
    %c0_174 = arith.constant 0 : index
    %215 = vector.load %arg15[%c0_173, %c0_174] : memref<136x128xf32, #tpu.memory_space<vmem>>, vector<1x128xf32>
    %c1_175 = arith.constant 1 : index
    %c0_176 = arith.constant 0 : index
    %216 = vector.load %arg15[%c1_175, %c0_176] : memref<136x128xf32, #tpu.memory_space<vmem>>, vector<1x128xf32>
    %217 = arith.maximumf %215, %216 : vector<1x128xf32>
    %c14_177 = arith.constant 14 : index
    %c0_178 = arith.constant 0 : index
    %218 = vector.load %arg15[%c14_177, %c0_178] : memref<136x128xf32, #tpu.memory_space<vmem>>, vector<1x128xf32>
    %c15_179 = arith.constant 15 : index
    %c0_180 = arith.constant 0 : index
    %219 = vector.load %arg15[%c15_179, %c0_180] : memref<136x128xf32, #tpu.memory_space<vmem>>, vector<1x128xf32>
    %220 = arith.maximumf %218, %219 : vector<1x128xf32>
    %221 = arith.maximumf %217, %220 : vector<1x128xf32>
    %c0_181 = arith.constant 0 : index
    %c0_182 = arith.constant 0 : index
    %222 = vector.load %arg16[%c0_181, %c0_182] : memref<8x3200xf32, #tpu.memory_space<vmem>>, vector<1x128xf32>
    tpu.vector_store %arg16[%c0_181, %c0_182], %221 {strides = array<i32>} : memref<8x3200xf32, #tpu.memory_space<vmem>>, vector<1x128xf32>,
    %c2_183 = arith.constant 2 : index
    %c0_184 = arith.constant 0 : index
    %223 = vector.load %arg15[%c2_183, %c0_184] : memref<136x128xf32, #tpu.memory_space<vmem>>, vector<1x128xf32>
    %c3_185 = arith.constant 3 : index
    %c0_186 = arith.constant 0 : index
    %224 = vector.load %arg15[%c3_185, %c0_186] : memref<136x128xf32, #tpu.memory_space<vmem>>, vector<1x128xf32>
    %225 = arith.maximumf %223, %224 : vector<1x128xf32>
    %c16_187 = arith.constant 16 : index
    %c0_188 = arith.constant 0 : index
    %226 = vector.load %arg15[%c16_187, %c0_188] : memref<136x128xf32, #tpu.memory_space<vmem>>, vector<1x128xf32>
    %c17_189 = arith.constant 17 : index
    %c0_190 = arith.constant 0 : index
    %227 = vector.load %arg15[%c17_189, %c0_190] : memref<136x128xf32, #tpu.memory_space<vmem>>, vector<1x128xf32>
    %228 = arith.maximumf %226, %227 : vector<1x128xf32>
    %229 = arith.maximumf %225, %228 : vector<1x128xf32>
    %c0_191 = arith.constant 0 : index
    %c128 = arith.constant 128 : index
    %230 = vector.load %arg16[%c0_191, %c128] : memref<8x3200xf32, #tpu.memory_space<vmem>>, vector<1x128xf32>
    tpu.vector_store %arg16[%c0_191, %c128], %229 {strides = array<i32>} : memref<8x3200xf32, #tpu.memory_space<vmem>>, vector<1x128xf32>,
    %c4_192 = arith.constant 4 : index
    %c0_193 = arith.constant 0 : index
    %231 = vector.load %arg15[%c4_192, %c0_193] : memref<136x128xf32, #tpu.memory_space<vmem>>, vector<1x128xf32>
    %c5_194 = arith.constant 5 : index
    %c0_195 = arith.constant 0 : index
    %232 = vector.load %arg15[%c5_194, %c0_195] : memref<136x128xf32, #tpu.memory_space<vmem>>, vector<1x128xf32>
    %233 = arith.maximumf %231, %232 : vector<1x128xf32>
    %c18_196 = arith.constant 18 : index
    %c0_197 = arith.constant 0 : index
    %234 = vector.load %arg15[%c18_196, %c0_197] : memref<136x128xf32, #tpu.memory_space<vmem>>, vector<1x128xf32>
    %c19_198 = arith.constant 19 : index
    %c0_199 = arith.constant 0 : index
    %235 = vector.load %arg15[%c19_198, %c0_199] : memref<136x128xf32, #tpu.memory_space<vmem>>, vector<1x128xf32>
    %236 = arith.maximumf %234, %235 : vector<1x128xf32>
    %237 = arith.maximumf %233, %236 : vector<1x128xf32>
    %c0_200 = arith.constant 0 : index
    %c256 = arith.constant 256 : index
    %238 = vector.load %arg16[%c0_200, %c256] : memref<8x3200xf32, #tpu.memory_space<vmem>>, vector<1x128xf32>
    tpu.vector_store %arg16[%c0_200, %c256], %237 {strides = array<i32>} : memref<8x3200xf32, #tpu.memory_space<vmem>>, vector<1x128xf32>,
    %c6_201 = arith.constant 6 : index
    %c0_202 = arith.constant 0 : index
    %239 = vector.load %arg15[%c6_201, %c0_202] : memref<136x128xf32, #tpu.memory_space<vmem>>, vector<1x128xf32>
    %c7_203 = arith.constant 7 : index
    %c0_204 = arith.constant 0 : index
    %240 = vector.load %arg15[%c7_203, %c0_204] : memref<136x128xf32, #tpu.memory_space<vmem>>, vector<1x128xf32>
    %241 = arith.maximumf %239, %240 : vector<1x128xf32>
    %c20_205 = arith.constant 20 : index
    %c0_206 = arith.constant 0 : index
    %242 = vector.load %arg15[%c20_205, %c0_206] : memref<136x128xf32, #tpu.memory_space<vmem>>, vector<1x128xf32>
    %c21_207 = arith.constant 21 : index
    %c0_208 = arith.constant 0 : index
    %243 = vector.load %arg15[%c21_207, %c0_208] : memref<136x128xf32, #tpu.memory_space<vmem>>, vector<1x128xf32>
    %244 = arith.maximumf %242, %243 : vector<1x128xf32>
    %245 = arith.maximumf %241, %244 : vector<1x128xf32>
    %c0_209 = arith.constant 0 : index
    %c384 = arith.constant 384 : index
    %246 = vector.load %arg16[%c0_209, %c384] : memref<8x3200xf32, #tpu.memory_space<vmem>>, vector<1x128xf32>
    tpu.vector_store %arg16[%c0_209, %c384], %245 {strides = array<i32>} : memref<8x3200xf32, #tpu.memory_space<vmem>>, vector<1x128xf32>,
    %c8_210 = arith.constant 8 : index
    %c0_211 = arith.constant 0 : index
    %247 = vector.load %arg15[%c8_210, %c0_211] : memref<136x128xf32, #tpu.memory_space<vmem>>, vector<1x128xf32>
    %c9_212 = arith.constant 9 : index
    %c0_213 = arith.constant 0 : index
    %248 = vector.load %arg15[%c9_212, %c0_213] : memref<136x128xf32, #tpu.memory_space<vmem>>, vector<1x128xf32>
    %249 = arith.maximumf %247, %248 : vector<1x128xf32>
    %c22_214 = arith.constant 22 : index
    %c0_215 = arith.constant 0 : index
    %250 = vector.load %arg15[%c22_214, %c0_215] : memref<136x128xf32, #tpu.memory_space<vmem>>, vector<1x128xf32>
    %c23_216 = arith.constant 23 : index
    %c0_217 = arith.constant 0 : index
    %251 = vector.load %arg15[%c23_216, %c0_217] : memref<136x128xf32, #tpu.memory_space<vmem>>, vector<1x128xf32>
    %252 = arith.maximumf %250, %251 : vector<1x128xf32>
    %253 = arith.maximumf %249, %252 : vector<1x128xf32>
    %c0_218 = arith.constant 0 : index
    %c512 = arith.constant 512 : index
    %254 = vector.load %arg16[%c0_218, %c512] : memref<8x3200xf32, #tpu.memory_space<vmem>>, vector<1x128xf32>
    tpu.vector_store %arg16[%c0_218, %c512], %253 {strides = array<i32>} : memref<8x3200xf32, #tpu.memory_space<vmem>>, vector<1x128xf32>,
    %c28_219 = arith.constant 28 : index
    %c0_220 = arith.constant 0 : index
    %255 = vector.load %arg15[%c28_219, %c0_220] : memref<136x128xf32, #tpu.memory_space<vmem>>, vector<1x128xf32>
    %c29_221 = arith.constant 29 : index
    %c0_222 = arith.constant 0 : index
    %256 = vector.load %arg15[%c29_221, %c0_222] : memref<136x128xf32, #tpu.memory_space<vmem>>, vector<1x128xf32>
    %257 = arith.maximumf %255, %256 : vector<1x128xf32>
    %c42_223 = arith.constant 42 : index
    %c0_224 = arith.constant 0 : index
    %258 = vector.load %arg15[%c42_223, %c0_224] : memref<136x128xf32, #tpu.memory_space<vmem>>, vector<1x128xf32>
    %c43_225 = arith.constant 43 : index
    %c0_226 = arith.constant 0 : index
    %259 = vector.load %arg15[%c43_225, %c0_226] : memref<136x128xf32, #tpu.memory_space<vmem>>, vector<1x128xf32>
    %260 = arith.maximumf %258, %259 : vector<1x128xf32>
    %261 = arith.maximumf %257, %260 : vector<1x128xf32>
    %c0_227 = arith.constant 0 : index
    %c640_228 = arith.constant 640 : index
    %262 = vector.load %arg16[%c0_227, %c640_228] : memref<8x3200xf32, #tpu.memory_space<vmem>>, vector<1x128xf32>
    tpu.vector_store %arg16[%c0_227, %c640_228], %261 {strides = array<i32>} : memref<8x3200xf32, #tpu.memory_space<vmem>>, vector<1x128xf32>,
    %c30_229 = arith.constant 30 : index
    %c0_230 = arith.constant 0 : index
    %263 = vector.load %arg15[%c30_229, %c0_230] : memref<136x128xf32, #tpu.memory_space<vmem>>, vector<1x128xf32>
    %c31_231 = arith.constant 31 : index
    %c0_232 = arith.constant 0 : index
    %264 = vector.load %arg15[%c31_231, %c0_232] : memref<136x128xf32, #tpu.memory_space<vmem>>, vector<1x128xf32>
    %265 = arith.maximumf %263, %264 : vector<1x128xf32>
    %c44_233 = arith.constant 44 : index
    %c0_234 = arith.constant 0 : index
    %266 = vector.load %arg15[%c44_233, %c0_234] : memref<136x128xf32, #tpu.memory_space<vmem>>, vector<1x128xf32>
    %c45_235 = arith.constant 45 : index
    %c0_236 = arith.constant 0 : index
    %267 = vector.load %arg15[%c45_235, %c0_236] : memref<136x128xf32, #tpu.memory_space<vmem>>, vector<1x128xf32>
    %268 = arith.maximumf %266, %267 : vector<1x128xf32>
    %269 = arith.maximumf %265, %268 : vector<1x128xf32>
    %c0_237 = arith.constant 0 : index
    %c768 = arith.constant 768 : index
    %270 = vector.load %arg16[%c0_237, %c768] : memref<8x3200xf32, #tpu.memory_space<vmem>>, vector<1x128xf32>
    tpu.vector_store %arg16[%c0_237, %c768], %269 {strides = array<i32>} : memref<8x3200xf32, #tpu.memory_space<vmem>>, vector<1x128xf32>,
    %c32_238 = arith.constant 32 : index
    %c0_239 = arith.constant 0 : index
    %271 = vector.load %arg15[%c32_238, %c0_239] : memref<136x128xf32, #tpu.memory_space<vmem>>, vector<1x128xf32>
    %c33 = arith.constant 33 : index
    %c0_240 = arith.constant 0 : index
    %272 = vector.load %arg15[%c33, %c0_240] : memref<136x128xf32, #tpu.memory_space<vmem>>, vector<1x128xf32>
    %273 = arith.maximumf %271, %272 : vector<1x128xf32>
    %c46_241 = arith.constant 46 : index
    %c0_242 = arith.constant 0 : index
    %274 = vector.load %arg15[%c46_241, %c0_242] : memref<136x128xf32, #tpu.memory_space<vmem>>, vector<1x128xf32>
    %c47 = arith.constant 47 : index
    %c0_243 = arith.constant 0 : index
    %275 = vector.load %arg15[%c47, %c0_243] : memref<136x128xf32, #tpu.memory_space<vmem>>, vector<1x128xf32>
    %276 = arith.maximumf %274, %275 : vector<1x128xf32>
    %277 = arith.maximumf %273, %276 : vector<1x128xf32>
    %c0_244 = arith.constant 0 : index
    %c896 = arith.constant 896 : index
    %278 = vector.load %arg16[%c0_244, %c896] : memref<8x3200xf32, #tpu.memory_space<vmem>>, vector<1x128xf32>
    tpu.vector_store %arg16[%c0_244, %c896], %277 {strides = array<i32>} : memref<8x3200xf32, #tpu.memory_space<vmem>>, vector<1x128xf32>,
    %c34 = arith.constant 34 : index
    %c0_245 = arith.constant 0 : index
    %279 = vector.load %arg15[%c34, %c0_245] : memref<136x128xf32, #tpu.memory_space<vmem>>, vector<1x128xf32>
    %c35 = arith.constant 35 : index
    %c0_246 = arith.constant 0 : index
    %280 = vector.load %arg15[%c35, %c0_246] : memref<136x128xf32, #tpu.memory_space<vmem>>, vector<1x128xf32>
    %281 = arith.maximumf %279, %280 : vector<1x128xf32>
    %c48 = arith.constant 48 : index
    %c0_247 = arith.constant 0 : index
    %282 = vector.load %arg15[%c48, %c0_247] : memref<136x128xf32, #tpu.memory_space<vmem>>, vector<1x128xf32>
    %c49 = arith.constant 49 : index
    %c0_248 = arith.constant 0 : index
    %283 = vector.load %arg15[%c49, %c0_248] : memref<136x128xf32, #tpu.memory_space<vmem>>, vector<1x128xf32>
    %284 = arith.maximumf %282, %283 : vector<1x128xf32>
    %285 = arith.maximumf %281, %284 : vector<1x128xf32>
    %c0_249 = arith.constant 0 : index
    %c1024 = arith.constant 1024 : index
    %286 = vector.load %arg16[%c0_249, %c1024] : memref<8x3200xf32, #tpu.memory_space<vmem>>, vector<1x128xf32>
    tpu.vector_store %arg16[%c0_249, %c1024], %285 {strides = array<i32>} : memref<8x3200xf32, #tpu.memory_space<vmem>>, vector<1x128xf32>,
    %c36 = arith.constant 36 : index
    %c0_250 = arith.constant 0 : index
    %287 = vector.load %arg15[%c36, %c0_250] : memref<136x128xf32, #tpu.memory_space<vmem>>, vector<1x128xf32>
    %c37 = arith.constant 37 : index
    %c0_251 = arith.constant 0 : index
    %288 = vector.load %arg15[%c37, %c0_251] : memref<136x128xf32, #tpu.memory_space<vmem>>, vector<1x128xf32>
    %289 = arith.maximumf %287, %288 : vector<1x128xf32>
    %c50 = arith.constant 50 : index
    %c0_252 = arith.constant 0 : index
    %290 = vector.load %arg15[%c50, %c0_252] : memref<136x128xf32, #tpu.memory_space<vmem>>, vector<1x128xf32>
    %c51 = arith.constant 51 : index
    %c0_253 = arith.constant 0 : index
    %291 = vector.load %arg15[%c51, %c0_253] : memref<136x128xf32, #tpu.memory_space<vmem>>, vector<1x128xf32>
    %292 = arith.maximumf %290, %291 : vector<1x128xf32>
    %293 = arith.maximumf %289, %292 : vector<1x128xf32>
    %c0_254 = arith.constant 0 : index
    %c1152 = arith.constant 1152 : index
    %294 = vector.load %arg16[%c0_254, %c1152] : memref<8x3200xf32, #tpu.memory_space<vmem>>, vector<1x128xf32>
    tpu.vector_store %arg16[%c0_254, %c1152], %293 {strides = array<i32>} : memref<8x3200xf32, #tpu.memory_space<vmem>>, vector<1x128xf32>,
    %c56_255 = arith.constant 56 : index
    %c0_256 = arith.constant 0 : index
    %295 = vector.load %arg15[%c56_255, %c0_256] : memref<136x128xf32, #tpu.memory_space<vmem>>, vector<1x128xf32>
    %c57_257 = arith.constant 57 : index
    %c0_258 = arith.constant 0 : index
    %296 = vector.load %arg15[%c57_257, %c0_258] : memref<136x128xf32, #tpu.memory_space<vmem>>, vector<1x128xf32>
    %297 = arith.maximumf %295, %296 : vector<1x128xf32>
    %c70 = arith.constant 70 : index
    %c0_259 = arith.constant 0 : index
    %298 = vector.load %arg15[%c70, %c0_259] : memref<136x128xf32, #tpu.memory_space<vmem>>, vector<1x128xf32>
    %c71 = arith.constant 71 : index
    %c0_260 = arith.constant 0 : index
    %299 = vector.load %arg15[%c71, %c0_260] : memref<136x128xf32, #tpu.memory_space<vmem>>, vector<1x128xf32>
    %300 = arith.maximumf %298, %299 : vector<1x128xf32>
    %301 = arith.maximumf %297, %300 : vector<1x128xf32>
    %c0_261 = arith.constant 0 : index
    %c1280 = arith.constant 1280 : index
    %302 = vector.load %arg16[%c0_261, %c1280] : memref<8x3200xf32, #tpu.memory_space<vmem>>, vector<1x128xf32>
    tpu.vector_store %arg16[%c0_261, %c1280], %301 {strides = array<i32>} : memref<8x3200xf32, #tpu.memory_space<vmem>>, vector<1x128xf32>,
    %c58_262 = arith.constant 58 : index
    %c0_263 = arith.constant 0 : index
    %303 = vector.load %arg15[%c58_262, %c0_263] : memref<136x128xf32, #tpu.memory_space<vmem>>, vector<1x128xf32>
    %c59_264 = arith.constant 59 : index
    %c0_265 = arith.constant 0 : index
    %304 = vector.load %arg15[%c59_264, %c0_265] : memref<136x128xf32, #tpu.memory_space<vmem>>, vector<1x128xf32>
    %305 = arith.maximumf %303, %304 : vector<1x128xf32>
    %c72 = arith.constant 72 : index
    %c0_266 = arith.constant 0 : index
    %306 = vector.load %arg15[%c72, %c0_266] : memref<136x128xf32, #tpu.memory_space<vmem>>, vector<1x128xf32>
    %c73 = arith.constant 73 : index
    %c0_267 = arith.constant 0 : index
    %307 = vector.load %arg15[%c73, %c0_267] : memref<136x128xf32, #tpu.memory_space<vmem>>, vector<1x128xf32>
    %308 = arith.maximumf %306, %307 : vector<1x128xf32>
    %309 = arith.maximumf %305, %308 : vector<1x128xf32>
    %c0_268 = arith.constant 0 : index
    %c1408 = arith.constant 1408 : index
    %310 = vector.load %arg16[%c0_268, %c1408] : memref<8x3200xf32, #tpu.memory_space<vmem>>, vector<1x128xf32>
    tpu.vector_store %arg16[%c0_268, %c1408], %309 {strides = array<i32>} : memref<8x3200xf32, #tpu.memory_space<vmem>>, vector<1x128xf32>,
    %c60_269 = arith.constant 60 : index
    %c0_270 = arith.constant 0 : index
    %311 = vector.load %arg15[%c60_269, %c0_270] : memref<136x128xf32, #tpu.memory_space<vmem>>, vector<1x128xf32>
    %c61 = arith.constant 61 : index
    %c0_271 = arith.constant 0 : index
    %312 = vector.load %arg15[%c61, %c0_271] : memref<136x128xf32, #tpu.memory_space<vmem>>, vector<1x128xf32>
    %313 = arith.maximumf %311, %312 : vector<1x128xf32>
    %c74 = arith.constant 74 : index
    %c0_272 = arith.constant 0 : index
    %314 = vector.load %arg15[%c74, %c0_272] : memref<136x128xf32, #tpu.memory_space<vmem>>, vector<1x128xf32>
    %c75 = arith.constant 75 : index
    %c0_273 = arith.constant 0 : index
    %315 = vector.load %arg15[%c75, %c0_273] : memref<136x128xf32, #tpu.memory_space<vmem>>, vector<1x128xf32>
    %316 = arith.maximumf %314, %315 : vector<1x128xf32>
    %317 = arith.maximumf %313, %316 : vector<1x128xf32>
    %c0_274 = arith.constant 0 : index
    %c1536 = arith.constant 1536 : index
    %318 = vector.load %arg16[%c0_274, %c1536] : memref<8x3200xf32, #tpu.memory_space<vmem>>, vector<1x128xf32>
    tpu.vector_store %arg16[%c0_274, %c1536], %317 {strides = array<i32>} : memref<8x3200xf32, #tpu.memory_space<vmem>>, vector<1x128xf32>,
    %c62 = arith.constant 62 : index
    %c0_275 = arith.constant 0 : index
    %319 = vector.load %arg15[%c62, %c0_275] : memref<136x128xf32, #tpu.memory_space<vmem>>, vector<1x128xf32>
    %c63 = arith.constant 63 : index
    %c0_276 = arith.constant 0 : index
    %320 = vector.load %arg15[%c63, %c0_276] : memref<136x128xf32, #tpu.memory_space<vmem>>, vector<1x128xf32>
    %321 = arith.maximumf %319, %320 : vector<1x128xf32>
    %c76 = arith.constant 76 : index
    %c0_277 = arith.constant 0 : index
    %322 = vector.load %arg15[%c76, %c0_277] : memref<136x128xf32, #tpu.memory_space<vmem>>, vector<1x128xf32>
    %c77 = arith.constant 77 : index
    %c0_278 = arith.constant 0 : index
    %323 = vector.load %arg15[%c77, %c0_278] : memref<136x128xf32, #tpu.memory_space<vmem>>, vector<1x128xf32>
    %324 = arith.maximumf %322, %323 : vector<1x128xf32>
    %325 = arith.maximumf %321, %324 : vector<1x128xf32>
    %c0_279 = arith.constant 0 : index
    %c1664 = arith.constant 1664 : index
    %326 = vector.load %arg16[%c0_279, %c1664] : memref<8x3200xf32, #tpu.memory_space<vmem>>, vector<1x128xf32>
    tpu.vector_store %arg16[%c0_279, %c1664], %325 {strides = array<i32>} : memref<8x3200xf32, #tpu.memory_space<vmem>>, vector<1x128xf32>,
    %c64 = arith.constant 64 : index
    %c0_280 = arith.constant 0 : index
    %327 = vector.load %arg15[%c64, %c0_280] : memref<136x128xf32, #tpu.memory_space<vmem>>, vector<1x128xf32>
    %c65 = arith.constant 65 : index
    %c0_281 = arith.constant 0 : index
    %328 = vector.load %arg15[%c65, %c0_281] : memref<136x128xf32, #tpu.memory_space<vmem>>, vector<1x128xf32>
    %329 = arith.maximumf %327, %328 : vector<1x128xf32>
    %c78 = arith.constant 78 : index
    %c0_282 = arith.constant 0 : index
    %330 = vector.load %arg15[%c78, %c0_282] : memref<136x128xf32, #tpu.memory_space<vmem>>, vector<1x128xf32>
    %c79 = arith.constant 79 : index
    %c0_283 = arith.constant 0 : index
    %331 = vector.load %arg15[%c79, %c0_283] : memref<136x128xf32, #tpu.memory_space<vmem>>, vector<1x128xf32>
    %332 = arith.maximumf %330, %331 : vector<1x128xf32>
    %333 = arith.maximumf %329, %332 : vector<1x128xf32>
    %c0_284 = arith.constant 0 : index
    %c1792 = arith.constant 1792 : index
    %334 = vector.load %arg16[%c0_284, %c1792] : memref<8x3200xf32, #tpu.memory_space<vmem>>, vector<1x128xf32>
    tpu.vector_store %arg16[%c0_284, %c1792], %333 {strides = array<i32>} : memref<8x3200xf32, #tpu.memory_space<vmem>>, vector<1x128xf32>,
    %c84 = arith.constant 84 : index
    %c0_285 = arith.constant 0 : index
    %335 = vector.load %arg15[%c84, %c0_285] : memref<136x128xf32, #tpu.memory_space<vmem>>, vector<1x128xf32>
    %c85 = arith.constant 85 : index
    %c0_286 = arith.constant 0 : index
    %336 = vector.load %arg15[%c85, %c0_286] : memref<136x128xf32, #tpu.memory_space<vmem>>, vector<1x128xf32>
    %337 = arith.maximumf %335, %336 : vector<1x128xf32>
    %c98 = arith.constant 98 : index
    %c0_287 = arith.constant 0 : index
    %338 = vector.load %arg15[%c98, %c0_287] : memref<136x128xf32, #tpu.memory_space<vmem>>, vector<1x128xf32>
    %c99 = arith.constant 99 : index
    %c0_288 = arith.constant 0 : index
    %339 = vector.load %arg15[%c99, %c0_288] : memref<136x128xf32, #tpu.memory_space<vmem>>, vector<1x128xf32>
    %340 = arith.maximumf %338, %339 : vector<1x128xf32>
    %341 = arith.maximumf %337, %340 : vector<1x128xf32>
    %c0_289 = arith.constant 0 : index
    %c1920 = arith.constant 1920 : index
    %342 = vector.load %arg16[%c0_289, %c1920] : memref<8x3200xf32, #tpu.memory_space<vmem>>, vector<1x128xf32>
    tpu.vector_store %arg16[%c0_289, %c1920], %341 {strides = array<i32>} : memref<8x3200xf32, #tpu.memory_space<vmem>>, vector<1x128xf32>,
    %c86 = arith.constant 86 : index
    %c0_290 = arith.constant 0 : index
    %343 = vector.load %arg15[%c86, %c0_290] : memref<136x128xf32, #tpu.memory_space<vmem>>, vector<1x128xf32>
    %c87 = arith.constant 87 : index
    %c0_291 = arith.constant 0 : index
    %344 = vector.load %arg15[%c87, %c0_291] : memref<136x128xf32, #tpu.memory_space<vmem>>, vector<1x128xf32>
    %345 = arith.maximumf %343, %344 : vector<1x128xf32>
    %c100 = arith.constant 100 : index
    %c0_292 = arith.constant 0 : index
    %346 = vector.load %arg15[%c100, %c0_292] : memref<136x128xf32, #tpu.memory_space<vmem>>, vector<1x128xf32>
    %c101 = arith.constant 101 : index
    %c0_293 = arith.constant 0 : index
    %347 = vector.load %arg15[%c101, %c0_293] : memref<136x128xf32, #tpu.memory_space<vmem>>, vector<1x128xf32>
    %348 = arith.maximumf %346, %347 : vector<1x128xf32>
    %349 = arith.maximumf %345, %348 : vector<1x128xf32>
    %c0_294 = arith.constant 0 : index
    %c2048 = arith.constant 2048 : index
    %350 = vector.load %arg16[%c0_294, %c2048] : memref<8x3200xf32, #tpu.memory_space<vmem>>, vector<1x128xf32>
    tpu.vector_store %arg16[%c0_294, %c2048], %349 {strides = array<i32>} : memref<8x3200xf32, #tpu.memory_space<vmem>>, vector<1x128xf32>,
    %c88 = arith.constant 88 : index
    %c0_295 = arith.constant 0 : index
    %351 = vector.load %arg15[%c88, %c0_295] : memref<136x128xf32, #tpu.memory_space<vmem>>, vector<1x128xf32>
    %c89 = arith.constant 89 : index
    %c0_296 = arith.constant 0 : index
    %352 = vector.load %arg15[%c89, %c0_296] : memref<136x128xf32, #tpu.memory_space<vmem>>, vector<1x128xf32>
    %353 = arith.maximumf %351, %352 : vector<1x128xf32>
    %c102 = arith.constant 102 : index
    %c0_297 = arith.constant 0 : index
    %354 = vector.load %arg15[%c102, %c0_297] : memref<136x128xf32, #tpu.memory_space<vmem>>, vector<1x128xf32>
    %c103 = arith.constant 103 : index
    %c0_298 = arith.constant 0 : index
    %355 = vector.load %arg15[%c103, %c0_298] : memref<136x128xf32, #tpu.memory_space<vmem>>, vector<1x128xf32>
    %356 = arith.maximumf %354, %355 : vector<1x128xf32>
    %357 = arith.maximumf %353, %356 : vector<1x128xf32>
    %c0_299 = arith.constant 0 : index
    %c2176 = arith.constant 2176 : index
    %358 = vector.load %arg16[%c0_299, %c2176] : memref<8x3200xf32, #tpu.memory_space<vmem>>, vector<1x128xf32>
    tpu.vector_store %arg16[%c0_299, %c2176], %357 {strides = array<i32>} : memref<8x3200xf32, #tpu.memory_space<vmem>>, vector<1x128xf32>,
    %c90 = arith.constant 90 : index
    %c0_300 = arith.constant 0 : index
    %359 = vector.load %arg15[%c90, %c0_300] : memref<136x128xf32, #tpu.memory_space<vmem>>, vector<1x128xf32>
    %c91 = arith.constant 91 : index
    %c0_301 = arith.constant 0 : index
    %360 = vector.load %arg15[%c91, %c0_301] : memref<136x128xf32, #tpu.memory_space<vmem>>, vector<1x128xf32>
    %361 = arith.maximumf %359, %360 : vector<1x128xf32>
    %c104 = arith.constant 104 : index
    %c0_302 = arith.constant 0 : index
    %362 = vector.load %arg15[%c104, %c0_302] : memref<136x128xf32, #tpu.memory_space<vmem>>, vector<1x128xf32>
    %c105 = arith.constant 105 : index
    %c0_303 = arith.constant 0 : index
    %363 = vector.load %arg15[%c105, %c0_303] : memref<136x128xf32, #tpu.memory_space<vmem>>, vector<1x128xf32>
    %364 = arith.maximumf %362, %363 : vector<1x128xf32>
    %365 = arith.maximumf %361, %364 : vector<1x128xf32>
    %c0_304 = arith.constant 0 : index
    %c2304 = arith.constant 2304 : index
    %366 = vector.load %arg16[%c0_304, %c2304] : memref<8x3200xf32, #tpu.memory_space<vmem>>, vector<1x128xf32>
    tpu.vector_store %arg16[%c0_304, %c2304], %365 {strides = array<i32>} : memref<8x3200xf32, #tpu.memory_space<vmem>>, vector<1x128xf32>,
    %c92 = arith.constant 92 : index
    %c0_305 = arith.constant 0 : index
    %367 = vector.load %arg15[%c92, %c0_305] : memref<136x128xf32, #tpu.memory_space<vmem>>, vector<1x128xf32>
    %c93 = arith.constant 93 : index
    %c0_306 = arith.constant 0 : index
    %368 = vector.load %arg15[%c93, %c0_306] : memref<136x128xf32, #tpu.memory_space<vmem>>, vector<1x128xf32>
    %369 = arith.maximumf %367, %368 : vector<1x128xf32>
    %c106 = arith.constant 106 : index
    %c0_307 = arith.constant 0 : index
    %370 = vector.load %arg15[%c106, %c0_307] : memref<136x128xf32, #tpu.memory_space<vmem>>, vector<1x128xf32>
    %c107 = arith.constant 107 : index
    %c0_308 = arith.constant 0 : index
    %371 = vector.load %arg15[%c107, %c0_308] : memref<136x128xf32, #tpu.memory_space<vmem>>, vector<1x128xf32>
    %372 = arith.maximumf %370, %371 : vector<1x128xf32>
    %373 = arith.maximumf %369, %372 : vector<1x128xf32>
    %c0_309 = arith.constant 0 : index
    %c2432 = arith.constant 2432 : index
    %374 = vector.load %arg16[%c0_309, %c2432] : memref<8x3200xf32, #tpu.memory_space<vmem>>, vector<1x128xf32>
    tpu.vector_store %arg16[%c0_309, %c2432], %373 {strides = array<i32>} : memref<8x3200xf32, #tpu.memory_space<vmem>>, vector<1x128xf32>,
    %c112 = arith.constant 112 : index
    %c0_310 = arith.constant 0 : index
    %375 = vector.load %arg15[%c112, %c0_310] : memref<136x128xf32, #tpu.memory_space<vmem>>, vector<1x128xf32>
    %c113 = arith.constant 113 : index
    %c0_311 = arith.constant 0 : index
    %376 = vector.load %arg15[%c113, %c0_311] : memref<136x128xf32, #tpu.memory_space<vmem>>, vector<1x128xf32>
    %377 = arith.maximumf %375, %376 : vector<1x128xf32>
    %c126 = arith.constant 126 : index
    %c0_312 = arith.constant 0 : index
    %378 = vector.load %arg15[%c126, %c0_312] : memref<136x128xf32, #tpu.memory_space<vmem>>, vector<1x128xf32>
    %c127 = arith.constant 127 : index
    %c0_313 = arith.constant 0 : index
    %379 = vector.load %arg15[%c127, %c0_313] : memref<136x128xf32, #tpu.memory_space<vmem>>, vector<1x128xf32>
    %380 = arith.maximumf %378, %379 : vector<1x128xf32>
    %381 = arith.maximumf %377, %380 : vector<1x128xf32>
    %c0_314 = arith.constant 0 : index
    %c2560 = arith.constant 2560 : index
    %382 = vector.load %arg16[%c0_314, %c2560] : memref<8x3200xf32, #tpu.memory_space<vmem>>, vector<1x128xf32>
    tpu.vector_store %arg16[%c0_314, %c2560], %381 {strides = array<i32>} : memref<8x3200xf32, #tpu.memory_space<vmem>>, vector<1x128xf32>,
    %c114 = arith.constant 114 : index
    %c0_315 = arith.constant 0 : index
    %383 = vector.load %arg15[%c114, %c0_315] : memref<136x128xf32, #tpu.memory_space<vmem>>, vector<1x128xf32>
    %c115 = arith.constant 115 : index
    %c0_316 = arith.constant 0 : index
    %384 = vector.load %arg15[%c115, %c0_316] : memref<136x128xf32, #tpu.memory_space<vmem>>, vector<1x128xf32>
    %385 = arith.maximumf %383, %384 : vector<1x128xf32>
    %c128_317 = arith.constant 128 : index
    %c0_318 = arith.constant 0 : index
    %386 = vector.load %arg15[%c128_317, %c0_318] : memref<136x128xf32, #tpu.memory_space<vmem>>, vector<1x128xf32>
    %c129 = arith.constant 129 : index
    %c0_319 = arith.constant 0 : index
    %387 = vector.load %arg15[%c129, %c0_319] : memref<136x128xf32, #tpu.memory_space<vmem>>, vector<1x128xf32>
    %388 = arith.maximumf %386, %387 : vector<1x128xf32>
    %389 = arith.maximumf %385, %388 : vector<1x128xf32>
    %c0_320 = arith.constant 0 : index
    %c2688 = arith.constant 2688 : index
    %390 = vector.load %arg16[%c0_320, %c2688] : memref<8x3200xf32, #tpu.memory_space<vmem>>, vector<1x128xf32>
    tpu.vector_store %arg16[%c0_320, %c2688], %389 {strides = array<i32>} : memref<8x3200xf32, #tpu.memory_space<vmem>>, vector<1x128xf32>,
    %c116 = arith.constant 116 : index
    %c0_321 = arith.constant 0 : index
    %391 = vector.load %arg15[%c116, %c0_321] : memref<136x128xf32, #tpu.memory_space<vmem>>, vector<1x128xf32>
    %c117 = arith.constant 117 : index
    %c0_322 = arith.constant 0 : index
    %392 = vector.load %arg15[%c117, %c0_322] : memref<136x128xf32, #tpu.memory_space<vmem>>, vector<1x128xf32>
    %393 = arith.maximumf %391, %392 : vector<1x128xf32>
    %c130 = arith.constant 130 : index
    %c0_323 = arith.constant 0 : index
    %394 = vector.load %arg15[%c130, %c0_323] : memref<136x128xf32, #tpu.memory_space<vmem>>, vector<1x128xf32>
    %c131 = arith.constant 131 : index
    %c0_324 = arith.constant 0 : index
    %395 = vector.load %arg15[%c131, %c0_324] : memref<136x128xf32, #tpu.memory_space<vmem>>, vector<1x128xf32>
    %396 = arith.maximumf %394, %395 : vector<1x128xf32>
    %397 = arith.maximumf %393, %396 : vector<1x128xf32>
    %c0_325 = arith.constant 0 : index
    %c2816 = arith.constant 2816 : index
    %398 = vector.load %arg16[%c0_325, %c2816] : memref<8x3200xf32, #tpu.memory_space<vmem>>, vector<1x128xf32>
    tpu.vector_store %arg16[%c0_325, %c2816], %397 {strides = array<i32>} : memref<8x3200xf32, #tpu.memory_space<vmem>>, vector<1x128xf32>,
    %c118 = arith.constant 118 : index
    %c0_326 = arith.constant 0 : index
    %399 = vector.load %arg15[%c118, %c0_326] : memref<136x128xf32, #tpu.memory_space<vmem>>, vector<1x128xf32>
    %c119 = arith.constant 119 : index
    %c0_327 = arith.constant 0 : index
    %400 = vector.load %arg15[%c119, %c0_327] : memref<136x128xf32, #tpu.memory_space<vmem>>, vector<1x128xf32>
    %401 = arith.maximumf %399, %400 : vector<1x128xf32>
    %c132 = arith.constant 132 : index
    %c0_328 = arith.constant 0 : index
    %402 = vector.load %arg15[%c132, %c0_328] : memref<136x128xf32, #tpu.memory_space<vmem>>, vector<1x128xf32>
    %c133 = arith.constant 133 : index
    %c0_329 = arith.constant 0 : index
    %403 = vector.load %arg15[%c133, %c0_329] : memref<136x128xf32, #tpu.memory_space<vmem>>, vector<1x128xf32>
    %404 = arith.maximumf %402, %403 : vector<1x128xf32>
    %405 = arith.maximumf %401, %404 : vector<1x128xf32>
    %c0_330 = arith.constant 0 : index
    %c2944 = arith.constant 2944 : index
    %406 = vector.load %arg16[%c0_330, %c2944] : memref<8x3200xf32, #tpu.memory_space<vmem>>, vector<1x128xf32>
    tpu.vector_store %arg16[%c0_330, %c2944], %405 {strides = array<i32>} : memref<8x3200xf32, #tpu.memory_space<vmem>>, vector<1x128xf32>,
    %c120 = arith.constant 120 : index
    %c0_331 = arith.constant 0 : index
    %407 = vector.load %arg15[%c120, %c0_331] : memref<136x128xf32, #tpu.memory_space<vmem>>, vector<1x128xf32>
    %c121 = arith.constant 121 : index
    %c0_332 = arith.constant 0 : index
    %408 = vector.load %arg15[%c121, %c0_332] : memref<136x128xf32, #tpu.memory_space<vmem>>, vector<1x128xf32>
    %409 = arith.maximumf %407, %408 : vector<1x128xf32>
    %c134 = arith.constant 134 : index
    %c0_333 = arith.constant 0 : index
    %410 = vector.load %arg15[%c134, %c0_333] : memref<136x128xf32, #tpu.memory_space<vmem>>, vector<1x128xf32>
    %c135 = arith.constant 135 : index
    %c0_334 = arith.constant 0 : index
    %411 = vector.load %arg15[%c135, %c0_334] : memref<136x128xf32, #tpu.memory_space<vmem>>, vector<1x128xf32>
    %412 = arith.maximumf %410, %411 : vector<1x128xf32>
    %413 = arith.maximumf %409, %412 : vector<1x128xf32>
    %c0_335 = arith.constant 0 : index
    %c3072 = arith.constant 3072 : index
    %414 = vector.load %arg16[%c0_335, %c3072] : memref<8x3200xf32, #tpu.memory_space<vmem>>, vector<1x128xf32>
    tpu.vector_store %arg16[%c0_335, %c3072], %413 {strides = array<i32>} : memref<8x3200xf32, #tpu.memory_space<vmem>>, vector<1x128xf32>,
    %c0_336 = arith.constant 0 : index
    %c0_337 = arith.constant 0 : index
    %415 = vector.load %arg16[%c0_336, %c0_337] : memref<8x3200xf32, #tpu.memory_space<vmem>>, vector<1x3200xf32>
    %416 = arith.truncf %415 : vector<1x3200xf32> to vector<1x3200xbf16>
    %c0_338 = arith.constant 0 : index
    %c0_339 = arith.constant 0 : index
    %417 = vector.load %arg6[%c0_338, %c0_339] : memref<3200x128xbf16, #tpu.memory_space<vmem>>, vector<3200x128xbf16>
    %cst_340 = arith.constant dense<0.000000e+00> : vector<1x128xf32>
    %418 = tpu.matmul %416, %417, %cst_340 {dimension_numbers = #tpu.dot_dimension_numbers<[1], [0], [0], [1], [0, 0, 1, 1], [], []>} : vector<1x3200xbf16>, vector<3200x128xbf16>, vector<1x128xf32> -> vector<1x128xf32>
    %c0_341 = arith.constant 0 : index
    %c0_342 = arith.constant 0 : index
    %419 = vector.load %arg7[%c0_341, %c0_342] : memref<1x128xf32, #tpu.memory_space<vmem>>, vector<1x128xf32>
    %420 = arith.addf %418, %419 : vector<1x128xf32>
    %cst_343 = arith.constant 0.000000e+00 : f32
    %421 = vector.broadcast %cst_343 : f32 to vector<1x128xf32>
    %422 = arith.maximumf %420, %421 : vector<1x128xf32>
    %423 = arith.truncf %422 : vector<1x128xf32> to vector<1x128xbf16>
    %c0_344 = arith.constant 0 : index
    %c0_345 = arith.constant 0 : index
    %424 = vector.load %arg8[%c0_344, %c0_345] : memref<128x128xbf16, #tpu.memory_space<vmem>>, vector<128x128xbf16>
    %cst_346 = arith.constant dense<0.000000e+00> : vector<1x128xf32>
    %425 = tpu.matmul %423, %424, %cst_346 {dimension_numbers = #tpu.dot_dimension_numbers<[1], [0], [0], [1], [0, 0, 1, 1], [], []>} : vector<1x128xbf16>, vector<128x128xbf16>, vector<1x128xf32> -> vector<1x128xf32>
    %c0_347 = arith.constant 0 : index
    %c0_348 = arith.constant 0 : index
    %426 = vector.load %arg9[%c0_347, %c0_348] : memref<1x128xf32, #tpu.memory_space<vmem>>, vector<1x128xf32>
    %427 = arith.addf %425, %426 : vector<1x128xf32>
    %cst_349 = arith.constant 0.000000e+00 : f32
    %428 = vector.broadcast %cst_349 : f32 to vector<1x128xf32>
    %429 = arith.maximumf %427, %428 : vector<1x128xf32>
    %430 = arith.truncf %429 : vector<1x128xf32> to vector<1x128xbf16>
    %c0_350 = arith.constant 0 : index
    %c0_351 = arith.constant 0 : index
    %431 = vector.load %arg10[%c0_350, %c0_351] : memref<128x128xbf16, #tpu.memory_space<vmem>>, vector<128x128xbf16>
    %cst_352 = arith.constant dense<0.000000e+00> : vector<1x128xf32>
    %432 = tpu.matmul %430, %431, %cst_352 {dimension_numbers = #tpu.dot_dimension_numbers<[1], [0], [0], [1], [0, 0, 1, 1], [], []>} : vector<1x128xbf16>, vector<128x128xbf16>, vector<1x128xf32> -> vector<1x128xf32>
    %c0_353 = arith.constant 0 : index
    %c0_354 = arith.constant 0 : index
    %433 = vector.load %arg11[%c0_353, %c0_354] : memref<1x128xf32, #tpu.memory_space<vmem>>, vector<1x128xf32>
    %434 = arith.addf %432, %433 : vector<1x128xf32>
    %c0_355 = arith.constant 0 : index
    %c0_356 = arith.constant 0 : index
    %c0_357 = arith.constant 0 : index
    %435 = vector.load %arg12[%c0_355, %c0_356, %c0_357] : memref<1x1x128xf32, #tpu.memory_space<vmem>>, vector<1x1x128xf32>
    %436 = vector.shape_cast %435 : vector<1x1x128xf32> to vector<1x128xf32>
    %437 = vector.shape_cast %434 : vector<1x128xf32> to vector<1x1x128xf32>
    tpu.vector_store %arg12[%c0_355, %c0_356, %c0_357], %437 {strides = array<i32>} : memref<1x1x128xf32, #tpu.memory_space<vmem>>, vector<1x1x128xf32>,
    return
  }
  func.func @transform_0(%arg0: i32) -> (i32, i32, i32) {
    %c0_i32 = arith.constant 0 : i32
    %c0_i32_0 = arith.constant 0 : i32
    %c0_i32_1 = arith.constant 0 : i32
    return %arg0, %c0_i32, %c0_i32_0 : i32, i32, i32
  }
  func.func @transform_1(%arg0: i32) -> (i32, i32) {
    %c0_i32 = arith.constant 0 : i32
    %c0_i32_0 = arith.constant 0 : i32
    %c0_i32_1 = arith.constant 0 : i32
    return %c0_i32, %c0_i32_0 : i32, i32
  }
  func.func @transform_2(%arg0: i32) -> (i32, i32) {
    %c0_i32 = arith.constant 0 : i32
    %c0_i32_0 = arith.constant 0 : i32
    %c0_i32_1 = arith.constant 0 : i32
    return %c0_i32, %c0_i32_0 : i32, i32
  }
  func.func @transform_3(%arg0: i32) -> (i32, i32, i32) {
    %c0_i32 = arith.constant 0 : i32
    %c0_i32_0 = arith.constant 0 : i32
    %c0_i32_1 = arith.constant 0 : i32
    %c0_i32_2 = arith.constant 0 : i32
    return %c0_i32, %c0_i32_0, %c0_i32_1 : i32, i32, i32
  }
  func.func @transform_4(%arg0: i32) -> (i32, i32) {
    %c0_i32 = arith.constant 0 : i32
    %c0_i32_0 = arith.constant 0 : i32
    %c0_i32_1 = arith.constant 0 : i32
    return %c0_i32, %c0_i32_0 : i32, i32
  }
  func.func @transform_5(%arg0: i32) -> (i32, i32) {
    %c0_i32 = arith.constant 0 : i32
    %c0_i32_0 = arith.constant 0 : i32
    %c0_i32_1 = arith.constant 0 : i32
    return %c0_i32, %c0_i32_0 : i32, i32
  }
  func.func @transform_6(%arg0: i32) -> (i32, i32) {
    %c0_i32 = arith.constant 0 : i32
    %c0_i32_0 = arith.constant 0 : i32
    %c0_i32_1 = arith.constant 0 : i32
    return %c0_i32, %c0_i32_0 : i32, i32
  }
  func.func @transform_7(%arg0: i32) -> (i32, i32) {
    %c0_i32 = arith.constant 0 : i32
    %c0_i32_0 = arith.constant 0 : i32
    %c0_i32_1 = arith.constant 0 : i32
    return %c0_i32, %c0_i32_0 : i32, i32
  }
  func.func @transform_8(%arg0: i32) -> (i32, i32) {
    %c0_i32 = arith.constant 0 : i32
    %c0_i32_0 = arith.constant 0 : i32
    %c0_i32_1 = arith.constant 0 : i32
    return %c0_i32, %c0_i32_0 : i32, i32
  }
  func.func @transform_9(%arg0: i32) -> (i32, i32) {
    %c0_i32 = arith.constant 0 : i32
    %c0_i32_0 = arith.constant 0 : i32
    %c0_i32_1 = arith.constant 0 : i32
    return %c0_i32, %c0_i32_0 : i32, i32
  }
  func.func @transform_10(%arg0: i32) -> (i32, i32) {
    %c0_i32 = arith.constant 0 : i32
    %c0_i32_0 = arith.constant 0 : i32
    %c0_i32_1 = arith.constant 0 : i32
    return %c0_i32, %c0_i32_0 : i32, i32
  }
  func.func @transform_11(%arg0: i32) -> (i32, i32, i32) {
    %c0_i32 = arith.constant 0 : i32
    %c0_i32_0 = arith.constant 0 : i32
    %c0_i32_1 = arith.constant 0 : i32
    return %arg0, %c0_i32, %c0_i32_0 : i32, i32, i32
  }
}

</mosaic_0001>

<llo_original>
// kernel: bayes_lenet5_forward.1
$region0: #{bayes_lenet5_forward.1}
  #allocation0 [shape = 'u32[]', space=smem, size = 0x4, offset = 0x4, fixed_abs, tag = 'smem constant byte address 0x4 - core index']
  #allocation1 [shape = 'u32[72,128]{1,0:T(1,128)}', space=vmem, size = 0x9000, scoped, tag = 'internal scratch']
  #allocation2 [shape = 'f32[800,128]{1,0:T(8,128)}', space=vmem, size = 0x64000, scoped, tag = 'scratch operand']
  #allocation3 [shape = 'f32[200,128]{1,0:T(8,128)}', space=vmem, size = 0x19000, scoped, tag = 'scratch operand']
  #allocation4 [shape = 'f32[136,128]{1,0:T(8,128)}', space=vmem, size = 0x11000, scoped, tag = 'scratch operand']
  #allocation5 [shape = 'f32[8,3200]{1,0:T(8,128)}', space=vmem, size = 0x19000, scoped, tag = 'scratch operand']
  %s0 = inlined_call_operand.vmem [shape: bf16[2,800,32], index: 0, kind: input, shape index: {}]
  %s1 = inlined_call_operand.vmem [shape: bf16[32,128], index: 1, kind: input, shape index: {}]
  %s2 = inlined_call_operand.vmem [shape: f32[1,128], index: 2, kind: input, shape index: {}]
  %s3 = inlined_call_operand.vmem [shape: bf16[25,128,128], index: 3, kind: input, shape index: {}]
  %s4 = inlined_call_operand.vmem [shape: f32[1,128], index: 4, kind: input, shape index: {}]
  %s5 = inlined_call_operand.vmem [shape: bf16[3200,128], index: 5, kind: input, shape index: {}]
  %s6 = inlined_call_operand.vmem [shape: f32[1,128], index: 6, kind: input, shape index: {}]
  %s7 = inlined_call_operand.vmem [shape: bf16[128,128], index: 7, kind: input, shape index: {}]
  %s8 = inlined_call_operand.vmem [shape: f32[1,128], index: 8, kind: input, shape index: {}]
  %s9 = inlined_call_operand.vmem [shape: bf16[128,128], index: 9, kind: input, shape index: {}]
  %s10 = inlined_call_operand.vmem [shape: f32[1,128], index: 10, kind: input, shape index: {}]
  %s11 = inlined_call_operand.hbm [shape: f32[2,1,128], index: 11, kind: output, shape index: {}]
  %s12 = sld [smem:[#allocation0]]
  $region77: #{bayes_lenet5_forward.1} parent=0
    _
  %s14 = ssub.s32 1, %s12
  %s15 = scalar_select 0, %s14, %s12
  $region1: #{bayes_lenet5_forward.1} parent=0
    #allocation6 [shape = 'u8[1024]{0}', space=vmem, size = 0x400, scoped, tag = 'output window, operand 0']
    #allocation7 [shape = 's32[2]{0}', space=sflag, size = 0x8, scoped, tag = 'scoped memory for bayes_lenet5_forward.1']
    %16 = vsyncpa [#allocation7], 0
    %s17 = scalar_lea.sflag [#allocation7], 1
    %18 = vsyncpa %s17, 0
    loop: start=0, step=1, limit=4
    $region2: #{bayes_lenet5_forward.1} parent=1 // loop_pre_header
      _
    $region3: #{bayes_lenet5_forward.1} parent=1 // loop_header
      %s20 = sphi 0, %s24
      %p21 = scmp.ge.s32.totalorder %s20, 4
      %s30 = sphi 0, %s32
      %s33 = sphi 0, %s30
      %s34 = sphi 0, %s33
      %s50 = sphi 0, %s34
      %s54 = sphi 0, %s54
      %s56 = sphi 0, %s54
      %s57 = sphi 0, %s56
      %s71 = sphi 0, %s57
      %s75 = sphi 0, %s75
      %s77 = sphi 0, %s75
      %s78 = sphi 0, %s77
      %s92 = sphi 0, %s78
      %s96 = sphi 0, %s96
      %s98 = sphi 0, %s96
      %s99 = sphi 0, %s98
      %s113 = sphi 0, %s99
      %s117 = sphi 0, %s117
      %s119 = sphi 0, %s117
      %s120 = sphi 0, %s119
      %s134 = sphi 0, %s120
      %s138 = sphi 0, %s138
      %s140 = sphi 0, %s138
      %s141 = sphi 0, %s140
      %s155 = sphi 0, %s141
      %s159 = sphi 0, %s159
      %s161 = sphi 0, %s159
      %s162 = sphi 0, %s161
      %s176 = sphi 0, %s162
      %s180 = sphi 0, %s180
      %s182 = sphi 0, %s180
      %s183 = sphi 0, %s182
      %s197 = sphi 0, %s183
      %s201 = sphi 0, %s201
      %s203 = sphi 0, %s201
      %s204 = sphi 0, %s203
      %s218 = sphi 0, %s204
      %s222 = sphi 0, %s222
      %s224 = sphi 0, %s222
      %s225 = sphi 0, %s224
      %s239 = sphi 0, %s225
      %s243 = sphi 0, %s243
      %s245 = sphi 0, %s243
      %s246 = sphi 0, %s245
      %s260 = sphi 0, %s246
      %s266 = sphi 0, %s268
      %s269 = sphi 0, %s266
      %s270 = sphi 0, %s269
      %s286 = sphi 0, %s270
    $region4: #{bayes_lenet5_forward.1} parent=1 // loop_header_branch
      %23 = sbr.rel (%p21) target = $region8
    $region5: #{bayes_lenet5_forward.1} parent=1 // loop_body
      %s25 = ssub.s32 %s20, 1
      %s26 = ssub.s32 %s20, 2
      %s27 = sadd.s32 %s20, 1
      %s28 = ssub.s32 %s20, %s27
      %p29 = scmp.eq.s32.totalorder %s28, 0
      %s31 = sadd.s32 %s30, 1
      %s32 = scalar_select %p29, %s30, %s31
      %p35 = pneg %p29
      %p36 = scmp.eq.s32.totalorder %s20, 1
      %p37 = por %p35, %p36
      %p38 = scmp.ne.s32.totalorder %s30, %s33
      %p39 = scmp.eq.s32.totalorder %s20, 0
      %p40 = por %p38, %p39
      %p41 = scmp.ne.s32.totalorder %s30, %s33
      %p42 = scmp.eq.s32.totalorder %s25, 1
      %p43 = por %p41, %p42
      %p44 = scmp.ne.s32.totalorder %s33, %s34
      %p45 = scmp.eq.s32.totalorder %s25, 0
      %p46 = por %p44, %p45
      %p47 = scmp.ne.s32.totalorder %s33, %s34
      %p48 = scmp.eq.s32.totalorder %s26, 1
      %p49 = por %p47, %p48
      %p51 = scmp.ne.s32.totalorder %s34, %s50
      %p52 = scmp.eq.s32.totalorder %s26, 0
      %p53 = por %p51, %p52
      %s55 = sadd.s32 %s54, 1
      %p58 = scmp.eq.s32.totalorder %s20, 1
      %p59 = scmp.ne.s32.totalorder %s54, %s56
      %p60 = scmp.eq.s32.totalorder %s20, 0
      %p61 = por %p59, %p60
      %p62 = scmp.ne.s32.totalorder %s54, %s56
      %p63 = scmp.eq.s32.totalorder %s25, 1
      %p64 = por %p62, %p63
      %p65 = scmp.ne.s32.totalorder %s56, %s57
      %p66 = scmp.eq.s32.totalorder %s25, 0
      %p67 = por %p65, %p66
      %p68 = scmp.ne.s32.totalorder %s56, %s57
      %p69 = scmp.eq.s32.totalorder %s26, 1
      %p70 = por %p68, %p69
      %p72 = scmp.ne.s32.totalorder %s57, %s71
      %p73 = scmp.eq.s32.totalorder %s26, 0
      %p74 = por %p72, %p73
      %s76 = sadd.s32 %s75, 1
      %p79 = scmp.eq.s32.totalorder %s20, 1
      %p80 = scmp.ne.s32.totalorder %s75, %s77
      %p81 = scmp.eq.s32.totalorder %s20, 0
      %p82 = por %p80, %p81
      %p83 = scmp.ne.s32.totalorder %s75, %s77
      %p84 = scmp.eq.s32.totalorder %s25, 1
      %p85 = por %p83, %p84
      %p86 = scmp.ne.s32.totalorder %s77, %s78
      %p87 = scmp.eq.s32.totalorder %s25, 0
      %p88 = por %p86, %p87
      %p89 = scmp.ne.s32.totalorder %s77, %s78
      %p90 = scmp.eq.s32.totalorder %s26, 1
      %p91 = por %p89, %p90
      %p93 = scmp.ne.s32.totalorder %s78, %s92
      %p94 = scmp.eq.s32.totalorder %s26, 0
      %p95 = por %p93, %p94
      %s97 = sadd.s32 %s96, 1
      %p100 = scmp.eq.s32.totalorder %s20, 1
      %p101 = scmp.ne.s32.totalorder %s96, %s98
      %p102 = scmp.eq.s32.totalorder %s20, 0
      %p103 = por %p101, %p102
      %p104 = scmp.ne.s32.totalorder %s96, %s98
      %p105 = scmp.eq.s32.totalorder %s25, 1
      %p106 = por %p104, %p105
      %p107 = scmp.ne.s32.totalorder %s98, %s99
      %p108 = scmp.eq.s32.totalorder %s25, 0
      %p109 = por %p107, %p108
      %p110 = scmp.ne.s32.totalorder %s98, %s99
      %p111 = scmp.eq.s32.totalorder %s26, 1
      %p112 = por %p110, %p111
      %p114 = scmp.ne.s32.totalorder %s99, %s113
      %p115 = scmp.eq.s32.totalorder %s26, 0
      %p116 = por %p114, %p115
      %s118 = sadd.s32 %s117, 1
      %p121 = scmp.eq.s32.totalorder %s20, 1
      %p122 = scmp.ne.s32.totalorder %s117, %s119
      %p123 = scmp.eq.s32.totalorder %s20, 0
      %p124 = por %p122, %p123
      %p125 = scmp.ne.s32.totalorder %s117, %s119
      %p126 = scmp.eq.s32.totalorder %s25, 1
      %p127 = por %p125, %p126
      %p128 = scmp.ne.s32.totalorder %s119, %s120
      %p129 = scmp.eq.s32.totalorder %s25, 0
      %p130 = por %p128, %p129
      %p131 = scmp.ne.s32.totalorder %s119, %s120
      %p132 = scmp.eq.s32.totalorder %s26, 1
      %p133 = por %p131, %p132
      %p135 = scmp.ne.s32.totalorder %s120, %s134
      %p136 = scmp.eq.s32.totalorder %s26, 0
      %p137 = por %p135, %p136
      %s139 = sadd.s32 %s138, 1
      %p142 = scmp.eq.s32.totalorder %s20, 1
      %p143 = scmp.ne.s32.totalorder %s138, %s140
      %p144 = scmp.eq.s32.totalorder %s20, 0
      %p145 = por %p143, %p144
      %p146 = scmp.ne.s32.totalorder %s138, %s140
      %p147 = scmp.eq.s32.totalorder %s25, 1
      %p148 = por %p146, %p147
      %p149 = scmp.ne.s32.totalorder %s140, %s141
      %p150 = scmp.eq.s32.totalorder %s25, 0
      %p151 = por %p149, %p150
      %p152 = scmp.ne.s32.totalorder %s140, %s141
      %p153 = scmp.eq.s32.totalorder %s26, 1
      %p154 = por %p152, %p153
      %p156 = scmp.ne.s32.totalorder %s141, %s155
      %p157 = scmp.eq.s32.totalorder %s26, 0
      %p158 = por %p156, %p157
      %s160 = sadd.s32 %s159, 1
      %p163 = scmp.eq.s32.totalorder %s20, 1
      %p164 = scmp.ne.s32.totalorder %s159, %s161
      %p165 = scmp.eq.s32.totalorder %s20, 0
      %p166 = por %p164, %p165
      %p167 = scmp.ne.s32.totalorder %s159, %s161
      %p168 = scmp.eq.s32.totalorder %s25, 1
      %p169 = por %p167, %p168
      %p170 = scmp.ne.s32.totalorder %s161, %s162
      %p171 = scmp.eq.s32.totalorder %s25, 0
      %p172 = por %p170, %p171
      %p173 = scmp.ne.s32.totalorder %s161, %s162
      %p174 = scmp.eq.s32.totalorder %s26, 1
      %p175 = por %p173, %p174
      %p177 = scmp.ne.s32.totalorder %s162, %s176
      %p178 = scmp.eq.s32.totalorder %s26, 0
      %p179 = por %p177, %p178
      %s181 = sadd.s32 %s180, 1
      %p184 = scmp.eq.s32.totalorder %s20, 1
      %p185 = scmp.ne.s32.totalorder %s180, %s182
      %p186 = scmp.eq.s32.totalorder %s20, 0
      %p187 = por %p185, %p186
      %p188 = scmp.ne.s32.totalorder %s180, %s182
      %p189 = scmp.eq.s32.totalorder %s25, 1
      %p190 = por %p188, %p189
      %p191 = scmp.ne.s32.totalorder %s182, %s183
      %p192 = scmp.eq.s32.totalorder %s25, 0
      %p193 = por %p191, %p192
      %p194 = scmp.ne.s32.totalorder %s182, %s183
      %p195 = scmp.eq.s32.totalorder %s26, 1
      %p196 = por %p194, %p195
      %p198 = scmp.ne.s32.totalorder %s183, %s197
      %p199 = scmp.eq.s32.totalorder %s26, 0
      %p200 = por %p198, %p199
      %s202 = sadd.s32 %s201, 1
      %p205 = scmp.eq.s32.totalorder %s20, 1
      %p206 = scmp.ne.s32.totalorder %s201, %s203
      %p207 = scmp.eq.s32.totalorder %s20, 0
      %p208 = por %p206, %p207
      %p209 = scmp.ne.s32.totalorder %s201, %s203
      %p210 = scmp.eq.s32.totalorder %s25, 1
      %p211 = por %p209, %p210
      %p212 = scmp.ne.s32.totalorder %s203, %s204
      %p213 = scmp.eq.s32.totalorder %s25, 0
      %p214 = por %p212, %p213
      %p215 = scmp.ne.s32.totalorder %s203, %s204
      %p216 = scmp.eq.s32.totalorder %s26, 1
      %p217 = por %p215, %p216
      %p219 = scmp.ne.s32.totalorder %s204, %s218
      %p220 = scmp.eq.s32.totalorder %s26, 0
      %p221 = por %p219, %p220
      %s223 = sadd.s32 %s222, 1
      %p226 = scmp.eq.s32.totalorder %s20, 1
      %p227 = scmp.ne.s32.totalorder %s222, %s224
      %p228 = scmp.eq.s32.totalorder %s20, 0
      %p229 = por %p227, %p228
      %p230 = scmp.ne.s32.totalorder %s222, %s224
      %p231 = scmp.eq.s32.totalorder %s25, 1
      %p232 = por %p230, %p231
      %p233 = scmp.ne.s32.totalorder %s224, %s225
      %p234 = scmp.eq.s32.totalorder %s25, 0
      %p235 = por %p233, %p234
      %p236 = scmp.ne.s32.totalorder %s224, %s225
      %p237 = scmp.eq.s32.totalorder %s26, 1
      %p238 = por %p236, %p237
      %p240 = scmp.ne.s32.totalorder %s225, %s239
      %p241 = scmp.eq.s32.totalorder %s26, 0
      %p242 = por %p240, %p241
      %s244 = sadd.s32 %s243, 1
      %p247 = scmp.eq.s32.totalorder %s20, 1
      %p248 = scmp.ne.s32.totalorder %s243, %s245
      %p249 = scmp.eq.s32.totalorder %s20, 0
      %p250 = por %p248, %p249
      %p251 = scmp.ne.s32.totalorder %s243, %s245
      %p252 = scmp.eq.s32.totalorder %s25, 1
      %p253 = por %p251, %p252
      %p254 = scmp.ne.s32.totalorder %s245, %s246
      %p255 = scmp.eq.s32.totalorder %s25, 0
      %p256 = por %p254, %p255
      %p257 = scmp.ne.s32.totalorder %s245, %s246
      %p258 = scmp.eq.s32.totalorder %s26, 1
      %p259 = por %p257, %p258
      %p261 = scmp.ne.s32.totalorder %s246, %s260
      %p262 = scmp.eq.s32.totalorder %s26, 0
      %p263 = por %p261, %p262
      %s264 = ssub.s32 %s20, %s27
      %p265 = scmp.eq.s32.totalorder %s264, 0
      %s267 = sadd.s32 %s266, 1
      %s268 = scalar_select %p265, %s266, %s267
      %p271 = pneg %p265
      %p272 = scmp.eq.s32.totalorder %s20, 1
      %p273 = por %p271, %p272
      %p274 = scmp.ne.s32.totalorder %s266, %s269
      %p275 = scmp.eq.s32.totalorder %s20, 0
      %p276 = por %p274, %p275
      %p277 = scmp.ne.s32.totalorder %s266, %s269
      %p278 = scmp.eq.s32.totalorder %s25, 1
      %p279 = por %p277, %p278
      %p280 = scmp.ne.s32.totalorder %s269, %s270
      %p281 = scmp.eq.s32.totalorder %s25, 0
      %p282 = por %p280, %p281
      %p283 = scmp.ne.s32.totalorder %s269, %s270
      %p284 = scmp.eq.s32.totalorder %s26, 1
      %p285 = por %p283, %p284
      %p287 = scmp.ne.s32.totalorder %s270, %s286
      %p288 = scmp.eq.s32.totalorder %s26, 0
      %p289 = por %p287, %p288
      %p290 = scmp.le.s32.totalorder 1, %s20
      %p291 = scmp.lt.s32.totalorder %s20, 3
      %p292 = pnand %p290, %p291
      %p293 = pneg %p292
      // Predicated region
      $region9: #{bayes_lenet5_forward.1} parent=5 // pred_check
        _
      $region10: #{bayes_lenet5_forward.1} parent=5 // pred_check_branch
        %295 = sbr.rel (%p292) target = $region12
      $region11: #{bayes_lenet5_forward.1} parent=5 // pred_region
        %s296 = ssub.s32 %s20, 1
        // Predicated region
        $region13: #{bayes_lenet5_forward.1} parent=11 // pred_check
          %p297 = pneg %p67
        $region14: #{bayes_lenet5_forward.1} parent=11 // pred_check_branch
          %299 = sbr.rel (%p297) target = $region16
        $region15: #{bayes_lenet5_forward.1} parent=11 // pred_region
          _
        $region16: #{bayes_lenet5_forward.1} parent=11 // pred_fallthru
          _
        // Predicated region
        $region17: #{bayes_lenet5_forward.1} parent=11 // pred_check
          %p300 = pneg %p88
        $region18: #{bayes_lenet5_forward.1} parent=11 // pred_check_branch
          %302 = sbr.rel (%p300) target = $region20
        $region19: #{bayes_lenet5_forward.1} parent=11 // pred_region
          _
        $region20: #{bayes_lenet5_forward.1} parent=11 // pred_fallthru
          _
        // Predicated region
        $region21: #{bayes_lenet5_forward.1} parent=11 // pred_check
          %p303 = pneg %p109
        $region22: #{bayes_lenet5_forward.1} parent=11 // pred_check_branch
          %305 = sbr.rel (%p303) target = $region24
        $region23: #{bayes_lenet5_forward.1} parent=11 // pred_region
          _
        $region24: #{bayes_lenet5_forward.1} parent=11 // pred_fallthru
          _
        // Predicated region
        $region25: #{bayes_lenet5_forward.1} parent=11 // pred_check
          %p306 = pneg %p130
        $region26: #{bayes_lenet5_forward.1} parent=11 // pred_check_branch
          %308 = sbr.rel (%p306) target = $region28
        $region27: #{bayes_lenet5_forward.1} parent=11 // pred_region
          _
        $region28: #{bayes_lenet5_forward.1} parent=11 // pred_fallthru
          _
        // Predicated region
        $region29: #{bayes_lenet5_forward.1} parent=11 // pred_check
          %p309 = pneg %p151
        $region30: #{bayes_lenet5_forward.1} parent=11 // pred_check_branch
          %311 = sbr.rel (%p309) target = $region32
        $region31: #{bayes_lenet5_forward.1} parent=11 // pred_region
          _
        $region32: #{bayes_lenet5_forward.1} parent=11 // pred_fallthru
          _
        // Predicated region
        $region33: #{bayes_lenet5_forward.1} parent=11 // pred_check
          %p312 = pneg %p172
        $region34: #{bayes_lenet5_forward.1} parent=11 // pred_check_branch
          %314 = sbr.rel (%p312) target = $region36
        $region35: #{bayes_lenet5_forward.1} parent=11 // pred_region
          _
        $region36: #{bayes_lenet5_forward.1} parent=11 // pred_fallthru
          _
        // Predicated region
        $region37: #{bayes_lenet5_forward.1} parent=11 // pred_check
          %p315 = pneg %p193
        $region38: #{bayes_lenet5_forward.1} parent=11 // pred_check_branch
          %317 = sbr.rel (%p315) target = $region40
        $region39: #{bayes_lenet5_forward.1} parent=11 // pred_region
          _
        $region40: #{bayes_lenet5_forward.1} parent=11 // pred_fallthru
          _
        // Predicated region
        $region41: #{bayes_lenet5_forward.1} parent=11 // pred_check
          %p318 = pneg %p214
        $region42: #{bayes_lenet5_forward.1} parent=11 // pred_check_branch
          %320 = sbr.rel (%p318) target = $region44
        $region43: #{bayes_lenet5_forward.1} parent=11 // pred_region
          _
        $region44: #{bayes_lenet5_forward.1} parent=11 // pred_fallthru
          _
        // Predicated region
        $region45: #{bayes_lenet5_forward.1} parent=11 // pred_check
          %p321 = pneg %p235
        $region46: #{bayes_lenet5_forward.1} parent=11 // pred_check_branch
          %323 = sbr.rel (%p321) target = $region48
        $region47: #{bayes_lenet5_forward.1} parent=11 // pred_region
          _
        $region48: #{bayes_lenet5_forward.1} parent=11 // pred_fallthru
          _
        // Predicated region
        $region49: #{bayes_lenet5_forward.1} parent=11 // pred_check
          %p324 = pneg %p256
        $region50: #{bayes_lenet5_forward.1} parent=11 // pred_check_branch
          %326 = sbr.rel (%p324) target = $region52
        $region51: #{bayes_lenet5_forward.1} parent=11 // pred_region
          _
        $region52: #{bayes_lenet5_forward.1} parent=11 // pred_fallthru
          _
      $region12: #{bayes_lenet5_forward.1} parent=5 // pred_fallthru
        _
      %p327 = scmp.lt.s32.totalorder %s20, 2
      // Predicated region
      $region53: #{bayes_lenet5_forward.1} parent=5 // pred_check
        %p328 = pneg %p327
      $region54: #{bayes_lenet5_forward.1} parent=5 // pred_check_branch
        %330 = sbr.rel (%p328) target = $region56
      $region55: #{bayes_lenet5_forward.1} parent=5 // pred_region
        // Predicated region
        $region57: #{bayes_lenet5_forward.1} parent=55 // pred_check
          %p331 = pneg %p40
        $region58: #{bayes_lenet5_forward.1} parent=55 // pred_check_branch
          %333 = sbr.rel (%p331) target = $region60
        $region59: #{bayes_lenet5_forward.1} parent=55 // pred_region
          %p334 = scmp.lt.s32.totalorder %s20, 1
          %s335 = scalar_select %p334, %s20, 1
          %s336 = smul.addr %s335, 100
          %s337 = smul.addr %s336, 4
          %s338 = scalar_lea.vmem %s0, %s337
        $region60: #{bayes_lenet5_forward.1} parent=55 // pred_fallthru
          _
      $region56: #{bayes_lenet5_forward.1} parent=5 // pred_fallthru
        _
      %p339 = scmp.le.s32.totalorder 1, %s20
      %p340 = scmp.lt.s32.totalorder %s20, 3
      %p341 = pnand %p339, %p340
      %p342 = pneg %p341
      // Predicated region
      $region61: #{bayes_lenet5_forward.1} parent=5 // pred_check
        _
      $region62: #{bayes_lenet5_forward.1} parent=5 // pred_check_branch
        %344 = sbr.rel (%p341) target = $region64
      $region63: #{bayes_lenet5_forward.1} parent=5 // pred_region
        %s345 = ssub.s32 %s20, 1
        %p346 = scmp.lt.s32.totalorder %s25, 1
        %s347 = scalar_select %p346, %s25, 1
        %s348 = smul.addr %s347, 100
        %s349 = smul.addr %s348, 4
        %s350 = scalar_lea.vmem %s0, %s349
        %p351 = pneg %p46
        %p352 = pneg %p43
        %p353 = pneg %p67
        %p354 = pneg %p64
        %p355 = pneg %p88
        %p356 = pneg %p85
        %p357 = pneg %p109
        %p358 = pneg %p106
        %p359 = pneg %p130
        %p360 = pneg %p127
        %p361 = pneg %p151
        %p362 = pneg %p148
        %p363 = pneg %p172
        %p364 = pneg %p169
        %p365 = pneg %p193
        %p366 = pneg %p190
        %p367 = pneg %p214
        %p368 = pneg %p211
        %p369 = pneg %p235
        %p370 = pneg %p232
        %p371 = pneg %p256
        %p372 = pneg %p253
        %p373 = pneg %p282
        %p374 = pneg %p279
        %s375 = sand.u32 %s269, 1
        %s376 = scalar_lea.sflag [#allocation7], %s375
        %s377 = sand.u32 %s269, 1
        %s378 = scalar_lea.vmem [#allocation6], %s377
        %p379 = scmp.lt.s32.totalorder %s25, 1
        %s380 = scalar_select %p379, %s25, 1
        %s381 = smul.addr %s380, 100
        %s382 = smul.addr %s381, 4
        %s383 = scalar_lea.vmem %s0, %s382
        %v385 = vld [vmem:[%s383] sm:$0xf]
        %v386 = vld [vmem:[%s383 + $0x4] sm:$0xf]
        %v387 = vld [vmem:[%s383 + $0x8] sm:$0xf]
        %v388 = vld [vmem:[%s383 + $0xc] sm:$0xf]
        %v389 = vld [vmem:[%s383 + $0x10] sm:$0xf]
        %v390 = vld [vmem:[%s383 + $0x14] sm:$0xf]
        %v391 = vld [vmem:[%s383 + $0x18] sm:$0xf]
        %v392 = vld [vmem:[%s383 + $0x1c] sm:$0xf]
        %v393 = vld [vmem:[%s383 + $0x20] sm:$0xf]
        %v394 = vld [vmem:[%s383 + $0x24] sm:$0xf]
        %v395 = vld [vmem:[%s383 + $0x28] sm:$0xf]
        %v396 = vld [vmem:[%s383 + $0x2c] sm:$0xf]
        %v397 = vld [vmem:[%s383 + $0x30] sm:$0xf]
        %v398 = vld [vmem:[%s383 + $0x34] sm:$0xf]
        %v399 = vld [vmem:[%s383 + $0x38] sm:$0xf]
        %v400 = vld [vmem:[%s383 + $0x3c] sm:$0xf]
        %v401 = vld [vmem:[%s383 + $0x40] sm:$0xf]
        %v402 = vld [vmem:[%s383 + $0x44] sm:$0xf]
        %v403 = vld [vmem:[%s383 + $0x48] sm:$0xf]
        %v404 = vld [vmem:[%s383 + $0x4c] sm:$0xf]
        %v405 = vld [vmem:[%s1] sm:$0xf]
        %v406 = vld [vmem:[%s1 + $0x4] sm:$0xf]
        %v407 = vld [vmem:[%s1 + $0x8] sm:$0xf]
        %v408 = vld [vmem:[%s1 + $0xc] sm:$0xf]
        %v409 = vld [vmem:[%s2] sm:$0x1]
        %v411 = vperm.slane %v409, 0
        %v433 = vunpack.c.l.b16 %v385
        %v434 = vunpack.c.l.b16 %v386
        %v435 = vunpack.c.l.b16 %v387
        %v436 = vunpack.c.l.b16 %v388
        %v437 = vunpack.c.l.b16 %v389
        %v438 = vunpack.c.l.b16 %v390
        %v439 = vunpack.c.l.b16 %v391
        %v440 = vunpack.c.l.b16 %v392
        %v441 = vunpack.c.l.b16 %v393
        %v442 = vunpack.c.l.b16 %v394
        %v443 = vunpack.c.l.b16 %v395
        %v444 = vunpack.c.l.b16 %v396
        %v445 = vunpack.c.l.b16 %v397
        %v446 = vunpack.c.l.b16 %v398
        %v447 = vunpack.c.l.b16 %v399
        %v448 = vunpack.c.l.b16 %v400
        %v449 = vunpack.c.l.b16 %v401
        %v450 = vunpack.c.l.b16 %v402
        %v451 = vunpack.c.l.b16 %v403
        %v452 = vunpack.c.l.b16 %v404
        %v453 = vpack.c.b16 %v434, %v433
        %v454 = vpack.c.b16 %v436, %v435
        %v455 = vpack.c.b16 %v438, %v437
        %v456 = vpack.c.b16 %v440, %v439
        %v457 = vpack.c.b16 %v442, %v441
        %v458 = vpack.c.b16 %v444, %v443
        %v459 = vpack.c.b16 %v446, %v445
        %v460 = vpack.c.b16 %v448, %v447
        %v461 = vpack.c.b16 %v450, %v449
        %v462 = vpack.c.b16 %v452, %v451
        %v467 = vunpack.c.l.b16 %v405
        %v468 = vunpack.c.l.b16 %v406
        %v469 = vunpack.c.l.b16 %v407
        %v470 = vunpack.c.l.b16 %v408
        %v471 = vpack.c.b16 %v468, %v467
        %v472 = vpack.c.b16 %v470, %v469
        %vm475 = vcmask 261120
        %v477 = vsel %vm475, %v453, 0
        %v480 = vsel %vm475, %v454, 0
        %v483 = vsel %vm475, %v455, 0
        %v486 = vsel %vm475, %v456, 0
        %v489 = vsel %vm475, %v457, 0
        %v492 = vsel %vm475, %v458, 0
        %v495 = vsel %vm475, %v459, 0
        %v498 = vsel %vm475, %v460, 0
        %v501 = vsel %vm475, %v461, 0
        %v504 = vsel %vm475, %v462, 0
        %506 = vmatpush.bf16.msra.mxu0 0
        %507 = vmatpush.bf16.msra.mxu0 0
        %508 = vmatpush.bf16.msra.mxu0 0
        %509 = vmatpush.bf16.msra.mxu0 0
        %510 = vmatpush.bf16.msra.mxu0 0
        %511 = vmatpush.bf16.msra.mxu0 0
        %512 = vmatpush.bf16.msra.mxu0 %v472
        %513 = vmatpush.bf16.msra.mxu0 %v471
        %514 = vmatmul.bf16.gmra.mxu0 %v477
        %v515 = vpop.f32.mrf.mxu0
        %v516 = vadd.f32 %v411, %v515
        %v517 = vpop.f32.mrf.mxu0
        %v518 = vadd.f32 %v411, %v517
        %519 = vmatmul.bf16.gmra.mxu0 %v480
        %v520 = vpop.f32.mrf.mxu0
        %v521 = vadd.f32 %v411, %v520
        %v522 = vpop.f32.mrf.mxu0
        %v523 = vadd.f32 %v411, %v522
        %524 = vmatmul.bf16.gmra.mxu0 %v483
        %v525 = vpop.f32.mrf.mxu0
        %v526 = vadd.f32 %v411, %v525
        %v527 = vpop.f32.mrf.mxu0
        %v528 = vadd.f32 %v411, %v527
        %529 = vmatmul.bf16.gmra.mxu0 %v486
        %v530 = vpop.f32.mrf.mxu0
        %v531 = vadd.f32 %v411, %v530
        %v532 = vpop.f32.mrf.mxu0
        %v533 = vadd.f32 %v411, %v532
        %534 = vmatmul.bf16.gmra.mxu0 %v489
        %v535 = vpop.f32.mrf.mxu0
        %v536 = vadd.f32 %v411, %v535
        %v537 = vpop.f32.mrf.mxu0
        %v538 = vadd.f32 %v411, %v537
        %539 = vmatmul.bf16.gmra.mxu0 %v492
        %v540 = vpop.f32.mrf.mxu0
        %v541 = vadd.f32 %v411, %v540
        %v542 = vpop.f32.mrf.mxu0
        %v543 = vadd.f32 %v411, %v542
        %544 = vmatmul.bf16.gmra.mxu0 %v495
        %v545 = vpop.f32.mrf.mxu0
        %v546 = vadd.f32 %v411, %v545
        %v547 = vpop.f32.mrf.mxu0
        %v548 = vadd.f32 %v411, %v547
        %549 = vmatmul.bf16.gmra.mxu0 %v498
        %v550 = vpop.f32.mrf.mxu0
        %v551 = vadd.f32 %v411, %v550
        %v552 = vpop.f32.mrf.mxu0
        %v553 = vadd.f32 %v411, %v552
        %554 = vmatmul.bf16.gmra.mxu0 %v501
        %v555 = vpop.f32.mrf.mxu0
        %v556 = vadd.f32 %v411, %v555
        %v557 = vpop.f32.mrf.mxu0
        %v558 = vadd.f32 %v411, %v557
        %559 = vmatmul.bf16.gmra.mxu0 %v504
        %v560 = vpop.f32.mrf.mxu0
        %v561 = vadd.f32 %v411, %v560
        %v562 = vpop.f32.mrf.mxu0
        %v563 = vadd.f32 %v411, %v562
        %564 = vdwg.mxu0
        %v565 = vmax.f32 %v516, 0.0
        %v566 = vmax.f32 %v518, 0.0
        %v567 = vmax.f32 %v521, 0.0
        %v568 = vmax.f32 %v523, 0.0
        %v569 = vmax.f32 %v526, 0.0
        %v570 = vmax.f32 %v528, 0.0
        %v571 = vmax.f32 %v531, 0.0
        %v572 = vmax.f32 %v533, 0.0
        %v573 = vmax.f32 %v536, 0.0
        %v574 = vmax.f32 %v538, 0.0
        %v575 = vmax.f32 %v541, 0.0
        %v576 = vmax.f32 %v543, 0.0
        %v577 = vmax.f32 %v546, 0.0
        %v578 = vmax.f32 %v548, 0.0
        %v579 = vmax.f32 %v551, 0.0
        %v580 = vmax.f32 %v553, 0.0
        %v581 = vmax.f32 %v556, 0.0
        %v582 = vmax.f32 %v558, 0.0
        %v583 = vmax.f32 %v561, 0.0
        %v584 = vmax.f32 %v563, 0.0
        %585 = vst [vmem:[#allocation2] sm:$0xff] %v565
        %586 = vst [vmem:[#allocation2 + $0x8] sm:$0xff] %v566
        %587 = vst [vmem:[#allocation2 + $0x10] sm:$0xff] %v567
        %588 = vst [vmem:[#allocation2 + $0x18] sm:$0xff] %v568
        %589 = vst [vmem:[#allocation2 + $0x20] sm:$0xff] %v569
        %590 = vst [vmem:[#allocation2 + $0x28] sm:$0xff] %v570
        %591 = vst [vmem:[#allocation2 + $0x30] sm:$0xff] %v571
        %592 = vst [vmem:[#allocation2 + $0x38] sm:$0xff] %v572
        %593 = vst [vmem:[#allocation2 + $0x40] sm:$0xff] %v573
        %594 = vst [vmem:[#allocation2 + $0x48] sm:$0xff] %v574
        %595 = vst [vmem:[#allocation2 + $0x50] sm:$0xff] %v575
        %596 = vst [vmem:[#allocation2 + $0x58] sm:$0xff] %v576
        %597 = vst [vmem:[#allocation2 + $0x60] sm:$0xff] %v577
        %598 = vst [vmem:[#allocation2 + $0x68] sm:$0xff] %v578
        %599 = vst [vmem:[#allocation2 + $0x70] sm:$0xff] %v579
        %600 = vst [vmem:[#allocation2 + $0x78] sm:$0xff] %v580
        %601 = vst [vmem:[#allocation2 + $0x80] sm:$0xff] %v581
        %602 = vst [vmem:[#allocation2 + $0x88] sm:$0xff] %v582
        %603 = vst [vmem:[#allocation2 + $0x90] sm:$0xff] %v583
        %604 = vst [vmem:[#allocation2 + $0x98] sm:$0xff] %v584
        %v605 = vld [vmem:[%s383 + $0x50] sm:$0xf]
        %v606 = vld [vmem:[%s383 + $0x54] sm:$0xf]
        %v607 = vld [vmem:[%s383 + $0x58] sm:$0xf]
        %v608 = vld [vmem:[%s383 + $0x5c] sm:$0xf]
        %v609 = vld [vmem:[%s383 + $0x60] sm:$0xf]
        %v610 = vld [vmem:[%s383 + $0x64] sm:$0xf]
        %v611 = vld [vmem:[%s383 + $0x68] sm:$0xf]
        %v612 = vld [vmem:[%s383 + $0x6c] sm:$0xf]
        %v613 = vld [vmem:[%s383 + $0x70] sm:$0xf]
        %v614 = vld [vmem:[%s383 + $0x74] sm:$0xf]
        %v615 = vld [vmem:[%s383 + $0x78] sm:$0xf]
        %v616 = vld [vmem:[%s383 + $0x7c] sm:$0xf]
        %v617 = vld [vmem:[%s383 + $0x80] sm:$0xf]
        %v618 = vld [vmem:[%s383 + $0x84] sm:$0xf]
        %v619 = vld [vmem:[%s383 + $0x88] sm:$0xf]
        %v620 = vld [vmem:[%s383 + $0x8c] sm:$0xf]
        %v621 = vld [vmem:[%s383 + $0x90] sm:$0xf]
        %v622 = vld [vmem:[%s383 + $0x94] sm:$0xf]
        %v623 = vld [vmem:[%s383 + $0x98] sm:$0xf]
        %v624 = vld [vmem:[%s383 + $0x9c] sm:$0xf]
        %v625 = vld [vmem:[%s1] sm:$0xf]
        %v626 = vld [vmem:[%s1 + $0x4] sm:$0xf]
        %v627 = vld [vmem:[%s1 + $0x8] sm:$0xf]
        %v628 = vld [vmem:[%s1 + $0xc] sm:$0xf]
        %v629 = vld [vmem:[%s2] sm:$0x1]
        %v631 = vperm.slane %v629, 0
        %v653 = vunpack.c.l.b16 %v605
        %v654 = vunpack.c.l.b16 %v606
        %v655 = vunpack.c.l.b16 %v607
        %v656 = vunpack.c.l.b16 %v608
        %v657 = vunpack.c.l.b16 %v609
        %v658 = vunpack.c.l.b16 %v610
        %v659 = vunpack.c.l.b16 %v611
        %v660 = vunpack.c.l.b16 %v612
        %v661 = vunpack.c.l.b16 %v613
        %v662 = vunpack.c.l.b16 %v614
        %v663 = vunpack.c.l.b16 %v615
        %v664 = vunpack.c.l.b16 %v616
        %v665 = vunpack.c.l.b16 %v617
        %v666 = vunpack.c.l.b16 %v618
        %v667 = vunpack.c.l.b16 %v619
        %v668 = vunpack.c.l.b16 %v620
        %v669 = vunpack.c.l.b16 %v621
        %v670 = vunpack.c.l.b16 %v622
        %v671 = vunpack.c.l.b16 %v623
        %v672 = vunpack.c.l.b16 %v624
        %v673 = vpack.c.b16 %v654, %v653
        %v674 = vpack.c.b16 %v656, %v655
        %v675 = vpack.c.b16 %v658, %v657
        %v676 = vpack.c.b16 %v660, %v659
        %v677 = vpack.c.b16 %v662, %v661
        %v678 = vpack.c.b16 %v664, %v663
        %v679 = vpack.c.b16 %v666, %v665
        %v680 = vpack.c.b16 %v668, %v667
        %v681 = vpack.c.b16 %v670, %v669
        %v682 = vpack.c.b16 %v672, %v671
        %v687 = vunpack.c.l.b16 %v625
        %v688 = vunpack.c.l.b16 %v626
        %v689 = vunpack.c.l.b16 %v627
        %v690 = vunpack.c.l.b16 %v628
        %v691 = vpack.c.b16 %v688, %v687
        %v692 = vpack.c.b16 %v690, %v689
        %v696 = vsel %vm475, %v673, 0
        %v699 = vsel %vm475, %v674, 0
        %v702 = vsel %vm475, %v675, 0
        %v705 = vsel %vm475, %v676, 0
        %v708 = vsel %vm475, %v677, 0
        %v711 = vsel %vm475, %v678, 0
        %v714 = vsel %vm475, %v679, 0
        %v717 = vsel %vm475, %v680, 0
        %v720 = vsel %vm475, %v681, 0
        %v723 = vsel %vm475, %v682, 0
        %725 = vmatpush.bf16.msra.mxu0 0
        %726 = vmatpush.bf16.msra.mxu0 0
        %727 = vmatpush.bf16.msra.mxu0 0
        %728 = vmatpush.bf16.msra.mxu0 0
        %729 = vmatpush.bf16.msra.mxu0 0
        %730 = vmatpush.bf16.msra.mxu0 0
        %731 = vmatpush.bf16.msra.mxu0 %v692
        %732 = vmatpush.bf16.msra.mxu0 %v691
        %733 = vmatmul.bf16.gmra.mxu0 %v696
        %v734 = vpop.f32.mrf.mxu0
        %v735 = vadd.f32 %v631, %v734
        %v736 = vpop.f32.mrf.mxu0
        %v737 = vadd.f32 %v631, %v736
        %738 = vmatmul.bf16.gmra.mxu0 %v699
        %v739 = vpop.f32.mrf.mxu0
        %v740 = vadd.f32 %v631, %v739
        %v741 = vpop.f32.mrf.mxu0
        %v742 = vadd.f32 %v631, %v741
        %743 = vmatmul.bf16.gmra.mxu0 %v702
        %v744 = vpop.f32.mrf.mxu0
        %v745 = vadd.f32 %v631, %v744
        %v746 = vpop.f32.mrf.mxu0
        %v747 = vadd.f32 %v631, %v746
        %748 = vmatmul.bf16.gmra.mxu0 %v705
        %v749 = vpop.f32.mrf.mxu0
        %v750 = vadd.f32 %v631, %v749
        %v751 = vpop.f32.mrf.mxu0
        %v752 = vadd.f32 %v631, %v751
        %753 = vmatmul.bf16.gmra.mxu0 %v708
        %v754 = vpop.f32.mrf.mxu0
        %v755 = vadd.f32 %v631, %v754
        %v756 = vpop.f32.mrf.mxu0
        %v757 = vadd.f32 %v631, %v756
        %758 = vmatmul.bf16.gmra.mxu0 %v711
        %v759 = vpop.f32.mrf.mxu0
        %v760 = vadd.f32 %v631, %v759
        %v761 = vpop.f32.mrf.mxu0
        %v762 = vadd.f32 %v631, %v761
        %763 = vmatmul.bf16.gmra.mxu0 %v714
        %v764 = vpop.f32.mrf.mxu0
        %v765 = vadd.f32 %v631, %v764
        %v766 = vpop.f32.mrf.mxu0
        %v767 = vadd.f32 %v631, %v766
        %768 = vmatmul.bf16.gmra.mxu0 %v717
        %v769 = vpop.f32.mrf.mxu0
        %v770 = vadd.f32 %v631, %v769
        %v771 = vpop.f32.mrf.mxu0
        %v772 = vadd.f32 %v631, %v771
        %773 = vmatmul.bf16.gmra.mxu0 %v720
        %v774 = vpop.f32.mrf.mxu0
        %v775 = vadd.f32 %v631, %v774
        %v776 = vpop.f32.mrf.mxu0
        %v777 = vadd.f32 %v631, %v776
        %778 = vmatmul.bf16.gmra.mxu0 %v723
        %v779 = vpop.f32.mrf.mxu0
        %v780 = vadd.f32 %v631, %v779
        %v781 = vpop.f32.mrf.mxu0
        %v782 = vadd.f32 %v631, %v781
        %783 = vdwg.mxu0
        %v784 = vmax.f32 %v735, 0.0
        %v785 = vmax.f32 %v737, 0.0
        %v786 = vmax.f32 %v740, 0.0
        %v787 = vmax.f32 %v742, 0.0
        %v788 = vmax.f32 %v745, 0.0
        %v789 = vmax.f32 %v747, 0.0
        %v790 = vmax.f32 %v750, 0.0
        %v791 = vmax.f32 %v752, 0.0
        %v792 = vmax.f32 %v755, 0.0
        %v793 = vmax.f32 %v757, 0.0
        %v794 = vmax.f32 %v760, 0.0
        %v795 = vmax.f32 %v762, 0.0
        %v796 = vmax.f32 %v765, 0.0
        %v797 = vmax.f32 %v767, 0.0
        %v798 = vmax.f32 %v770, 0.0
        %v799 = vmax.f32 %v772, 0.0
        %v800 = vmax.f32 %v775, 0.0
        %v801 = vmax.f32 %v777, 0.0
        %v802 = vmax.f32 %v780, 0.0
        %v803 = vmax.f32 %v782, 0.0
        %804 = vst [vmem:[#allocation2 + $0xa0] sm:$0xff] %v784
        %805 = vst [vmem:[#allocation2 + $0xa8] sm:$0xff] %v785
        %806 = vst [vmem:[#allocation2 + $0xb0] sm:$0xff] %v786
        %807 = vst [vmem:[#allocation2 + $0xb8] sm:$0xff] %v787
        %808 = vst [vmem:[#allocation2 + $0xc0] sm:$0xff] %v788
        %809 = vst [vmem:[#allocation2 + $0xc8] sm:$0xff] %v789
        %810 = vst [vmem:[#allocation2 + $0xd0] sm:$0xff] %v790
        %811 = vst [vmem:[#allocation2 + $0xd8] sm:$0xff] %v791
        %812 = vst [vmem:[#allocation2 + $0xe0] sm:$0xff] %v792
        %813 = vst [vmem:[#allocation2 + $0xe8] sm:$0xff] %v793
        %814 = vst [vmem:[#allocation2 + $0xf0] sm:$0xff] %v794
        %815 = vst [vmem:[#allocation2 + $0xf8] sm:$0xff] %v795
        %816 = vst [vmem:[#allocation2 + $0x100] sm:$0xff] %v796
        %817 = vst [vmem:[#allocation2 + $0x108] sm:$0xff] %v797
        %818 = vst [vmem:[#allocation2 + $0x110] sm:$0xff] %v798
        %819 = vst [vmem:[#allocation2 + $0x118] sm:$0xff] %v799
        %820 = vst [vmem:[#allocation2 + $0x120] sm:$0xff] %v800
        %821 = vst [vmem:[#allocation2 + $0x128] sm:$0xff] %v801
        %822 = vst [vmem:[#allocation2 + $0x130] sm:$0xff] %v802
        %823 = vst [vmem:[#allocation2 + $0x138] sm:$0xff] %v803
        %v824 = vld [vmem:[%s383 + $0xa0] sm:$0xf]
        %v825 = vld [vmem:[%s383 + $0xa4] sm:$0xf]
        %v826 = vld [vmem:[%s383 + $0xa8] sm:$0xf]
        %v827 = vld [vmem:[%s383 + $0xac] sm:$0xf]
        %v828 = vld [vmem:[%s383 + $0xb0] sm:$0xf]
        %v829 = vld [vmem:[%s383 + $0xb4] sm:$0xf]
        %v830 = vld [vmem:[%s383 + $0xb8] sm:$0xf]
        %v831 = vld [vmem:[%s383 + $0xbc] sm:$0xf]
        %v832 = vld [vmem:[%s383 + $0xc0] sm:$0xf]
        %v833 = vld [vmem:[%s383 + $0xc4] sm:$0xf]
        %v834 = vld [vmem:[%s383 + $0xc8] sm:$0xf]
        %v835 = vld [vmem:[%s383 + $0xcc] sm:$0xf]
        %v836 = vld [vmem:[%s383 + $0xd0] sm:$0xf]
        %v837 = vld [vmem:[%s383 + $0xd4] sm:$0xf]
        %v838 = vld [vmem:[%s383 + $0xd8] sm:$0xf]
        %v839 = vld [vmem:[%s383 + $0xdc] sm:$0xf]
        %v840 = vld [vmem:[%s383 + $0xe0] sm:$0xf]
        %v841 = vld [vmem:[%s383 + $0xe4] sm:$0xf]
        %v842 = vld [vmem:[%s383 + $0xe8] sm:$0xf]
        %v843 = vld [vmem:[%s383 + $0xec] sm:$0xf]
        %v844 = vld [vmem:[%s1] sm:$0xf]
        %v845 = vld [vmem:[%s1 + $0x4] sm:$0xf]
        %v846 = vld [vmem:[%s1 + $0x8] sm:$0xf]
        %v847 = vld [vmem:[%s1 + $0xc] sm:$0xf]
        %v848 = vld [vmem:[%s2] sm:$0x1]
        %v850 = vperm.slane %v848, 0
        %v872 = vunpack.c.l.b16 %v824
        %v873 = vunpack.c.l.b16 %v825
        %v874 = vunpack.c.l.b16 %v826
        %v875 = vunpack.c.l.b16 %v827
        %v876 = vunpack.c.l.b16 %v828
        %v877 = vunpack.c.l.b16 %v829
        %v878 = vunpack.c.l.b16 %v830
        %v879 = vunpack.c.l.b16 %v831
        %v880 = vunpack.c.l.b16 %v832
        %v881 = vunpack.c.l.b16 %v833
        %v882 = vunpack.c.l.b16 %v834
        %v883 = vunpack.c.l.b16 %v835
        %v884 = vunpack.c.l.b16 %v836
        %v885 = vunpack.c.l.b16 %v837
        %v886 = vunpack.c.l.b16 %v838
        %v887 = vunpack.c.l.b16 %v839
        %v888 = vunpack.c.l.b16 %v840
        %v889 = vunpack.c.l.b16 %v841
        %v890 = vunpack.c.l.b16 %v842
        %v891 = vunpack.c.l.b16 %v843
        %v892 = vpack.c.b16 %v873, %v872
        %v893 = vpack.c.b16 %v875, %v874
        %v894 = vpack.c.b16 %v877, %v876
        %v895 = vpack.c.b16 %v879, %v878
        %v896 = vpack.c.b16 %v881, %v880
        %v897 = vpack.c.b16 %v883, %v882
        %v898 = vpack.c.b16 %v885, %v884
        %v899 = vpack.c.b16 %v887, %v886
        %v900 = vpack.c.b16 %v889, %v888
        %v901 = vpack.c.b16 %v891, %v890
        %v906 = vunpack.c.l.b16 %v844
        %v907 = vunpack.c.l.b16 %v845
        %v908 = vunpack.c.l.b16 %v846
        %v909 = vunpack.c.l.b16 %v847
        %v910 = vpack.c.b16 %v907, %v906
        %v911 = vpack.c.b16 %v909, %v908
        %v915 = vsel %vm475, %v892, 0
        %v918 = vsel %vm475, %v893, 0
        %v921 = vsel %vm475, %v894, 0
        %v924 = vsel %vm475, %v895, 0
        %v927 = vsel %vm475, %v896, 0
        %v930 = vsel %vm475, %v897, 0
        %v933 = vsel %vm475, %v898, 0
        %v936 = vsel %vm475, %v899, 0
        %v939 = vsel %vm475, %v900, 0
        %v942 = vsel %vm475, %v901, 0
        %944 = vmatpush.bf16.msra.mxu0 0
        %945 = vmatpush.bf16.msra.mxu0 0
        %946 = vmatpush.bf16.msra.mxu0 0
        %947 = vmatpush.bf16.msra.mxu0 0
        %948 = vmatpush.bf16.msra.mxu0 0
        %949 = vmatpush.bf16.msra.mxu0 0
        %950 = vmatpush.bf16.msra.mxu0 %v911
        %951 = vmatpush.bf16.msra.mxu0 %v910
        %952 = vmatmul.bf16.gmra.mxu0 %v915
        %v953 = vpop.f32.mrf.mxu0
        %v954 = vadd.f32 %v850, %v953
        %v955 = vpop.f32.mrf.mxu0
        %v956 = vadd.f32 %v850, %v955
        %957 = vmatmul.bf16.gmra.mxu0 %v918
        %v958 = vpop.f32.mrf.mxu0
        %v959 = vadd.f32 %v850, %v958
        %v960 = vpop.f32.mrf.mxu0
        %v961 = vadd.f32 %v850, %v960
        %962 = vmatmul.bf16.gmra.mxu0 %v921
        %v963 = vpop.f32.mrf.mxu0
        %v964 = vadd.f32 %v850, %v963
        %v965 = vpop.f32.mrf.mxu0
        %v966 = vadd.f32 %v850, %v965
        %967 = vmatmul.bf16.gmra.mxu0 %v924
        %v968 = vpop.f32.mrf.mxu0
        %v969 = vadd.f32 %v850, %v968
        %v970 = vpop.f32.mrf.mxu0
        %v971 = vadd.f32 %v850, %v970
        %972 = vmatmul.bf16.gmra.mxu0 %v927
        %v973 = vpop.f32.mrf.mxu0
        %v974 = vadd.f32 %v850, %v973
        %v975 = vpop.f32.mrf.mxu0
        %v976 = vadd.f32 %v850, %v975
        %977 = vmatmul.bf16.gmra.mxu0 %v930
        %v978 = vpop.f32.mrf.mxu0
        %v979 = vadd.f32 %v850, %v978
        %v980 = vpop.f32.mrf.mxu0
        %v981 = vadd.f32 %v850, %v980
        %982 = vmatmul.bf16.gmra.mxu0 %v933
        %v983 = vpop.f32.mrf.mxu0
        %v984 = vadd.f32 %v850, %v983
        %v985 = vpop.f32.mrf.mxu0
        %v986 = vadd.f32 %v850, %v985
        %987 = vmatmul.bf16.gmra.mxu0 %v936
        %v988 = vpop.f32.mrf.mxu0
        %v989 = vadd.f32 %v850, %v988
        %v990 = vpop.f32.mrf.mxu0
        %v991 = vadd.f32 %v850, %v990
        %992 = vmatmul.bf16.gmra.mxu0 %v939
        %v993 = vpop.f32.mrf.mxu0
        %v994 = vadd.f32 %v850, %v993
        %v995 = vpop.f32.mrf.mxu0
        %v996 = vadd.f32 %v850, %v995
        %997 = vmatmul.bf16.gmra.mxu0 %v942
        %v998 = vpop.f32.mrf.mxu0
        %v999 = vadd.f32 %v850, %v998
        %v1000 = vpop.f32.mrf.mxu0
        %v1001 = vadd.f32 %v850, %v1000
        %1002 = vdwg.mxu0
        %v1003 = vmax.f32 %v954, 0.0
        %v1004 = vmax.f32 %v956, 0.0
        %v1005 = vmax.f32 %v959, 0.0
        %v1006 = vmax.f32 %v961, 0.0
        %v1007 = vmax.f32 %v964, 0.0
        %v1008 = vmax.f32 %v966, 0.0
        %v1009 = vmax.f32 %v969, 0.0
        %v1010 = vmax.f32 %v971, 0.0
        %v1011 = vmax.f32 %v974, 0.0
        %v1012 = vmax.f32 %v976, 0.0
        %v1013 = vmax.f32 %v979, 0.0
        %v1014 = vmax.f32 %v981, 0.0
        %v1015 = vmax.f32 %v984, 0.0
        %v1016 = vmax.f32 %v986, 0.0
        %v1017 = vmax.f32 %v989, 0.0
        %v1018 = vmax.f32 %v991, 0.0
        %v1019 = vmax.f32 %v994, 0.0
        %v1020 = vmax.f32 %v996, 0.0
        %v1021 = vmax.f32 %v999, 0.0
        %v1022 = vmax.f32 %v1001, 0.0
        %1023 = vst [vmem:[#allocation2 + $0x140] sm:$0xff] %v1003
        %1024 = vst [vmem:[#allocation2 + $0x148] sm:$0xff] %v1004
        %1025 = vst [vmem:[#allocation2 + $0x150] sm:$0xff] %v1005
        %1026 = vst [vmem:[#allocation2 + $0x158] sm:$0xff] %v1006
        %1027 = vst [vmem:[#allocation2 + $0x160] sm:$0xff] %v1007
        %1028 = vst [vmem:[#allocation2 + $0x168] sm:$0xff] %v1008
        %1029 = vst [vmem:[#allocation2 + $0x170] sm:$0xff] %v1009
        %1030 = vst [vmem:[#allocation2 + $0x178] sm:$0xff] %v1010
        %1031 = vst [vmem:[#allocation2 + $0x180] sm:$0xff] %v1011
        %1032 = vst [vmem:[#allocation2 + $0x188] sm:$0xff] %v1012
        %1033 = vst [vmem:[#allocation2 + $0x190] sm:$0xff] %v1013
        %1034 = vst [vmem:[#allocation2 + $0x198] sm:$0xff] %v1014
        %1035 = vst [vmem:[#allocation2 + $0x1a0] sm:$0xff] %v1015
        %1036 = vst [vmem:[#allocation2 + $0x1a8] sm:$0xff] %v1016
        %1037 = vst [vmem:[#allocation2 + $0x1b0] sm:$0xff] %v1017
        %1038 = vst [vmem:[#allocation2 + $0x1b8] sm:$0xff] %v1018
        %1039 = vst [vmem:[#allocation2 + $0x1c0] sm:$0xff] %v1019
        %1040 = vst [vmem:[#allocation2 + $0x1c8] sm:$0xff] %v1020
        %1041 = vst [vmem:[#allocation2 + $0x1d0] sm:$0xff] %v1021
        %1042 = vst [vmem:[#allocation2 + $0x1d8] sm:$0xff] %v1022
        %v1043 = vld [vmem:[%s383 + $0xf0] sm:$0xf]
        %v1044 = vld [vmem:[%s383 + $0xf4] sm:$0xf]
        %v1045 = vld [vmem:[%s383 + $0xf8] sm:$0xf]
        %v1046 = vld [vmem:[%s383 + $0xfc] sm:$0xf]
        %v1047 = vld [vmem:[%s383 + $0x100] sm:$0xf]
        %v1048 = vld [vmem:[%s383 + $0x104] sm:$0xf]
        %v1049 = vld [vmem:[%s383 + $0x108] sm:$0xf]
        %v1050 = vld [vmem:[%s383 + $0x10c] sm:$0xf]
        %v1051 = vld [vmem:[%s383 + $0x110] sm:$0xf]
        %v1052 = vld [vmem:[%s383 + $0x114] sm:$0xf]
        %v1053 = vld [vmem:[%s383 + $0x118] sm:$0xf]
        %v1054 = vld [vmem:[%s383 + $0x11c] sm:$0xf]
        %v1055 = vld [vmem:[%s383 + $0x120] sm:$0xf]
        %v1056 = vld [vmem:[%s383 + $0x124] sm:$0xf]
        %v1057 = vld [vmem:[%s383 + $0x128] sm:$0xf]
        %v1058 = vld [vmem:[%s383 + $0x12c] sm:$0xf]
        %v1059 = vld [vmem:[%s383 + $0x130] sm:$0xf]
        %v1060 = vld [vmem:[%s383 + $0x134] sm:$0xf]
        %v1061 = vld [vmem:[%s383 + $0x138] sm:$0xf]
        %v1062 = vld [vmem:[%s383 + $0x13c] sm:$0xf]
        %v1063 = vld [vmem:[%s1] sm:$0xf]
        %v1064 = vld [vmem:[%s1 + $0x4] sm:$0xf]
        %v1065 = vld [vmem:[%s1 + $0x8] sm:$0xf]
        %v1066 = vld [vmem:[%s1 + $0xc] sm:$0xf]
        %v1067 = vld [vmem:[%s2] sm:$0x1]
        %v1069 = vperm.slane %v1067, 0
        %v1091 = vunpack.c.l.b16 %v1043
        %v1092 = vunpack.c.l.b16 %v1044
        %v1093 = vunpack.c.l.b16 %v1045
        %v1094 = vunpack.c.l.b16 %v1046
        %v1095 = vunpack.c.l.b16 %v1047
        %v1096 = vunpack.c.l.b16 %v1048
        %v1097 = vunpack.c.l.b16 %v1049
        %v1098 = vunpack.c.l.b16 %v1050
        %v1099 = vunpack.c.l.b16 %v1051
        %v1100 = vunpack.c.l.b16 %v1052
        %v1101 = vunpack.c.l.b16 %v1053
        %v1102 = vunpack.c.l.b16 %v1054
        %v1103 = vunpack.c.l.b16 %v1055
        %v1104 = vunpack.c.l.b16 %v1056
        %v1105 = vunpack.c.l.b16 %v1057
        %v1106 = vunpack.c.l.b16 %v1058
        %v1107 = vunpack.c.l.b16 %v1059
        %v1108 = vunpack.c.l.b16 %v1060
        %v1109 = vunpack.c.l.b16 %v1061
        %v1110 = vunpack.c.l.b16 %v1062
        %v1111 = vpack.c.b16 %v1092, %v1091
        %v1112 = vpack.c.b16 %v1094, %v1093
        %v1113 = vpack.c.b16 %v1096, %v1095
        %v1114 = vpack.c.b16 %v1098, %v1097
        %v1115 = vpack.c.b16 %v1100, %v1099
        %v1116 = vpack.c.b16 %v1102, %v1101
        %v1117 = vpack.c.b16 %v1104, %v1103
        %v1118 = vpack.c.b16 %v1106, %v1105
        %v1119 = vpack.c.b16 %v1108, %v1107
        %v1120 = vpack.c.b16 %v1110, %v1109
        %v1125 = vunpack.c.l.b16 %v1063
        %v1126 = vunpack.c.l.b16 %v1064
        %v1127 = vunpack.c.l.b16 %v1065
        %v1128 = vunpack.c.l.b16 %v1066
        %v1129 = vpack.c.b16 %v1126, %v1125
        %v1130 = vpack.c.b16 %v1128, %v1127
        %v1134 = vsel %vm475, %v1111, 0
        %v1137 = vsel %vm475, %v1112, 0
        %v1140 = vsel %vm475, %v1113, 0
        %v1143 = vsel %vm475, %v1114, 0
        %v1146 = vsel %vm475, %v1115, 0
        %v1149 = vsel %vm475, %v1116, 0
        %v1152 = vsel %vm475, %v1117, 0
        %v1155 = vsel %vm475, %v1118, 0
        %v1158 = vsel %vm475, %v1119, 0
        %v1161 = vsel %vm475, %v1120, 0
        %1163 = vmatpush.bf16.msra.mxu0 0
        %1164 = vmatpush.bf16.msra.mxu0 0
        %1165 = vmatpush.bf16.msra.mxu0 0
        %1166 = vmatpush.bf16.msra.mxu0 0
        %1167 = vmatpush.bf16.msra.mxu0 0
        %1168 = vmatpush.bf16.msra.mxu0 0
        %1169 = vmatpush.bf16.msra.mxu0 %v1130
        %1170 = vmatpush.bf16.msra.mxu0 %v1129
        %1171 = vmatmul.bf16.gmra.mxu0 %v1134
        %v1172 = vpop.f32.mrf.mxu0
        %v1173 = vadd.f32 %v1069, %v1172
        %v1174 = vpop.f32.mrf.mxu0
        %v1175 = vadd.f32 %v1069, %v1174
        %1176 = vmatmul.bf16.gmra.mxu0 %v1137
        %v1177 = vpop.f32.mrf.mxu0
        %v1178 = vadd.f32 %v1069, %v1177
        %v1179 = vpop.f32.mrf.mxu0
        %v1180 = vadd.f32 %v1069, %v1179
        %1181 = vmatmul.bf16.gmra.mxu0 %v1140
        %v1182 = vpop.f32.mrf.mxu0
        %v1183 = vadd.f32 %v1069, %v1182
        %v1184 = vpop.f32.mrf.mxu0
        %v1185 = vadd.f32 %v1069, %v1184
        %1186 = vmatmul.bf16.gmra.mxu0 %v1143
        %v1187 = vpop.f32.mrf.mxu0
        %v1188 = vadd.f32 %v1069, %v1187
        %v1189 = vpop.f32.mrf.mxu0
        %v1190 = vadd.f32 %v1069, %v1189
        %1191 = vmatmul.bf16.gmra.mxu0 %v1146
        %v1192 = vpop.f32.mrf.mxu0
        %v1193 = vadd.f32 %v1069, %v1192
        %v1194 = vpop.f32.mrf.mxu0
        %v1195 = vadd.f32 %v1069, %v1194
        %1196 = vmatmul.bf16.gmra.mxu0 %v1149
        %v1197 = vpop.f32.mrf.mxu0
        %v1198 = vadd.f32 %v1069, %v1197
        %v1199 = vpop.f32.mrf.mxu0
        %v1200 = vadd.f32 %v1069, %v1199
        %1201 = vmatmul.bf16.gmra.mxu0 %v1152
        %v1202 = vpop.f32.mrf.mxu0
        %v1203 = vadd.f32 %v1069, %v1202
        %v1204 = vpop.f32.mrf.mxu0
        %v1205 = vadd.f32 %v1069, %v1204
        %1206 = vmatmul.bf16.gmra.mxu0 %v1155
        %v1207 = vpop.f32.mrf.mxu0
        %v1208 = vadd.f32 %v1069, %v1207
        %v1209 = vpop.f32.mrf.mxu0
        %v1210 = vadd.f32 %v1069, %v1209
        %1211 = vmatmul.bf16.gmra.mxu0 %v1158
        %v1212 = vpop.f32.mrf.mxu0
        %v1213 = vadd.f32 %v1069, %v1212
        %v1214 = vpop.f32.mrf.mxu0
        %v1215 = vadd.f32 %v1069, %v1214
        %1216 = vmatmul.bf16.gmra.mxu0 %v1161
        %v1217 = vpop.f32.mrf.mxu0
        %v1218 = vadd.f32 %v1069, %v1217
        %v1219 = vpop.f32.mrf.mxu0
        %v1220 = vadd.f32 %v1069, %v1219
        %1221 = vdwg.mxu0
        %v1222 = vmax.f32 %v1173, 0.0
        %v1223 = vmax.f32 %v1175, 0.0
        %v1224 = vmax.f32 %v1178, 0.0
        %v1225 = vmax.f32 %v1180, 0.0
        %v1226 = vmax.f32 %v1183, 0.0
        %v1227 = vmax.f32 %v1185, 0.0
        %v1228 = vmax.f32 %v1188, 0.0
        %v1229 = vmax.f32 %v1190, 0.0
        %v1230 = vmax.f32 %v1193, 0.0
        %v1231 = vmax.f32 %v1195, 0.0
        %v1232 = vmax.f32 %v1198, 0.0
        %v1233 = vmax.f32 %v1200, 0.0
        %v1234 = vmax.f32 %v1203, 0.0
        %v1235 = vmax.f32 %v1205, 0.0
        %v1236 = vmax.f32 %v1208, 0.0
        %v1237 = vmax.f32 %v1210, 0.0
        %v1238 = vmax.f32 %v1213, 0.0
        %v1239 = vmax.f32 %v1215, 0.0
        %v1240 = vmax.f32 %v1218, 0.0
        %v1241 = vmax.f32 %v1220, 0.0
        %1242 = vst [vmem:[#allocation2 + $0x1e0] sm:$0xff] %v1222
        %1243 = vst [vmem:[#allocation2 + $0x1e8] sm:$0xff] %v1223
        %1244 = vst [vmem:[#allocation2 + $0x1f0] sm:$0xff] %v1224
        %1245 = vst [vmem:[#allocation2 + $0x1f8] sm:$0xff] %v1225
        %1246 = vst [vmem:[#allocation2 + $0x200] sm:$0xff] %v1226
        %1247 = vst [vmem:[#allocation2 + $0x208] sm:$0xff] %v1227
        %1248 = vst [vmem:[#allocation2 + $0x210] sm:$0xff] %v1228
        %1249 = vst [vmem:[#allocation2 + $0x218] sm:$0xff] %v1229
        %1250 = vst [vmem:[#allocation2 + $0x220] sm:$0xff] %v1230
        %1251 = vst [vmem:[#allocation2 + $0x228] sm:$0xff] %v1231
        %1252 = vst [vmem:[#allocation2 + $0x230] sm:$0xff] %v1232
        %1253 = vst [vmem:[#allocation2 + $0x238] sm:$0xff] %v1233
        %1254 = vst [vmem:[#allocation2 + $0x240] sm:$0xff] %v1234
        %1255 = vst [vmem:[#allocation2 + $0x248] sm:$0xff] %v1235
        %1256 = vst [vmem:[#allocation2 + $0x250] sm:$0xff] %v1236
        %1257 = vst [vmem:[#allocation2 + $0x258] sm:$0xff] %v1237
        %1258 = vst [vmem:[#allocation2 + $0x260] sm:$0xff] %v1238
        %1259 = vst [vmem:[#allocation2 + $0x268] sm:$0xff] %v1239
        %1260 = vst [vmem:[#allocation2 + $0x270] sm:$0xff] %v1240
        %1261 = vst [vmem:[#allocation2 + $0x278] sm:$0xff] %v1241
        %v1262 = vld [vmem:[%s383 + $0x140] sm:$0xf]
        %v1263 = vld [vmem:[%s383 + $0x144] sm:$0xf]
        %v1264 = vld [vmem:[%s383 + $0x148] sm:$0xf]
        %v1265 = vld [vmem:[%s383 + $0x14c] sm:$0xf]
        %v1266 = vld [vmem:[%s383 + $0x150] sm:$0xf]
        %v1267 = vld [vmem:[%s383 + $0x154] sm:$0xf]
        %v1268 = vld [vmem:[%s383 + $0x158] sm:$0xf]
        %v1269 = vld [vmem:[%s383 + $0x15c] sm:$0xf]
        %v1270 = vld [vmem:[%s383 + $0x160] sm:$0xf]
        %v1271 = vld [vmem:[%s383 + $0x164] sm:$0xf]
        %v1272 = vld [vmem:[%s383 + $0x168] sm:$0xf]
        %v1273 = vld [vmem:[%s383 + $0x16c] sm:$0xf]
        %v1274 = vld [vmem:[%s383 + $0x170] sm:$0xf]
        %v1275 = vld [vmem:[%s383 + $0x174] sm:$0xf]
        %v1276 = vld [vmem:[%s383 + $0x178] sm:$0xf]
        %v1277 = vld [vmem:[%s383 + $0x17c] sm:$0xf]
        %v1278 = vld [vmem:[%s383 + $0x180] sm:$0xf]
        %v1279 = vld [vmem:[%s383 + $0x184] sm:$0xf]
        %v1280 = vld [vmem:[%s383 + $0x188] sm:$0xf]
        %v1281 = vld [vmem:[%s383 + $0x18c] sm:$0xf]
        %v1282 = vld [vmem:[%s1] sm:$0xf]
        %v1283 = vld [vmem:[%s1 + $0x4] sm:$0xf]
        %v1284 = vld [vmem:[%s1 + $0x8] sm:$0xf]
        %v1285 = vld [vmem:[%s1 + $0xc] sm:$0xf]
        %v1286 = vld [vmem:[%s2] sm:$0x1]
        %v1288 = vperm.slane %v1286, 0
        %v1310 = vunpack.c.l.b16 %v1262
        %v1311 = vunpack.c.l.b16 %v1263
        %v1312 = vunpack.c.l.b16 %v1264
        %v1313 = vunpack.c.l.b16 %v1265
        %v1314 = vunpack.c.l.b16 %v1266
        %v1315 = vunpack.c.l.b16 %v1267
        %v1316 = vunpack.c.l.b16 %v1268
        %v1317 = vunpack.c.l.b16 %v1269
        %v1318 = vunpack.c.l.b16 %v1270
        %v1319 = vunpack.c.l.b16 %v1271
        %v1320 = vunpack.c.l.b16 %v1272
        %v1321 = vunpack.c.l.b16 %v1273
        %v1322 = vunpack.c.l.b16 %v1274
        %v1323 = vunpack.c.l.b16 %v1275
        %v1324 = vunpack.c.l.b16 %v1276
        %v1325 = vunpack.c.l.b16 %v1277
        %v1326 = vunpack.c.l.b16 %v1278
        %v1327 = vunpack.c.l.b16 %v1279
        %v1328 = vunpack.c.l.b16 %v1280
        %v1329 = vunpack.c.l.b16 %v1281
        %v1330 = vpack.c.b16 %v1311, %v1310
        %v1331 = vpack.c.b16 %v1313, %v1312
        %v1332 = vpack.c.b16 %v1315, %v1314
        %v1333 = vpack.c.b16 %v1317, %v1316
        %v1334 = vpack.c.b16 %v1319, %v1318
        %v1335 = vpack.c.b16 %v1321, %v1320
        %v1336 = vpack.c.b16 %v1323, %v1322
        %v1337 = vpack.c.b16 %v1325, %v1324
        %v1338 = vpack.c.b16 %v1327, %v1326
        %v1339 = vpack.c.b16 %v1329, %v1328
        %v1344 = vunpack.c.l.b16 %v1282
        %v1345 = vunpack.c.l.b16 %v1283
        %v1346 = vunpack.c.l.b16 %v1284
        %v1347 = vunpack.c.l.b16 %v1285
        %v1348 = vpack.c.b16 %v1345, %v1344
        %v1349 = vpack.c.b16 %v1347, %v1346
        %v1353 = vsel %vm475, %v1330, 0
        %v1356 = vsel %vm475, %v1331, 0
        %v1359 = vsel %vm475, %v1332, 0
        %v1362 = vsel %vm475, %v1333, 0
        %v1365 = vsel %vm475, %v1334, 0
        %v1368 = vsel %vm475, %v1335, 0
        %v1371 = vsel %vm475, %v1336, 0
        %v1374 = vsel %vm475, %v1337, 0
        %v1377 = vsel %vm475, %v1338, 0
        %v1380 = vsel %vm475, %v1339, 0
        %1382 = vmatpush.bf16.msra.mxu0 0
        %1383 = vmatpush.bf16.msra.mxu0 0
        %1384 = vmatpush.bf16.msra.mxu0 0
        %1385 = vmatpush.bf16.msra.mxu0 0
        %1386 = vmatpush.bf16.msra.mxu0 0
        %1387 = vmatpush.bf16.msra.mxu0 0
        %1388 = vmatpush.bf16.msra.mxu0 %v1349
        %1389 = vmatpush.bf16.msra.mxu0 %v1348
        %1390 = vmatmul.bf16.gmra.mxu0 %v1353
        %v1391 = vpop.f32.mrf.mxu0
        %v1392 = vadd.f32 %v1288, %v1391
        %v1393 = vpop.f32.mrf.mxu0
        %v1394 = vadd.f32 %v1288, %v1393
        %1395 = vmatmul.bf16.gmra.mxu0 %v1356
        %v1396 = vpop.f32.mrf.mxu0
        %v1397 = vadd.f32 %v1288, %v1396
        %v1398 = vpop.f32.mrf.mxu0
        %v1399 = vadd.f32 %v1288, %v1398
        %1400 = vmatmul.bf16.gmra.mxu0 %v1359
        %v1401 = vpop.f32.mrf.mxu0
        %v1402 = vadd.f32 %v1288, %v1401
        %v1403 = vpop.f32.mrf.mxu0
        %v1404 = vadd.f32 %v1288, %v1403
        %1405 = vmatmul.bf16.gmra.mxu0 %v1362
        %v1406 = vpop.f32.mrf.mxu0
        %v1407 = vadd.f32 %v1288, %v1406
        %v1408 = vpop.f32.mrf.mxu0
        %v1409 = vadd.f32 %v1288, %v1408
        %1410 = vmatmul.bf16.gmra.mxu0 %v1365
        %v1411 = vpop.f32.mrf.mxu0
        %v1412 = vadd.f32 %v1288, %v1411
        %v1413 = vpop.f32.mrf.mxu0
        %v1414 = vadd.f32 %v1288, %v1413
        %1415 = vmatmul.bf16.gmra.mxu0 %v1368
        %v1416 = vpop.f32.mrf.mxu0
        %v1417 = vadd.f32 %v1288, %v1416
        %v1418 = vpop.f32.mrf.mxu0
        %v1419 = vadd.f32 %v1288, %v1418
        %1420 = vmatmul.bf16.gmra.mxu0 %v1371
        %v1421 = vpop.f32.mrf.mxu0
        %v1422 = vadd.f32 %v1288, %v1421
        %v1423 = vpop.f32.mrf.mxu0
        %v1424 = vadd.f32 %v1288, %v1423
        %1425 = vmatmul.bf16.gmra.mxu0 %v1374
        %v1426 = vpop.f32.mrf.mxu0
        %v1427 = vadd.f32 %v1288, %v1426
        %v1428 = vpop.f32.mrf.mxu0
        %v1429 = vadd.f32 %v1288, %v1428
        %1430 = vmatmul.bf16.gmra.mxu0 %v1377
        %v1431 = vpop.f32.mrf.mxu0
        %v1432 = vadd.f32 %v1288, %v1431
        %v1433 = vpop.f32.mrf.mxu0
        %v1434 = vadd.f32 %v1288, %v1433
        %1435 = vmatmul.bf16.gmra.mxu0 %v1380
        %v1436 = vpop.f32.mrf.mxu0
        %v1437 = vadd.f32 %v1288, %v1436
        %v1438 = vpop.f32.mrf.mxu0
        %v1439 = vadd.f32 %v1288, %v1438
        %1440 = vdwg.mxu0
        %v1441 = vmax.f32 %v1392, 0.0
        %v1442 = vmax.f32 %v1394, 0.0
        %v1443 = vmax.f32 %v1397, 0.0
        %v1444 = vmax.f32 %v1399, 0.0
        %v1445 = vmax.f32 %v1402, 0.0
        %v1446 = vmax.f32 %v1404, 0.0
        %v1447 = vmax.f32 %v1407, 0.0
        %v1448 = vmax.f32 %v1409, 0.0
        %v1449 = vmax.f32 %v1412, 0.0
        %v1450 = vmax.f32 %v1414, 0.0
        %v1451 = vmax.f32 %v1417, 0.0
        %v1452 = vmax.f32 %v1419, 0.0
        %v1453 = vmax.f32 %v1422, 0.0
        %v1454 = vmax.f32 %v1424, 0.0
        %v1455 = vmax.f32 %v1427, 0.0
        %v1456 = vmax.f32 %v1429, 0.0
        %v1457 = vmax.f32 %v1432, 0.0
        %v1458 = vmax.f32 %v1434, 0.0
        %v1459 = vmax.f32 %v1437, 0.0
        %v1460 = vmax.f32 %v1439, 0.0
        %1461 = vst [vmem:[#allocation2 + $0x280] sm:$0xff] %v1441
        %1462 = vst [vmem:[#allocation2 + $0x288] sm:$0xff] %v1442
        %1463 = vst [vmem:[#allocation2 + $0x290] sm:$0xff] %v1443
        %1464 = vst [vmem:[#allocation2 + $0x298] sm:$0xff] %v1444
        %1465 = vst [vmem:[#allocation2 + $0x2a0] sm:$0xff] %v1445
        %1466 = vst [vmem:[#allocation2 + $0x2a8] sm:$0xff] %v1446
        %1467 = vst [vmem:[#allocation2 + $0x2b0] sm:$0xff] %v1447
        %1468 = vst [vmem:[#allocation2 + $0x2b8] sm:$0xff] %v1448
        %1469 = vst [vmem:[#allocation2 + $0x2c0] sm:$0xff] %v1449
        %1470 = vst [vmem:[#allocation2 + $0x2c8] sm:$0xff] %v1450
        %1471 = vst [vmem:[#allocation2 + $0x2d0] sm:$0xff] %v1451
        %1472 = vst [vmem:[#allocation2 + $0x2d8] sm:$0xff] %v1452
        %1473 = vst [vmem:[#allocation2 + $0x2e0] sm:$0xff] %v1453
        %1474 = vst [vmem:[#allocation2 + $0x2e8] sm:$0xff] %v1454
        %1475 = vst [vmem:[#allocation2 + $0x2f0] sm:$0xff] %v1455
        %1476 = vst [vmem:[#allocation2 + $0x2f8] sm:$0xff] %v1456
        %1477 = vst [vmem:[#allocation2 + $0x300] sm:$0xff] %v1457
        %1478 = vst [vmem:[#allocation2 + $0x308] sm:$0xff] %v1458
        %1479 = vst [vmem:[#allocation2 + $0x310] sm:$0xff] %v1459
        %1480 = vst [vmem:[#allocation2 + $0x318] sm:$0xff] %v1460
        %v1481 = vld [vmem:[#allocation2] sm:$0xff]
        %v1482 = vld [vmem:[#allocation2 + $0x8] sm:$0xff]
        %v1483 = vld [vmem:[#allocation2 + $0x10] sm:$0xff]
        %v1484 = vld [vmem:[#allocation2 + $0x18] sm:$0xff]
        %v1485 = vld [vmem:[#allocation2 + $0x20] sm:$0xff]
        %v1486 = vld [vmem:[#allocation2 + $0x28] sm:$0xff]
        %v1487 = vld [vmem:[#allocation2 + $0x30] sm:$0xff]
        %v1488 = vld [vmem:[#allocation2 + $0x38] sm:$0xff]
        %v1489 = vld [vmem:[#allocation2 + $0x40] sm:$0xff]
        %v1490 = vld [vmem:[#allocation2 + $0x48] sm:$0xff]
        %v1491 = vld [vmem:[#allocation2 + $0x50] sm:$0xff]
        %v1492 = vld [vmem:[#allocation2 + $0x58] sm:$0xff]
        %v1493 = vld [vmem:[#allocation2 + $0x60] sm:$0xff]
        %v1494 = vld [vmem:[#allocation2 + $0x68] sm:$0xff]
        %v1495 = vld [vmem:[#allocation2 + $0x70] sm:$0xff]
        %v1496 = vld [vmem:[#allocation2 + $0x78] sm:$0xff]
        %v1497 = vld [vmem:[#allocation2 + $0x80] sm:$0xff]
        %v1498 = vld [vmem:[#allocation2 + $0x88] sm:$0xff]
        %v1499 = vld [vmem:[#allocation2 + $0x90] sm:$0xff]
        %v1500 = vld [vmem:[#allocation2 + $0x98] sm:$0xff]
        %v1501 = vld [vmem:[#allocation2 + $0xa0] sm:$0xff]
        %v1502 = vld [vmem:[#allocation2 + $0xa8] sm:$0xff]
        %v1503 = vld [vmem:[#allocation2 + $0xb0] sm:$0xff]
        %v1504 = vld [vmem:[#allocation2 + $0xb8] sm:$0xff]
        %v1505 = vld [vmem:[#allocation2 + $0xc0] sm:$0xf]
        %v1506 = vld [vmem:[#allocation2 + $0xc8] sm:$0xff]
        %v1507 = vld [vmem:[#allocation2 + $0xd0] sm:$0xff]
        %v1508 = vld [vmem:[#allocation2 + $0xd8] sm:$0xff]
        %v1509 = vld [vmem:[#allocation2 + $0xe0] sm:$0xff]
        %v1510 = vld [vmem:[#allocation2 + $0xe8] sm:$0xff]
        %v1511 = vld [vmem:[#allocation2 + $0xf0] sm:$0xff]
        %v1512 = vld [vmem:[#allocation2 + $0xf8] sm:$0xff]
        %v1513 = vld [vmem:[#allocation2 + $0x100] sm:$0xff]
        %v1514 = vld [vmem:[#allocation2 + $0x108] sm:$0xff]
        %v1515 = vld [vmem:[#allocation2 + $0x110] sm:$0xff]
        %v1516 = vld [vmem:[#allocation2 + $0x118] sm:$0xff]
        %v1517 = vld [vmem:[#allocation2 + $0x120] sm:$0xff]
        %v1518 = vld [vmem:[#allocation2 + $0x128] sm:$0xff]
        %v1519 = vld [vmem:[#allocation2 + $0x130] sm:$0xff]
        %v1520 = vld [vmem:[#allocation2 + $0x138] sm:$0xff]
        %v1521 = vld [vmem:[#allocation2 + $0x140] sm:$0xff]
        %v1522 = vld [vmem:[#allocation2 + $0x148] sm:$0xff]
        %v1523 = vld [vmem:[#allocation2 + $0x150] sm:$0xff]
        %v1524 = vld [vmem:[#allocation2 + $0x158] sm:$0xff]
        %v1525 = vld [vmem:[#allocation2 + $0x160] sm:$0xff]
        %v1526 = vld [vmem:[#allocation2 + $0x168] sm:$0xff]
        %v1527 = vld [vmem:[#allocation2 + $0x170] sm:$0xff]
        %v1528 = vld [vmem:[#allocation2 + $0x178] sm:$0xff]
        %v1529 = vld [vmem:[#allocation2 + $0x180] sm:$0xff]
        %v1530 = vld [vmem:[#allocation2 + $0x188] sm:$0xf]
        %v1531 = vmax.f32 %v1481, %v1506
        %v1532 = vmax.f32 %v1482, %v1507
        %v1533 = vmax.f32 %v1483, %v1508
        %v1534 = vmax.f32 %v1484, %v1509
        %v1535 = vmax.f32 %v1485, %v1510
        %v1536 = vmax.f32 %v1486, %v1511
        %v1537 = vmax.f32 %v1487, %v1512
        %v1538 = vmax.f32 %v1488, %v1513
        %v1539 = vmax.f32 %v1489, %v1514
        %v1540 = vmax.f32 %v1490, %v1515
        %v1541 = vmax.f32 %v1491, %v1516
        %v1542 = vmax.f32 %v1492, %v1517
        %v1543 = vmax.f32 %v1493, %v1518
        %v1544 = vmax.f32 %v1494, %v1519
        %v1545 = vmax.f32 %v1495, %v1520
        %v1546 = vmax.f32 %v1496, %v1521
        %v1547 = vmax.f32 %v1497, %v1522
        %v1548 = vmax.f32 %v1498, %v1523
        %v1549 = vmax.f32 %v1499, %v1524
        %v1550 = vmax.f32 %v1500, %v1525
        %v1551 = vmax.f32 %v1501, %v1526
        %v1552 = vmax.f32 %v1502, %v1527
        %v1553 = vmax.f32 %v1503, %v1528
        %v1554 = vmax.f32 %v1504, %v1529
        %v1555 = vmax.f32 %v1505, %v1530
        %v1556 = vld [vmem:[#allocation2 + $0x190] sm:$0xff]
        %v1557 = vld [vmem:[#allocation2 + $0x198] sm:$0xff]
        %v1558 = vld [vmem:[#allocation2 + $0x1a0] sm:$0xff]
        %v1559 = vld [vmem:[#allocation2 + $0x1a8] sm:$0xff]
        %v1560 = vld [vmem:[#allocation2 + $0x1b0] sm:$0xff]
        %v1561 = vld [vmem:[#allocation2 + $0x1b8] sm:$0xff]
        %v1562 = vld [vmem:[#allocation2 + $0x1c0] sm:$0xff]
        %v1563 = vld [vmem:[#allocation2 + $0x1c8] sm:$0xff]
        %v1564 = vld [vmem:[#allocation2 + $0x1d0] sm:$0xff]
        %v1565 = vld [vmem:[#allocation2 + $0x1d8] sm:$0xff]
        %v1566 = vld [vmem:[#allocation2 + $0x1e0] sm:$0xff]
        %v1567 = vld [vmem:[#allocation2 + $0x1e8] sm:$0xff]
        %v1568 = vld [vmem:[#allocation2 + $0x1f0] sm:$0xff]
        %v1569 = vld [vmem:[#allocation2 + $0x1f8] sm:$0xff]
        %v1570 = vld [vmem:[#allocation2 + $0x200] sm:$0xff]
        %v1571 = vld [vmem:[#allocation2 + $0x208] sm:$0xff]
        %v1572 = vld [vmem:[#allocation2 + $0x210] sm:$0xff]
        %v1573 = vld [vmem:[#allocation2 + $0x218] sm:$0xff]
        %v1574 = vld [vmem:[#allocation2 + $0x220] sm:$0xff]
        %v1575 = vld [vmem:[#allocation2 + $0x228] sm:$0xff]
        %v1576 = vld [vmem:[#allocation2 + $0x230] sm:$0xff]
        %v1577 = vld [vmem:[#allocation2 + $0x238] sm:$0xff]
        %v1578 = vld [vmem:[#allocation2 + $0x240] sm:$0xff]
        %v1579 = vld [vmem:[#allocation2 + $0x248] sm:$0xff]
        %v1580 = vld [vmem:[#allocation2 + $0x250] sm:$0xf]
        %v1581 = vld [vmem:[#allocation2 + $0x258] sm:$0xff]
        %v1582 = vld [vmem:[#allocation2 + $0x260] sm:$0xff]
        %v1583 = vld [vmem:[#allocation2 + $0x268] sm:$0xff]
        %v1584 = vld [vmem:[#allocation2 + $0x270] sm:$0xff]
        %v1585 = vld [vmem:[#allocation2 + $0x278] sm:$0xff]
        %v1586 = vld [vmem:[#allocation2 + $0x280] sm:$0xff]
        %v1587 = vld [vmem:[#allocation2 + $0x288] sm:$0xff]
        %v1588 = vld [vmem:[#allocation2 + $0x290] sm:$0xff]
        %v1589 = vld [vmem:[#allocation2 + $0x298] sm:$0xff]
        %v1590 = vld [vmem:[#allocation2 + $0x2a0] sm:$0xff]
        %v1591 = vld [vmem:[#allocation2 + $0x2a8] sm:$0xff]
        %v1592 = vld [vmem:[#allocation2 + $0x2b0] sm:$0xff]
        %v1593 = vld [vmem:[#allocation2 + $0x2b8] sm:$0xff]
        %v1594 = vld [vmem:[#allocation2 + $0x2c0] sm:$0xff]
        %v1595 = vld [vmem:[#allocation2 + $0x2c8] sm:$0xff]
        %v1596 = vld [vmem:[#allocation2 + $0x2d0] sm:$0xff]
        %v1597 = vld [vmem:[#allocation2 + $0x2d8] sm:$0xff]
        %v1598 = vld [vmem:[#allocation2 + $0x2e0] sm:$0xff]
        %v1599 = vld [vmem:[#allocation2 + $0x2e8] sm:$0xff]
        %v1600 = vld [vmem:[#allocation2 + $0x2f0] sm:$0xff]
        %v1601 = vld [vmem:[#allocation2 + $0x2f8] sm:$0xff]
        %v1602 = vld [vmem:[#allocation2 + $0x300] sm:$0xff]
        %v1603 = vld [vmem:[#allocation2 + $0x308] sm:$0xff]
        %v1604 = vld [vmem:[#allocation2 + $0x310] sm:$0xff]
        %v1605 = vld [vmem:[#allocation2 + $0x318] sm:$0xf]
        %v1606 = vmax.f32 %v1556, %v1581
        %v1607 = vmax.f32 %v1557, %v1582
        %v1608 = vmax.f32 %v1558, %v1583
        %v1609 = vmax.f32 %v1559, %v1584
        %v1610 = vmax.f32 %v1560, %v1585
        %v1611 = vmax.f32 %v1561, %v1586
        %v1612 = vmax.f32 %v1562, %v1587
        %v1613 = vmax.f32 %v1563, %v1588
        %v1614 = vmax.f32 %v1564, %v1589
        %v1615 = vmax.f32 %v1565, %v1590
        %v1616 = vmax.f32 %v1566, %v1591
        %v1617 = vmax.f32 %v1567, %v1592
        %v1618 = vmax.f32 %v1568, %v1593
        %v1619 = vmax.f32 %v1569, %v1594
        %v1620 = vmax.f32 %v1570, %v1595
        %v1621 = vmax.f32 %v1571, %v1596
        %v1622 = vmax.f32 %v1572, %v1597
        %v1623 = vmax.f32 %v1573, %v1598
        %v1624 = vmax.f32 %v1574, %v1599
        %v1625 = vmax.f32 %v1575, %v1600
        %v1626 = vmax.f32 %v1576, %v1601
        %v1627 = vmax.f32 %v1577, %v1602
        %v1628 = vmax.f32 %v1578, %v1603
        %v1629 = vmax.f32 %v1579, %v1604
        %v1630 = vmax.f32 %v1580, %v1605
        %v1631 = vmax.f32 %v1531, %v1606
        %v1632 = vmax.f32 %v1532, %v1607
        %v1633 = vmax.f32 %v1533, %v1608
        %v1634 = vmax.f32 %v1534, %v1609
        %v1635 = vmax.f32 %v1535, %v1610
        %v1636 = vmax.f32 %v1536, %v1611
        %v1637 = vmax.f32 %v1537, %v1612
        %v1638 = vmax.f32 %v1538, %v1613
        %v1639 = vmax.f32 %v1539, %v1614
        %v1640 = vmax.f32 %v1540, %v1615
        %v1641 = vmax.f32 %v1541, %v1616
        %v1642 = vmax.f32 %v1542, %v1617
        %v1643 = vmax.f32 %v1543, %v1618
        %v1644 = vmax.f32 %v1544, %v1619
        %v1645 = vmax.f32 %v1545, %v1620
        %v1646 = vmax.f32 %v1546, %v1621
        %v1647 = vmax.f32 %v1547, %v1622
        %v1648 = vmax.f32 %v1548, %v1623
        %v1649 = vmax.f32 %v1549, %v1624
        %v1650 = vmax.f32 %v1550, %v1625
        %v1651 = vmax.f32 %v1551, %v1626
        %v1652 = vmax.f32 %v1552, %v1627
        %v1653 = vmax.f32 %v1553, %v1628
        %v1654 = vmax.f32 %v1554, %v1629
        %v1655 = vmax.f32 %v1555, %v1630
        %1656 = vst [vmem:[#allocation3] sm:$0xff] %v1631
        %1657 = vst [vmem:[#allocation3 + $0x8] sm:$0xff] %v1632
        %1658 = vst [vmem:[#allocation3 + $0x10] sm:$0xff] %v1633
        %1659 = vst [vmem:[#allocation3 + $0x18] sm:$0xff] %v1634
        %1660 = vst [vmem:[#allocation3 + $0x20] sm:$0xff] %v1635
        %1661 = vst [vmem:[#allocation3 + $0x28] sm:$0xff] %v1636
        %1662 = vst [vmem:[#allocation3 + $0x30] sm:$0xff] %v1637
        %1663 = vst [vmem:[#allocation3 + $0x38] sm:$0xff] %v1638
        %1664 = vst [vmem:[#allocation3 + $0x40] sm:$0xff] %v1639
        %1665 = vst [vmem:[#allocation3 + $0x48] sm:$0xff] %v1640
        %1666 = vst [vmem:[#allocation3 + $0x50] sm:$0xff] %v1641
        %1667 = vst [vmem:[#allocation3 + $0x58] sm:$0xff] %v1642
        %1668 = vst [vmem:[#allocation3 + $0x60] sm:$0xff] %v1643
        %1669 = vst [vmem:[#allocation3 + $0x68] sm:$0xff] %v1644
        %1670 = vst [vmem:[#allocation3 + $0x70] sm:$0xff] %v1645
        %1671 = vst [vmem:[#allocation3 + $0x78] sm:$0xff] %v1646
        %1672 = vst [vmem:[#allocation3 + $0x80] sm:$0xff] %v1647
        %1673 = vst [vmem:[#allocation3 + $0x88] sm:$0xff] %v1648
        %1674 = vst [vmem:[#allocation3 + $0x90] sm:$0xff] %v1649
        %1675 = vst [vmem:[#allocation3 + $0x98] sm:$0xff] %v1650
        %1676 = vst [vmem:[#allocation3 + $0xa0] sm:$0xff] %v1651
        %1677 = vst [vmem:[#allocation3 + $0xa8] sm:$0xff] %v1652
        %1678 = vst [vmem:[#allocation3 + $0xb0] sm:$0xff] %v1653
        %1679 = vst [vmem:[#allocation3 + $0xb8] sm:$0xff] %v1654
        %1680 = vst [vmem:[#allocation3 + $0xc0] sm:$0xf] %v1655
        %v1681 = vld [vmem:[#allocation3] sm:$0xff]
        %v1682 = vld [vmem:[#allocation3 + $0x8] sm:$0xff]
        %v1683 = vld [vmem:[#allocation3 + $0x10] sm:$0xff]
        %v1684 = vld [vmem:[#allocation3 + $0x18] sm:$0xff]
        %v1685 = vld [vmem:[#allocation3 + $0x20] sm:$0xff]
        %v1686 = vld [vmem:[#allocation3 + $0x28] sm:$0xff]
        %v1687 = vld [vmem:[#allocation3 + $0x30] sm:$0xff]
        %v1688 = vld [vmem:[#allocation3 + $0x38] sm:$0xff]
        %v1689 = vld [vmem:[#allocation3 + $0x40] sm:$0xff]
        %v1690 = vld [vmem:[#allocation3 + $0x48] sm:$0xff]
        %v1691 = vld [vmem:[#allocation3 + $0x50] sm:$0xff]
        %v1692 = vld [vmem:[#allocation3 + $0x58] sm:$0xff]
        %v1693 = vld [vmem:[#allocation3 + $0x60] sm:$0xff]
        %v1694 = vld [vmem:[#allocation3 + $0x68] sm:$0xff]
        %v1695 = vld [vmem:[#allocation3 + $0x70] sm:$0xff]
        %v1696 = vld [vmem:[#allocation3 + $0x78] sm:$0xff]
        %v1697 = vld [vmem:[#allocation3 + $0x80] sm:$0xff]
        %v1698 = vpack.c.bf16 %v1682, %v1681
        %v1699 = vpack.c.bf16 %v1684, %v1683
        %v1700 = vpack.c.bf16 %v1686, %v1685
        %v1701 = vpack.c.bf16 %v1688, %v1687
        %v1702 = vpack.c.bf16 %v1690, %v1689
        %v1703 = vpack.c.bf16 %v1692, %v1691
        %v1704 = vpack.c.bf16 %v1694, %v1693
        %v1705 = vpack.c.bf16 %v1696, %v1695
        %v1706 = vpack.c.bf16 %v1697, %v1697
        %v1707 = vld [vmem:[%s3] sm:$0xf]
        %v1708 = vld [vmem:[%s3 + $0x4] sm:$0xf]
        %v1709 = vld [vmem:[%s3 + $0x8] sm:$0xf]
        %v1710 = vld [vmem:[%s3 + $0xc] sm:$0xf]
        %v1711 = vld [vmem:[%s3 + $0x10] sm:$0xf]
        %v1712 = vld [vmem:[%s3 + $0x14] sm:$0xf]
        %v1713 = vld [vmem:[%s3 + $0x18] sm:$0xf]
        %v1714 = vld [vmem:[%s3 + $0x1c] sm:$0xf]
        %v1715 = vld [vmem:[%s3 + $0x20] sm:$0xf]
        %v1716 = vld [vmem:[%s3 + $0x24] sm:$0xf]
        %v1717 = vld [vmem:[%s3 + $0x28] sm:$0xf]
        %v1718 = vld [vmem:[%s3 + $0x2c] sm:$0xf]
        %v1719 = vld [vmem:[%s3 + $0x30] sm:$0xf]
        %v1720 = vld [vmem:[%s3 + $0x34] sm:$0xf]
        %v1721 = vld [vmem:[%s3 + $0x38] sm:$0xf]
        %v1722 = vld [vmem:[%s3 + $0x3c] sm:$0xf]
        %v1723 = vld [vmem:[#allocation3 + $0x1] sm:$0xff]
        %v1724 = vld [vmem:[#allocation3 + $0x9] sm:$0xff]
        %v1725 = vld [vmem:[#allocation3 + $0x11] sm:$0xff]
        %v1726 = vld [vmem:[#allocation3 + $0x19] sm:$0xff]
        %v1727 = vld [vmem:[#allocation3 + $0x21] sm:$0xff]
        %v1728 = vld [vmem:[#allocation3 + $0x29] sm:$0xff]
        %v1729 = vld [vmem:[#allocation3 + $0x31] sm:$0xff]
        %v1730 = vld [vmem:[#allocation3 + $0x39] sm:$0xff]
        %v1731 = vld [vmem:[#allocation3 + $0x41] sm:$0xff]
        %v1732 = vld [vmem:[#allocation3 + $0x49] sm:$0xff]
        %v1733 = vld [vmem:[#allocation3 + $0x51] sm:$0xff]
        %v1734 = vld [vmem:[#allocation3 + $0x59] sm:$0xff]
        %v1735 = vld [vmem:[#allocation3 + $0x61] sm:$0xff]
        %v1736 = vld [vmem:[#allocation3 + $0x69] sm:$0xff]
        %v1737 = vld [vmem:[#allocation3 + $0x71] sm:$0xff]
        %v1738 = vld [vmem:[#allocation3 + $0x79] sm:$0xff]
        %v1739 = vld [vmem:[#allocation3 + $0x81] sm:$0xff]
        %v1740 = vpack.c.bf16 %v1724, %v1723
        %v1741 = vpack.c.bf16 %v1726, %v1725
        %v1742 = vpack.c.bf16 %v1728, %v1727
        %v1743 = vpack.c.bf16 %v1730, %v1729
        %v1744 = vpack.c.bf16 %v1732, %v1731
        %v1745 = vpack.c.bf16 %v1734, %v1733
        %v1746 = vpack.c.bf16 %v1736, %v1735
        %v1747 = vpack.c.bf16 %v1738, %v1737
        %v1748 = vpack.c.bf16 %v1739, %v1739
        %s1749 = scalar_lea.vmem %s3, 64
        %v1750 = vld [vmem:[%s1749] sm:$0xf]
        %v1751 = vld [vmem:[%s1749 + $0x4] sm:$0xf]
        %v1752 = vld [vmem:[%s1749 + $0x8] sm:$0xf]
        %v1753 = vld [vmem:[%s1749 + $0xc] sm:$0xf]
        %v1754 = vld [vmem:[%s1749 + $0x10] sm:$0xf]
        %v1755 = vld [vmem:[%s1749 + $0x14] sm:$0xf]
        %v1756 = vld [vmem:[%s1749 + $0x18] sm:$0xf]
        %v1757 = vld [vmem:[%s1749 + $0x1c] sm:$0xf]
        %v1758 = vld [vmem:[%s1749 + $0x20] sm:$0xf]
        %v1759 = vld [vmem:[%s1749 + $0x24] sm:$0xf]
        %v1760 = vld [vmem:[%s1749 + $0x28] sm:$0xf]
        %v1761 = vld [vmem:[%s1749 + $0x2c] sm:$0xf]
        %v1762 = vld [vmem:[%s1749 + $0x30] sm:$0xf]
        %v1763 = vld [vmem:[%s1749 + $0x34] sm:$0xf]
        %v1764 = vld [vmem:[%s1749 + $0x38] sm:$0xf]
        %v1765 = vld [vmem:[%s1749 + $0x3c] sm:$0xf]
        %v1782 = vunpack.c.l.b16 %v1750
        %v1783 = vunpack.c.l.b16 %v1751
        %v1784 = vunpack.c.l.b16 %v1752
        %v1785 = vunpack.c.l.b16 %v1753
        %v1786 = vunpack.c.l.b16 %v1754
        %v1787 = vunpack.c.l.b16 %v1755
        %v1788 = vunpack.c.l.b16 %v1756
        %v1789 = vunpack.c.l.b16 %v1757
        %v1790 = vunpack.c.l.b16 %v1758
        %v1791 = vunpack.c.l.b16 %v1759
        %v1792 = vunpack.c.l.b16 %v1760
        %v1793 = vunpack.c.l.b16 %v1761
        %v1794 = vunpack.c.l.b16 %v1762
        %v1795 = vunpack.c.l.b16 %v1763
        %v1796 = vunpack.c.l.b16 %v1764
        %v1797 = vunpack.c.l.b16 %v1765
        %v1798 = vpack.c.b16 %v1783, %v1782
        %v1799 = vpack.c.b16 %v1785, %v1784
        %v1800 = vpack.c.b16 %v1787, %v1786
        %v1801 = vpack.c.b16 %v1789, %v1788
        %v1802 = vpack.c.b16 %v1791, %v1790
        %v1803 = vpack.c.b16 %v1793, %v1792
        %v1804 = vpack.c.b16 %v1795, %v1794
        %v1805 = vpack.c.b16 %v1797, %v1796
        %1814 = vmatpush.bf16.msra.mxu0 %v1805
        %1815 = vmatpush.bf16.msra.mxu0 %v1804
        %1816 = vmatpush.bf16.msra.mxu0 %v1803
        %1817 = vmatpush.bf16.msra.mxu0 %v1802
        %1818 = vmatpush.bf16.msra.mxu0 %v1801
        %1819 = vmatpush.bf16.msra.mxu0 %v1800
        %1820 = vmatpush.bf16.msra.mxu0 %v1799
        %1821 = vmatpush.bf16.msra.mxu0 %v1798
        %1822 = vmatmul.bf16.gmra.mxu0 %v1740
        %v1823 = vpop.f32.mrf.mxu0
        %v1824 = vadd.f32 0.0, %v1823
        %v1825 = vpop.f32.mrf.mxu0
        %v1826 = vadd.f32 0.0, %v1825
        %1827 = vmatmul.bf16.gmra.mxu0 %v1741
        %v1828 = vpop.f32.mrf.mxu0
        %v1829 = vadd.f32 0.0, %v1828
        %v1830 = vpop.f32.mrf.mxu0
        %v1831 = vadd.f32 0.0, %v1830
        %1832 = vmatmul.bf16.gmra.mxu0 %v1742
        %v1833 = vpop.f32.mrf.mxu0
        %v1834 = vadd.f32 0.0, %v1833
        %v1835 = vpop.f32.mrf.mxu0
        %v1836 = vadd.f32 0.0, %v1835
        %1837 = vmatmul.bf16.gmra.mxu0 %v1743
        %v1838 = vpop.f32.mrf.mxu0
        %v1839 = vadd.f32 0.0, %v1838
        %v1840 = vpop.f32.mrf.mxu0
        %v1841 = vadd.f32 0.0, %v1840
        %1842 = vmatmul.bf16.gmra.mxu0 %v1744
        %v1843 = vpop.f32.mrf.mxu0
        %v1844 = vadd.f32 0.0, %v1843
        %v1845 = vpop.f32.mrf.mxu0
        %v1846 = vadd.f32 0.0, %v1845
        %1847 = vmatmul.bf16.gmra.mxu0 %v1745
        %v1848 = vpop.f32.mrf.mxu0
        %v1849 = vadd.f32 0.0, %v1848
        %v1850 = vpop.f32.mrf.mxu0
        %v1851 = vadd.f32 0.0, %v1850
        %1852 = vmatmul.bf16.gmra.mxu0 %v1746
        %v1853 = vpop.f32.mrf.mxu0
        %v1854 = vadd.f32 0.0, %v1853
        %v1855 = vpop.f32.mrf.mxu0
        %v1856 = vadd.f32 0.0, %v1855
        %1857 = vmatmul.bf16.gmra.mxu0 %v1747
        %v1858 = vpop.f32.mrf.mxu0
        %v1859 = vadd.f32 0.0, %v1858
        %v1860 = vpop.f32.mrf.mxu0
        %v1861 = vadd.f32 0.0, %v1860
        %1862 = vmatmul.bf16.gmra.mxu0 %v1748
        %v1863 = vpop.f32.mrf.mxu0
        %v1864 = vadd.f32 0.0, %v1863
        %v1865 = vpop.f32.mrf.mxu0
        %1866 = vdwg.mxu0
        %v1883 = vunpack.c.l.b16 %v1707
        %v1884 = vunpack.c.l.b16 %v1708
        %v1885 = vunpack.c.l.b16 %v1709
        %v1886 = vunpack.c.l.b16 %v1710
        %v1887 = vunpack.c.l.b16 %v1711
        %v1888 = vunpack.c.l.b16 %v1712
        %v1889 = vunpack.c.l.b16 %v1713
        %v1890 = vunpack.c.l.b16 %v1714
        %v1891 = vunpack.c.l.b16 %v1715
        %v1892 = vunpack.c.l.b16 %v1716
        %v1893 = vunpack.c.l.b16 %v1717
        %v1894 = vunpack.c.l.b16 %v1718
        %v1895 = vunpack.c.l.b16 %v1719
        %v1896 = vunpack.c.l.b16 %v1720
        %v1897 = vunpack.c.l.b16 %v1721
        %v1898 = vunpack.c.l.b16 %v1722
        %v1899 = vpack.c.b16 %v1884, %v1883
        %v1900 = vpack.c.b16 %v1886, %v1885
        %v1901 = vpack.c.b16 %v1888, %v1887
        %v1902 = vpack.c.b16 %v1890, %v1889
        %v1903 = vpack.c.b16 %v1892, %v1891
        %v1904 = vpack.c.b16 %v1894, %v1893
        %v1905 = vpack.c.b16 %v1896, %v1895
        %v1906 = vpack.c.b16 %v1898, %v1897
        %1915 = vmatpush.bf16.msra.mxu0 %v1906
        %1916 = vmatpush.bf16.msra.mxu0 %v1905
        %1917 = vmatpush.bf16.msra.mxu0 %v1904
        %1918 = vmatpush.bf16.msra.mxu0 %v1903
        %1919 = vmatpush.bf16.msra.mxu0 %v1902
        %1920 = vmatpush.bf16.msra.mxu0 %v1901
        %1921 = vmatpush.bf16.msra.mxu0 %v1900
        %1922 = vmatpush.bf16.msra.mxu0 %v1899
        %1923 = vmatmul.bf16.gmra.mxu0 %v1698
        %v1924 = vpop.f32.mrf.mxu0
        %v1925 = vadd.f32 %v1824, %v1924
        %v1926 = vpop.f32.mrf.mxu0
        %v1927 = vadd.f32 %v1826, %v1926
        %1928 = vmatmul.bf16.gmra.mxu0 %v1699
        %v1929 = vpop.f32.mrf.mxu0
        %v1930 = vadd.f32 %v1829, %v1929
        %v1931 = vpop.f32.mrf.mxu0
        %v1932 = vadd.f32 %v1831, %v1931
        %1933 = vmatmul.bf16.gmra.mxu0 %v1700
        %v1934 = vpop.f32.mrf.mxu0
        %v1935 = vadd.f32 %v1834, %v1934
        %v1936 = vpop.f32.mrf.mxu0
        %v1937 = vadd.f32 %v1836, %v1936
        %1938 = vmatmul.bf16.gmra.mxu0 %v1701
        %v1939 = vpop.f32.mrf.mxu0
        %v1940 = vadd.f32 %v1839, %v1939
        %v1941 = vpop.f32.mrf.mxu0
        %v1942 = vadd.f32 %v1841, %v1941
        %1943 = vmatmul.bf16.gmra.mxu0 %v1702
        %v1944 = vpop.f32.mrf.mxu0
        %v1945 = vadd.f32 %v1844, %v1944
        %v1946 = vpop.f32.mrf.mxu0
        %v1947 = vadd.f32 %v1846, %v1946
        %1948 = vmatmul.bf16.gmra.mxu0 %v1703
        %v1949 = vpop.f32.mrf.mxu0
        %v1950 = vadd.f32 %v1849, %v1949
        %v1951 = vpop.f32.mrf.mxu0
        %v1952 = vadd.f32 %v1851, %v1951
        %1953 = vmatmul.bf16.gmra.mxu0 %v1704
        %v1954 = vpop.f32.mrf.mxu0
        %v1955 = vadd.f32 %v1854, %v1954
        %v1956 = vpop.f32.mrf.mxu0
        %v1957 = vadd.f32 %v1856, %v1956
        %1958 = vmatmul.bf16.gmra.mxu0 %v1705
        %v1959 = vpop.f32.mrf.mxu0
        %v1960 = vadd.f32 %v1859, %v1959
        %v1961 = vpop.f32.mrf.mxu0
        %v1962 = vadd.f32 %v1861, %v1961
        %1963 = vmatmul.bf16.gmra.mxu0 %v1706
        %v1964 = vpop.f32.mrf.mxu0
        %v1965 = vadd.f32 %v1864, %v1964
        %v1966 = vpop.f32.mrf.mxu0
        %1967 = vdwg.mxu0
        %v1968 = vld [vmem:[#allocation3 + $0x2] sm:$0xff]
        %v1969 = vld [vmem:[#allocation3 + $0xa] sm:$0xff]
        %v1970 = vld [vmem:[#allocation3 + $0x12] sm:$0xff]
        %v1971 = vld [vmem:[#allocation3 + $0x1a] sm:$0xff]
        %v1972 = vld [vmem:[#allocation3 + $0x22] sm:$0xff]
        %v1973 = vld [vmem:[#allocation3 + $0x2a] sm:$0xff]
        %v1974 = vld [vmem:[#allocation3 + $0x32] sm:$0xff]
        %v1975 = vld [vmem:[#allocation3 + $0x3a] sm:$0xff]
        %v1976 = vld [vmem:[#allocation3 + $0x42] sm:$0xff]
        %v1977 = vld [vmem:[#allocation3 + $0x4a] sm:$0xff]
        %v1978 = vld [vmem:[#allocation3 + $0x52] sm:$0xff]
        %v1979 = vld [vmem:[#allocation3 + $0x5a] sm:$0xff]
        %v1980 = vld [vmem:[#allocation3 + $0x62] sm:$0xff]
        %v1981 = vld [vmem:[#allocation3 + $0x6a] sm:$0xff]
        %v1982 = vld [vmem:[#allocation3 + $0x72] sm:$0xff]
        %v1983 = vld [vmem:[#allocation3 + $0x7a] sm:$0xff]
        %v1984 = vld [vmem:[#allocation3 + $0x82] sm:$0xff]
        %v1985 = vpack.c.bf16 %v1969, %v1968
        %v1986 = vpack.c.bf16 %v1971, %v1970
        %v1987 = vpack.c.bf16 %v1973, %v1972
        %v1988 = vpack.c.bf16 %v1975, %v1974
        %v1989 = vpack.c.bf16 %v1977, %v1976
        %v1990 = vpack.c.bf16 %v1979, %v1978
        %v1991 = vpack.c.bf16 %v1981, %v1980
        %v1992 = vpack.c.bf16 %v1983, %v1982
        %v1993 = vpack.c.bf16 %v1984, %v1984
        %s1994 = scalar_lea.vmem %s3, 128
        %v1995 = vld [vmem:[%s1994] sm:$0xf]
        %v1996 = vld [vmem:[%s1994 + $0x4] sm:$0xf]
        %v1997 = vld [vmem:[%s1994 + $0x8] sm:$0xf]
        %v1998 = vld [vmem:[%s1994 + $0xc] sm:$0xf]
        %v1999 = vld [vmem:[%s1994 + $0x10] sm:$0xf]
        %v2000 = vld [vmem:[%s1994 + $0x14] sm:$0xf]
        %v2001 = vld [vmem:[%s1994 + $0x18] sm:$0xf]
        %v2002 = vld [vmem:[%s1994 + $0x1c] sm:$0xf]
        %v2003 = vld [vmem:[%s1994 + $0x20] sm:$0xf]
        %v2004 = vld [vmem:[%s1994 + $0x24] sm:$0xf]
        %v2005 = vld [vmem:[%s1994 + $0x28] sm:$0xf]
        %v2006 = vld [vmem:[%s1994 + $0x2c] sm:$0xf]
        %v2007 = vld [vmem:[%s1994 + $0x30] sm:$0xf]
        %v2008 = vld [vmem:[%s1994 + $0x34] sm:$0xf]
        %v2009 = vld [vmem:[%s1994 + $0x38] sm:$0xf]
        %v2010 = vld [vmem:[%s1994 + $0x3c] sm:$0xf]
        %v2027 = vunpack.c.l.b16 %v1995
        %v2028 = vunpack.c.l.b16 %v1996
        %v2029 = vunpack.c.l.b16 %v1997
        %v2030 = vunpack.c.l.b16 %v1998
        %v2031 = vunpack.c.l.b16 %v1999
        %v2032 = vunpack.c.l.b16 %v2000
        %v2033 = vunpack.c.l.b16 %v2001
        %v2034 = vunpack.c.l.b16 %v2002
        %v2035 = vunpack.c.l.b16 %v2003
        %v2036 = vunpack.c.l.b16 %v2004
        %v2037 = vunpack.c.l.b16 %v2005
        %v2038 = vunpack.c.l.b16 %v2006
        %v2039 = vunpack.c.l.b16 %v2007
        %v2040 = vunpack.c.l.b16 %v2008
        %v2041 = vunpack.c.l.b16 %v2009
        %v2042 = vunpack.c.l.b16 %v2010
        %v2043 = vpack.c.b16 %v2028, %v2027
        %v2044 = vpack.c.b16 %v2030, %v2029
        %v2045 = vpack.c.b16 %v2032, %v2031
        %v2046 = vpack.c.b16 %v2034, %v2033
        %v2047 = vpack.c.b16 %v2036, %v2035
        %v2048 = vpack.c.b16 %v2038, %v2037
        %v2049 = vpack.c.b16 %v2040, %v2039
        %v2050 = vpack.c.b16 %v2042, %v2041
        %2059 = vmatpush.bf16.msra.mxu0 %v2050
        %2060 = vmatpush.bf16.msra.mxu0 %v2049
        %2061 = vmatpush.bf16.msra.mxu0 %v2048
        %2062 = vmatpush.bf16.msra.mxu0 %v2047
        %2063 = vmatpush.bf16.msra.mxu0 %v2046
        %2064 = vmatpush.bf16.msra.mxu0 %v2045
        %2065 = vmatpush.bf16.msra.mxu0 %v2044
        %2066 = vmatpush.bf16.msra.mxu0 %v2043
        %2067 = vmatmul.bf16.gmra.mxu0 %v1985
        %v2068 = vpop.f32.mrf.mxu0
        %v2069 = vadd.f32 0.0, %v2068
        %v2070 = vpop.f32.mrf.mxu0
        %v2071 = vadd.f32 0.0, %v2070
        %2072 = vmatmul.bf16.gmra.mxu0 %v1986
        %v2073 = vpop.f32.mrf.mxu0
        %v2074 = vadd.f32 0.0, %v2073
        %v2075 = vpop.f32.mrf.mxu0
        %v2076 = vadd.f32 0.0, %v2075
        %2077 = vmatmul.bf16.gmra.mxu0 %v1987
        %v2078 = vpop.f32.mrf.mxu0
        %v2079 = vadd.f32 0.0, %v2078
        %v2080 = vpop.f32.mrf.mxu0
        %v2081 = vadd.f32 0.0, %v2080
        %2082 = vmatmul.bf16.gmra.mxu0 %v1988
        %v2083 = vpop.f32.mrf.mxu0
        %v2084 = vadd.f32 0.0, %v2083
        %v2085 = vpop.f32.mrf.mxu0
        %v2086 = vadd.f32 0.0, %v2085
        %2087 = vmatmul.bf16.gmra.mxu0 %v1989
        %v2088 = vpop.f32.mrf.mxu0
        %v2089 = vadd.f32 0.0, %v2088
        %v2090 = vpop.f32.mrf.mxu0
        %v2091 = vadd.f32 0.0, %v2090
        %2092 = vmatmul.bf16.gmra.mxu0 %v1990
        %v2093 = vpop.f32.mrf.mxu0
        %v2094 = vadd.f32 0.0, %v2093
        %v2095 = vpop.f32.mrf.mxu0
        %v2096 = vadd.f32 0.0, %v2095
        %2097 = vmatmul.bf16.gmra.mxu0 %v1991
        %v2098 = vpop.f32.mrf.mxu0
        %v2099 = vadd.f32 0.0, %v2098
        %v2100 = vpop.f32.mrf.mxu0
        %v2101 = vadd.f32 0.0, %v2100
        %2102 = vmatmul.bf16.gmra.mxu0 %v1992
        %v2103 = vpop.f32.mrf.mxu0
        %v2104 = vadd.f32 0.0, %v2103
        %v2105 = vpop.f32.mrf.mxu0
        %v2106 = vadd.f32 0.0, %v2105
        %2107 = vmatmul.bf16.gmra.mxu0 %v1993
        %v2108 = vpop.f32.mrf.mxu0
        %v2109 = vadd.f32 0.0, %v2108
        %v2110 = vpop.f32.mrf.mxu0
        %2111 = vdwg.mxu0
        %v2112 = vadd.f32 %v1925, %v2069
        %v2113 = vadd.f32 %v1927, %v2071
        %v2114 = vadd.f32 %v1930, %v2074
        %v2115 = vadd.f32 %v1932, %v2076
        %v2116 = vadd.f32 %v1935, %v2079
        %v2117 = vadd.f32 %v1937, %v2081
        %v2118 = vadd.f32 %v1940, %v2084
        %v2119 = vadd.f32 %v1942, %v2086
        %v2120 = vadd.f32 %v1945, %v2089
        %v2121 = vadd.f32 %v1947, %v2091
        %v2122 = vadd.f32 %v1950, %v2094
        %v2123 = vadd.f32 %v1952, %v2096
        %v2124 = vadd.f32 %v1955, %v2099
        %v2125 = vadd.f32 %v1957, %v2101
        %v2126 = vadd.f32 %v1960, %v2104
        %v2127 = vadd.f32 %v1962, %v2106
        %v2128 = vadd.f32 %v1965, %v2109
        %v2129 = vld [vmem:[#allocation3 + $0x3] sm:$0xff]
        %v2130 = vld [vmem:[#allocation3 + $0xb] sm:$0xff]
        %v2131 = vld [vmem:[#allocation3 + $0x13] sm:$0xff]
        %v2132 = vld [vmem:[#allocation3 + $0x1b] sm:$0xff]
        %v2133 = vld [vmem:[#allocation3 + $0x23] sm:$0xff]
        %v2134 = vld [vmem:[#allocation3 + $0x2b] sm:$0xff]
        %v2135 = vld [vmem:[#allocation3 + $0x33] sm:$0xff]
        %v2136 = vld [vmem:[#allocation3 + $0x3b] sm:$0xff]
        %v2137 = vld [vmem:[#allocation3 + $0x43] sm:$0xff]
        %v2138 = vld [vmem:[#allocation3 + $0x4b] sm:$0xff]
        %v2139 = vld [vmem:[#allocation3 + $0x53] sm:$0xff]
        %v2140 = vld [vmem:[#allocation3 + $0x5b] sm:$0xff]
        %v2141 = vld [vmem:[#allocation3 + $0x63] sm:$0xff]
        %v2142 = vld [vmem:[#allocation3 + $0x6b] sm:$0xff]
        %v2143 = vld [vmem:[#allocation3 + $0x73] sm:$0xff]
        %v2144 = vld [vmem:[#allocation3 + $0x7b] sm:$0xff]
        %v2145 = vld [vmem:[#allocation3 + $0x83] sm:$0xff]
        %v2146 = vpack.c.bf16 %v2130, %v2129
        %v2147 = vpack.c.bf16 %v2132, %v2131
        %v2148 = vpack.c.bf16 %v2134, %v2133
        %v2149 = vpack.c.bf16 %v2136, %v2135
        %v2150 = vpack.c.bf16 %v2138, %v2137
        %v2151 = vpack.c.bf16 %v2140, %v2139
        %v2152 = vpack.c.bf16 %v2142, %v2141
        %v2153 = vpack.c.bf16 %v2144, %v2143
        %v2154 = vpack.c.bf16 %v2145, %v2145
        %s2155 = scalar_lea.vmem %s3, 192
        %v2156 = vld [vmem:[%s2155] sm:$0xf]
        %v2157 = vld [vmem:[%s2155 + $0x4] sm:$0xf]
        %v2158 = vld [vmem:[%s2155 + $0x8] sm:$0xf]
        %v2159 = vld [vmem:[%s2155 + $0xc] sm:$0xf]
        %v2160 = vld [vmem:[%s2155 + $0x10] sm:$0xf]
        %v2161 = vld [vmem:[%s2155 + $0x14] sm:$0xf]
        %v2162 = vld [vmem:[%s2155 + $0x18] sm:$0xf]
        %v2163 = vld [vmem:[%s2155 + $0x1c] sm:$0xf]
        %v2164 = vld [vmem:[%s2155 + $0x20] sm:$0xf]
        %v2165 = vld [vmem:[%s2155 + $0x24] sm:$0xf]
        %v2166 = vld [vmem:[%s2155 + $0x28] sm:$0xf]
        %v2167 = vld [vmem:[%s2155 + $0x2c] sm:$0xf]
        %v2168 = vld [vmem:[%s2155 + $0x30] sm:$0xf]
        %v2169 = vld [vmem:[%s2155 + $0x34] sm:$0xf]
        %v2170 = vld [vmem:[%s2155 + $0x38] sm:$0xf]
        %v2171 = vld [vmem:[%s2155 + $0x3c] sm:$0xf]
        %v2188 = vunpack.c.l.b16 %v2156
        %v2189 = vunpack.c.l.b16 %v2157
        %v2190 = vunpack.c.l.b16 %v2158
        %v2191 = vunpack.c.l.b16 %v2159
        %v2192 = vunpack.c.l.b16 %v2160
        %v2193 = vunpack.c.l.b16 %v2161
        %v2194 = vunpack.c.l.b16 %v2162
        %v2195 = vunpack.c.l.b16 %v2163
        %v2196 = vunpack.c.l.b16 %v2164
        %v2197 = vunpack.c.l.b16 %v2165
        %v2198 = vunpack.c.l.b16 %v2166
        %v2199 = vunpack.c.l.b16 %v2167
        %v2200 = vunpack.c.l.b16 %v2168
        %v2201 = vunpack.c.l.b16 %v2169
        %v2202 = vunpack.c.l.b16 %v2170
        %v2203 = vunpack.c.l.b16 %v2171
        %v2204 = vpack.c.b16 %v2189, %v2188
        %v2205 = vpack.c.b16 %v2191, %v2190
        %v2206 = vpack.c.b16 %v2193, %v2192
        %v2207 = vpack.c.b16 %v2195, %v2194
        %v2208 = vpack.c.b16 %v2197, %v2196
        %v2209 = vpack.c.b16 %v2199, %v2198
        %v2210 = vpack.c.b16 %v2201, %v2200
        %v2211 = vpack.c.b16 %v2203, %v2202
        %2220 = vmatpush.bf16.msra.mxu0 %v2211
        %2221 = vmatpush.bf16.msra.mxu0 %v2210
        %2222 = vmatpush.bf16.msra.mxu0 %v2209
        %2223 = vmatpush.bf16.msra.mxu0 %v2208
        %2224 = vmatpush.bf16.msra.mxu0 %v2207
        %2225 = vmatpush.bf16.msra.mxu0 %v2206
        %2226 = vmatpush.bf16.msra.mxu0 %v2205
        %2227 = vmatpush.bf16.msra.mxu0 %v2204
        %2228 = vmatmul.bf16.gmra.mxu0 %v2146
        %v2229 = vpop.f32.mrf.mxu0
        %v2230 = vadd.f32 0.0, %v2229
        %v2231 = vpop.f32.mrf.mxu0
        %v2232 = vadd.f32 0.0, %v2231
        %2233 = vmatmul.bf16.gmra.mxu0 %v2147
        %v2234 = vpop.f32.mrf.mxu0
        %v2235 = vadd.f32 0.0, %v2234
        %v2236 = vpop.f32.mrf.mxu0
        %v2237 = vadd.f32 0.0, %v2236
        %2238 = vmatmul.bf16.gmra.mxu0 %v2148
        %v2239 = vpop.f32.mrf.mxu0
        %v2240 = vadd.f32 0.0, %v2239
        %v2241 = vpop.f32.mrf.mxu0
        %v2242 = vadd.f32 0.0, %v2241
        %2243 = vmatmul.bf16.gmra.mxu0 %v2149
        %v2244 = vpop.f32.mrf.mxu0
        %v2245 = vadd.f32 0.0, %v2244
        %v2246 = vpop.f32.mrf.mxu0
        %v2247 = vadd.f32 0.0, %v2246
        %2248 = vmatmul.bf16.gmra.mxu0 %v2150
        %v2249 = vpop.f32.mrf.mxu0
        %v2250 = vadd.f32 0.0, %v2249
        %v2251 = vpop.f32.mrf.mxu0
        %v2252 = vadd.f32 0.0, %v2251
        %2253 = vmatmul.bf16.gmra.mxu0 %v2151
        %v2254 = vpop.f32.mrf.mxu0
        %v2255 = vadd.f32 0.0, %v2254
        %v2256 = vpop.f32.mrf.mxu0
        %v2257 = vadd.f32 0.0, %v2256
        %2258 = vmatmul.bf16.gmra.mxu0 %v2152
        %v2259 = vpop.f32.mrf.mxu0
        %v2260 = vadd.f32 0.0, %v2259
        %v2261 = vpop.f32.mrf.mxu0
        %v2262 = vadd.f32 0.0, %v2261
        %2263 = vmatmul.bf16.gmra.mxu0 %v2153
        %v2264 = vpop.f32.mrf.mxu0
        %v2265 = vadd.f32 0.0, %v2264
        %v2266 = vpop.f32.mrf.mxu0
        %v2267 = vadd.f32 0.0, %v2266
        %2268 = vmatmul.bf16.gmra.mxu0 %v2154
        %v2269 = vpop.f32.mrf.mxu0
        %v2270 = vadd.f32 0.0, %v2269
        %v2271 = vpop.f32.mrf.mxu0
        %2272 = vdwg.mxu0
        %v2273 = vadd.f32 %v2112, %v2230
        %v2274 = vadd.f32 %v2113, %v2232
        %v2275 = vadd.f32 %v2114, %v2235
        %v2276 = vadd.f32 %v2115, %v2237
        %v2277 = vadd.f32 %v2116, %v2240
        %v2278 = vadd.f32 %v2117, %v2242
        %v2279 = vadd.f32 %v2118, %v2245
        %v2280 = vadd.f32 %v2119, %v2247
        %v2281 = vadd.f32 %v2120, %v2250
        %v2282 = vadd.f32 %v2121, %v2252
        %v2283 = vadd.f32 %v2122, %v2255
        %v2284 = vadd.f32 %v2123, %v2257
        %v2285 = vadd.f32 %v2124, %v2260
        %v2286 = vadd.f32 %v2125, %v2262
        %v2287 = vadd.f32 %v2126, %v2265
        %v2288 = vadd.f32 %v2127, %v2267
        %v2289 = vadd.f32 %v2128, %v2270
        %v2290 = vld [vmem:[#allocation3 + $0x4] sm:$0xff]
        %v2291 = vld [vmem:[#allocation3 + $0xc] sm:$0xff]
        %v2292 = vld [vmem:[#allocation3 + $0x14] sm:$0xff]
        %v2293 = vld [vmem:[#allocation3 + $0x1c] sm:$0xff]
        %v2294 = vld [vmem:[#allocation3 + $0x24] sm:$0xff]
        %v2295 = vld [vmem:[#allocation3 + $0x2c] sm:$0xff]
        %v2296 = vld [vmem:[#allocation3 + $0x34] sm:$0xff]
        %v2297 = vld [vmem:[#allocation3 + $0x3c] sm:$0xff]
        %v2298 = vld [vmem:[#allocation3 + $0x44] sm:$0xff]
        %v2299 = vld [vmem:[#allocation3 + $0x4c] sm:$0xff]
        %v2300 = vld [vmem:[#allocation3 + $0x54] sm:$0xff]
        %v2301 = vld [vmem:[#allocation3 + $0x5c] sm:$0xff]
        %v2302 = vld [vmem:[#allocation3 + $0x64] sm:$0xff]
        %v2303 = vld [vmem:[#allocation3 + $0x6c] sm:$0xff]
        %v2304 = vld [vmem:[#allocation3 + $0x74] sm:$0xff]
        %v2305 = vld [vmem:[#allocation3 + $0x7c] sm:$0xff]
        %v2306 = vld [vmem:[#allocation3 + $0x84] sm:$0xff]
        %v2307 = vpack.c.bf16 %v2291, %v2290
        %v2308 = vpack.c.bf16 %v2293, %v2292
        %v2309 = vpack.c.bf16 %v2295, %v2294
        %v2310 = vpack.c.bf16 %v2297, %v2296
        %v2311 = vpack.c.bf16 %v2299, %v2298
        %v2312 = vpack.c.bf16 %v2301, %v2300
        %v2313 = vpack.c.bf16 %v2303, %v2302
        %v2314 = vpack.c.bf16 %v2305, %v2304
        %v2315 = vpack.c.bf16 %v2306, %v2306
        %s2316 = scalar_lea.vmem %s3, 256
        %v2317 = vld [vmem:[%s2316] sm:$0xf]
        %v2318 = vld [vmem:[%s2316 + $0x4] sm:$0xf]
        %v2319 = vld [vmem:[%s2316 + $0x8] sm:$0xf]
        %v2320 = vld [vmem:[%s2316 + $0xc] sm:$0xf]
        %v2321 = vld [vmem:[%s2316 + $0x10] sm:$0xf]
        %v2322 = vld [vmem:[%s2316 + $0x14] sm:$0xf]
        %v2323 = vld [vmem:[%s2316 + $0x18] sm:$0xf]
        %v2324 = vld [vmem:[%s2316 + $0x1c] sm:$0xf]
        %v2325 = vld [vmem:[%s2316 + $0x20] sm:$0xf]
        %v2326 = vld [vmem:[%s2316 + $0x24] sm:$0xf]
        %v2327 = vld [vmem:[%s2316 + $0x28] sm:$0xf]
        %v2328 = vld [vmem:[%s2316 + $0x2c] sm:$0xf]
        %v2329 = vld [vmem:[%s2316 + $0x30] sm:$0xf]
        %v2330 = vld [vmem:[%s2316 + $0x34] sm:$0xf]
        %v2331 = vld [vmem:[%s2316 + $0x38] sm:$0xf]
        %v2332 = vld [vmem:[%s2316 + $0x3c] sm:$0xf]
        %v2349 = vunpack.c.l.b16 %v2317
        %v2350 = vunpack.c.l.b16 %v2318
        %v2351 = vunpack.c.l.b16 %v2319
        %v2352 = vunpack.c.l.b16 %v2320
        %v2353 = vunpack.c.l.b16 %v2321
        %v2354 = vunpack.c.l.b16 %v2322
        %v2355 = vunpack.c.l.b16 %v2323
        %v2356 = vunpack.c.l.b16 %v2324
        %v2357 = vunpack.c.l.b16 %v2325
        %v2358 = vunpack.c.l.b16 %v2326
        %v2359 = vunpack.c.l.b16 %v2327
        %v2360 = vunpack.c.l.b16 %v2328
        %v2361 = vunpack.c.l.b16 %v2329
        %v2362 = vunpack.c.l.b16 %v2330
        %v2363 = vunpack.c.l.b16 %v2331
        %v2364 = vunpack.c.l.b16 %v2332
        %v2365 = vpack.c.b16 %v2350, %v2349
        %v2366 = vpack.c.b16 %v2352, %v2351
        %v2367 = vpack.c.b16 %v2354, %v2353
        %v2368 = vpack.c.b16 %v2356, %v2355
        %v2369 = vpack.c.b16 %v2358, %v2357
        %v2370 = vpack.c.b16 %v2360, %v2359
        %v2371 = vpack.c.b16 %v2362, %v2361
        %v2372 = vpack.c.b16 %v2364, %v2363
        %2381 = vmatpush.bf16.msra.mxu0 %v2372
        %2382 = vmatpush.bf16.msra.mxu0 %v2371
        %2383 = vmatpush.bf16.msra.mxu0 %v2370
        %2384 = vmatpush.bf16.msra.mxu0 %v2369
        %2385 = vmatpush.bf16.msra.mxu0 %v2368
        %2386 = vmatpush.bf16.msra.mxu0 %v2367
        %2387 = vmatpush.bf16.msra.mxu0 %v2366
        %2388 = vmatpush.bf16.msra.mxu0 %v2365
        %2389 = vmatmul.bf16.gmra.mxu0 %v2307
        %v2390 = vpop.f32.mrf.mxu0
        %v2391 = vadd.f32 0.0, %v2390
        %v2392 = vpop.f32.mrf.mxu0
        %v2393 = vadd.f32 0.0, %v2392
        %2394 = vmatmul.bf16.gmra.mxu0 %v2308
        %v2395 = vpop.f32.mrf.mxu0
        %v2396 = vadd.f32 0.0, %v2395
        %v2397 = vpop.f32.mrf.mxu0
        %v2398 = vadd.f32 0.0, %v2397
        %2399 = vmatmul.bf16.gmra.mxu0 %v2309
        %v2400 = vpop.f32.mrf.mxu0
        %v2401 = vadd.f32 0.0, %v2400
        %v2402 = vpop.f32.mrf.mxu0
        %v2403 = vadd.f32 0.0, %v2402
        %2404 = vmatmul.bf16.gmra.mxu0 %v2310
        %v2405 = vpop.f32.mrf.mxu0
        %v2406 = vadd.f32 0.0, %v2405
        %v2407 = vpop.f32.mrf.mxu0
        %v2408 = vadd.f32 0.0, %v2407
        %2409 = vmatmul.bf16.gmra.mxu0 %v2311
        %v2410 = vpop.f32.mrf.mxu0
        %v2411 = vadd.f32 0.0, %v2410
        %v2412 = vpop.f32.mrf.mxu0
        %v2413 = vadd.f32 0.0, %v2412
        %2414 = vmatmul.bf16.gmra.mxu0 %v2312
        %v2415 = vpop.f32.mrf.mxu0
        %v2416 = vadd.f32 0.0, %v2415
        %v2417 = vpop.f32.mrf.mxu0
        %v2418 = vadd.f32 0.0, %v2417
        %2419 = vmatmul.bf16.gmra.mxu0 %v2313
        %v2420 = vpop.f32.mrf.mxu0
        %v2421 = vadd.f32 0.0, %v2420
        %v2422 = vpop.f32.mrf.mxu0
        %v2423 = vadd.f32 0.0, %v2422
        %2424 = vmatmul.bf16.gmra.mxu0 %v2314
        %v2425 = vpop.f32.mrf.mxu0
        %v2426 = vadd.f32 0.0, %v2425
        %v2427 = vpop.f32.mrf.mxu0
        %v2428 = vadd.f32 0.0, %v2427
        %2429 = vmatmul.bf16.gmra.mxu0 %v2315
        %v2430 = vpop.f32.mrf.mxu0
        %v2431 = vadd.f32 0.0, %v2430
        %v2432 = vpop.f32.mrf.mxu0
        %2433 = vdwg.mxu0
        %v2434 = vadd.f32 %v2273, %v2391
        %v2435 = vadd.f32 %v2274, %v2393
        %v2436 = vadd.f32 %v2275, %v2396
        %v2437 = vadd.f32 %v2276, %v2398
        %v2438 = vadd.f32 %v2277, %v2401
        %v2439 = vadd.f32 %v2278, %v2403
        %v2440 = vadd.f32 %v2279, %v2406
        %v2441 = vadd.f32 %v2280, %v2408
        %v2442 = vadd.f32 %v2281, %v2411
        %v2443 = vadd.f32 %v2282, %v2413
        %v2444 = vadd.f32 %v2283, %v2416
        %v2445 = vadd.f32 %v2284, %v2418
        %v2446 = vadd.f32 %v2285, %v2421
        %v2447 = vadd.f32 %v2286, %v2423
        %v2448 = vadd.f32 %v2287, %v2426
        %v2449 = vadd.f32 %v2288, %v2428
        %v2450 = vadd.f32 %v2289, %v2431
        %v2451 = vld [vmem:[#allocation3 + $0xe] sm:$0xff]
        %v2452 = vld [vmem:[#allocation3 + $0x16] sm:$0xff]
        %v2453 = vld [vmem:[#allocation3 + $0x1e] sm:$0xff]
        %v2454 = vld [vmem:[#allocation3 + $0x26] sm:$0xff]
        %v2455 = vld [vmem:[#allocation3 + $0x2e] sm:$0xff]
        %v2456 = vld [vmem:[#allocation3 + $0x36] sm:$0xff]
        %v2457 = vld [vmem:[#allocation3 + $0x3e] sm:$0xff]
        %v2458 = vld [vmem:[#allocation3 + $0x46] sm:$0xff]
        %v2459 = vld [vmem:[#allocation3 + $0x4e] sm:$0xff]
        %v2460 = vld [vmem:[#allocation3 + $0x56] sm:$0xff]
        %v2461 = vld [vmem:[#allocation3 + $0x5e] sm:$0xff]
        %v2462 = vld [vmem:[#allocation3 + $0x66] sm:$0xff]
        %v2463 = vld [vmem:[#allocation3 + $0x6e] sm:$0xff]
        %v2464 = vld [vmem:[#allocation3 + $0x76] sm:$0xff]
        %v2465 = vld [vmem:[#allocation3 + $0x7e] sm:$0xff]
        %v2466 = vld [vmem:[#allocation3 + $0x86] sm:$0xff]
        %v2467 = vld [vmem:[#allocation3 + $0x8e] sm:$0xff]
        %v2468 = vpack.c.bf16 %v2452, %v2451
        %v2469 = vpack.c.bf16 %v2454, %v2453
        %v2470 = vpack.c.bf16 %v2456, %v2455
        %v2471 = vpack.c.bf16 %v2458, %v2457
        %v2472 = vpack.c.bf16 %v2460, %v2459
        %v2473 = vpack.c.bf16 %v2462, %v2461
        %v2474 = vpack.c.bf16 %v2464, %v2463
        %v2475 = vpack.c.bf16 %v2466, %v2465
        %v2476 = vpack.c.bf16 %v2467, %v2467
        %s2477 = scalar_lea.vmem %s3, 320
        %v2478 = vld [vmem:[%s2477] sm:$0xf]
        %v2479 = vld [vmem:[%s2477 + $0x4] sm:$0xf]
        %v2480 = vld [vmem:[%s2477 + $0x8] sm:$0xf]
        %v2481 = vld [vmem:[%s2477 + $0xc] sm:$0xf]
        %v2482 = vld [vmem:[%s2477 + $0x10] sm:$0xf]
        %v2483 = vld [vmem:[%s2477 + $0x14] sm:$0xf]
        %v2484 = vld [vmem:[%s2477 + $0x18] sm:$0xf]
        %v2485 = vld [vmem:[%s2477 + $0x1c] sm:$0xf]
        %v2486 = vld [vmem:[%s2477 + $0x20] sm:$0xf]
        %v2487 = vld [vmem:[%s2477 + $0x24] sm:$0xf]
        %v2488 = vld [vmem:[%s2477 + $0x28] sm:$0xf]
        %v2489 = vld [vmem:[%s2477 + $0x2c] sm:$0xf]
        %v2490 = vld [vmem:[%s2477 + $0x30] sm:$0xf]
        %v2491 = vld [vmem:[%s2477 + $0x34] sm:$0xf]
        %v2492 = vld [vmem:[%s2477 + $0x38] sm:$0xf]
        %v2493 = vld [vmem:[%s2477 + $0x3c] sm:$0xf]
        %v2510 = vunpack.c.l.b16 %v2478
        %v2511 = vunpack.c.l.b16 %v2479
        %v2512 = vunpack.c.l.b16 %v2480
        %v2513 = vunpack.c.l.b16 %v2481
        %v2514 = vunpack.c.l.b16 %v2482
        %v2515 = vunpack.c.l.b16 %v2483
        %v2516 = vunpack.c.l.b16 %v2484
        %v2517 = vunpack.c.l.b16 %v2485
        %v2518 = vunpack.c.l.b16 %v2486
        %v2519 = vunpack.c.l.b16 %v2487
        %v2520 = vunpack.c.l.b16 %v2488
        %v2521 = vunpack.c.l.b16 %v2489
        %v2522 = vunpack.c.l.b16 %v2490
        %v2523 = vunpack.c.l.b16 %v2491
        %v2524 = vunpack.c.l.b16 %v2492
        %v2525 = vunpack.c.l.b16 %v2493
        %v2526 = vpack.c.b16 %v2511, %v2510
        %v2527 = vpack.c.b16 %v2513, %v2512
        %v2528 = vpack.c.b16 %v2515, %v2514
        %v2529 = vpack.c.b16 %v2517, %v2516
        %v2530 = vpack.c.b16 %v2519, %v2518
        %v2531 = vpack.c.b16 %v2521, %v2520
        %v2532 = vpack.c.b16 %v2523, %v2522
        %v2533 = vpack.c.b16 %v2525, %v2524
        %2542 = vmatpush.bf16.msra.mxu0 %v2533
        %2543 = vmatpush.bf16.msra.mxu0 %v2532
        %2544 = vmatpush.bf16.msra.mxu0 %v2531
        %2545 = vmatpush.bf16.msra.mxu0 %v2530
        %2546 = vmatpush.bf16.msra.mxu0 %v2529
        %2547 = vmatpush.bf16.msra.mxu0 %v2528
        %2548 = vmatpush.bf16.msra.mxu0 %v2527
        %2549 = vmatpush.bf16.msra.mxu0 %v2526
        %2550 = vmatmul.bf16.gmra.mxu0 %v2468
        %v2551 = vpop.f32.mrf.mxu0
        %v2552 = vadd.f32 0.0, %v2551
        %v2553 = vpop.f32.mrf.mxu0
        %v2554 = vadd.f32 0.0, %v2553
        %2555 = vmatmul.bf16.gmra.mxu0 %v2469
        %v2556 = vpop.f32.mrf.mxu0
        %v2557 = vadd.f32 0.0, %v2556
        %v2558 = vpop.f32.mrf.mxu0
        %v2559 = vadd.f32 0.0, %v2558
        %2560 = vmatmul.bf16.gmra.mxu0 %v2470
        %v2561 = vpop.f32.mrf.mxu0
        %v2562 = vadd.f32 0.0, %v2561
        %v2563 = vpop.f32.mrf.mxu0
        %v2564 = vadd.f32 0.0, %v2563
        %2565 = vmatmul.bf16.gmra.mxu0 %v2471
        %v2566 = vpop.f32.mrf.mxu0
        %v2567 = vadd.f32 0.0, %v2566
        %v2568 = vpop.f32.mrf.mxu0
        %v2569 = vadd.f32 0.0, %v2568
        %2570 = vmatmul.bf16.gmra.mxu0 %v2472
        %v2571 = vpop.f32.mrf.mxu0
        %v2572 = vadd.f32 0.0, %v2571
        %v2573 = vpop.f32.mrf.mxu0
        %v2574 = vadd.f32 0.0, %v2573
        %2575 = vmatmul.bf16.gmra.mxu0 %v2473
        %v2576 = vpop.f32.mrf.mxu0
        %v2577 = vadd.f32 0.0, %v2576
        %v2578 = vpop.f32.mrf.mxu0
        %v2579 = vadd.f32 0.0, %v2578
        %2580 = vmatmul.bf16.gmra.mxu0 %v2474
        %v2581 = vpop.f32.mrf.mxu0
        %v2582 = vadd.f32 0.0, %v2581
        %v2583 = vpop.f32.mrf.mxu0
        %v2584 = vadd.f32 0.0, %v2583
        %2585 = vmatmul.bf16.gmra.mxu0 %v2475
        %v2586 = vpop.f32.mrf.mxu0
        %v2587 = vadd.f32 0.0, %v2586
        %v2588 = vpop.f32.mrf.mxu0
        %v2589 = vadd.f32 0.0, %v2588
        %2590 = vmatmul.bf16.gmra.mxu0 %v2476
        %v2591 = vpop.f32.mrf.mxu0
        %v2592 = vadd.f32 0.0, %v2591
        %v2593 = vpop.f32.mrf.mxu0
        %2594 = vdwg.mxu0
        %v2595 = vadd.f32 %v2434, %v2552
        %v2596 = vadd.f32 %v2435, %v2554
        %v2597 = vadd.f32 %v2436, %v2557
        %v2598 = vadd.f32 %v2437, %v2559
        %v2599 = vadd.f32 %v2438, %v2562
        %v2600 = vadd.f32 %v2439, %v2564
        %v2601 = vadd.f32 %v2440, %v2567
        %v2602 = vadd.f32 %v2441, %v2569
        %v2603 = vadd.f32 %v2442, %v2572
        %v2604 = vadd.f32 %v2443, %v2574
        %v2605 = vadd.f32 %v2444, %v2577
        %v2606 = vadd.f32 %v2445, %v2579
        %v2607 = vadd.f32 %v2446, %v2582
        %v2608 = vadd.f32 %v2447, %v2584
        %v2609 = vadd.f32 %v2448, %v2587
        %v2610 = vadd.f32 %v2449, %v2589
        %v2611 = vadd.f32 %v2450, %v2592
        %v2612 = vld [vmem:[#allocation3 + $0xf] sm:$0xff]
        %v2613 = vld [vmem:[#allocation3 + $0x17] sm:$0xff]
        %v2614 = vld [vmem:[#allocation3 + $0x1f] sm:$0xff]
        %v2615 = vld [vmem:[#allocation3 + $0x27] sm:$0xff]
        %v2616 = vld [vmem:[#allocation3 + $0x2f] sm:$0xff]
        %v2617 = vld [vmem:[#allocation3 + $0x37] sm:$0xff]
        %v2618 = vld [vmem:[#allocation3 + $0x3f] sm:$0xff]
        %v2619 = vld [vmem:[#allocation3 + $0x47] sm:$0xff]
        %v2620 = vld [vmem:[#allocation3 + $0x4f] sm:$0xff]
        %v2621 = vld [vmem:[#allocation3 + $0x57] sm:$0xff]
        %v2622 = vld [vmem:[#allocation3 + $0x5f] sm:$0xff]
        %v2623 = vld [vmem:[#allocation3 + $0x67] sm:$0xff]
        %v2624 = vld [vmem:[#allocation3 + $0x6f] sm:$0xff]
        %v2625 = vld [vmem:[#allocation3 + $0x77] sm:$0xff]
        %v2626 = vld [vmem:[#allocation3 + $0x7f] sm:$0xff]
        %v2627 = vld [vmem:[#allocation3 + $0x87] sm:$0xff]
        %v2628 = vld [vmem:[#allocation3 + $0x8f] sm:$0xff]
        %v2629 = vpack.c.bf16 %v2613, %v2612
        %v2630 = vpack.c.bf16 %v2615, %v2614
        %v2631 = vpack.c.bf16 %v2617, %v2616
        %v2632 = vpack.c.bf16 %v2619, %v2618
        %v2633 = vpack.c.bf16 %v2621, %v2620
        %v2634 = vpack.c.bf16 %v2623, %v2622
        %v2635 = vpack.c.bf16 %v2625, %v2624
        %v2636 = vpack.c.bf16 %v2627, %v2626
        %v2637 = vpack.c.bf16 %v2628, %v2628
        %s2638 = scalar_lea.vmem %s3, 384
        %v2639 = vld [vmem:[%s2638] sm:$0xf]
        %v2640 = vld [vmem:[%s2638 + $0x4] sm:$0xf]
        %v2641 = vld [vmem:[%s2638 + $0x8] sm:$0xf]
        %v2642 = vld [vmem:[%s2638 + $0xc] sm:$0xf]
        %v2643 = vld [vmem:[%s2638 + $0x10] sm:$0xf]
        %v2644 = vld [vmem:[%s2638 + $0x14] sm:$0xf]
        %v2645 = vld [vmem:[%s2638 + $0x18] sm:$0xf]
        %v2646 = vld [vmem:[%s2638 + $0x1c] sm:$0xf]
        %v2647 = vld [vmem:[%s2638 + $0x20] sm:$0xf]
        %v2648 = vld [vmem:[%s2638 + $0x24] sm:$0xf]
        %v2649 = vld [vmem:[%s2638 + $0x28] sm:$0xf]
        %v2650 = vld [vmem:[%s2638 + $0x2c] sm:$0xf]
        %v2651 = vld [vmem:[%s2638 + $0x30] sm:$0xf]
        %v2652 = vld [vmem:[%s2638 + $0x34] sm:$0xf]
        %v2653 = vld [vmem:[%s2638 + $0x38] sm:$0xf]
        %v2654 = vld [vmem:[%s2638 + $0x3c] sm:$0xf]
        %v2671 = vunpack.c.l.b16 %v2639
        %v2672 = vunpack.c.l.b16 %v2640
        %v2673 = vunpack.c.l.b16 %v2641
        %v2674 = vunpack.c.l.b16 %v2642
        %v2675 = vunpack.c.l.b16 %v2643
        %v2676 = vunpack.c.l.b16 %v2644
        %v2677 = vunpack.c.l.b16 %v2645
        %v2678 = vunpack.c.l.b16 %v2646
        %v2679 = vunpack.c.l.b16 %v2647
        %v2680 = vunpack.c.l.b16 %v2648
        %v2681 = vunpack.c.l.b16 %v2649
        %v2682 = vunpack.c.l.b16 %v2650
        %v2683 = vunpack.c.l.b16 %v2651
        %v2684 = vunpack.c.l.b16 %v2652
        %v2685 = vunpack.c.l.b16 %v2653
        %v2686 = vunpack.c.l.b16 %v2654
        %v2687 = vpack.c.b16 %v2672, %v2671
        %v2688 = vpack.c.b16 %v2674, %v2673
        %v2689 = vpack.c.b16 %v2676, %v2675
        %v2690 = vpack.c.b16 %v2678, %v2677
        %v2691 = vpack.c.b16 %v2680, %v2679
        %v2692 = vpack.c.b16 %v2682, %v2681
        %v2693 = vpack.c.b16 %v2684, %v2683
        %v2694 = vpack.c.b16 %v2686, %v2685
        %2703 = vmatpush.bf16.msra.mxu0 %v2694
        %2704 = vmatpush.bf16.msra.mxu0 %v2693
        %2705 = vmatpush.bf16.msra.mxu0 %v2692
        %2706 = vmatpush.bf16.msra.mxu0 %v2691
        %2707 = vmatpush.bf16.msra.mxu0 %v2690
        %2708 = vmatpush.bf16.msra.mxu0 %v2689
        %2709 = vmatpush.bf16.msra.mxu0 %v2688
        %2710 = vmatpush.bf16.msra.mxu0 %v2687
        %2711 = vmatmul.bf16.gmra.mxu0 %v2629
        %v2712 = vpop.f32.mrf.mxu0
        %v2713 = vadd.f32 0.0, %v2712
        %v2714 = vpop.f32.mrf.mxu0
        %v2715 = vadd.f32 0.0, %v2714
        %2716 = vmatmul.bf16.gmra.mxu0 %v2630
        %v2717 = vpop.f32.mrf.mxu0
        %v2718 = vadd.f32 0.0, %v2717
        %v2719 = vpop.f32.mrf.mxu0
        %v2720 = vadd.f32 0.0, %v2719
        %2721 = vmatmul.bf16.gmra.mxu0 %v2631
        %v2722 = vpop.f32.mrf.mxu0
        %v2723 = vadd.f32 0.0, %v2722
        %v2724 = vpop.f32.mrf.mxu0
        %v2725 = vadd.f32 0.0, %v2724
        %2726 = vmatmul.bf16.gmra.mxu0 %v2632
        %v2727 = vpop.f32.mrf.mxu0
        %v2728 = vadd.f32 0.0, %v2727
        %v2729 = vpop.f32.mrf.mxu0
        %v2730 = vadd.f32 0.0, %v2729
        %2731 = vmatmul.bf16.gmra.mxu0 %v2633
        %v2732 = vpop.f32.mrf.mxu0
        %v2733 = vadd.f32 0.0, %v2732
        %v2734 = vpop.f32.mrf.mxu0
        %v2735 = vadd.f32 0.0, %v2734
        %2736 = vmatmul.bf16.gmra.mxu0 %v2634
        %v2737 = vpop.f32.mrf.mxu0
        %v2738 = vadd.f32 0.0, %v2737
        %v2739 = vpop.f32.mrf.mxu0
        %v2740 = vadd.f32 0.0, %v2739
        %2741 = vmatmul.bf16.gmra.mxu0 %v2635
        %v2742 = vpop.f32.mrf.mxu0
        %v2743 = vadd.f32 0.0, %v2742
        %v2744 = vpop.f32.mrf.mxu0
        %v2745 = vadd.f32 0.0, %v2744
        %2746 = vmatmul.bf16.gmra.mxu0 %v2636
        %v2747 = vpop.f32.mrf.mxu0
        %v2748 = vadd.f32 0.0, %v2747
        %v2749 = vpop.f32.mrf.mxu0
        %v2750 = vadd.f32 0.0, %v2749
        %2751 = vmatmul.bf16.gmra.mxu0 %v2637
        %v2752 = vpop.f32.mrf.mxu0
        %v2753 = vadd.f32 0.0, %v2752
        %v2754 = vpop.f32.mrf.mxu0
        %2755 = vdwg.mxu0
        %v2756 = vadd.f32 %v2595, %v2713
        %v2757 = vadd.f32 %v2596, %v2715
        %v2758 = vadd.f32 %v2597, %v2718
        %v2759 = vadd.f32 %v2598, %v2720
        %v2760 = vadd.f32 %v2599, %v2723
        %v2761 = vadd.f32 %v2600, %v2725
        %v2762 = vadd.f32 %v2601, %v2728
        %v2763 = vadd.f32 %v2602, %v2730
        %v2764 = vadd.f32 %v2603, %v2733
        %v2765 = vadd.f32 %v2604, %v2735
        %v2766 = vadd.f32 %v2605, %v2738
        %v2767 = vadd.f32 %v2606, %v2740
        %v2768 = vadd.f32 %v2607, %v2743
        %v2769 = vadd.f32 %v2608, %v2745
        %v2770 = vadd.f32 %v2609, %v2748
        %v2771 = vadd.f32 %v2610, %v2750
        %v2772 = vadd.f32 %v2611, %v2753
        %v2773 = vld [vmem:[#allocation3 + $0x10] sm:$0xff]
        %v2774 = vld [vmem:[#allocation3 + $0x18] sm:$0xff]
        %v2775 = vld [vmem:[#allocation3 + $0x20] sm:$0xff]
        %v2776 = vld [vmem:[#allocation3 + $0x28] sm:$0xff]
        %v2777 = vld [vmem:[#allocation3 + $0x30] sm:$0xff]
        %v2778 = vld [vmem:[#allocation3 + $0x38] sm:$0xff]
        %v2779 = vld [vmem:[#allocation3 + $0x40] sm:$0xff]
        %v2780 = vld [vmem:[#allocation3 + $0x48] sm:$0xff]
        %v2781 = vld [vmem:[#allocation3 + $0x50] sm:$0xff]
        %v2782 = vld [vmem:[#allocation3 + $0x58] sm:$0xff]
        %v2783 = vld [vmem:[#allocation3 + $0x60] sm:$0xff]
        %v2784 = vld [vmem:[#allocation3 + $0x68] sm:$0xff]
        %v2785 = vld [vmem:[#allocation3 + $0x70] sm:$0xff]
        %v2786 = vld [vmem:[#allocation3 + $0x78] sm:$0xff]
        %v2787 = vld [vmem:[#allocation3 + $0x80] sm:$0xff]
        %v2788 = vld [vmem:[#allocation3 + $0x88] sm:$0xff]
        %v2789 = vld [vmem:[#allocation3 + $0x90] sm:$0xff]
        %v2790 = vpack.c.bf16 %v2774, %v2773
        %v2791 = vpack.c.bf16 %v2776, %v2775
        %v2792 = vpack.c.bf16 %v2778, %v2777
        %v2793 = vpack.c.bf16 %v2780, %v2779
        %v2794 = vpack.c.bf16 %v2782, %v2781
        %v2795 = vpack.c.bf16 %v2784, %v2783
        %v2796 = vpack.c.bf16 %v2786, %v2785
        %v2797 = vpack.c.bf16 %v2788, %v2787
        %v2798 = vpack.c.bf16 %v2789, %v2789
        %s2799 = scalar_lea.vmem %s3, 448
        %v2800 = vld [vmem:[%s2799] sm:$0xf]
        %v2801 = vld [vmem:[%s2799 + $0x4] sm:$0xf]
        %v2802 = vld [vmem:[%s2799 + $0x8] sm:$0xf]
        %v2803 = vld [vmem:[%s2799 + $0xc] sm:$0xf]
        %v2804 = vld [vmem:[%s2799 + $0x10] sm:$0xf]
        %v2805 = vld [vmem:[%s2799 + $0x14] sm:$0xf]
        %v2806 = vld [vmem:[%s2799 + $0x18] sm:$0xf]
        %v2807 = vld [vmem:[%s2799 + $0x1c] sm:$0xf]
        %v2808 = vld [vmem:[%s2799 + $0x20] sm:$0xf]
        %v2809 = vld [vmem:[%s2799 + $0x24] sm:$0xf]
        %v2810 = vld [vmem:[%s2799 + $0x28] sm:$0xf]
        %v2811 = vld [vmem:[%s2799 + $0x2c] sm:$0xf]
        %v2812 = vld [vmem:[%s2799 + $0x30] sm:$0xf]
        %v2813 = vld [vmem:[%s2799 + $0x34] sm:$0xf]
        %v2814 = vld [vmem:[%s2799 + $0x38] sm:$0xf]
        %v2815 = vld [vmem:[%s2799 + $0x3c] sm:$0xf]
        %v2832 = vunpack.c.l.b16 %v2800
        %v2833 = vunpack.c.l.b16 %v2801
        %v2834 = vunpack.c.l.b16 %v2802
        %v2835 = vunpack.c.l.b16 %v2803
        %v2836 = vunpack.c.l.b16 %v2804
        %v2837 = vunpack.c.l.b16 %v2805
        %v2838 = vunpack.c.l.b16 %v2806
        %v2839 = vunpack.c.l.b16 %v2807
        %v2840 = vunpack.c.l.b16 %v2808
        %v2841 = vunpack.c.l.b16 %v2809
        %v2842 = vunpack.c.l.b16 %v2810
        %v2843 = vunpack.c.l.b16 %v2811
        %v2844 = vunpack.c.l.b16 %v2812
        %v2845 = vunpack.c.l.b16 %v2813
        %v2846 = vunpack.c.l.b16 %v2814
        %v2847 = vunpack.c.l.b16 %v2815
        %v2848 = vpack.c.b16 %v2833, %v2832
        %v2849 = vpack.c.b16 %v2835, %v2834
        %v2850 = vpack.c.b16 %v2837, %v2836
        %v2851 = vpack.c.b16 %v2839, %v2838
        %v2852 = vpack.c.b16 %v2841, %v2840
        %v2853 = vpack.c.b16 %v2843, %v2842
        %v2854 = vpack.c.b16 %v2845, %v2844
        %v2855 = vpack.c.b16 %v2847, %v2846
        %2864 = vmatpush.bf16.msra.mxu0 %v2855
        %2865 = vmatpush.bf16.msra.mxu0 %v2854
        %2866 = vmatpush.bf16.msra.mxu0 %v2853
        %2867 = vmatpush.bf16.msra.mxu0 %v2852
        %2868 = vmatpush.bf16.msra.mxu0 %v2851
        %2869 = vmatpush.bf16.msra.mxu0 %v2850
        %2870 = vmatpush.bf16.msra.mxu0 %v2849
        %2871 = vmatpush.bf16.msra.mxu0 %v2848
        %2872 = vmatmul.bf16.gmra.mxu0 %v2790
        %v2873 = vpop.f32.mrf.mxu0
        %v2874 = vadd.f32 0.0, %v2873
        %v2875 = vpop.f32.mrf.mxu0
        %v2876 = vadd.f32 0.0, %v2875
        %2877 = vmatmul.bf16.gmra.mxu0 %v2791
        %v2878 = vpop.f32.mrf.mxu0
        %v2879 = vadd.f32 0.0, %v2878
        %v2880 = vpop.f32.mrf.mxu0
        %v2881 = vadd.f32 0.0, %v2880
        %2882 = vmatmul.bf16.gmra.mxu0 %v2792
        %v2883 = vpop.f32.mrf.mxu0
        %v2884 = vadd.f32 0.0, %v2883
        %v2885 = vpop.f32.mrf.mxu0
        %v2886 = vadd.f32 0.0, %v2885
        %2887 = vmatmul.bf16.gmra.mxu0 %v2793
        %v2888 = vpop.f32.mrf.mxu0
        %v2889 = vadd.f32 0.0, %v2888
        %v2890 = vpop.f32.mrf.mxu0
        %v2891 = vadd.f32 0.0, %v2890
        %2892 = vmatmul.bf16.gmra.mxu0 %v2794
        %v2893 = vpop.f32.mrf.mxu0
        %v2894 = vadd.f32 0.0, %v2893
        %v2895 = vpop.f32.mrf.mxu0
        %v2896 = vadd.f32 0.0, %v2895
        %2897 = vmatmul.bf16.gmra.mxu0 %v2795
        %v2898 = vpop.f32.mrf.mxu0
        %v2899 = vadd.f32 0.0, %v2898
        %v2900 = vpop.f32.mrf.mxu0
        %v2901 = vadd.f32 0.0, %v2900
        %2902 = vmatmul.bf16.gmra.mxu0 %v2796
        %v2903 = vpop.f32.mrf.mxu0
        %v2904 = vadd.f32 0.0, %v2903
        %v2905 = vpop.f32.mrf.mxu0
        %v2906 = vadd.f32 0.0, %v2905
        %2907 = vmatmul.bf16.gmra.mxu0 %v2797
        %v2908 = vpop.f32.mrf.mxu0
        %v2909 = vadd.f32 0.0, %v2908
        %v2910 = vpop.f32.mrf.mxu0
        %v2911 = vadd.f32 0.0, %v2910
        %2912 = vmatmul.bf16.gmra.mxu0 %v2798
        %v2913 = vpop.f32.mrf.mxu0
        %v2914 = vadd.f32 0.0, %v2913
        %v2915 = vpop.f32.mrf.mxu0
        %2916 = vdwg.mxu0
        %v2917 = vadd.f32 %v2756, %v2874
        %v2918 = vadd.f32 %v2757, %v2876
        %v2919 = vadd.f32 %v2758, %v2879
        %v2920 = vadd.f32 %v2759, %v2881
        %v2921 = vadd.f32 %v2760, %v2884
        %v2922 = vadd.f32 %v2761, %v2886
        %v2923 = vadd.f32 %v2762, %v2889
        %v2924 = vadd.f32 %v2763, %v2891
        %v2925 = vadd.f32 %v2764, %v2894
        %v2926 = vadd.f32 %v2765, %v2896
        %v2927 = vadd.f32 %v2766, %v2899
        %v2928 = vadd.f32 %v2767, %v2901
        %v2929 = vadd.f32 %v2768, %v2904
        %v2930 = vadd.f32 %v2769, %v2906
        %v2931 = vadd.f32 %v2770, %v2909
        %v2932 = vadd.f32 %v2771, %v2911
        %v2933 = vadd.f32 %v2772, %v2914
        %v2934 = vld [vmem:[#allocation3 + $0x11] sm:$0xff]
        %v2935 = vld [vmem:[#allocation3 + $0x19] sm:$0xff]
        %v2936 = vld [vmem:[#allocation3 + $0x21] sm:$0xff]
        %v2937 = vld [vmem:[#allocation3 + $0x29] sm:$0xff]
        %v2938 = vld [vmem:[#allocation3 + $0x31] sm:$0xff]
        %v2939 = vld [vmem:[#allocation3 + $0x39] sm:$0xff]
        %v2940 = vld [vmem:[#allocation3 + $0x41] sm:$0xff]
        %v2941 = vld [vmem:[#allocation3 + $0x49] sm:$0xff]
        %v2942 = vld [vmem:[#allocation3 + $0x51] sm:$0xff]
        %v2943 = vld [vmem:[#allocation3 + $0x59] sm:$0xff]
        %v2944 = vld [vmem:[#allocation3 + $0x61] sm:$0xff]
        %v2945 = vld [vmem:[#allocation3 + $0x69] sm:$0xff]
        %v2946 = vld [vmem:[#allocation3 + $0x71] sm:$0xff]
        %v2947 = vld [vmem:[#allocation3 + $0x79] sm:$0xff]
        %v2948 = vld [vmem:[#allocation3 + $0x81] sm:$0xff]
        %v2949 = vld [vmem:[#allocation3 + $0x89] sm:$0xff]
        %v2950 = vld [vmem:[#allocation3 + $0x91] sm:$0xff]
        %v2951 = vpack.c.bf16 %v2935, %v2934
        %v2952 = vpack.c.bf16 %v2937, %v2936
        %v2953 = vpack.c.bf16 %v2939, %v2938
        %v2954 = vpack.c.bf16 %v2941, %v2940
        %v2955 = vpack.c.bf16 %v2943, %v2942
        %v2956 = vpack.c.bf16 %v2945, %v2944
        %v2957 = vpack.c.bf16 %v2947, %v2946
        %v2958 = vpack.c.bf16 %v2949, %v2948
        %v2959 = vpack.c.bf16 %v2950, %v2950
        %s2960 = scalar_lea.vmem %s3, 512
        %v2961 = vld [vmem:[%s2960] sm:$0xf]
        %v2962 = vld [vmem:[%s2960 + $0x4] sm:$0xf]
        %v2963 = vld [vmem:[%s2960 + $0x8] sm:$0xf]
        %v2964 = vld [vmem:[%s2960 + $0xc] sm:$0xf]
        %v2965 = vld [vmem:[%s2960 + $0x10] sm:$0xf]
        %v2966 = vld [vmem:[%s2960 + $0x14] sm:$0xf]
        %v2967 = vld [vmem:[%s2960 + $0x18] sm:$0xf]
        %v2968 = vld [vmem:[%s2960 + $0x1c] sm:$0xf]
        %v2969 = vld [vmem:[%s2960 + $0x20] sm:$0xf]
        %v2970 = vld [vmem:[%s2960 + $0x24] sm:$0xf]
        %v2971 = vld [vmem:[%s2960 + $0x28] sm:$0xf]
        %v2972 = vld [vmem:[%s2960 + $0x2c] sm:$0xf]
        %v2973 = vld [vmem:[%s2960 + $0x30] sm:$0xf]
        %v2974 = vld [vmem:[%s2960 + $0x34] sm:$0xf]
        %v2975 = vld [vmem:[%s2960 + $0x38] sm:$0xf]
        %v2976 = vld [vmem:[%s2960 + $0x3c] sm:$0xf]
        %v2993 = vunpack.c.l.b16 %v2961
        %v2994 = vunpack.c.l.b16 %v2962
        %v2995 = vunpack.c.l.b16 %v2963
        %v2996 = vunpack.c.l.b16 %v2964
        %v2997 = vunpack.c.l.b16 %v2965
        %v2998 = vunpack.c.l.b16 %v2966
        %v2999 = vunpack.c.l.b16 %v2967
        %v3000 = vunpack.c.l.b16 %v2968
        %v3001 = vunpack.c.l.b16 %v2969
        %v3002 = vunpack.c.l.b16 %v2970
        %v3003 = vunpack.c.l.b16 %v2971
        %v3004 = vunpack.c.l.b16 %v2972
        %v3005 = vunpack.c.l.b16 %v2973
        %v3006 = vunpack.c.l.b16 %v2974
        %v3007 = vunpack.c.l.b16 %v2975
        %v3008 = vunpack.c.l.b16 %v2976
        %v3009 = vpack.c.b16 %v2994, %v2993
        %v3010 = vpack.c.b16 %v2996, %v2995
        %v3011 = vpack.c.b16 %v2998, %v2997
        %v3012 = vpack.c.b16 %v3000, %v2999
        %v3013 = vpack.c.b16 %v3002, %v3001
        %v3014 = vpack.c.b16 %v3004, %v3003
        %v3015 = vpack.c.b16 %v3006, %v3005
        %v3016 = vpack.c.b16 %v3008, %v3007
        %3025 = vmatpush.bf16.msra.mxu0 %v3016
        %3026 = vmatpush.bf16.msra.mxu0 %v3015
        %3027 = vmatpush.bf16.msra.mxu0 %v3014
        %3028 = vmatpush.bf16.msra.mxu0 %v3013
        %3029 = vmatpush.bf16.msra.mxu0 %v3012
        %3030 = vmatpush.bf16.msra.mxu0 %v3011
        %3031 = vmatpush.bf16.msra.mxu0 %v3010
        %3032 = vmatpush.bf16.msra.mxu0 %v3009
        %3033 = vmatmul.bf16.gmra.mxu0 %v2951
        %v3034 = vpop.f32.mrf.mxu0
        %v3035 = vadd.f32 0.0, %v3034
        %v3036 = vpop.f32.mrf.mxu0
        %v3037 = vadd.f32 0.0, %v3036
        %3038 = vmatmul.bf16.gmra.mxu0 %v2952
        %v3039 = vpop.f32.mrf.mxu0
        %v3040 = vadd.f32 0.0, %v3039
        %v3041 = vpop.f32.mrf.mxu0
        %v3042 = vadd.f32 0.0, %v3041
        %3043 = vmatmul.bf16.gmra.mxu0 %v2953
        %v3044 = vpop.f32.mrf.mxu0
        %v3045 = vadd.f32 0.0, %v3044
        %v3046 = vpop.f32.mrf.mxu0
        %v3047 = vadd.f32 0.0, %v3046
        %3048 = vmatmul.bf16.gmra.mxu0 %v2954
        %v3049 = vpop.f32.mrf.mxu0
        %v3050 = vadd.f32 0.0, %v3049
        %v3051 = vpop.f32.mrf.mxu0
        %v3052 = vadd.f32 0.0, %v3051
        %3053 = vmatmul.bf16.gmra.mxu0 %v2955
        %v3054 = vpop.f32.mrf.mxu0
        %v3055 = vadd.f32 0.0, %v3054
        %v3056 = vpop.f32.mrf.mxu0
        %v3057 = vadd.f32 0.0, %v3056
        %3058 = vmatmul.bf16.gmra.mxu0 %v2956
        %v3059 = vpop.f32.mrf.mxu0
        %v3060 = vadd.f32 0.0, %v3059
        %v3061 = vpop.f32.mrf.mxu0
        %v3062 = vadd.f32 0.0, %v3061
        %3063 = vmatmul.bf16.gmra.mxu0 %v2957
        %v3064 = vpop.f32.mrf.mxu0
        %v3065 = vadd.f32 0.0, %v3064
        %v3066 = vpop.f32.mrf.mxu0
        %v3067 = vadd.f32 0.0, %v3066
        %3068 = vmatmul.bf16.gmra.mxu0 %v2958
        %v3069 = vpop.f32.mrf.mxu0
        %v3070 = vadd.f32 0.0, %v3069
        %v3071 = vpop.f32.mrf.mxu0
        %v3072 = vadd.f32 0.0, %v3071
        %3073 = vmatmul.bf16.gmra.mxu0 %v2959
        %v3074 = vpop.f32.mrf.mxu0
        %v3075 = vadd.f32 0.0, %v3074
        %v3076 = vpop.f32.mrf.mxu0
        %3077 = vdwg.mxu0
        %v3078 = vadd.f32 %v2917, %v3035
        %v3079 = vadd.f32 %v2918, %v3037
        %v3080 = vadd.f32 %v2919, %v3040
        %v3081 = vadd.f32 %v2920, %v3042
        %v3082 = vadd.f32 %v2921, %v3045
        %v3083 = vadd.f32 %v2922, %v3047
        %v3084 = vadd.f32 %v2923, %v3050
        %v3085 = vadd.f32 %v2924, %v3052
        %v3086 = vadd.f32 %v2925, %v3055
        %v3087 = vadd.f32 %v2926, %v3057
        %v3088 = vadd.f32 %v2927, %v3060
        %v3089 = vadd.f32 %v2928, %v3062
        %v3090 = vadd.f32 %v2929, %v3065
        %v3091 = vadd.f32 %v2930, %v3067
        %v3092 = vadd.f32 %v2931, %v3070
        %v3093 = vadd.f32 %v2932, %v3072
        %v3094 = vadd.f32 %v2933, %v3075
        %v3095 = vld [vmem:[#allocation3 + $0x12] sm:$0xff]
        %v3096 = vld [vmem:[#allocation3 + $0x1a] sm:$0xff]
        %v3097 = vld [vmem:[#allocation3 + $0x22] sm:$0xff]
        %v3098 = vld [vmem:[#allocation3 + $0x2a] sm:$0xff]
        %v3099 = vld [vmem:[#allocation3 + $0x32] sm:$0xff]
        %v3100 = vld [vmem:[#allocation3 + $0x3a] sm:$0xff]
        %v3101 = vld [vmem:[#allocation3 + $0x42] sm:$0xff]
        %v3102 = vld [vmem:[#allocation3 + $0x4a] sm:$0xff]
        %v3103 = vld [vmem:[#allocation3 + $0x52] sm:$0xff]
        %v3104 = vld [vmem:[#allocation3 + $0x5a] sm:$0xff]
        %v3105 = vld [vmem:[#allocation3 + $0x62] sm:$0xff]
        %v3106 = vld [vmem:[#allocation3 + $0x6a] sm:$0xff]
        %v3107 = vld [vmem:[#allocation3 + $0x72] sm:$0xff]
        %v3108 = vld [vmem:[#allocation3 + $0x7a] sm:$0xff]
        %v3109 = vld [vmem:[#allocation3 + $0x82] sm:$0xff]
        %v3110 = vld [vmem:[#allocation3 + $0x8a] sm:$0xff]
        %v3111 = vld [vmem:[#allocation3 + $0x92] sm:$0xff]
        %v3112 = vpack.c.bf16 %v3096, %v3095
        %v3113 = vpack.c.bf16 %v3098, %v3097
        %v3114 = vpack.c.bf16 %v3100, %v3099
        %v3115 = vpack.c.bf16 %v3102, %v3101
        %v3116 = vpack.c.bf16 %v3104, %v3103
        %v3117 = vpack.c.bf16 %v3106, %v3105
        %v3118 = vpack.c.bf16 %v3108, %v3107
        %v3119 = vpack.c.bf16 %v3110, %v3109
        %v3120 = vpack.c.bf16 %v3111, %v3111
        %s3121 = scalar_lea.vmem %s3, 576
        %v3122 = vld [vmem:[%s3121] sm:$0xf]
        %v3123 = vld [vmem:[%s3121 + $0x4] sm:$0xf]
        %v3124 = vld [vmem:[%s3121 + $0x8] sm:$0xf]
        %v3125 = vld [vmem:[%s3121 + $0xc] sm:$0xf]
        %v3126 = vld [vmem:[%s3121 + $0x10] sm:$0xf]
        %v3127 = vld [vmem:[%s3121 + $0x14] sm:$0xf]
        %v3128 = vld [vmem:[%s3121 + $0x18] sm:$0xf]
        %v3129 = vld [vmem:[%s3121 + $0x1c] sm:$0xf]
        %v3130 = vld [vmem:[%s3121 + $0x20] sm:$0xf]
        %v3131 = vld [vmem:[%s3121 + $0x24] sm:$0xf]
        %v3132 = vld [vmem:[%s3121 + $0x28] sm:$0xf]
        %v3133 = vld [vmem:[%s3121 + $0x2c] sm:$0xf]
        %v3134 = vld [vmem:[%s3121 + $0x30] sm:$0xf]
        %v3135 = vld [vmem:[%s3121 + $0x34] sm:$0xf]
        %v3136 = vld [vmem:[%s3121 + $0x38] sm:$0xf]
        %v3137 = vld [vmem:[%s3121 + $0x3c] sm:$0xf]
        %v3154 = vunpack.c.l.b16 %v3122
        %v3155 = vunpack.c.l.b16 %v3123
        %v3156 = vunpack.c.l.b16 %v3124
        %v3157 = vunpack.c.l.b16 %v3125
        %v3158 = vunpack.c.l.b16 %v3126
        %v3159 = vunpack.c.l.b16 %v3127
        %v3160 = vunpack.c.l.b16 %v3128
        %v3161 = vunpack.c.l.b16 %v3129
        %v3162 = vunpack.c.l.b16 %v3130
        %v3163 = vunpack.c.l.b16 %v3131
        %v3164 = vunpack.c.l.b16 %v3132
        %v3165 = vunpack.c.l.b16 %v3133
        %v3166 = vunpack.c.l.b16 %v3134
        %v3167 = vunpack.c.l.b16 %v3135
        %v3168 = vunpack.c.l.b16 %v3136
        %v3169 = vunpack.c.l.b16 %v3137
        %v3170 = vpack.c.b16 %v3155, %v3154
        %v3171 = vpack.c.b16 %v3157, %v3156
        %v3172 = vpack.c.b16 %v3159, %v3158
        %v3173 = vpack.c.b16 %v3161, %v3160
        %v3174 = vpack.c.b16 %v3163, %v3162
        %v3175 = vpack.c.b16 %v3165, %v3164
        %v3176 = vpack.c.b16 %v3167, %v3166
        %v3177 = vpack.c.b16 %v3169, %v3168
        %3186 = vmatpush.bf16.msra.mxu0 %v3177
        %3187 = vmatpush.bf16.msra.mxu0 %v3176
        %3188 = vmatpush.bf16.msra.mxu0 %v3175
        %3189 = vmatpush.bf16.msra.mxu0 %v3174
        %3190 = vmatpush.bf16.msra.mxu0 %v3173
        %3191 = vmatpush.bf16.msra.mxu0 %v3172
        %3192 = vmatpush.bf16.msra.mxu0 %v3171
        %3193 = vmatpush.bf16.msra.mxu0 %v3170
        %3194 = vmatmul.bf16.gmra.mxu0 %v3112
        %v3195 = vpop.f32.mrf.mxu0
        %v3196 = vadd.f32 0.0, %v3195
        %v3197 = vpop.f32.mrf.mxu0
        %v3198 = vadd.f32 0.0, %v3197
        %3199 = vmatmul.bf16.gmra.mxu0 %v3113
        %v3200 = vpop.f32.mrf.mxu0
        %v3201 = vadd.f32 0.0, %v3200
        %v3202 = vpop.f32.mrf.mxu0
        %v3203 = vadd.f32 0.0, %v3202
        %3204 = vmatmul.bf16.gmra.mxu0 %v3114
        %v3205 = vpop.f32.mrf.mxu0
        %v3206 = vadd.f32 0.0, %v3205
        %v3207 = vpop.f32.mrf.mxu0
        %v3208 = vadd.f32 0.0, %v3207
        %3209 = vmatmul.bf16.gmra.mxu0 %v3115
        %v3210 = vpop.f32.mrf.mxu0
        %v3211 = vadd.f32 0.0, %v3210
        %v3212 = vpop.f32.mrf.mxu0
        %v3213 = vadd.f32 0.0, %v3212
        %3214 = vmatmul.bf16.gmra.mxu0 %v3116
        %v3215 = vpop.f32.mrf.mxu0
        %v3216 = vadd.f32 0.0, %v3215
        %v3217 = vpop.f32.mrf.mxu0
        %v3218 = vadd.f32 0.0, %v3217
        %3219 = vmatmul.bf16.gmra.mxu0 %v3117
        %v3220 = vpop.f32.mrf.mxu0
        %v3221 = vadd.f32 0.0, %v3220
        %v3222 = vpop.f32.mrf.mxu0
        %v3223 = vadd.f32 0.0, %v3222
        %3224 = vmatmul.bf16.gmra.mxu0 %v3118
        %v3225 = vpop.f32.mrf.mxu0
        %v3226 = vadd.f32 0.0, %v3225
        %v3227 = vpop.f32.mrf.mxu0
        %v3228 = vadd.f32 0.0, %v3227
        %3229 = vmatmul.bf16.gmra.mxu0 %v3119
        %v3230 = vpop.f32.mrf.mxu0
        %v3231 = vadd.f32 0.0, %v3230
        %v3232 = vpop.f32.mrf.mxu0
        %v3233 = vadd.f32 0.0, %v3232
        %3234 = vmatmul.bf16.gmra.mxu0 %v3120
        %v3235 = vpop.f32.mrf.mxu0
        %v3236 = vadd.f32 0.0, %v3235
        %v3237 = vpop.f32.mrf.mxu0
        %3238 = vdwg.mxu0
        %v3239 = vadd.f32 %v3078, %v3196
        %v3240 = vadd.f32 %v3079, %v3198
        %v3241 = vadd.f32 %v3080, %v3201
        %v3242 = vadd.f32 %v3081, %v3203
        %v3243 = vadd.f32 %v3082, %v3206
        %v3244 = vadd.f32 %v3083, %v3208
        %v3245 = vadd.f32 %v3084, %v3211
        %v3246 = vadd.f32 %v3085, %v3213
        %v3247 = vadd.f32 %v3086, %v3216
        %v3248 = vadd.f32 %v3087, %v3218
        %v3249 = vadd.f32 %v3088, %v3221
        %v3250 = vadd.f32 %v3089, %v3223
        %v3251 = vadd.f32 %v3090, %v3226
        %v3252 = vadd.f32 %v3091, %v3228
        %v3253 = vadd.f32 %v3092, %v3231
        %v3254 = vadd.f32 %v3093, %v3233
        %v3255 = vadd.f32 %v3094, %v3236
        %v3256 = vld [vmem:[#allocation3 + $0x1c] sm:$0xff]
        %v3257 = vld [vmem:[#allocation3 + $0x24] sm:$0xff]
        %v3258 = vld [vmem:[#allocation3 + $0x2c] sm:$0xff]
        %v3259 = vld [vmem:[#allocation3 + $0x34] sm:$0xff]
        %v3260 = vld [vmem:[#allocation3 + $0x3c] sm:$0xff]
        %v3261 = vld [vmem:[#allocation3 + $0x44] sm:$0xff]
        %v3262 = vld [vmem:[#allocation3 + $0x4c] sm:$0xff]
        %v3263 = vld [vmem:[#allocation3 + $0x54] sm:$0xff]
        %v3264 = vld [vmem:[#allocation3 + $0x5c] sm:$0xff]
        %v3265 = vld [vmem:[#allocation3 + $0x64] sm:$0xff]
        %v3266 = vld [vmem:[#allocation3 + $0x6c] sm:$0xff]
        %v3267 = vld [vmem:[#allocation3 + $0x74] sm:$0xff]
        %v3268 = vld [vmem:[#allocation3 + $0x7c] sm:$0xff]
        %v3269 = vld [vmem:[#allocation3 + $0x84] sm:$0xff]
        %v3270 = vld [vmem:[#allocation3 + $0x8c] sm:$0xff]
        %v3271 = vld [vmem:[#allocation3 + $0x94] sm:$0xff]
        %v3272 = vld [vmem:[#allocation3 + $0x9c] sm:$0xff]
        %v3273 = vpack.c.bf16 %v3257, %v3256
        %v3274 = vpack.c.bf16 %v3259, %v3258
        %v3275 = vpack.c.bf16 %v3261, %v3260
        %v3276 = vpack.c.bf16 %v3263, %v3262
        %v3277 = vpack.c.bf16 %v3265, %v3264
        %v3278 = vpack.c.bf16 %v3267, %v3266
        %v3279 = vpack.c.bf16 %v3269, %v3268
        %v3280 = vpack.c.bf16 %v3271, %v3270
        %v3281 = vpack.c.bf16 %v3272, %v3272
        %s3282 = scalar_lea.vmem %s3, 640
        %v3283 = vld [vmem:[%s3282] sm:$0xf]
        %v3284 = vld [vmem:[%s3282 + $0x4] sm:$0xf]
        %v3285 = vld [vmem:[%s3282 + $0x8] sm:$0xf]
        %v3286 = vld [vmem:[%s3282 + $0xc] sm:$0xf]
        %v3287 = vld [vmem:[%s3282 + $0x10] sm:$0xf]
        %v3288 = vld [vmem:[%s3282 + $0x14] sm:$0xf]
        %v3289 = vld [vmem:[%s3282 + $0x18] sm:$0xf]
        %v3290 = vld [vmem:[%s3282 + $0x1c] sm:$0xf]
        %v3291 = vld [vmem:[%s3282 + $0x20] sm:$0xf]
        %v3292 = vld [vmem:[%s3282 + $0x24] sm:$0xf]
        %v3293 = vld [vmem:[%s3282 + $0x28] sm:$0xf]
        %v3294 = vld [vmem:[%s3282 + $0x2c] sm:$0xf]
        %v3295 = vld [vmem:[%s3282 + $0x30] sm:$0xf]
        %v3296 = vld [vmem:[%s3282 + $0x34] sm:$0xf]
        %v3297 = vld [vmem:[%s3282 + $0x38] sm:$0xf]
        %v3298 = vld [vmem:[%s3282 + $0x3c] sm:$0xf]
        %v3315 = vunpack.c.l.b16 %v3283
        %v3316 = vunpack.c.l.b16 %v3284
        %v3317 = vunpack.c.l.b16 %v3285
        %v3318 = vunpack.c.l.b16 %v3286
        %v3319 = vunpack.c.l.b16 %v3287
        %v3320 = vunpack.c.l.b16 %v3288
        %v3321 = vunpack.c.l.b16 %v3289
        %v3322 = vunpack.c.l.b16 %v3290
        %v3323 = vunpack.c.l.b16 %v3291
        %v3324 = vunpack.c.l.b16 %v3292
        %v3325 = vunpack.c.l.b16 %v3293
        %v3326 = vunpack.c.l.b16 %v3294
        %v3327 = vunpack.c.l.b16 %v3295
        %v3328 = vunpack.c.l.b16 %v3296
        %v3329 = vunpack.c.l.b16 %v3297
        %v3330 = vunpack.c.l.b16 %v3298
        %v3331 = vpack.c.b16 %v3316, %v3315
        %v3332 = vpack.c.b16 %v3318, %v3317
        %v3333 = vpack.c.b16 %v3320, %v3319
        %v3334 = vpack.c.b16 %v3322, %v3321
        %v3335 = vpack.c.b16 %v3324, %v3323
        %v3336 = vpack.c.b16 %v3326, %v3325
        %v3337 = vpack.c.b16 %v3328, %v3327
        %v3338 = vpack.c.b16 %v3330, %v3329
        %3347 = vmatpush.bf16.msra.mxu0 %v3338
        %3348 = vmatpush.bf16.msra.mxu0 %v3337
        %3349 = vmatpush.bf16.msra.mxu0 %v3336
        %3350 = vmatpush.bf16.msra.mxu0 %v3335
        %3351 = vmatpush.bf16.msra.mxu0 %v3334
        %3352 = vmatpush.bf16.msra.mxu0 %v3333
        %3353 = vmatpush.bf16.msra.mxu0 %v3332
        %3354 = vmatpush.bf16.msra.mxu0 %v3331
        %3355 = vmatmul.bf16.gmra.mxu0 %v3273
        %v3356 = vpop.f32.mrf.mxu0
        %v3357 = vadd.f32 0.0, %v3356
        %v3358 = vpop.f32.mrf.mxu0
        %v3359 = vadd.f32 0.0, %v3358
        %3360 = vmatmul.bf16.gmra.mxu0 %v3274
        %v3361 = vpop.f32.mrf.mxu0
        %v3362 = vadd.f32 0.0, %v3361
        %v3363 = vpop.f32.mrf.mxu0
        %v3364 = vadd.f32 0.0, %v3363
        %3365 = vmatmul.bf16.gmra.mxu0 %v3275
        %v3366 = vpop.f32.mrf.mxu0
        %v3367 = vadd.f32 0.0, %v3366
        %v3368 = vpop.f32.mrf.mxu0
        %v3369 = vadd.f32 0.0, %v3368
        %3370 = vmatmul.bf16.gmra.mxu0 %v3276
        %v3371 = vpop.f32.mrf.mxu0
        %v3372 = vadd.f32 0.0, %v3371
        %v3373 = vpop.f32.mrf.mxu0
        %v3374 = vadd.f32 0.0, %v3373
        %3375 = vmatmul.bf16.gmra.mxu0 %v3277
        %v3376 = vpop.f32.mrf.mxu0
        %v3377 = vadd.f32 0.0, %v3376
        %v3378 = vpop.f32.mrf.mxu0
        %v3379 = vadd.f32 0.0, %v3378
        %3380 = vmatmul.bf16.gmra.mxu0 %v3278
        %v3381 = vpop.f32.mrf.mxu0
        %v3382 = vadd.f32 0.0, %v3381
        %v3383 = vpop.f32.mrf.mxu0
        %v3384 = vadd.f32 0.0, %v3383
        %3385 = vmatmul.bf16.gmra.mxu0 %v3279
        %v3386 = vpop.f32.mrf.mxu0
        %v3387 = vadd.f32 0.0, %v3386
        %v3388 = vpop.f32.mrf.mxu0
        %v3389 = vadd.f32 0.0, %v3388
        %3390 = vmatmul.bf16.gmra.mxu0 %v3280
        %v3391 = vpop.f32.mrf.mxu0
        %v3392 = vadd.f32 0.0, %v3391
        %v3393 = vpop.f32.mrf.mxu0
        %v3394 = vadd.f32 0.0, %v3393
        %3395 = vmatmul.bf16.gmra.mxu0 %v3281
        %v3396 = vpop.f32.mrf.mxu0
        %v3397 = vadd.f32 0.0, %v3396
        %v3398 = vpop.f32.mrf.mxu0
        %3399 = vdwg.mxu0
        %v3400 = vadd.f32 %v3239, %v3357
        %v3401 = vadd.f32 %v3240, %v3359
        %v3402 = vadd.f32 %v3241, %v3362
        %v3403 = vadd.f32 %v3242, %v3364
        %v3404 = vadd.f32 %v3243, %v3367
        %v3405 = vadd.f32 %v3244, %v3369
        %v3406 = vadd.f32 %v3245, %v3372
        %v3407 = vadd.f32 %v3246, %v3374
        %v3408 = vadd.f32 %v3247, %v3377
        %v3409 = vadd.f32 %v3248, %v3379
        %v3410 = vadd.f32 %v3249, %v3382
        %v3411 = vadd.f32 %v3250, %v3384
        %v3412 = vadd.f32 %v3251, %v3387
        %v3413 = vadd.f32 %v3252, %v3389
        %v3414 = vadd.f32 %v3253, %v3392
        %v3415 = vadd.f32 %v3254, %v3394
        %v3416 = vadd.f32 %v3255, %v3397
        %v3417 = vld [vmem:[#allocation3 + $0x1d] sm:$0xff]
        %v3418 = vld [vmem:[#allocation3 + $0x25] sm:$0xff]
        %v3419 = vld [vmem:[#allocation3 + $0x2d] sm:$0xff]
        %v3420 = vld [vmem:[#allocation3 + $0x35] sm:$0xff]
        %v3421 = vld [vmem:[#allocation3 + $0x3d] sm:$0xff]
        %v3422 = vld [vmem:[#allocation3 + $0x45] sm:$0xff]
        %v3423 = vld [vmem:[#allocation3 + $0x4d] sm:$0xff]
        %v3424 = vld [vmem:[#allocation3 + $0x55] sm:$0xff]
        %v3425 = vld [vmem:[#allocation3 + $0x5d] sm:$0xff]
        %v3426 = vld [vmem:[#allocation3 + $0x65] sm:$0xff]
        %v3427 = vld [vmem:[#allocation3 + $0x6d] sm:$0xff]
        %v3428 = vld [vmem:[#allocation3 + $0x75] sm:$0xff]
        %v3429 = vld [vmem:[#allocation3 + $0x7d] sm:$0xff]
        %v3430 = vld [vmem:[#allocation3 + $0x85] sm:$0xff]
        %v3431 = vld [vmem:[#allocation3 + $0x8d] sm:$0xff]
        %v3432 = vld [vmem:[#allocation3 + $0x95] sm:$0xff]
        %v3433 = vld [vmem:[#allocation3 + $0x9d] sm:$0xff]
        %v3434 = vpack.c.bf16 %v3418, %v3417
        %v3435 = vpack.c.bf16 %v3420, %v3419
        %v3436 = vpack.c.bf16 %v3422, %v3421
        %v3437 = vpack.c.bf16 %v3424, %v3423
        %v3438 = vpack.c.bf16 %v3426, %v3425
        %v3439 = vpack.c.bf16 %v3428, %v3427
        %v3440 = vpack.c.bf16 %v3430, %v3429
        %v3441 = vpack.c.bf16 %v3432, %v3431
        %v3442 = vpack.c.bf16 %v3433, %v3433
        %s3443 = scalar_lea.vmem %s3, 704
        %v3444 = vld [vmem:[%s3443] sm:$0xf]
        %v3445 = vld [vmem:[%s3443 + $0x4] sm:$0xf]
        %v3446 = vld [vmem:[%s3443 + $0x8] sm:$0xf]
        %v3447 = vld [vmem:[%s3443 + $0xc] sm:$0xf]
        %v3448 = vld [vmem:[%s3443 + $0x10] sm:$0xf]
        %v3449 = vld [vmem:[%s3443 + $0x14] sm:$0xf]
        %v3450 = vld [vmem:[%s3443 + $0x18] sm:$0xf]
        %v3451 = vld [vmem:[%s3443 + $0x1c] sm:$0xf]
        %v3452 = vld [vmem:[%s3443 + $0x20] sm:$0xf]
        %v3453 = vld [vmem:[%s3443 + $0x24] sm:$0xf]
        %v3454 = vld [vmem:[%s3443 + $0x28] sm:$0xf]
        %v3455 = vld [vmem:[%s3443 + $0x2c] sm:$0xf]
        %v3456 = vld [vmem:[%s3443 + $0x30] sm:$0xf]
        %v3457 = vld [vmem:[%s3443 + $0x34] sm:$0xf]
        %v3458 = vld [vmem:[%s3443 + $0x38] sm:$0xf]
        %v3459 = vld [vmem:[%s3443 + $0x3c] sm:$0xf]
        %v3476 = vunpack.c.l.b16 %v3444
        %v3477 = vunpack.c.l.b16 %v3445
        %v3478 = vunpack.c.l.b16 %v3446
        %v3479 = vunpack.c.l.b16 %v3447
        %v3480 = vunpack.c.l.b16 %v3448
        %v3481 = vunpack.c.l.b16 %v3449
        %v3482 = vunpack.c.l.b16 %v3450
        %v3483 = vunpack.c.l.b16 %v3451
        %v3484 = vunpack.c.l.b16 %v3452
        %v3485 = vunpack.c.l.b16 %v3453
        %v3486 = vunpack.c.l.b16 %v3454
        %v3487 = vunpack.c.l.b16 %v3455
        %v3488 = vunpack.c.l.b16 %v3456
        %v3489 = vunpack.c.l.b16 %v3457
        %v3490 = vunpack.c.l.b16 %v3458
        %v3491 = vunpack.c.l.b16 %v3459
        %v3492 = vpack.c.b16 %v3477, %v3476
        %v3493 = vpack.c.b16 %v3479, %v3478
        %v3494 = vpack.c.b16 %v3481, %v3480
        %v3495 = vpack.c.b16 %v3483, %v3482
        %v3496 = vpack.c.b16 %v3485, %v3484
        %v3497 = vpack.c.b16 %v3487, %v3486
        %v3498 = vpack.c.b16 %v3489, %v3488
        %v3499 = vpack.c.b16 %v3491, %v3490
        %3508 = vmatpush.bf16.msra.mxu0 %v3499
        %3509 = vmatpush.bf16.msra.mxu0 %v3498
        %3510 = vmatpush.bf16.msra.mxu0 %v3497
        %3511 = vmatpush.bf16.msra.mxu0 %v3496
        %3512 = vmatpush.bf16.msra.mxu0 %v3495
        %3513 = vmatpush.bf16.msra.mxu0 %v3494
        %3514 = vmatpush.bf16.msra.mxu0 %v3493
        %3515 = vmatpush.bf16.msra.mxu0 %v3492
        %3516 = vmatmul.bf16.gmra.mxu0 %v3434
        %v3517 = vpop.f32.mrf.mxu0
        %v3518 = vadd.f32 0.0, %v3517
        %v3519 = vpop.f32.mrf.mxu0
        %v3520 = vadd.f32 0.0, %v3519
        %3521 = vmatmul.bf16.gmra.mxu0 %v3435
        %v3522 = vpop.f32.mrf.mxu0
        %v3523 = vadd.f32 0.0, %v3522
        %v3524 = vpop.f32.mrf.mxu0
        %v3525 = vadd.f32 0.0, %v3524
        %3526 = vmatmul.bf16.gmra.mxu0 %v3436
        %v3527 = vpop.f32.mrf.mxu0
        %v3528 = vadd.f32 0.0, %v3527
        %v3529 = vpop.f32.mrf.mxu0
        %v3530 = vadd.f32 0.0, %v3529
        %3531 = vmatmul.bf16.gmra.mxu0 %v3437
        %v3532 = vpop.f32.mrf.mxu0
        %v3533 = vadd.f32 0.0, %v3532
        %v3534 = vpop.f32.mrf.mxu0
        %v3535 = vadd.f32 0.0, %v3534
        %3536 = vmatmul.bf16.gmra.mxu0 %v3438
        %v3537 = vpop.f32.mrf.mxu0
        %v3538 = vadd.f32 0.0, %v3537
        %v3539 = vpop.f32.mrf.mxu0
        %v3540 = vadd.f32 0.0, %v3539
        %3541 = vmatmul.bf16.gmra.mxu0 %v3439
        %v3542 = vpop.f32.mrf.mxu0
        %v3543 = vadd.f32 0.0, %v3542
        %v3544 = vpop.f32.mrf.mxu0
        %v3545 = vadd.f32 0.0, %v3544
        %3546 = vmatmul.bf16.gmra.mxu0 %v3440
        %v3547 = vpop.f32.mrf.mxu0
        %v3548 = vadd.f32 0.0, %v3547
        %v3549 = vpop.f32.mrf.mxu0
        %v3550 = vadd.f32 0.0, %v3549
        %3551 = vmatmul.bf16.gmra.mxu0 %v3441
        %v3552 = vpop.f32.mrf.mxu0
        %v3553 = vadd.f32 0.0, %v3552
        %v3554 = vpop.f32.mrf.mxu0
        %v3555 = vadd.f32 0.0, %v3554
        %3556 = vmatmul.bf16.gmra.mxu0 %v3442
        %v3557 = vpop.f32.mrf.mxu0
        %v3558 = vadd.f32 0.0, %v3557
        %v3559 = vpop.f32.mrf.mxu0
        %3560 = vdwg.mxu0
        %v3561 = vadd.f32 %v3400, %v3518
        %v3562 = vadd.f32 %v3401, %v3520
        %v3563 = vadd.f32 %v3402, %v3523
        %v3564 = vadd.f32 %v3403, %v3525
        %v3565 = vadd.f32 %v3404, %v3528
        %v3566 = vadd.f32 %v3405, %v3530
        %v3567 = vadd.f32 %v3406, %v3533
        %v3568 = vadd.f32 %v3407, %v3535
        %v3569 = vadd.f32 %v3408, %v3538
        %v3570 = vadd.f32 %v3409, %v3540
        %v3571 = vadd.f32 %v3410, %v3543
        %v3572 = vadd.f32 %v3411, %v3545
        %v3573 = vadd.f32 %v3412, %v3548
        %v3574 = vadd.f32 %v3413, %v3550
        %v3575 = vadd.f32 %v3414, %v3553
        %v3576 = vadd.f32 %v3415, %v3555
        %v3577 = vadd.f32 %v3416, %v3558
        %v3578 = vld [vmem:[#allocation3 + $0x1e] sm:$0xff]
        %v3579 = vld [vmem:[#allocation3 + $0x26] sm:$0xff]
        %v3580 = vld [vmem:[#allocation3 + $0x2e] sm:$0xff]
        %v3581 = vld [vmem:[#allocation3 + $0x36] sm:$0xff]
        %v3582 = vld [vmem:[#allocation3 + $0x3e] sm:$0xff]
        %v3583 = vld [vmem:[#allocation3 + $0x46] sm:$0xff]
        %v3584 = vld [vmem:[#allocation3 + $0x4e] sm:$0xff]
        %v3585 = vld [vmem:[#allocation3 + $0x56] sm:$0xff]
        %v3586 = vld [vmem:[#allocation3 + $0x5e] sm:$0xff]
        %v3587 = vld [vmem:[#allocation3 + $0x66] sm:$0xff]
        %v3588 = vld [vmem:[#allocation3 + $0x6e] sm:$0xff]
        %v3589 = vld [vmem:[#allocation3 + $0x76] sm:$0xff]
        %v3590 = vld [vmem:[#allocation3 + $0x7e] sm:$0xff]
        %v3591 = vld [vmem:[#allocation3 + $0x86] sm:$0xff]
        %v3592 = vld [vmem:[#allocation3 + $0x8e] sm:$0xff]
        %v3593 = vld [vmem:[#allocation3 + $0x96] sm:$0xff]
        %v3594 = vld [vmem:[#allocation3 + $0x9e] sm:$0xff]
        %v3595 = vpack.c.bf16 %v3579, %v3578
        %v3596 = vpack.c.bf16 %v3581, %v3580
        %v3597 = vpack.c.bf16 %v3583, %v3582
        %v3598 = vpack.c.bf16 %v3585, %v3584
        %v3599 = vpack.c.bf16 %v3587, %v3586
        %v3600 = vpack.c.bf16 %v3589, %v3588
        %v3601 = vpack.c.bf16 %v3591, %v3590
        %v3602 = vpack.c.bf16 %v3593, %v3592
        %v3603 = vpack.c.bf16 %v3594, %v3594
        %s3604 = scalar_lea.vmem %s3, 768
        %v3605 = vld [vmem:[%s3604] sm:$0xf]
        %v3606 = vld [vmem:[%s3604 + $0x4] sm:$0xf]
        %v3607 = vld [vmem:[%s3604 + $0x8] sm:$0xf]
        %v3608 = vld [vmem:[%s3604 + $0xc] sm:$0xf]
        %v3609 = vld [vmem:[%s3604 + $0x10] sm:$0xf]
        %v3610 = vld [vmem:[%s3604 + $0x14] sm:$0xf]
        %v3611 = vld [vmem:[%s3604 + $0x18] sm:$0xf]
        %v3612 = vld [vmem:[%s3604 + $0x1c] sm:$0xf]
        %v3613 = vld [vmem:[%s3604 + $0x20] sm:$0xf]
        %v3614 = vld [vmem:[%s3604 + $0x24] sm:$0xf]
        %v3615 = vld [vmem:[%s3604 + $0x28] sm:$0xf]
        %v3616 = vld [vmem:[%s3604 + $0x2c] sm:$0xf]
        %v3617 = vld [vmem:[%s3604 + $0x30] sm:$0xf]
        %v3618 = vld [vmem:[%s3604 + $0x34] sm:$0xf]
        %v3619 = vld [vmem:[%s3604 + $0x38] sm:$0xf]
        %v3620 = vld [vmem:[%s3604 + $0x3c] sm:$0xf]
        %v3637 = vunpack.c.l.b16 %v3605
        %v3638 = vunpack.c.l.b16 %v3606
        %v3639 = vunpack.c.l.b16 %v3607
        %v3640 = vunpack.c.l.b16 %v3608
        %v3641 = vunpack.c.l.b16 %v3609
        %v3642 = vunpack.c.l.b16 %v3610
        %v3643 = vunpack.c.l.b16 %v3611
        %v3644 = vunpack.c.l.b16 %v3612
        %v3645 = vunpack.c.l.b16 %v3613
        %v3646 = vunpack.c.l.b16 %v3614
        %v3647 = vunpack.c.l.b16 %v3615
        %v3648 = vunpack.c.l.b16 %v3616
        %v3649 = vunpack.c.l.b16 %v3617
        %v3650 = vunpack.c.l.b16 %v3618
        %v3651 = vunpack.c.l.b16 %v3619
        %v3652 = vunpack.c.l.b16 %v3620
        %v3653 = vpack.c.b16 %v3638, %v3637
        %v3654 = vpack.c.b16 %v3640, %v3639
        %v3655 = vpack.c.b16 %v3642, %v3641
        %v3656 = vpack.c.b16 %v3644, %v3643
        %v3657 = vpack.c.b16 %v3646, %v3645
        %v3658 = vpack.c.b16 %v3648, %v3647
        %v3659 = vpack.c.b16 %v3650, %v3649
        %v3660 = vpack.c.b16 %v3652, %v3651
        %3669 = vmatpush.bf16.msra.mxu0 %v3660
        %3670 = vmatpush.bf16.msra.mxu0 %v3659
        %3671 = vmatpush.bf16.msra.mxu0 %v3658
        %3672 = vmatpush.bf16.msra.mxu0 %v3657
        %3673 = vmatpush.bf16.msra.mxu0 %v3656
        %3674 = vmatpush.bf16.msra.mxu0 %v3655
        %3675 = vmatpush.bf16.msra.mxu0 %v3654
        %3676 = vmatpush.bf16.msra.mxu0 %v3653
        %3677 = vmatmul.bf16.gmra.mxu0 %v3595
        %v3678 = vpop.f32.mrf.mxu0
        %v3679 = vadd.f32 0.0, %v3678
        %v3680 = vpop.f32.mrf.mxu0
        %v3681 = vadd.f32 0.0, %v3680
        %3682 = vmatmul.bf16.gmra.mxu0 %v3596
        %v3683 = vpop.f32.mrf.mxu0
        %v3684 = vadd.f32 0.0, %v3683
        %v3685 = vpop.f32.mrf.mxu0
        %v3686 = vadd.f32 0.0, %v3685
        %3687 = vmatmul.bf16.gmra.mxu0 %v3597
        %v3688 = vpop.f32.mrf.mxu0
        %v3689 = vadd.f32 0.0, %v3688
        %v3690 = vpop.f32.mrf.mxu0
        %v3691 = vadd.f32 0.0, %v3690
        %3692 = vmatmul.bf16.gmra.mxu0 %v3598
        %v3693 = vpop.f32.mrf.mxu0
        %v3694 = vadd.f32 0.0, %v3693
        %v3695 = vpop.f32.mrf.mxu0
        %v3696 = vadd.f32 0.0, %v3695
        %3697 = vmatmul.bf16.gmra.mxu0 %v3599
        %v3698 = vpop.f32.mrf.mxu0
        %v3699 = vadd.f32 0.0, %v3698
        %v3700 = vpop.f32.mrf.mxu0
        %v3701 = vadd.f32 0.0, %v3700
        %3702 = vmatmul.bf16.gmra.mxu0 %v3600
        %v3703 = vpop.f32.mrf.mxu0
        %v3704 = vadd.f32 0.0, %v3703
        %v3705 = vpop.f32.mrf.mxu0
        %v3706 = vadd.f32 0.0, %v3705
        %3707 = vmatmul.bf16.gmra.mxu0 %v3601
        %v3708 = vpop.f32.mrf.mxu0
        %v3709 = vadd.f32 0.0, %v3708
        %v3710 = vpop.f32.mrf.mxu0
        %v3711 = vadd.f32 0.0, %v3710
        %3712 = vmatmul.bf16.gmra.mxu0 %v3602
        %v3713 = vpop.f32.mrf.mxu0
        %v3714 = vadd.f32 0.0, %v3713
        %v3715 = vpop.f32.mrf.mxu0
        %v3716 = vadd.f32 0.0, %v3715
        %3717 = vmatmul.bf16.gmra.mxu0 %v3603
        %v3718 = vpop.f32.mrf.mxu0
        %v3719 = vadd.f32 0.0, %v3718
        %v3720 = vpop.f32.mrf.mxu0
        %3721 = vdwg.mxu0
        %v3722 = vadd.f32 %v3561, %v3679
        %v3723 = vadd.f32 %v3562, %v3681
        %v3724 = vadd.f32 %v3563, %v3684
        %v3725 = vadd.f32 %v3564, %v3686
        %v3726 = vadd.f32 %v3565, %v3689
        %v3727 = vadd.f32 %v3566, %v3691
        %v3728 = vadd.f32 %v3567, %v3694
        %v3729 = vadd.f32 %v3568, %v3696
        %v3730 = vadd.f32 %v3569, %v3699
        %v3731 = vadd.f32 %v3570, %v3701
        %v3732 = vadd.f32 %v3571, %v3704
        %v3733 = vadd.f32 %v3572, %v3706
        %v3734 = vadd.f32 %v3573, %v3709
        %v3735 = vadd.f32 %v3574, %v3711
        %v3736 = vadd.f32 %v3575, %v3714
        %v3737 = vadd.f32 %v3576, %v3716
        %v3738 = vadd.f32 %v3577, %v3719
        %v3739 = vld [vmem:[#allocation3 + $0x1f] sm:$0xff]
        %v3740 = vld [vmem:[#allocation3 + $0x27] sm:$0xff]
        %v3741 = vld [vmem:[#allocation3 + $0x2f] sm:$0xff]
        %v3742 = vld [vmem:[#allocation3 + $0x37] sm:$0xff]
        %v3743 = vld [vmem:[#allocation3 + $0x3f] sm:$0xff]
        %v3744 = vld [vmem:[#allocation3 + $0x47] sm:$0xff]
        %v3745 = vld [vmem:[#allocation3 + $0x4f] sm:$0xff]
        %v3746 = vld [vmem:[#allocation3 + $0x57] sm:$0xff]
        %v3747 = vld [vmem:[#allocation3 + $0x5f] sm:$0xff]
        %v3748 = vld [vmem:[#allocation3 + $0x67] sm:$0xff]
        %v3749 = vld [vmem:[#allocation3 + $0x6f] sm:$0xff]
        %v3750 = vld [vmem:[#allocation3 + $0x77] sm:$0xff]
        %v3751 = vld [vmem:[#allocation3 + $0x7f] sm:$0xff]
        %v3752 = vld [vmem:[#allocation3 + $0x87] sm:$0xff]
        %v3753 = vld [vmem:[#allocation3 + $0x8f] sm:$0xff]
        %v3754 = vld [vmem:[#allocation3 + $0x97] sm:$0xff]
        %v3755 = vld [vmem:[#allocation3 + $0x9f] sm:$0xff]
        %v3756 = vpack.c.bf16 %v3740, %v3739
        %v3757 = vpack.c.bf16 %v3742, %v3741
        %v3758 = vpack.c.bf16 %v3744, %v3743
        %v3759 = vpack.c.bf16 %v3746, %v3745
        %v3760 = vpack.c.bf16 %v3748, %v3747
        %v3761 = vpack.c.bf16 %v3750, %v3749
        %v3762 = vpack.c.bf16 %v3752, %v3751
        %v3763 = vpack.c.bf16 %v3754, %v3753
        %v3764 = vpack.c.bf16 %v3755, %v3755
        %s3765 = scalar_lea.vmem %s3, 832
        %v3766 = vld [vmem:[%s3765] sm:$0xf]
        %v3767 = vld [vmem:[%s3765 + $0x4] sm:$0xf]
        %v3768 = vld [vmem:[%s3765 + $0x8] sm:$0xf]
        %v3769 = vld [vmem:[%s3765 + $0xc] sm:$0xf]
        %v3770 = vld [vmem:[%s3765 + $0x10] sm:$0xf]
        %v3771 = vld [vmem:[%s3765 + $0x14] sm:$0xf]
        %v3772 = vld [vmem:[%s3765 + $0x18] sm:$0xf]
        %v3773 = vld [vmem:[%s3765 + $0x1c] sm:$0xf]
        %v3774 = vld [vmem:[%s3765 + $0x20] sm:$0xf]
        %v3775 = vld [vmem:[%s3765 + $0x24] sm:$0xf]
        %v3776 = vld [vmem:[%s3765 + $0x28] sm:$0xf]
        %v3777 = vld [vmem:[%s3765 + $0x2c] sm:$0xf]
        %v3778 = vld [vmem:[%s3765 + $0x30] sm:$0xf]
        %v3779 = vld [vmem:[%s3765 + $0x34] sm:$0xf]
        %v3780 = vld [vmem:[%s3765 + $0x38] sm:$0xf]
        %v3781 = vld [vmem:[%s3765 + $0x3c] sm:$0xf]
        %v3798 = vunpack.c.l.b16 %v3766
        %v3799 = vunpack.c.l.b16 %v3767
        %v3800 = vunpack.c.l.b16 %v3768
        %v3801 = vunpack.c.l.b16 %v3769
        %v3802 = vunpack.c.l.b16 %v3770
        %v3803 = vunpack.c.l.b16 %v3771
        %v3804 = vunpack.c.l.b16 %v3772
        %v3805 = vunpack.c.l.b16 %v3773
        %v3806 = vunpack.c.l.b16 %v3774
        %v3807 = vunpack.c.l.b16 %v3775
        %v3808 = vunpack.c.l.b16 %v3776
        %v3809 = vunpack.c.l.b16 %v3777
        %v3810 = vunpack.c.l.b16 %v3778
        %v3811 = vunpack.c.l.b16 %v3779
        %v3812 = vunpack.c.l.b16 %v3780
        %v3813 = vunpack.c.l.b16 %v3781
        %v3814 = vpack.c.b16 %v3799, %v3798
        %v3815 = vpack.c.b16 %v3801, %v3800
        %v3816 = vpack.c.b16 %v3803, %v3802
        %v3817 = vpack.c.b16 %v3805, %v3804
        %v3818 = vpack.c.b16 %v3807, %v3806
        %v3819 = vpack.c.b16 %v3809, %v3808
        %v3820 = vpack.c.b16 %v3811, %v3810
        %v3821 = vpack.c.b16 %v3813, %v3812
        %3830 = vmatpush.bf16.msra.mxu0 %v3821
        %3831 = vmatpush.bf16.msra.mxu0 %v3820
        %3832 = vmatpush.bf16.msra.mxu0 %v3819
        %3833 = vmatpush.bf16.msra.mxu0 %v3818
        %3834 = vmatpush.bf16.msra.mxu0 %v3817
        %3835 = vmatpush.bf16.msra.mxu0 %v3816
        %3836 = vmatpush.bf16.msra.mxu0 %v3815
        %3837 = vmatpush.bf16.msra.mxu0 %v3814
        %3838 = vmatmul.bf16.gmra.mxu0 %v3756
        %v3839 = vpop.f32.mrf.mxu0
        %v3840 = vadd.f32 0.0, %v3839
        %v3841 = vpop.f32.mrf.mxu0
        %v3842 = vadd.f32 0.0, %v3841
        %3843 = vmatmul.bf16.gmra.mxu0 %v3757
        %v3844 = vpop.f32.mrf.mxu0
        %v3845 = vadd.f32 0.0, %v3844
        %v3846 = vpop.f32.mrf.mxu0
        %v3847 = vadd.f32 0.0, %v3846
        %3848 = vmatmul.bf16.gmra.mxu0 %v3758
        %v3849 = vpop.f32.mrf.mxu0
        %v3850 = vadd.f32 0.0, %v3849
        %v3851 = vpop.f32.mrf.mxu0
        %v3852 = vadd.f32 0.0, %v3851
        %3853 = vmatmul.bf16.gmra.mxu0 %v3759
        %v3854 = vpop.f32.mrf.mxu0
        %v3855 = vadd.f32 0.0, %v3854
        %v3856 = vpop.f32.mrf.mxu0
        %v3857 = vadd.f32 0.0, %v3856
        %3858 = vmatmul.bf16.gmra.mxu0 %v3760
        %v3859 = vpop.f32.mrf.mxu0
        %v3860 = vadd.f32 0.0, %v3859
        %v3861 = vpop.f32.mrf.mxu0
        %v3862 = vadd.f32 0.0, %v3861
        %3863 = vmatmul.bf16.gmra.mxu0 %v3761
        %v3864 = vpop.f32.mrf.mxu0
        %v3865 = vadd.f32 0.0, %v3864
        %v3866 = vpop.f32.mrf.mxu0
        %v3867 = vadd.f32 0.0, %v3866
        %3868 = vmatmul.bf16.gmra.mxu0 %v3762
        %v3869 = vpop.f32.mrf.mxu0
        %v3870 = vadd.f32 0.0, %v3869
        %v3871 = vpop.f32.mrf.mxu0
        %v3872 = vadd.f32 0.0, %v3871
        %3873 = vmatmul.bf16.gmra.mxu0 %v3763
        %v3874 = vpop.f32.mrf.mxu0
        %v3875 = vadd.f32 0.0, %v3874
        %v3876 = vpop.f32.mrf.mxu0
        %v3877 = vadd.f32 0.0, %v3876
        %3878 = vmatmul.bf16.gmra.mxu0 %v3764
        %v3879 = vpop.f32.mrf.mxu0
        %v3880 = vadd.f32 0.0, %v3879
        %v3881 = vpop.f32.mrf.mxu0
        %3882 = vdwg.mxu0
        %v3883 = vadd.f32 %v3722, %v3840
        %v3884 = vadd.f32 %v3723, %v3842
        %v3885 = vadd.f32 %v3724, %v3845
        %v3886 = vadd.f32 %v3725, %v3847
        %v3887 = vadd.f32 %v3726, %v3850
        %v3888 = vadd.f32 %v3727, %v3852
        %v3889 = vadd.f32 %v3728, %v3855
        %v3890 = vadd.f32 %v3729, %v3857
        %v3891 = vadd.f32 %v3730, %v3860
        %v3892 = vadd.f32 %v3731, %v3862
        %v3893 = vadd.f32 %v3732, %v3865
        %v3894 = vadd.f32 %v3733, %v3867
        %v3895 = vadd.f32 %v3734, %v3870
        %v3896 = vadd.f32 %v3735, %v3872
        %v3897 = vadd.f32 %v3736, %v3875
        %v3898 = vadd.f32 %v3737, %v3877
        %v3899 = vadd.f32 %v3738, %v3880
        %v3900 = vld [vmem:[#allocation3 + $0x20] sm:$0xff]
        %v3901 = vld [vmem:[#allocation3 + $0x28] sm:$0xff]
        %v3902 = vld [vmem:[#allocation3 + $0x30] sm:$0xff]
        %v3903 = vld [vmem:[#allocation3 + $0x38] sm:$0xff]
        %v3904 = vld [vmem:[#allocation3 + $0x40] sm:$0xff]
        %v3905 = vld [vmem:[#allocation3 + $0x48] sm:$0xff]
        %v3906 = vld [vmem:[#allocation3 + $0x50] sm:$0xff]
        %v3907 = vld [vmem:[#allocation3 + $0x58] sm:$0xff]
        %v3908 = vld [vmem:[#allocation3 + $0x60] sm:$0xff]
        %v3909 = vld [vmem:[#allocation3 + $0x68] sm:$0xff]
        %v3910 = vld [vmem:[#allocation3 + $0x70] sm:$0xff]
        %v3911 = vld [vmem:[#allocation3 + $0x78] sm:$0xff]
        %v3912 = vld [vmem:[#allocation3 + $0x80] sm:$0xff]
        %v3913 = vld [vmem:[#allocation3 + $0x88] sm:$0xff]
        %v3914 = vld [vmem:[#allocation3 + $0x90] sm:$0xff]
        %v3915 = vld [vmem:[#allocation3 + $0x98] sm:$0xff]
        %v3916 = vld [vmem:[#allocation3 + $0xa0] sm:$0xff]
        %v3917 = vpack.c.bf16 %v3901, %v3900
        %v3918 = vpack.c.bf16 %v3903, %v3902
        %v3919 = vpack.c.bf16 %v3905, %v3904
        %v3920 = vpack.c.bf16 %v3907, %v3906
        %v3921 = vpack.c.bf16 %v3909, %v3908
        %v3922 = vpack.c.bf16 %v3911, %v3910
        %v3923 = vpack.c.bf16 %v3913, %v3912
        %v3924 = vpack.c.bf16 %v3915, %v3914
        %v3925 = vpack.c.bf16 %v3916, %v3916
        %s3926 = scalar_lea.vmem %s3, 896
        %v3927 = vld [vmem:[%s3926] sm:$0xf]
        %v3928 = vld [vmem:[%s3926 + $0x4] sm:$0xf]
        %v3929 = vld [vmem:[%s3926 + $0x8] sm:$0xf]
        %v3930 = vld [vmem:[%s3926 + $0xc] sm:$0xf]
        %v3931 = vld [vmem:[%s3926 + $0x10] sm:$0xf]
        %v3932 = vld [vmem:[%s3926 + $0x14] sm:$0xf]
        %v3933 = vld [vmem:[%s3926 + $0x18] sm:$0xf]
        %v3934 = vld [vmem:[%s3926 + $0x1c] sm:$0xf]
        %v3935 = vld [vmem:[%s3926 + $0x20] sm:$0xf]
        %v3936 = vld [vmem:[%s3926 + $0x24] sm:$0xf]
        %v3937 = vld [vmem:[%s3926 + $0x28] sm:$0xf]
        %v3938 = vld [vmem:[%s3926 + $0x2c] sm:$0xf]
        %v3939 = vld [vmem:[%s3926 + $0x30] sm:$0xf]
        %v3940 = vld [vmem:[%s3926 + $0x34] sm:$0xf]
        %v3941 = vld [vmem:[%s3926 + $0x38] sm:$0xf]
        %v3942 = vld [vmem:[%s3926 + $0x3c] sm:$0xf]
        %v3959 = vunpack.c.l.b16 %v3927
        %v3960 = vunpack.c.l.b16 %v3928
        %v3961 = vunpack.c.l.b16 %v3929
        %v3962 = vunpack.c.l.b16 %v3930
        %v3963 = vunpack.c.l.b16 %v3931
        %v3964 = vunpack.c.l.b16 %v3932
        %v3965 = vunpack.c.l.b16 %v3933
        %v3966 = vunpack.c.l.b16 %v3934
        %v3967 = vunpack.c.l.b16 %v3935
        %v3968 = vunpack.c.l.b16 %v3936
        %v3969 = vunpack.c.l.b16 %v3937
        %v3970 = vunpack.c.l.b16 %v3938
        %v3971 = vunpack.c.l.b16 %v3939
        %v3972 = vunpack.c.l.b16 %v3940
        %v3973 = vunpack.c.l.b16 %v3941
        %v3974 = vunpack.c.l.b16 %v3942
        %v3975 = vpack.c.b16 %v3960, %v3959
        %v3976 = vpack.c.b16 %v3962, %v3961
        %v3977 = vpack.c.b16 %v3964, %v3963
        %v3978 = vpack.c.b16 %v3966, %v3965
        %v3979 = vpack.c.b16 %v3968, %v3967
        %v3980 = vpack.c.b16 %v3970, %v3969
        %v3981 = vpack.c.b16 %v3972, %v3971
        %v3982 = vpack.c.b16 %v3974, %v3973
        %3991 = vmatpush.bf16.msra.mxu0 %v3982
        %3992 = vmatpush.bf16.msra.mxu0 %v3981
        %3993 = vmatpush.bf16.msra.mxu0 %v3980
        %3994 = vmatpush.bf16.msra.mxu0 %v3979
        %3995 = vmatpush.bf16.msra.mxu0 %v3978
        %3996 = vmatpush.bf16.msra.mxu0 %v3977
        %3997 = vmatpush.bf16.msra.mxu0 %v3976
        %3998 = vmatpush.bf16.msra.mxu0 %v3975
        %3999 = vmatmul.bf16.gmra.mxu0 %v3917
        %v4000 = vpop.f32.mrf.mxu0
        %v4001 = vadd.f32 0.0, %v4000
        %v4002 = vpop.f32.mrf.mxu0
        %v4003 = vadd.f32 0.0, %v4002
        %4004 = vmatmul.bf16.gmra.mxu0 %v3918
        %v4005 = vpop.f32.mrf.mxu0
        %v4006 = vadd.f32 0.0, %v4005
        %v4007 = vpop.f32.mrf.mxu0
        %v4008 = vadd.f32 0.0, %v4007
        %4009 = vmatmul.bf16.gmra.mxu0 %v3919
        %v4010 = vpop.f32.mrf.mxu0
        %v4011 = vadd.f32 0.0, %v4010
        %v4012 = vpop.f32.mrf.mxu0
        %v4013 = vadd.f32 0.0, %v4012
        %4014 = vmatmul.bf16.gmra.mxu0 %v3920
        %v4015 = vpop.f32.mrf.mxu0
        %v4016 = vadd.f32 0.0, %v4015
        %v4017 = vpop.f32.mrf.mxu0
        %v4018 = vadd.f32 0.0, %v4017
        %4019 = vmatmul.bf16.gmra.mxu0 %v3921
        %v4020 = vpop.f32.mrf.mxu0
        %v4021 = vadd.f32 0.0, %v4020
        %v4022 = vpop.f32.mrf.mxu0
        %v4023 = vadd.f32 0.0, %v4022
        %4024 = vmatmul.bf16.gmra.mxu0 %v3922
        %v4025 = vpop.f32.mrf.mxu0
        %v4026 = vadd.f32 0.0, %v4025
        %v4027 = vpop.f32.mrf.mxu0
        %v4028 = vadd.f32 0.0, %v4027
        %4029 = vmatmul.bf16.gmra.mxu0 %v3923
        %v4030 = vpop.f32.mrf.mxu0
        %v4031 = vadd.f32 0.0, %v4030
        %v4032 = vpop.f32.mrf.mxu0
        %v4033 = vadd.f32 0.0, %v4032
        %4034 = vmatmul.bf16.gmra.mxu0 %v3924
        %v4035 = vpop.f32.mrf.mxu0
        %v4036 = vadd.f32 0.0, %v4035
        %v4037 = vpop.f32.mrf.mxu0
        %v4038 = vadd.f32 0.0, %v4037
        %4039 = vmatmul.bf16.gmra.mxu0 %v3925
        %v4040 = vpop.f32.mrf.mxu0
        %v4041 = vadd.f32 0.0, %v4040
        %v4042 = vpop.f32.mrf.mxu0
        %4043 = vdwg.mxu0
        %v4044 = vadd.f32 %v3883, %v4001
        %v4045 = vadd.f32 %v3884, %v4003
        %v4046 = vadd.f32 %v3885, %v4006
        %v4047 = vadd.f32 %v3886, %v4008
        %v4048 = vadd.f32 %v3887, %v4011
        %v4049 = vadd.f32 %v3888, %v4013
        %v4050 = vadd.f32 %v3889, %v4016
        %v4051 = vadd.f32 %v3890, %v4018
        %v4052 = vadd.f32 %v3891, %v4021
        %v4053 = vadd.f32 %v3892, %v4023
        %v4054 = vadd.f32 %v3893, %v4026
        %v4055 = vadd.f32 %v3894, %v4028
        %v4056 = vadd.f32 %v3895, %v4031
        %v4057 = vadd.f32 %v3896, %v4033
        %v4058 = vadd.f32 %v3897, %v4036
        %v4059 = vadd.f32 %v3898, %v4038
        %v4060 = vadd.f32 %v3899, %v4041
        %v4061 = vld [vmem:[#allocation3 + $0x2a] sm:$0xff]
        %v4062 = vld [vmem:[#allocation3 + $0x32] sm:$0xff]
        %v4063 = vld [vmem:[#allocation3 + $0x3a] sm:$0xff]
        %v4064 = vld [vmem:[#allocation3 + $0x42] sm:$0xff]
        %v4065 = vld [vmem:[#allocation3 + $0x4a] sm:$0xff]
        %v4066 = vld [vmem:[#allocation3 + $0x52] sm:$0xff]
        %v4067 = vld [vmem:[#allocation3 + $0x5a] sm:$0xff]
        %v4068 = vld [vmem:[#allocation3 + $0x62] sm:$0xff]
        %v4069 = vld [vmem:[#allocation3 + $0x6a] sm:$0xff]
        %v4070 = vld [vmem:[#allocation3 + $0x72] sm:$0xff]
        %v4071 = vld [vmem:[#allocation3 + $0x7a] sm:$0xff]
        %v4072 = vld [vmem:[#allocation3 + $0x82] sm:$0xff]
        %v4073 = vld [vmem:[#allocation3 + $0x8a] sm:$0xff]
        %v4074 = vld [vmem:[#allocation3 + $0x92] sm:$0xff]
        %v4075 = vld [vmem:[#allocation3 + $0x9a] sm:$0xff]
        %v4076 = vld [vmem:[#allocation3 + $0xa2] sm:$0xff]
        %v4077 = vld [vmem:[#allocation3 + $0xaa] sm:$0xff]
        %v4078 = vpack.c.bf16 %v4062, %v4061
        %v4079 = vpack.c.bf16 %v4064, %v4063
        %v4080 = vpack.c.bf16 %v4066, %v4065
        %v4081 = vpack.c.bf16 %v4068, %v4067
        %v4082 = vpack.c.bf16 %v4070, %v4069
        %v4083 = vpack.c.bf16 %v4072, %v4071
        %v4084 = vpack.c.bf16 %v4074, %v4073
        %v4085 = vpack.c.bf16 %v4076, %v4075
        %v4086 = vpack.c.bf16 %v4077, %v4077
        %s4087 = scalar_lea.vmem %s3, 960
        %v4088 = vld [vmem:[%s4087] sm:$0xf]
        %v4089 = vld [vmem:[%s4087 + $0x4] sm:$0xf]
        %v4090 = vld [vmem:[%s4087 + $0x8] sm:$0xf]
        %v4091 = vld [vmem:[%s4087 + $0xc] sm:$0xf]
        %v4092 = vld [vmem:[%s4087 + $0x10] sm:$0xf]
        %v4093 = vld [vmem:[%s4087 + $0x14] sm:$0xf]
        %v4094 = vld [vmem:[%s4087 + $0x18] sm:$0xf]
        %v4095 = vld [vmem:[%s4087 + $0x1c] sm:$0xf]
        %v4096 = vld [vmem:[%s4087 + $0x20] sm:$0xf]
        %v4097 = vld [vmem:[%s4087 + $0x24] sm:$0xf]
        %v4098 = vld [vmem:[%s4087 + $0x28] sm:$0xf]
        %v4099 = vld [vmem:[%s4087 + $0x2c] sm:$0xf]
        %v4100 = vld [vmem:[%s4087 + $0x30] sm:$0xf]
        %v4101 = vld [vmem:[%s4087 + $0x34] sm:$0xf]
        %v4102 = vld [vmem:[%s4087 + $0x38] sm:$0xf]
        %v4103 = vld [vmem:[%s4087 + $0x3c] sm:$0xf]
        %v4120 = vunpack.c.l.b16 %v4088
        %v4121 = vunpack.c.l.b16 %v4089
        %v4122 = vunpack.c.l.b16 %v4090
        %v4123 = vunpack.c.l.b16 %v4091
        %v4124 = vunpack.c.l.b16 %v4092
        %v4125 = vunpack.c.l.b16 %v4093
        %v4126 = vunpack.c.l.b16 %v4094
        %v4127 = vunpack.c.l.b16 %v4095
        %v4128 = vunpack.c.l.b16 %v4096
        %v4129 = vunpack.c.l.b16 %v4097
        %v4130 = vunpack.c.l.b16 %v4098
        %v4131 = vunpack.c.l.b16 %v4099
        %v4132 = vunpack.c.l.b16 %v4100
        %v4133 = vunpack.c.l.b16 %v4101
        %v4134 = vunpack.c.l.b16 %v4102
        %v4135 = vunpack.c.l.b16 %v4103
        %v4136 = vpack.c.b16 %v4121, %v4120
        %v4137 = vpack.c.b16 %v4123, %v4122
        %v4138 = vpack.c.b16 %v4125, %v4124
        %v4139 = vpack.c.b16 %v4127, %v4126
        %v4140 = vpack.c.b16 %v4129, %v4128
        %v4141 = vpack.c.b16 %v4131, %v4130
        %v4142 = vpack.c.b16 %v4133, %v4132
        %v4143 = vpack.c.b16 %v4135, %v4134
        %4152 = vmatpush.bf16.msra.mxu0 %v4143
        %4153 = vmatpush.bf16.msra.mxu0 %v4142
        %4154 = vmatpush.bf16.msra.mxu0 %v4141
        %4155 = vmatpush.bf16.msra.mxu0 %v4140
        %4156 = vmatpush.bf16.msra.mxu0 %v4139
        %4157 = vmatpush.bf16.msra.mxu0 %v4138
        %4158 = vmatpush.bf16.msra.mxu0 %v4137
        %4159 = vmatpush.bf16.msra.mxu0 %v4136
        %4160 = vmatmul.bf16.gmra.mxu0 %v4078
        %v4161 = vpop.f32.mrf.mxu0
        %v4162 = vadd.f32 0.0, %v4161
        %v4163 = vpop.f32.mrf.mxu0
        %v4164 = vadd.f32 0.0, %v4163
        %4165 = vmatmul.bf16.gmra.mxu0 %v4079
        %v4166 = vpop.f32.mrf.mxu0
        %v4167 = vadd.f32 0.0, %v4166
        %v4168 = vpop.f32.mrf.mxu0
        %v4169 = vadd.f32 0.0, %v4168
        %4170 = vmatmul.bf16.gmra.mxu0 %v4080
        %v4171 = vpop.f32.mrf.mxu0
        %v4172 = vadd.f32 0.0, %v4171
        %v4173 = vpop.f32.mrf.mxu0
        %v4174 = vadd.f32 0.0, %v4173
        %4175 = vmatmul.bf16.gmra.mxu0 %v4081
        %v4176 = vpop.f32.mrf.mxu0
        %v4177 = vadd.f32 0.0, %v4176
        %v4178 = vpop.f32.mrf.mxu0
        %v4179 = vadd.f32 0.0, %v4178
        %4180 = vmatmul.bf16.gmra.mxu0 %v4082
        %v4181 = vpop.f32.mrf.mxu0
        %v4182 = vadd.f32 0.0, %v4181
        %v4183 = vpop.f32.mrf.mxu0
        %v4184 = vadd.f32 0.0, %v4183
        %4185 = vmatmul.bf16.gmra.mxu0 %v4083
        %v4186 = vpop.f32.mrf.mxu0
        %v4187 = vadd.f32 0.0, %v4186
        %v4188 = vpop.f32.mrf.mxu0
        %v4189 = vadd.f32 0.0, %v4188
        %4190 = vmatmul.bf16.gmra.mxu0 %v4084
        %v4191 = vpop.f32.mrf.mxu0
        %v4192 = vadd.f32 0.0, %v4191
        %v4193 = vpop.f32.mrf.mxu0
        %v4194 = vadd.f32 0.0, %v4193
        %4195 = vmatmul.bf16.gmra.mxu0 %v4085
        %v4196 = vpop.f32.mrf.mxu0
        %v4197 = vadd.f32 0.0, %v4196
        %v4198 = vpop.f32.mrf.mxu0
        %v4199 = vadd.f32 0.0, %v4198
        %4200 = vmatmul.bf16.gmra.mxu0 %v4086
        %v4201 = vpop.f32.mrf.mxu0
        %v4202 = vadd.f32 0.0, %v4201
        %v4203 = vpop.f32.mrf.mxu0
        %4204 = vdwg.mxu0
        %v4205 = vadd.f32 %v4044, %v4162
        %v4206 = vadd.f32 %v4045, %v4164
        %v4207 = vadd.f32 %v4046, %v4167
        %v4208 = vadd.f32 %v4047, %v4169
        %v4209 = vadd.f32 %v4048, %v4172
        %v4210 = vadd.f32 %v4049, %v4174
        %v4211 = vadd.f32 %v4050, %v4177
        %v4212 = vadd.f32 %v4051, %v4179
        %v4213 = vadd.f32 %v4052, %v4182
        %v4214 = vadd.f32 %v4053, %v4184
        %v4215 = vadd.f32 %v4054, %v4187
        %v4216 = vadd.f32 %v4055, %v4189
        %v4217 = vadd.f32 %v4056, %v4192
        %v4218 = vadd.f32 %v4057, %v4194
        %v4219 = vadd.f32 %v4058, %v4197
        %v4220 = vadd.f32 %v4059, %v4199
        %v4221 = vadd.f32 %v4060, %v4202
        %v4222 = vld [vmem:[#allocation3 + $0x2b] sm:$0xff]
        %v4223 = vld [vmem:[#allocation3 + $0x33] sm:$0xff]
        %v4224 = vld [vmem:[#allocation3 + $0x3b] sm:$0xff]
        %v4225 = vld [vmem:[#allocation3 + $0x43] sm:$0xff]
        %v4226 = vld [vmem:[#allocation3 + $0x4b] sm:$0xff]
        %v4227 = vld [vmem:[#allocation3 + $0x53] sm:$0xff]
        %v4228 = vld [vmem:[#allocation3 + $0x5b] sm:$0xff]
        %v4229 = vld [vmem:[#allocation3 + $0x63] sm:$0xff]
        %v4230 = vld [vmem:[#allocation3 + $0x6b] sm:$0xff]
        %v4231 = vld [vmem:[#allocation3 + $0x73] sm:$0xff]
        %v4232 = vld [vmem:[#allocation3 + $0x7b] sm:$0xff]
        %v4233 = vld [vmem:[#allocation3 + $0x83] sm:$0xff]
        %v4234 = vld [vmem:[#allocation3 + $0x8b] sm:$0xff]
        %v4235 = vld [vmem:[#allocation3 + $0x93] sm:$0xff]
        %v4236 = vld [vmem:[#allocation3 + $0x9b] sm:$0xff]
        %v4237 = vld [vmem:[#allocation3 + $0xa3] sm:$0xff]
        %v4238 = vld [vmem:[#allocation3 + $0xab] sm:$0xff]
        %v4239 = vpack.c.bf16 %v4223, %v4222
        %v4240 = vpack.c.bf16 %v4225, %v4224
        %v4241 = vpack.c.bf16 %v4227, %v4226
        %v4242 = vpack.c.bf16 %v4229, %v4228
        %v4243 = vpack.c.bf16 %v4231, %v4230
        %v4244 = vpack.c.bf16 %v4233, %v4232
        %v4245 = vpack.c.bf16 %v4235, %v4234
        %v4246 = vpack.c.bf16 %v4237, %v4236
        %v4247 = vpack.c.bf16 %v4238, %v4238
        %s4248 = scalar_lea.vmem %s3, 1024
        %v4249 = vld [vmem:[%s4248] sm:$0xf]
        %v4250 = vld [vmem:[%s4248 + $0x4] sm:$0xf]
        %v4251 = vld [vmem:[%s4248 + $0x8] sm:$0xf]
        %v4252 = vld [vmem:[%s4248 + $0xc] sm:$0xf]
        %v4253 = vld [vmem:[%s4248 + $0x10] sm:$0xf]
        %v4254 = vld [vmem:[%s4248 + $0x14] sm:$0xf]
        %v4255 = vld [vmem:[%s4248 + $0x18] sm:$0xf]
        %v4256 = vld [vmem:[%s4248 + $0x1c] sm:$0xf]
        %v4257 = vld [vmem:[%s4248 + $0x20] sm:$0xf]
        %v4258 = vld [vmem:[%s4248 + $0x24] sm:$0xf]
        %v4259 = vld [vmem:[%s4248 + $0x28] sm:$0xf]
        %v4260 = vld [vmem:[%s4248 + $0x2c] sm:$0xf]
        %v4261 = vld [vmem:[%s4248 + $0x30] sm:$0xf]
        %v4262 = vld [vmem:[%s4248 + $0x34] sm:$0xf]
        %v4263 = vld [vmem:[%s4248 + $0x38] sm:$0xf]
        %v4264 = vld [vmem:[%s4248 + $0x3c] sm:$0xf]
        %v4281 = vunpack.c.l.b16 %v4249
        %v4282 = vunpack.c.l.b16 %v4250
        %v4283 = vunpack.c.l.b16 %v4251
        %v4284 = vunpack.c.l.b16 %v4252
        %v4285 = vunpack.c.l.b16 %v4253
        %v4286 = vunpack.c.l.b16 %v4254
        %v4287 = vunpack.c.l.b16 %v4255
        %v4288 = vunpack.c.l.b16 %v4256
        %v4289 = vunpack.c.l.b16 %v4257
        %v4290 = vunpack.c.l.b16 %v4258
        %v4291 = vunpack.c.l.b16 %v4259
        %v4292 = vunpack.c.l.b16 %v4260
        %v4293 = vunpack.c.l.b16 %v4261
        %v4294 = vunpack.c.l.b16 %v4262
        %v4295 = vunpack.c.l.b16 %v4263
        %v4296 = vunpack.c.l.b16 %v4264
        %v4297 = vpack.c.b16 %v4282, %v4281
        %v4298 = vpack.c.b16 %v4284, %v4283
        %v4299 = vpack.c.b16 %v4286, %v4285
        %v4300 = vpack.c.b16 %v4288, %v4287
        %v4301 = vpack.c.b16 %v4290, %v4289
        %v4302 = vpack.c.b16 %v4292, %v4291
        %v4303 = vpack.c.b16 %v4294, %v4293
        %v4304 = vpack.c.b16 %v4296, %v4295
        %4313 = vmatpush.bf16.msra.mxu0 %v4304
        %4314 = vmatpush.bf16.msra.mxu0 %v4303
        %4315 = vmatpush.bf16.msra.mxu0 %v4302
        %4316 = vmatpush.bf16.msra.mxu0 %v4301
        %4317 = vmatpush.bf16.msra.mxu0 %v4300
        %4318 = vmatpush.bf16.msra.mxu0 %v4299
        %4319 = vmatpush.bf16.msra.mxu0 %v4298
        %4320 = vmatpush.bf16.msra.mxu0 %v4297
        %4321 = vmatmul.bf16.gmra.mxu0 %v4239
        %v4322 = vpop.f32.mrf.mxu0
        %v4323 = vadd.f32 0.0, %v4322
        %v4324 = vpop.f32.mrf.mxu0
        %v4325 = vadd.f32 0.0, %v4324
        %4326 = vmatmul.bf16.gmra.mxu0 %v4240
        %v4327 = vpop.f32.mrf.mxu0
        %v4328 = vadd.f32 0.0, %v4327
        %v4329 = vpop.f32.mrf.mxu0
        %v4330 = vadd.f32 0.0, %v4329
        %4331 = vmatmul.bf16.gmra.mxu0 %v4241
        %v4332 = vpop.f32.mrf.mxu0
        %v4333 = vadd.f32 0.0, %v4332
        %v4334 = vpop.f32.mrf.mxu0
        %v4335 = vadd.f32 0.0, %v4334
        %4336 = vmatmul.bf16.gmra.mxu0 %v4242
        %v4337 = vpop.f32.mrf.mxu0
        %v4338 = vadd.f32 0.0, %v4337
        %v4339 = vpop.f32.mrf.mxu0
        %v4340 = vadd.f32 0.0, %v4339
        %4341 = vmatmul.bf16.gmra.mxu0 %v4243
        %v4342 = vpop.f32.mrf.mxu0
        %v4343 = vadd.f32 0.0, %v4342
        %v4344 = vpop.f32.mrf.mxu0
        %v4345 = vadd.f32 0.0, %v4344
        %4346 = vmatmul.bf16.gmra.mxu0 %v4244
        %v4347 = vpop.f32.mrf.mxu0
        %v4348 = vadd.f32 0.0, %v4347
        %v4349 = vpop.f32.mrf.mxu0
        %v4350 = vadd.f32 0.0, %v4349
        %4351 = vmatmul.bf16.gmra.mxu0 %v4245
        %v4352 = vpop.f32.mrf.mxu0
        %v4353 = vadd.f32 0.0, %v4352
        %v4354 = vpop.f32.mrf.mxu0
        %v4355 = vadd.f32 0.0, %v4354
        %4356 = vmatmul.bf16.gmra.mxu0 %v4246
        %v4357 = vpop.f32.mrf.mxu0
        %v4358 = vadd.f32 0.0, %v4357
        %v4359 = vpop.f32.mrf.mxu0
        %v4360 = vadd.f32 0.0, %v4359
        %4361 = vmatmul.bf16.gmra.mxu0 %v4247
        %v4362 = vpop.f32.mrf.mxu0
        %v4363 = vadd.f32 0.0, %v4362
        %v4364 = vpop.f32.mrf.mxu0
        %4365 = vdwg.mxu0
        %v4366 = vadd.f32 %v4205, %v4323
        %v4367 = vadd.f32 %v4206, %v4325
        %v4368 = vadd.f32 %v4207, %v4328
        %v4369 = vadd.f32 %v4208, %v4330
        %v4370 = vadd.f32 %v4209, %v4333
        %v4371 = vadd.f32 %v4210, %v4335
        %v4372 = vadd.f32 %v4211, %v4338
        %v4373 = vadd.f32 %v4212, %v4340
        %v4374 = vadd.f32 %v4213, %v4343
        %v4375 = vadd.f32 %v4214, %v4345
        %v4376 = vadd.f32 %v4215, %v4348
        %v4377 = vadd.f32 %v4216, %v4350
        %v4378 = vadd.f32 %v4217, %v4353
        %v4379 = vadd.f32 %v4218, %v4355
        %v4380 = vadd.f32 %v4219, %v4358
        %v4381 = vadd.f32 %v4220, %v4360
        %v4382 = vadd.f32 %v4221, %v4363
        %v4383 = vld [vmem:[#allocation3 + $0x2c] sm:$0xff]
        %v4384 = vld [vmem:[#allocation3 + $0x34] sm:$0xff]
        %v4385 = vld [vmem:[#allocation3 + $0x3c] sm:$0xff]
        %v4386 = vld [vmem:[#allocation3 + $0x44] sm:$0xff]
        %v4387 = vld [vmem:[#allocation3 + $0x4c] sm:$0xff]
        %v4388 = vld [vmem:[#allocation3 + $0x54] sm:$0xff]
        %v4389 = vld [vmem:[#allocation3 + $0x5c] sm:$0xff]
        %v4390 = vld [vmem:[#allocation3 + $0x64] sm:$0xff]
        %v4391 = vld [vmem:[#allocation3 + $0x6c] sm:$0xff]
        %v4392 = vld [vmem:[#allocation3 + $0x74] sm:$0xff]
        %v4393 = vld [vmem:[#allocation3 + $0x7c] sm:$0xff]
        %v4394 = vld [vmem:[#allocation3 + $0x84] sm:$0xff]
        %v4395 = vld [vmem:[#allocation3 + $0x8c] sm:$0xff]
        %v4396 = vld [vmem:[#allocation3 + $0x94] sm:$0xff]
        %v4397 = vld [vmem:[#allocation3 + $0x9c] sm:$0xff]
        %v4398 = vld [vmem:[#allocation3 + $0xa4] sm:$0xff]
        %v4399 = vld [vmem:[#allocation3 + $0xac] sm:$0xff]
        %v4400 = vpack.c.bf16 %v4384, %v4383
        %v4401 = vpack.c.bf16 %v4386, %v4385
        %v4402 = vpack.c.bf16 %v4388, %v4387
        %v4403 = vpack.c.bf16 %v4390, %v4389
        %v4404 = vpack.c.bf16 %v4392, %v4391
        %v4405 = vpack.c.bf16 %v4394, %v4393
        %v4406 = vpack.c.bf16 %v4396, %v4395
        %v4407 = vpack.c.bf16 %v4398, %v4397
        %v4408 = vpack.c.bf16 %v4399, %v4399
        %s4409 = scalar_lea.vmem %s3, 1088
        %v4410 = vld [vmem:[%s4409] sm:$0xf]
        %v4411 = vld [vmem:[%s4409 + $0x4] sm:$0xf]
        %v4412 = vld [vmem:[%s4409 + $0x8] sm:$0xf]
        %v4413 = vld [vmem:[%s4409 + $0xc] sm:$0xf]
        %v4414 = vld [vmem:[%s4409 + $0x10] sm:$0xf]
        %v4415 = vld [vmem:[%s4409 + $0x14] sm:$0xf]
        %v4416 = vld [vmem:[%s4409 + $0x18] sm:$0xf]
        %v4417 = vld [vmem:[%s4409 + $0x1c] sm:$0xf]
        %v4418 = vld [vmem:[%s4409 + $0x20] sm:$0xf]
        %v4419 = vld [vmem:[%s4409 + $0x24] sm:$0xf]
        %v4420 = vld [vmem:[%s4409 + $0x28] sm:$0xf]
        %v4421 = vld [vmem:[%s4409 + $0x2c] sm:$0xf]
        %v4422 = vld [vmem:[%s4409 + $0x30] sm:$0xf]
        %v4423 = vld [vmem:[%s4409 + $0x34] sm:$0xf]
        %v4424 = vld [vmem:[%s4409 + $0x38] sm:$0xf]
        %v4425 = vld [vmem:[%s4409 + $0x3c] sm:$0xf]
        %v4442 = vunpack.c.l.b16 %v4410
        %v4443 = vunpack.c.l.b16 %v4411
        %v4444 = vunpack.c.l.b16 %v4412
        %v4445 = vunpack.c.l.b16 %v4413
        %v4446 = vunpack.c.l.b16 %v4414
        %v4447 = vunpack.c.l.b16 %v4415
        %v4448 = vunpack.c.l.b16 %v4416
        %v4449 = vunpack.c.l.b16 %v4417
        %v4450 = vunpack.c.l.b16 %v4418
        %v4451 = vunpack.c.l.b16 %v4419
        %v4452 = vunpack.c.l.b16 %v4420
        %v4453 = vunpack.c.l.b16 %v4421
        %v4454 = vunpack.c.l.b16 %v4422
        %v4455 = vunpack.c.l.b16 %v4423
        %v4456 = vunpack.c.l.b16 %v4424
        %v4457 = vunpack.c.l.b16 %v4425
        %v4458 = vpack.c.b16 %v4443, %v4442
        %v4459 = vpack.c.b16 %v4445, %v4444
        %v4460 = vpack.c.b16 %v4447, %v4446
        %v4461 = vpack.c.b16 %v4449, %v4448
        %v4462 = vpack.c.b16 %v4451, %v4450
        %v4463 = vpack.c.b16 %v4453, %v4452
        %v4464 = vpack.c.b16 %v4455, %v4454
        %v4465 = vpack.c.b16 %v4457, %v4456
        %4474 = vmatpush.bf16.msra.mxu0 %v4465
        %4475 = vmatpush.bf16.msra.mxu0 %v4464
        %4476 = vmatpush.bf16.msra.mxu0 %v4463
        %4477 = vmatpush.bf16.msra.mxu0 %v4462
        %4478 = vmatpush.bf16.msra.mxu0 %v4461
        %4479 = vmatpush.bf16.msra.mxu0 %v4460
        %4480 = vmatpush.bf16.msra.mxu0 %v4459
        %4481 = vmatpush.bf16.msra.mxu0 %v4458
        %4482 = vmatmul.bf16.gmra.mxu0 %v4400
        %v4483 = vpop.f32.mrf.mxu0
        %v4484 = vadd.f32 0.0, %v4483
        %v4485 = vpop.f32.mrf.mxu0
        %v4486 = vadd.f32 0.0, %v4485
        %4487 = vmatmul.bf16.gmra.mxu0 %v4401
        %v4488 = vpop.f32.mrf.mxu0
        %v4489 = vadd.f32 0.0, %v4488
        %v4490 = vpop.f32.mrf.mxu0
        %v4491 = vadd.f32 0.0, %v4490
        %4492 = vmatmul.bf16.gmra.mxu0 %v4402
        %v4493 = vpop.f32.mrf.mxu0
        %v4494 = vadd.f32 0.0, %v4493
        %v4495 = vpop.f32.mrf.mxu0
        %v4496 = vadd.f32 0.0, %v4495
        %4497 = vmatmul.bf16.gmra.mxu0 %v4403
        %v4498 = vpop.f32.mrf.mxu0
        %v4499 = vadd.f32 0.0, %v4498
        %v4500 = vpop.f32.mrf.mxu0
        %v4501 = vadd.f32 0.0, %v4500
        %4502 = vmatmul.bf16.gmra.mxu0 %v4404
        %v4503 = vpop.f32.mrf.mxu0
        %v4504 = vadd.f32 0.0, %v4503
        %v4505 = vpop.f32.mrf.mxu0
        %v4506 = vadd.f32 0.0, %v4505
        %4507 = vmatmul.bf16.gmra.mxu0 %v4405
        %v4508 = vpop.f32.mrf.mxu0
        %v4509 = vadd.f32 0.0, %v4508
        %v4510 = vpop.f32.mrf.mxu0
        %v4511 = vadd.f32 0.0, %v4510
        %4512 = vmatmul.bf16.gmra.mxu0 %v4406
        %v4513 = vpop.f32.mrf.mxu0
        %v4514 = vadd.f32 0.0, %v4513
        %v4515 = vpop.f32.mrf.mxu0
        %v4516 = vadd.f32 0.0, %v4515
        %4517 = vmatmul.bf16.gmra.mxu0 %v4407
        %v4518 = vpop.f32.mrf.mxu0
        %v4519 = vadd.f32 0.0, %v4518
        %v4520 = vpop.f32.mrf.mxu0
        %v4521 = vadd.f32 0.0, %v4520
        %4522 = vmatmul.bf16.gmra.mxu0 %v4408
        %v4523 = vpop.f32.mrf.mxu0
        %v4524 = vadd.f32 0.0, %v4523
        %v4525 = vpop.f32.mrf.mxu0
        %4526 = vdwg.mxu0
        %v4527 = vadd.f32 %v4366, %v4484
        %v4528 = vadd.f32 %v4367, %v4486
        %v4529 = vadd.f32 %v4368, %v4489
        %v4530 = vadd.f32 %v4369, %v4491
        %v4531 = vadd.f32 %v4370, %v4494
        %v4532 = vadd.f32 %v4371, %v4496
        %v4533 = vadd.f32 %v4372, %v4499
        %v4534 = vadd.f32 %v4373, %v4501
        %v4535 = vadd.f32 %v4374, %v4504
        %v4536 = vadd.f32 %v4375, %v4506
        %v4537 = vadd.f32 %v4376, %v4509
        %v4538 = vadd.f32 %v4377, %v4511
        %v4539 = vadd.f32 %v4378, %v4514
        %v4540 = vadd.f32 %v4379, %v4516
        %v4541 = vadd.f32 %v4380, %v4519
        %v4542 = vadd.f32 %v4381, %v4521
        %v4543 = vadd.f32 %v4382, %v4524
        %v4544 = vld [vmem:[#allocation3 + $0x2d] sm:$0xff]
        %v4545 = vld [vmem:[#allocation3 + $0x35] sm:$0xff]
        %v4546 = vld [vmem:[#allocation3 + $0x3d] sm:$0xff]
        %v4547 = vld [vmem:[#allocation3 + $0x45] sm:$0xff]
        %v4548 = vld [vmem:[#allocation3 + $0x4d] sm:$0xff]
        %v4549 = vld [vmem:[#allocation3 + $0x55] sm:$0xff]
        %v4550 = vld [vmem:[#allocation3 + $0x5d] sm:$0xff]
        %v4551 = vld [vmem:[#allocation3 + $0x65] sm:$0xff]
        %v4552 = vld [vmem:[#allocation3 + $0x6d] sm:$0xff]
        %v4553 = vld [vmem:[#allocation3 + $0x75] sm:$0xff]
        %v4554 = vld [vmem:[#allocation3 + $0x7d] sm:$0xff]
        %v4555 = vld [vmem:[#allocation3 + $0x85] sm:$0xff]
        %v4556 = vld [vmem:[#allocation3 + $0x8d] sm:$0xff]
        %v4557 = vld [vmem:[#allocation3 + $0x95] sm:$0xff]
        %v4558 = vld [vmem:[#allocation3 + $0x9d] sm:$0xff]
        %v4559 = vld [vmem:[#allocation3 + $0xa5] sm:$0xff]
        %v4560 = vld [vmem:[#allocation3 + $0xad] sm:$0xff]
        %v4561 = vpack.c.bf16 %v4545, %v4544
        %v4562 = vpack.c.bf16 %v4547, %v4546
        %v4563 = vpack.c.bf16 %v4549, %v4548
        %v4564 = vpack.c.bf16 %v4551, %v4550
        %v4565 = vpack.c.bf16 %v4553, %v4552
        %v4566 = vpack.c.bf16 %v4555, %v4554
        %v4567 = vpack.c.bf16 %v4557, %v4556
        %v4568 = vpack.c.bf16 %v4559, %v4558
        %v4569 = vpack.c.bf16 %v4560, %v4560
        %s4570 = scalar_lea.vmem %s3, 1152
        %v4571 = vld [vmem:[%s4570] sm:$0xf]
        %v4572 = vld [vmem:[%s4570 + $0x4] sm:$0xf]
        %v4573 = vld [vmem:[%s4570 + $0x8] sm:$0xf]
        %v4574 = vld [vmem:[%s4570 + $0xc] sm:$0xf]
        %v4575 = vld [vmem:[%s4570 + $0x10] sm:$0xf]
        %v4576 = vld [vmem:[%s4570 + $0x14] sm:$0xf]
        %v4577 = vld [vmem:[%s4570 + $0x18] sm:$0xf]
        %v4578 = vld [vmem:[%s4570 + $0x1c] sm:$0xf]
        %v4579 = vld [vmem:[%s4570 + $0x20] sm:$0xf]
        %v4580 = vld [vmem:[%s4570 + $0x24] sm:$0xf]
        %v4581 = vld [vmem:[%s4570 + $0x28] sm:$0xf]
        %v4582 = vld [vmem:[%s4570 + $0x2c] sm:$0xf]
        %v4583 = vld [vmem:[%s4570 + $0x30] sm:$0xf]
        %v4584 = vld [vmem:[%s4570 + $0x34] sm:$0xf]
        %v4585 = vld [vmem:[%s4570 + $0x38] sm:$0xf]
        %v4586 = vld [vmem:[%s4570 + $0x3c] sm:$0xf]
        %v4603 = vunpack.c.l.b16 %v4571
        %v4604 = vunpack.c.l.b16 %v4572
        %v4605 = vunpack.c.l.b16 %v4573
        %v4606 = vunpack.c.l.b16 %v4574
        %v4607 = vunpack.c.l.b16 %v4575
        %v4608 = vunpack.c.l.b16 %v4576
        %v4609 = vunpack.c.l.b16 %v4577
        %v4610 = vunpack.c.l.b16 %v4578
        %v4611 = vunpack.c.l.b16 %v4579
        %v4612 = vunpack.c.l.b16 %v4580
        %v4613 = vunpack.c.l.b16 %v4581
        %v4614 = vunpack.c.l.b16 %v4582
        %v4615 = vunpack.c.l.b16 %v4583
        %v4616 = vunpack.c.l.b16 %v4584
        %v4617 = vunpack.c.l.b16 %v4585
        %v4618 = vunpack.c.l.b16 %v4586
        %v4619 = vpack.c.b16 %v4604, %v4603
        %v4620 = vpack.c.b16 %v4606, %v4605
        %v4621 = vpack.c.b16 %v4608, %v4607
        %v4622 = vpack.c.b16 %v4610, %v4609
        %v4623 = vpack.c.b16 %v4612, %v4611
        %v4624 = vpack.c.b16 %v4614, %v4613
        %v4625 = vpack.c.b16 %v4616, %v4615
        %v4626 = vpack.c.b16 %v4618, %v4617
        %4635 = vmatpush.bf16.msra.mxu0 %v4626
        %4636 = vmatpush.bf16.msra.mxu0 %v4625
        %4637 = vmatpush.bf16.msra.mxu0 %v4624
        %4638 = vmatpush.bf16.msra.mxu0 %v4623
        %4639 = vmatpush.bf16.msra.mxu0 %v4622
        %4640 = vmatpush.bf16.msra.mxu0 %v4621
        %4641 = vmatpush.bf16.msra.mxu0 %v4620
        %4642 = vmatpush.bf16.msra.mxu0 %v4619
        %4643 = vmatmul.bf16.gmra.mxu0 %v4561
        %v4644 = vpop.f32.mrf.mxu0
        %v4645 = vadd.f32 0.0, %v4644
        %v4646 = vpop.f32.mrf.mxu0
        %v4647 = vadd.f32 0.0, %v4646
        %4648 = vmatmul.bf16.gmra.mxu0 %v4562
        %v4649 = vpop.f32.mrf.mxu0
        %v4650 = vadd.f32 0.0, %v4649
        %v4651 = vpop.f32.mrf.mxu0
        %v4652 = vadd.f32 0.0, %v4651
        %4653 = vmatmul.bf16.gmra.mxu0 %v4563
        %v4654 = vpop.f32.mrf.mxu0
        %v4655 = vadd.f32 0.0, %v4654
        %v4656 = vpop.f32.mrf.mxu0
        %v4657 = vadd.f32 0.0, %v4656
        %4658 = vmatmul.bf16.gmra.mxu0 %v4564
        %v4659 = vpop.f32.mrf.mxu0
        %v4660 = vadd.f32 0.0, %v4659
        %v4661 = vpop.f32.mrf.mxu0
        %v4662 = vadd.f32 0.0, %v4661
        %4663 = vmatmul.bf16.gmra.mxu0 %v4565
        %v4664 = vpop.f32.mrf.mxu0
        %v4665 = vadd.f32 0.0, %v4664
        %v4666 = vpop.f32.mrf.mxu0
        %v4667 = vadd.f32 0.0, %v4666
        %4668 = vmatmul.bf16.gmra.mxu0 %v4566
        %v4669 = vpop.f32.mrf.mxu0
        %v4670 = vadd.f32 0.0, %v4669
        %v4671 = vpop.f32.mrf.mxu0
        %v4672 = vadd.f32 0.0, %v4671
        %4673 = vmatmul.bf16.gmra.mxu0 %v4567
        %v4674 = vpop.f32.mrf.mxu0
        %v4675 = vadd.f32 0.0, %v4674
        %v4676 = vpop.f32.mrf.mxu0
        %v4677 = vadd.f32 0.0, %v4676
        %4678 = vmatmul.bf16.gmra.mxu0 %v4568
        %v4679 = vpop.f32.mrf.mxu0
        %v4680 = vadd.f32 0.0, %v4679
        %v4681 = vpop.f32.mrf.mxu0
        %v4682 = vadd.f32 0.0, %v4681
        %4683 = vmatmul.bf16.gmra.mxu0 %v4569
        %v4684 = vpop.f32.mrf.mxu0
        %v4685 = vadd.f32 0.0, %v4684
        %v4686 = vpop.f32.mrf.mxu0
        %4687 = vdwg.mxu0
        %v4688 = vadd.f32 %v4527, %v4645
        %v4689 = vadd.f32 %v4528, %v4647
        %v4690 = vadd.f32 %v4529, %v4650
        %v4691 = vadd.f32 %v4530, %v4652
        %v4692 = vadd.f32 %v4531, %v4655
        %v4693 = vadd.f32 %v4532, %v4657
        %v4694 = vadd.f32 %v4533, %v4660
        %v4695 = vadd.f32 %v4534, %v4662
        %v4696 = vadd.f32 %v4535, %v4665
        %v4697 = vadd.f32 %v4536, %v4667
        %v4698 = vadd.f32 %v4537, %v4670
        %v4699 = vadd.f32 %v4538, %v4672
        %v4700 = vadd.f32 %v4539, %v4675
        %v4701 = vadd.f32 %v4540, %v4677
        %v4702 = vadd.f32 %v4541, %v4680
        %v4703 = vadd.f32 %v4542, %v4682
        %v4704 = vadd.f32 %v4543, %v4685
        %v4705 = vld [vmem:[#allocation3 + $0x2e] sm:$0xff]
        %v4706 = vld [vmem:[#allocation3 + $0x36] sm:$0xff]
        %v4707 = vld [vmem:[#allocation3 + $0x3e] sm:$0xff]
        %v4708 = vld [vmem:[#allocation3 + $0x46] sm:$0xff]
        %v4709 = vld [vmem:[#allocation3 + $0x4e] sm:$0xff]
        %v4710 = vld [vmem:[#allocation3 + $0x56] sm:$0xff]
        %v4711 = vld [vmem:[#allocation3 + $0x5e] sm:$0xff]
        %v4712 = vld [vmem:[#allocation3 + $0x66] sm:$0xff]
        %v4713 = vld [vmem:[#allocation3 + $0x6e] sm:$0xff]
        %v4714 = vld [vmem:[#allocation3 + $0x76] sm:$0xff]
        %v4715 = vld [vmem:[#allocation3 + $0x7e] sm:$0xff]
        %v4716 = vld [vmem:[#allocation3 + $0x86] sm:$0xff]
        %v4717 = vld [vmem:[#allocation3 + $0x8e] sm:$0xff]
        %v4718 = vld [vmem:[#allocation3 + $0x96] sm:$0xff]
        %v4719 = vld [vmem:[#allocation3 + $0x9e] sm:$0xff]
        %v4720 = vld [vmem:[#allocation3 + $0xa6] sm:$0xff]
        %v4721 = vld [vmem:[#allocation3 + $0xae] sm:$0xff]
        %v4722 = vpack.c.bf16 %v4706, %v4705
        %v4723 = vpack.c.bf16 %v4708, %v4707
        %v4724 = vpack.c.bf16 %v4710, %v4709
        %v4725 = vpack.c.bf16 %v4712, %v4711
        %v4726 = vpack.c.bf16 %v4714, %v4713
        %v4727 = vpack.c.bf16 %v4716, %v4715
        %v4728 = vpack.c.bf16 %v4718, %v4717
        %v4729 = vpack.c.bf16 %v4720, %v4719
        %v4730 = vpack.c.bf16 %v4721, %v4721
        %s4731 = scalar_lea.vmem %s3, 1216
        %v4732 = vld [vmem:[%s4731] sm:$0xf]
        %v4733 = vld [vmem:[%s4731 + $0x4] sm:$0xf]
        %v4734 = vld [vmem:[%s4731 + $0x8] sm:$0xf]
        %v4735 = vld [vmem:[%s4731 + $0xc] sm:$0xf]
        %v4736 = vld [vmem:[%s4731 + $0x10] sm:$0xf]
        %v4737 = vld [vmem:[%s4731 + $0x14] sm:$0xf]
        %v4738 = vld [vmem:[%s4731 + $0x18] sm:$0xf]
        %v4739 = vld [vmem:[%s4731 + $0x1c] sm:$0xf]
        %v4740 = vld [vmem:[%s4731 + $0x20] sm:$0xf]
        %v4741 = vld [vmem:[%s4731 + $0x24] sm:$0xf]
        %v4742 = vld [vmem:[%s4731 + $0x28] sm:$0xf]
        %v4743 = vld [vmem:[%s4731 + $0x2c] sm:$0xf]
        %v4744 = vld [vmem:[%s4731 + $0x30] sm:$0xf]
        %v4745 = vld [vmem:[%s4731 + $0x34] sm:$0xf]
        %v4746 = vld [vmem:[%s4731 + $0x38] sm:$0xf]
        %v4747 = vld [vmem:[%s4731 + $0x3c] sm:$0xf]
        %v4764 = vunpack.c.l.b16 %v4732
        %v4765 = vunpack.c.l.b16 %v4733
        %v4766 = vunpack.c.l.b16 %v4734
        %v4767 = vunpack.c.l.b16 %v4735
        %v4768 = vunpack.c.l.b16 %v4736
        %v4769 = vunpack.c.l.b16 %v4737
        %v4770 = vunpack.c.l.b16 %v4738
        %v4771 = vunpack.c.l.b16 %v4739
        %v4772 = vunpack.c.l.b16 %v4740
        %v4773 = vunpack.c.l.b16 %v4741
        %v4774 = vunpack.c.l.b16 %v4742
        %v4775 = vunpack.c.l.b16 %v4743
        %v4776 = vunpack.c.l.b16 %v4744
        %v4777 = vunpack.c.l.b16 %v4745
        %v4778 = vunpack.c.l.b16 %v4746
        %v4779 = vunpack.c.l.b16 %v4747
        %v4780 = vpack.c.b16 %v4765, %v4764
        %v4781 = vpack.c.b16 %v4767, %v4766
        %v4782 = vpack.c.b16 %v4769, %v4768
        %v4783 = vpack.c.b16 %v4771, %v4770
        %v4784 = vpack.c.b16 %v4773, %v4772
        %v4785 = vpack.c.b16 %v4775, %v4774
        %v4786 = vpack.c.b16 %v4777, %v4776
        %v4787 = vpack.c.b16 %v4779, %v4778
        %4796 = vmatpush.bf16.msra.mxu0 %v4787
        %4797 = vmatpush.bf16.msra.mxu0 %v4786
        %4798 = vmatpush.bf16.msra.mxu0 %v4785
        %4799 = vmatpush.bf16.msra.mxu0 %v4784
        %4800 = vmatpush.bf16.msra.mxu0 %v4783
        %4801 = vmatpush.bf16.msra.mxu0 %v4782
        %4802 = vmatpush.bf16.msra.mxu0 %v4781
        %4803 = vmatpush.bf16.msra.mxu0 %v4780
        %4804 = vmatmul.bf16.gmra.mxu0 %v4722
        %v4805 = vpop.f32.mrf.mxu0
        %v4806 = vadd.f32 0.0, %v4805
        %v4807 = vpop.f32.mrf.mxu0
        %v4808 = vadd.f32 0.0, %v4807
        %4809 = vmatmul.bf16.gmra.mxu0 %v4723
        %v4810 = vpop.f32.mrf.mxu0
        %v4811 = vadd.f32 0.0, %v4810
        %v4812 = vpop.f32.mrf.mxu0
        %v4813 = vadd.f32 0.0, %v4812
        %4814 = vmatmul.bf16.gmra.mxu0 %v4724
        %v4815 = vpop.f32.mrf.mxu0
        %v4816 = vadd.f32 0.0, %v4815
        %v4817 = vpop.f32.mrf.mxu0
        %v4818 = vadd.f32 0.0, %v4817
        %4819 = vmatmul.bf16.gmra.mxu0 %v4725
        %v4820 = vpop.f32.mrf.mxu0
        %v4821 = vadd.f32 0.0, %v4820
        %v4822 = vpop.f32.mrf.mxu0
        %v4823 = vadd.f32 0.0, %v4822
        %4824 = vmatmul.bf16.gmra.mxu0 %v4726
        %v4825 = vpop.f32.mrf.mxu0
        %v4826 = vadd.f32 0.0, %v4825
        %v4827 = vpop.f32.mrf.mxu0
        %v4828 = vadd.f32 0.0, %v4827
        %4829 = vmatmul.bf16.gmra.mxu0 %v4727
        %v4830 = vpop.f32.mrf.mxu0
        %v4831 = vadd.f32 0.0, %v4830
        %v4832 = vpop.f32.mrf.mxu0
        %v4833 = vadd.f32 0.0, %v4832
        %4834 = vmatmul.bf16.gmra.mxu0 %v4728
        %v4835 = vpop.f32.mrf.mxu0
        %v4836 = vadd.f32 0.0, %v4835
        %v4837 = vpop.f32.mrf.mxu0
        %v4838 = vadd.f32 0.0, %v4837
        %4839 = vmatmul.bf16.gmra.mxu0 %v4729
        %v4840 = vpop.f32.mrf.mxu0
        %v4841 = vadd.f32 0.0, %v4840
        %v4842 = vpop.f32.mrf.mxu0
        %v4843 = vadd.f32 0.0, %v4842
        %4844 = vmatmul.bf16.gmra.mxu0 %v4730
        %v4845 = vpop.f32.mrf.mxu0
        %v4846 = vadd.f32 0.0, %v4845
        %v4847 = vpop.f32.mrf.mxu0
        %4848 = vdwg.mxu0
        %v4849 = vadd.f32 %v4688, %v4806
        %v4850 = vadd.f32 %v4689, %v4808
        %v4851 = vadd.f32 %v4690, %v4811
        %v4852 = vadd.f32 %v4691, %v4813
        %v4853 = vadd.f32 %v4692, %v4816
        %v4854 = vadd.f32 %v4693, %v4818
        %v4855 = vadd.f32 %v4694, %v4821
        %v4856 = vadd.f32 %v4695, %v4823
        %v4857 = vadd.f32 %v4696, %v4826
        %v4858 = vadd.f32 %v4697, %v4828
        %v4859 = vadd.f32 %v4698, %v4831
        %v4860 = vadd.f32 %v4699, %v4833
        %v4861 = vadd.f32 %v4700, %v4836
        %v4862 = vadd.f32 %v4701, %v4838
        %v4863 = vadd.f32 %v4702, %v4841
        %v4864 = vadd.f32 %v4703, %v4843
        %v4865 = vadd.f32 %v4704, %v4846
        %v4866 = vld [vmem:[#allocation3 + $0x38] sm:$0xff]
        %v4867 = vld [vmem:[#allocation3 + $0x40] sm:$0xff]
        %v4868 = vld [vmem:[#allocation3 + $0x48] sm:$0xff]
        %v4869 = vld [vmem:[#allocation3 + $0x50] sm:$0xff]
        %v4870 = vld [vmem:[#allocation3 + $0x58] sm:$0xff]
        %v4871 = vld [vmem:[#allocation3 + $0x60] sm:$0xff]
        %v4872 = vld [vmem:[#allocation3 + $0x68] sm:$0xff]
        %v4873 = vld [vmem:[#allocation3 + $0x70] sm:$0xff]
        %v4874 = vld [vmem:[#allocation3 + $0x78] sm:$0xff]
        %v4875 = vld [vmem:[#allocation3 + $0x80] sm:$0xff]
        %v4876 = vld [vmem:[#allocation3 + $0x88] sm:$0xff]
        %v4877 = vld [vmem:[#allocation3 + $0x90] sm:$0xff]
        %v4878 = vld [vmem:[#allocation3 + $0x98] sm:$0xff]
        %v4879 = vld [vmem:[#allocation3 + $0xa0] sm:$0xff]
        %v4880 = vld [vmem:[#allocation3 + $0xa8] sm:$0xff]
        %v4881 = vld [vmem:[#allocation3 + $0xb0] sm:$0xff]
        %v4882 = vld [vmem:[#allocation3 + $0xb8] sm:$0xff]
        %v4883 = vpack.c.bf16 %v4867, %v4866
        %v4884 = vpack.c.bf16 %v4869, %v4868
        %v4885 = vpack.c.bf16 %v4871, %v4870
        %v4886 = vpack.c.bf16 %v4873, %v4872
        %v4887 = vpack.c.bf16 %v4875, %v4874
        %v4888 = vpack.c.bf16 %v4877, %v4876
        %v4889 = vpack.c.bf16 %v4879, %v4878
        %v4890 = vpack.c.bf16 %v4881, %v4880
        %v4891 = vpack.c.bf16 %v4882, %v4882
        %s4892 = scalar_lea.vmem %s3, 1280
        %v4893 = vld [vmem:[%s4892] sm:$0xf]
        %v4894 = vld [vmem:[%s4892 + $0x4] sm:$0xf]
        %v4895 = vld [vmem:[%s4892 + $0x8] sm:$0xf]
        %v4896 = vld [vmem:[%s4892 + $0xc] sm:$0xf]
        %v4897 = vld [vmem:[%s4892 + $0x10] sm:$0xf]
        %v4898 = vld [vmem:[%s4892 + $0x14] sm:$0xf]
        %v4899 = vld [vmem:[%s4892 + $0x18] sm:$0xf]
        %v4900 = vld [vmem:[%s4892 + $0x1c] sm:$0xf]
        %v4901 = vld [vmem:[%s4892 + $0x20] sm:$0xf]
        %v4902 = vld [vmem:[%s4892 + $0x24] sm:$0xf]
        %v4903 = vld [vmem:[%s4892 + $0x28] sm:$0xf]
        %v4904 = vld [vmem:[%s4892 + $0x2c] sm:$0xf]
        %v4905 = vld [vmem:[%s4892 + $0x30] sm:$0xf]
        %v4906 = vld [vmem:[%s4892 + $0x34] sm:$0xf]
        %v4907 = vld [vmem:[%s4892 + $0x38] sm:$0xf]
        %v4908 = vld [vmem:[%s4892 + $0x3c] sm:$0xf]
        %v4925 = vunpack.c.l.b16 %v4893
        %v4926 = vunpack.c.l.b16 %v4894
        %v4927 = vunpack.c.l.b16 %v4895
        %v4928 = vunpack.c.l.b16 %v4896
        %v4929 = vunpack.c.l.b16 %v4897
        %v4930 = vunpack.c.l.b16 %v4898
        %v4931 = vunpack.c.l.b16 %v4899
        %v4932 = vunpack.c.l.b16 %v4900
        %v4933 = vunpack.c.l.b16 %v4901
        %v4934 = vunpack.c.l.b16 %v4902
        %v4935 = vunpack.c.l.b16 %v4903
        %v4936 = vunpack.c.l.b16 %v4904
        %v4937 = vunpack.c.l.b16 %v4905
        %v4938 = vunpack.c.l.b16 %v4906
        %v4939 = vunpack.c.l.b16 %v4907
        %v4940 = vunpack.c.l.b16 %v4908
        %v4941 = vpack.c.b16 %v4926, %v4925
        %v4942 = vpack.c.b16 %v4928, %v4927
        %v4943 = vpack.c.b16 %v4930, %v4929
        %v4944 = vpack.c.b16 %v4932, %v4931
        %v4945 = vpack.c.b16 %v4934, %v4933
        %v4946 = vpack.c.b16 %v4936, %v4935
        %v4947 = vpack.c.b16 %v4938, %v4937
        %v4948 = vpack.c.b16 %v4940, %v4939
        %4957 = vmatpush.bf16.msra.mxu0 %v4948
        %4958 = vmatpush.bf16.msra.mxu0 %v4947
        %4959 = vmatpush.bf16.msra.mxu0 %v4946
        %4960 = vmatpush.bf16.msra.mxu0 %v4945
        %4961 = vmatpush.bf16.msra.mxu0 %v4944
        %4962 = vmatpush.bf16.msra.mxu0 %v4943
        %4963 = vmatpush.bf16.msra.mxu0 %v4942
        %4964 = vmatpush.bf16.msra.mxu0 %v4941
        %4965 = vmatmul.bf16.gmra.mxu0 %v4883
        %v4966 = vpop.f32.mrf.mxu0
        %v4967 = vadd.f32 0.0, %v4966
        %v4968 = vpop.f32.mrf.mxu0
        %v4969 = vadd.f32 0.0, %v4968
        %4970 = vmatmul.bf16.gmra.mxu0 %v4884
        %v4971 = vpop.f32.mrf.mxu0
        %v4972 = vadd.f32 0.0, %v4971
        %v4973 = vpop.f32.mrf.mxu0
        %v4974 = vadd.f32 0.0, %v4973
        %4975 = vmatmul.bf16.gmra.mxu0 %v4885
        %v4976 = vpop.f32.mrf.mxu0
        %v4977 = vadd.f32 0.0, %v4976
        %v4978 = vpop.f32.mrf.mxu0
        %v4979 = vadd.f32 0.0, %v4978
        %4980 = vmatmul.bf16.gmra.mxu0 %v4886
        %v4981 = vpop.f32.mrf.mxu0
        %v4982 = vadd.f32 0.0, %v4981
        %v4983 = vpop.f32.mrf.mxu0
        %v4984 = vadd.f32 0.0, %v4983
        %4985 = vmatmul.bf16.gmra.mxu0 %v4887
        %v4986 = vpop.f32.mrf.mxu0
        %v4987 = vadd.f32 0.0, %v4986
        %v4988 = vpop.f32.mrf.mxu0
        %v4989 = vadd.f32 0.0, %v4988
        %4990 = vmatmul.bf16.gmra.mxu0 %v4888
        %v4991 = vpop.f32.mrf.mxu0
        %v4992 = vadd.f32 0.0, %v4991
        %v4993 = vpop.f32.mrf.mxu0
        %v4994 = vadd.f32 0.0, %v4993
        %4995 = vmatmul.bf16.gmra.mxu0 %v4889
        %v4996 = vpop.f32.mrf.mxu0
        %v4997 = vadd.f32 0.0, %v4996
        %v4998 = vpop.f32.mrf.mxu0
        %v4999 = vadd.f32 0.0, %v4998
        %5000 = vmatmul.bf16.gmra.mxu0 %v4890
        %v5001 = vpop.f32.mrf.mxu0
        %v5002 = vadd.f32 0.0, %v5001
        %v5003 = vpop.f32.mrf.mxu0
        %v5004 = vadd.f32 0.0, %v5003
        %5005 = vmatmul.bf16.gmra.mxu0 %v4891
        %v5006 = vpop.f32.mrf.mxu0
        %v5007 = vadd.f32 0.0, %v5006
        %v5008 = vpop.f32.mrf.mxu0
        %5009 = vdwg.mxu0
        %v5010 = vadd.f32 %v4849, %v4967
        %v5011 = vadd.f32 %v4850, %v4969
        %v5012 = vadd.f32 %v4851, %v4972
        %v5013 = vadd.f32 %v4852, %v4974
        %v5014 = vadd.f32 %v4853, %v4977
        %v5015 = vadd.f32 %v4854, %v4979
        %v5016 = vadd.f32 %v4855, %v4982
        %v5017 = vadd.f32 %v4856, %v4984
        %v5018 = vadd.f32 %v4857, %v4987
        %v5019 = vadd.f32 %v4858, %v4989
        %v5020 = vadd.f32 %v4859, %v4992
        %v5021 = vadd.f32 %v4860, %v4994
        %v5022 = vadd.f32 %v4861, %v4997
        %v5023 = vadd.f32 %v4862, %v4999
        %v5024 = vadd.f32 %v4863, %v5002
        %v5025 = vadd.f32 %v4864, %v5004
        %v5026 = vadd.f32 %v4865, %v5007
        %v5027 = vld [vmem:[#allocation3 + $0x39] sm:$0xff]
        %v5028 = vld [vmem:[#allocation3 + $0x41] sm:$0xff]
        %v5029 = vld [vmem:[#allocation3 + $0x49] sm:$0xff]
        %v5030 = vld [vmem:[#allocation3 + $0x51] sm:$0xff]
        %v5031 = vld [vmem:[#allocation3 + $0x59] sm:$0xff]
        %v5032 = vld [vmem:[#allocation3 + $0x61] sm:$0xff]
        %v5033 = vld [vmem:[#allocation3 + $0x69] sm:$0xff]
        %v5034 = vld [vmem:[#allocation3 + $0x71] sm:$0xff]
        %v5035 = vld [vmem:[#allocation3 + $0x79] sm:$0xff]
        %v5036 = vld [vmem:[#allocation3 + $0x81] sm:$0xff]
        %v5037 = vld [vmem:[#allocation3 + $0x89] sm:$0xff]
        %v5038 = vld [vmem:[#allocation3 + $0x91] sm:$0xff]
        %v5039 = vld [vmem:[#allocation3 + $0x99] sm:$0xff]
        %v5040 = vld [vmem:[#allocation3 + $0xa1] sm:$0xff]
        %v5041 = vld [vmem:[#allocation3 + $0xa9] sm:$0xff]
        %v5042 = vld [vmem:[#allocation3 + $0xb1] sm:$0xff]
        %v5043 = vld [vmem:[#allocation3 + $0xb9] sm:$0xff]
        %v5044 = vpack.c.bf16 %v5028, %v5027
        %v5045 = vpack.c.bf16 %v5030, %v5029
        %v5046 = vpack.c.bf16 %v5032, %v5031
        %v5047 = vpack.c.bf16 %v5034, %v5033
        %v5048 = vpack.c.bf16 %v5036, %v5035
        %v5049 = vpack.c.bf16 %v5038, %v5037
        %v5050 = vpack.c.bf16 %v5040, %v5039
        %v5051 = vpack.c.bf16 %v5042, %v5041
        %v5052 = vpack.c.bf16 %v5043, %v5043
        %s5053 = scalar_lea.vmem %s3, 1344
        %v5054 = vld [vmem:[%s5053] sm:$0xf]
        %v5055 = vld [vmem:[%s5053 + $0x4] sm:$0xf]
        %v5056 = vld [vmem:[%s5053 + $0x8] sm:$0xf]
        %v5057 = vld [vmem:[%s5053 + $0xc] sm:$0xf]
        %v5058 = vld [vmem:[%s5053 + $0x10] sm:$0xf]
        %v5059 = vld [vmem:[%s5053 + $0x14] sm:$0xf]
        %v5060 = vld [vmem:[%s5053 + $0x18] sm:$0xf]
        %v5061 = vld [vmem:[%s5053 + $0x1c] sm:$0xf]
        %v5062 = vld [vmem:[%s5053 + $0x20] sm:$0xf]
        %v5063 = vld [vmem:[%s5053 + $0x24] sm:$0xf]
        %v5064 = vld [vmem:[%s5053 + $0x28] sm:$0xf]
        %v5065 = vld [vmem:[%s5053 + $0x2c] sm:$0xf]
        %v5066 = vld [vmem:[%s5053 + $0x30] sm:$0xf]
        %v5067 = vld [vmem:[%s5053 + $0x34] sm:$0xf]
        %v5068 = vld [vmem:[%s5053 + $0x38] sm:$0xf]
        %v5069 = vld [vmem:[%s5053 + $0x3c] sm:$0xf]
        %v5086 = vunpack.c.l.b16 %v5054
        %v5087 = vunpack.c.l.b16 %v5055
        %v5088 = vunpack.c.l.b16 %v5056
        %v5089 = vunpack.c.l.b16 %v5057
        %v5090 = vunpack.c.l.b16 %v5058
        %v5091 = vunpack.c.l.b16 %v5059
        %v5092 = vunpack.c.l.b16 %v5060
        %v5093 = vunpack.c.l.b16 %v5061
        %v5094 = vunpack.c.l.b16 %v5062
        %v5095 = vunpack.c.l.b16 %v5063
        %v5096 = vunpack.c.l.b16 %v5064
        %v5097 = vunpack.c.l.b16 %v5065
        %v5098 = vunpack.c.l.b16 %v5066
        %v5099 = vunpack.c.l.b16 %v5067
        %v5100 = vunpack.c.l.b16 %v5068
        %v5101 = vunpack.c.l.b16 %v5069
        %v5102 = vpack.c.b16 %v5087, %v5086
        %v5103 = vpack.c.b16 %v5089, %v5088
        %v5104 = vpack.c.b16 %v5091, %v5090
        %v5105 = vpack.c.b16 %v5093, %v5092
        %v5106 = vpack.c.b16 %v5095, %v5094
        %v5107 = vpack.c.b16 %v5097, %v5096
        %v5108 = vpack.c.b16 %v5099, %v5098
        %v5109 = vpack.c.b16 %v5101, %v5100
        %5118 = vmatpush.bf16.msra.mxu0 %v5109
        %5119 = vmatpush.bf16.msra.mxu0 %v5108
        %5120 = vmatpush.bf16.msra.mxu0 %v5107
        %5121 = vmatpush.bf16.msra.mxu0 %v5106
        %5122 = vmatpush.bf16.msra.mxu0 %v5105
        %5123 = vmatpush.bf16.msra.mxu0 %v5104
        %5124 = vmatpush.bf16.msra.mxu0 %v5103
        %5125 = vmatpush.bf16.msra.mxu0 %v5102
        %5126 = vmatmul.bf16.gmra.mxu0 %v5044
        %v5127 = vpop.f32.mrf.mxu0
        %v5128 = vadd.f32 0.0, %v5127
        %v5129 = vpop.f32.mrf.mxu0
        %v5130 = vadd.f32 0.0, %v5129
        %5131 = vmatmul.bf16.gmra.mxu0 %v5045
        %v5132 = vpop.f32.mrf.mxu0
        %v5133 = vadd.f32 0.0, %v5132
        %v5134 = vpop.f32.mrf.mxu0
        %v5135 = vadd.f32 0.0, %v5134
        %5136 = vmatmul.bf16.gmra.mxu0 %v5046
        %v5137 = vpop.f32.mrf.mxu0
        %v5138 = vadd.f32 0.0, %v5137
        %v5139 = vpop.f32.mrf.mxu0
        %v5140 = vadd.f32 0.0, %v5139
        %5141 = vmatmul.bf16.gmra.mxu0 %v5047
        %v5142 = vpop.f32.mrf.mxu0
        %v5143 = vadd.f32 0.0, %v5142
        %v5144 = vpop.f32.mrf.mxu0
        %v5145 = vadd.f32 0.0, %v5144
        %5146 = vmatmul.bf16.gmra.mxu0 %v5048
        %v5147 = vpop.f32.mrf.mxu0
        %v5148 = vadd.f32 0.0, %v5147
        %v5149 = vpop.f32.mrf.mxu0
        %v5150 = vadd.f32 0.0, %v5149
        %5151 = vmatmul.bf16.gmra.mxu0 %v5049
        %v5152 = vpop.f32.mrf.mxu0
        %v5153 = vadd.f32 0.0, %v5152
        %v5154 = vpop.f32.mrf.mxu0
        %v5155 = vadd.f32 0.0, %v5154
        %5156 = vmatmul.bf16.gmra.mxu0 %v5050
        %v5157 = vpop.f32.mrf.mxu0
        %v5158 = vadd.f32 0.0, %v5157
        %v5159 = vpop.f32.mrf.mxu0
        %v5160 = vadd.f32 0.0, %v5159
        %5161 = vmatmul.bf16.gmra.mxu0 %v5051
        %v5162 = vpop.f32.mrf.mxu0
        %v5163 = vadd.f32 0.0, %v5162
        %v5164 = vpop.f32.mrf.mxu0
        %v5165 = vadd.f32 0.0, %v5164
        %5166 = vmatmul.bf16.gmra.mxu0 %v5052
        %v5167 = vpop.f32.mrf.mxu0
        %v5168 = vadd.f32 0.0, %v5167
        %v5169 = vpop.f32.mrf.mxu0
        %5170 = vdwg.mxu0
        %v5171 = vadd.f32 %v5010, %v5128
        %v5172 = vadd.f32 %v5011, %v5130
        %v5173 = vadd.f32 %v5012, %v5133
        %v5174 = vadd.f32 %v5013, %v5135
        %v5175 = vadd.f32 %v5014, %v5138
        %v5176 = vadd.f32 %v5015, %v5140
        %v5177 = vadd.f32 %v5016, %v5143
        %v5178 = vadd.f32 %v5017, %v5145
        %v5179 = vadd.f32 %v5018, %v5148
        %v5180 = vadd.f32 %v5019, %v5150
        %v5181 = vadd.f32 %v5020, %v5153
        %v5182 = vadd.f32 %v5021, %v5155
        %v5183 = vadd.f32 %v5022, %v5158
        %v5184 = vadd.f32 %v5023, %v5160
        %v5185 = vadd.f32 %v5024, %v5163
        %v5186 = vadd.f32 %v5025, %v5165
        %v5187 = vadd.f32 %v5026, %v5168
        %v5188 = vld [vmem:[#allocation3 + $0x3a] sm:$0xff]
        %v5189 = vld [vmem:[#allocation3 + $0x42] sm:$0xff]
        %v5190 = vld [vmem:[#allocation3 + $0x4a] sm:$0xff]
        %v5191 = vld [vmem:[#allocation3 + $0x52] sm:$0xff]
        %v5192 = vld [vmem:[#allocation3 + $0x5a] sm:$0xff]
        %v5193 = vld [vmem:[#allocation3 + $0x62] sm:$0xff]
        %v5194 = vld [vmem:[#allocation3 + $0x6a] sm:$0xff]
        %v5195 = vld [vmem:[#allocation3 + $0x72] sm:$0xff]
        %v5196 = vld [vmem:[#allocation3 + $0x7a] sm:$0xff]
        %v5197 = vld [vmem:[#allocation3 + $0x82] sm:$0xff]
        %v5198 = vld [vmem:[#allocation3 + $0x8a] sm:$0xff]
        %v5199 = vld [vmem:[#allocation3 + $0x92] sm:$0xff]
        %v5200 = vld [vmem:[#allocation3 + $0x9a] sm:$0xff]
        %v5201 = vld [vmem:[#allocation3 + $0xa2] sm:$0xff]
        %v5202 = vld [vmem:[#allocation3 + $0xaa] sm:$0xff]
        %v5203 = vld [vmem:[#allocation3 + $0xb2] sm:$0xff]
        %v5204 = vld [vmem:[#allocation3 + $0xba] sm:$0xff]
        %v5205 = vpack.c.bf16 %v5189, %v5188
        %v5206 = vpack.c.bf16 %v5191, %v5190
        %v5207 = vpack.c.bf16 %v5193, %v5192
        %v5208 = vpack.c.bf16 %v5195, %v5194
        %v5209 = vpack.c.bf16 %v5197, %v5196
        %v5210 = vpack.c.bf16 %v5199, %v5198
        %v5211 = vpack.c.bf16 %v5201, %v5200
        %v5212 = vpack.c.bf16 %v5203, %v5202
        %v5213 = vpack.c.bf16 %v5204, %v5204
        %s5214 = scalar_lea.vmem %s3, 1408
        %v5215 = vld [vmem:[%s5214] sm:$0xf]
        %v5216 = vld [vmem:[%s5214 + $0x4] sm:$0xf]
        %v5217 = vld [vmem:[%s5214 + $0x8] sm:$0xf]
        %v5218 = vld [vmem:[%s5214 + $0xc] sm:$0xf]
        %v5219 = vld [vmem:[%s5214 + $0x10] sm:$0xf]
        %v5220 = vld [vmem:[%s5214 + $0x14] sm:$0xf]
        %v5221 = vld [vmem:[%s5214 + $0x18] sm:$0xf]
        %v5222 = vld [vmem:[%s5214 + $0x1c] sm:$0xf]
        %v5223 = vld [vmem:[%s5214 + $0x20] sm:$0xf]
        %v5224 = vld [vmem:[%s5214 + $0x24] sm:$0xf]
        %v5225 = vld [vmem:[%s5214 + $0x28] sm:$0xf]
        %v5226 = vld [vmem:[%s5214 + $0x2c] sm:$0xf]
        %v5227 = vld [vmem:[%s5214 + $0x30] sm:$0xf]
        %v5228 = vld [vmem:[%s5214 + $0x34] sm:$0xf]
        %v5229 = vld [vmem:[%s5214 + $0x38] sm:$0xf]
        %v5230 = vld [vmem:[%s5214 + $0x3c] sm:$0xf]
        %v5247 = vunpack.c.l.b16 %v5215
        %v5248 = vunpack.c.l.b16 %v5216
        %v5249 = vunpack.c.l.b16 %v5217
        %v5250 = vunpack.c.l.b16 %v5218
        %v5251 = vunpack.c.l.b16 %v5219
        %v5252 = vunpack.c.l.b16 %v5220
        %v5253 = vunpack.c.l.b16 %v5221
        %v5254 = vunpack.c.l.b16 %v5222
        %v5255 = vunpack.c.l.b16 %v5223
        %v5256 = vunpack.c.l.b16 %v5224
        %v5257 = vunpack.c.l.b16 %v5225
        %v5258 = vunpack.c.l.b16 %v5226
        %v5259 = vunpack.c.l.b16 %v5227
        %v5260 = vunpack.c.l.b16 %v5228
        %v5261 = vunpack.c.l.b16 %v5229
        %v5262 = vunpack.c.l.b16 %v5230
        %v5263 = vpack.c.b16 %v5248, %v5247
        %v5264 = vpack.c.b16 %v5250, %v5249
        %v5265 = vpack.c.b16 %v5252, %v5251
        %v5266 = vpack.c.b16 %v5254, %v5253
        %v5267 = vpack.c.b16 %v5256, %v5255
        %v5268 = vpack.c.b16 %v5258, %v5257
        %v5269 = vpack.c.b16 %v5260, %v5259
        %v5270 = vpack.c.b16 %v5262, %v5261
        %5279 = vmatpush.bf16.msra.mxu0 %v5270
        %5280 = vmatpush.bf16.msra.mxu0 %v5269
        %5281 = vmatpush.bf16.msra.mxu0 %v5268
        %5282 = vmatpush.bf16.msra.mxu0 %v5267
        %5283 = vmatpush.bf16.msra.mxu0 %v5266
        %5284 = vmatpush.bf16.msra.mxu0 %v5265
        %5285 = vmatpush.bf16.msra.mxu0 %v5264
        %5286 = vmatpush.bf16.msra.mxu0 %v5263
        %5287 = vmatmul.bf16.gmra.mxu0 %v5205
        %v5288 = vpop.f32.mrf.mxu0
        %v5289 = vadd.f32 0.0, %v5288
        %v5290 = vpop.f32.mrf.mxu0
        %v5291 = vadd.f32 0.0, %v5290
        %5292 = vmatmul.bf16.gmra.mxu0 %v5206
        %v5293 = vpop.f32.mrf.mxu0
        %v5294 = vadd.f32 0.0, %v5293
        %v5295 = vpop.f32.mrf.mxu0
        %v5296 = vadd.f32 0.0, %v5295
        %5297 = vmatmul.bf16.gmra.mxu0 %v5207
        %v5298 = vpop.f32.mrf.mxu0
        %v5299 = vadd.f32 0.0, %v5298
        %v5300 = vpop.f32.mrf.mxu0
        %v5301 = vadd.f32 0.0, %v5300
        %5302 = vmatmul.bf16.gmra.mxu0 %v5208
        %v5303 = vpop.f32.mrf.mxu0
        %v5304 = vadd.f32 0.0, %v5303
        %v5305 = vpop.f32.mrf.mxu0
        %v5306 = vadd.f32 0.0, %v5305
        %5307 = vmatmul.bf16.gmra.mxu0 %v5209
        %v5308 = vpop.f32.mrf.mxu0
        %v5309 = vadd.f32 0.0, %v5308
        %v5310 = vpop.f32.mrf.mxu0
        %v5311 = vadd.f32 0.0, %v5310
        %5312 = vmatmul.bf16.gmra.mxu0 %v5210
        %v5313 = vpop.f32.mrf.mxu0
        %v5314 = vadd.f32 0.0, %v5313
        %v5315 = vpop.f32.mrf.mxu0
        %v5316 = vadd.f32 0.0, %v5315
        %5317 = vmatmul.bf16.gmra.mxu0 %v5211
        %v5318 = vpop.f32.mrf.mxu0
        %v5319 = vadd.f32 0.0, %v5318
        %v5320 = vpop.f32.mrf.mxu0
        %v5321 = vadd.f32 0.0, %v5320
        %5322 = vmatmul.bf16.gmra.mxu0 %v5212
        %v5323 = vpop.f32.mrf.mxu0
        %v5324 = vadd.f32 0.0, %v5323
        %v5325 = vpop.f32.mrf.mxu0
        %v5326 = vadd.f32 0.0, %v5325
        %5327 = vmatmul.bf16.gmra.mxu0 %v5213
        %v5328 = vpop.f32.mrf.mxu0
        %v5329 = vadd.f32 0.0, %v5328
        %v5330 = vpop.f32.mrf.mxu0
        %5331 = vdwg.mxu0
        %v5332 = vadd.f32 %v5171, %v5289
        %v5333 = vadd.f32 %v5172, %v5291
        %v5334 = vadd.f32 %v5173, %v5294
        %v5335 = vadd.f32 %v5174, %v5296
        %v5336 = vadd.f32 %v5175, %v5299
        %v5337 = vadd.f32 %v5176, %v5301
        %v5338 = vadd.f32 %v5177, %v5304
        %v5339 = vadd.f32 %v5178, %v5306
        %v5340 = vadd.f32 %v5179, %v5309
        %v5341 = vadd.f32 %v5180, %v5311
        %v5342 = vadd.f32 %v5181, %v5314
        %v5343 = vadd.f32 %v5182, %v5316
        %v5344 = vadd.f32 %v5183, %v5319
        %v5345 = vadd.f32 %v5184, %v5321
        %v5346 = vadd.f32 %v5185, %v5324
        %v5347 = vadd.f32 %v5186, %v5326
        %v5348 = vadd.f32 %v5187, %v5329
        %v5349 = vld [vmem:[#allocation3 + $0x3b] sm:$0xff]
        %v5350 = vld [vmem:[#allocation3 + $0x43] sm:$0xff]
        %v5351 = vld [vmem:[#allocation3 + $0x4b] sm:$0xff]
        %v5352 = vld [vmem:[#allocation3 + $0x53] sm:$0xff]
        %v5353 = vld [vmem:[#allocation3 + $0x5b] sm:$0xff]
        %v5354 = vld [vmem:[#allocation3 + $0x63] sm:$0xff]
        %v5355 = vld [vmem:[#allocation3 + $0x6b] sm:$0xff]
        %v5356 = vld [vmem:[#allocation3 + $0x73] sm:$0xff]
        %v5357 = vld [vmem:[#allocation3 + $0x7b] sm:$0xff]
        %v5358 = vld [vmem:[#allocation3 + $0x83] sm:$0xff]
        %v5359 = vld [vmem:[#allocation3 + $0x8b] sm:$0xff]
        %v5360 = vld [vmem:[#allocation3 + $0x93] sm:$0xff]
        %v5361 = vld [vmem:[#allocation3 + $0x9b] sm:$0xff]
        %v5362 = vld [vmem:[#allocation3 + $0xa3] sm:$0xff]
        %v5363 = vld [vmem:[#allocation3 + $0xab] sm:$0xff]
        %v5364 = vld [vmem:[#allocation3 + $0xb3] sm:$0xff]
        %v5365 = vld [vmem:[#allocation3 + $0xbb] sm:$0xff]
        %v5366 = vpack.c.bf16 %v5350, %v5349
        %v5367 = vpack.c.bf16 %v5352, %v5351
        %v5368 = vpack.c.bf16 %v5354, %v5353
        %v5369 = vpack.c.bf16 %v5356, %v5355
        %v5370 = vpack.c.bf16 %v5358, %v5357
        %v5371 = vpack.c.bf16 %v5360, %v5359
        %v5372 = vpack.c.bf16 %v5362, %v5361
        %v5373 = vpack.c.bf16 %v5364, %v5363
        %v5374 = vpack.c.bf16 %v5365, %v5365
        %s5375 = scalar_lea.vmem %s3, 1472
        %v5376 = vld [vmem:[%s5375] sm:$0xf]
        %v5377 = vld [vmem:[%s5375 + $0x4] sm:$0xf]
        %v5378 = vld [vmem:[%s5375 + $0x8] sm:$0xf]
        %v5379 = vld [vmem:[%s5375 + $0xc] sm:$0xf]
        %v5380 = vld [vmem:[%s5375 + $0x10] sm:$0xf]
        %v5381 = vld [vmem:[%s5375 + $0x14] sm:$0xf]
        %v5382 = vld [vmem:[%s5375 + $0x18] sm:$0xf]
        %v5383 = vld [vmem:[%s5375 + $0x1c] sm:$0xf]
        %v5384 = vld [vmem:[%s5375 + $0x20] sm:$0xf]
        %v5385 = vld [vmem:[%s5375 + $0x24] sm:$0xf]
        %v5386 = vld [vmem:[%s5375 + $0x28] sm:$0xf]
        %v5387 = vld [vmem:[%s5375 + $0x2c] sm:$0xf]
        %v5388 = vld [vmem:[%s5375 + $0x30] sm:$0xf]
        %v5389 = vld [vmem:[%s5375 + $0x34] sm:$0xf]
        %v5390 = vld [vmem:[%s5375 + $0x38] sm:$0xf]
        %v5391 = vld [vmem:[%s5375 + $0x3c] sm:$0xf]
        %v5408 = vunpack.c.l.b16 %v5376
        %v5409 = vunpack.c.l.b16 %v5377
        %v5410 = vunpack.c.l.b16 %v5378
        %v5411 = vunpack.c.l.b16 %v5379
        %v5412 = vunpack.c.l.b16 %v5380
        %v5413 = vunpack.c.l.b16 %v5381
        %v5414 = vunpack.c.l.b16 %v5382
        %v5415 = vunpack.c.l.b16 %v5383
        %v5416 = vunpack.c.l.b16 %v5384
        %v5417 = vunpack.c.l.b16 %v5385
        %v5418 = vunpack.c.l.b16 %v5386
        %v5419 = vunpack.c.l.b16 %v5387
        %v5420 = vunpack.c.l.b16 %v5388
        %v5421 = vunpack.c.l.b16 %v5389
        %v5422 = vunpack.c.l.b16 %v5390
        %v5423 = vunpack.c.l.b16 %v5391
        %v5424 = vpack.c.b16 %v5409, %v5408
        %v5425 = vpack.c.b16 %v5411, %v5410
        %v5426 = vpack.c.b16 %v5413, %v5412
        %v5427 = vpack.c.b16 %v5415, %v5414
        %v5428 = vpack.c.b16 %v5417, %v5416
        %v5429 = vpack.c.b16 %v5419, %v5418
        %v5430 = vpack.c.b16 %v5421, %v5420
        %v5431 = vpack.c.b16 %v5423, %v5422
        %5440 = vmatpush.bf16.msra.mxu0 %v5431
        %5441 = vmatpush.bf16.msra.mxu0 %v5430
        %5442 = vmatpush.bf16.msra.mxu0 %v5429
        %5443 = vmatpush.bf16.msra.mxu0 %v5428
        %5444 = vmatpush.bf16.msra.mxu0 %v5427
        %5445 = vmatpush.bf16.msra.mxu0 %v5426
        %5446 = vmatpush.bf16.msra.mxu0 %v5425
        %5447 = vmatpush.bf16.msra.mxu0 %v5424
        %5448 = vmatmul.bf16.gmra.mxu0 %v5366
        %v5449 = vpop.f32.mrf.mxu0
        %v5450 = vadd.f32 0.0, %v5449
        %v5451 = vpop.f32.mrf.mxu0
        %v5452 = vadd.f32 0.0, %v5451
        %5453 = vmatmul.bf16.gmra.mxu0 %v5367
        %v5454 = vpop.f32.mrf.mxu0
        %v5455 = vadd.f32 0.0, %v5454
        %v5456 = vpop.f32.mrf.mxu0
        %v5457 = vadd.f32 0.0, %v5456
        %5458 = vmatmul.bf16.gmra.mxu0 %v5368
        %v5459 = vpop.f32.mrf.mxu0
        %v5460 = vadd.f32 0.0, %v5459
        %v5461 = vpop.f32.mrf.mxu0
        %v5462 = vadd.f32 0.0, %v5461
        %5463 = vmatmul.bf16.gmra.mxu0 %v5369
        %v5464 = vpop.f32.mrf.mxu0
        %v5465 = vadd.f32 0.0, %v5464
        %v5466 = vpop.f32.mrf.mxu0
        %v5467 = vadd.f32 0.0, %v5466
        %5468 = vmatmul.bf16.gmra.mxu0 %v5370
        %v5469 = vpop.f32.mrf.mxu0
        %v5470 = vadd.f32 0.0, %v5469
        %v5471 = vpop.f32.mrf.mxu0
        %v5472 = vadd.f32 0.0, %v5471
        %5473 = vmatmul.bf16.gmra.mxu0 %v5371
        %v5474 = vpop.f32.mrf.mxu0
        %v5475 = vadd.f32 0.0, %v5474
        %v5476 = vpop.f32.mrf.mxu0
        %v5477 = vadd.f32 0.0, %v5476
        %5478 = vmatmul.bf16.gmra.mxu0 %v5372
        %v5479 = vpop.f32.mrf.mxu0
        %v5480 = vadd.f32 0.0, %v5479
        %v5481 = vpop.f32.mrf.mxu0
        %v5482 = vadd.f32 0.0, %v5481
        %5483 = vmatmul.bf16.gmra.mxu0 %v5373
        %v5484 = vpop.f32.mrf.mxu0
        %v5485 = vadd.f32 0.0, %v5484
        %v5486 = vpop.f32.mrf.mxu0
        %v5487 = vadd.f32 0.0, %v5486
        %5488 = vmatmul.bf16.gmra.mxu0 %v5374
        %v5489 = vpop.f32.mrf.mxu0
        %v5490 = vadd.f32 0.0, %v5489
        %v5491 = vpop.f32.mrf.mxu0
        %5492 = vdwg.mxu0
        %v5493 = vadd.f32 %v5332, %v5450
        %v5494 = vadd.f32 %v5333, %v5452
        %v5495 = vadd.f32 %v5334, %v5455
        %v5496 = vadd.f32 %v5335, %v5457
        %v5497 = vadd.f32 %v5336, %v5460
        %v5498 = vadd.f32 %v5337, %v5462
        %v5499 = vadd.f32 %v5338, %v5465
        %v5500 = vadd.f32 %v5339, %v5467
        %v5501 = vadd.f32 %v5340, %v5470
        %v5502 = vadd.f32 %v5341, %v5472
        %v5503 = vadd.f32 %v5342, %v5475
        %v5504 = vadd.f32 %v5343, %v5477
        %v5505 = vadd.f32 %v5344, %v5480
        %v5506 = vadd.f32 %v5345, %v5482
        %v5507 = vadd.f32 %v5346, %v5485
        %v5508 = vadd.f32 %v5347, %v5487
        %v5509 = vadd.f32 %v5348, %v5490
        %v5510 = vld [vmem:[#allocation3 + $0x3c] sm:$0xff]
        %v5511 = vld [vmem:[#allocation3 + $0x44] sm:$0xff]
        %v5512 = vld [vmem:[#allocation3 + $0x4c] sm:$0xff]
        %v5513 = vld [vmem:[#allocation3 + $0x54] sm:$0xff]
        %v5514 = vld [vmem:[#allocation3 + $0x5c] sm:$0xff]
        %v5515 = vld [vmem:[#allocation3 + $0x64] sm:$0xff]
        %v5516 = vld [vmem:[#allocation3 + $0x6c] sm:$0xff]
        %v5517 = vld [vmem:[#allocation3 + $0x74] sm:$0xff]
        %v5518 = vld [vmem:[#allocation3 + $0x7c] sm:$0xff]
        %v5519 = vld [vmem:[#allocation3 + $0x84] sm:$0xff]
        %v5520 = vld [vmem:[#allocation3 + $0x8c] sm:$0xff]
        %v5521 = vld [vmem:[#allocation3 + $0x94] sm:$0xff]
        %v5522 = vld [vmem:[#allocation3 + $0x9c] sm:$0xff]
        %v5523 = vld [vmem:[#allocation3 + $0xa4] sm:$0xff]
        %v5524 = vld [vmem:[#allocation3 + $0xac] sm:$0xff]
        %v5525 = vld [vmem:[#allocation3 + $0xb4] sm:$0xff]
        %v5526 = vld [vmem:[#allocation3 + $0xbc] sm:$0xff]
        %v5527 = vpack.c.bf16 %v5511, %v5510
        %v5528 = vpack.c.bf16 %v5513, %v5512
        %v5529 = vpack.c.bf16 %v5515, %v5514
        %v5530 = vpack.c.bf16 %v5517, %v5516
        %v5531 = vpack.c.bf16 %v5519, %v5518
        %v5532 = vpack.c.bf16 %v5521, %v5520
        %v5533 = vpack.c.bf16 %v5523, %v5522
        %v5534 = vpack.c.bf16 %v5525, %v5524
        %v5535 = vpack.c.bf16 %v5526, %v5526
        %s5536 = scalar_lea.vmem %s3, 1536
        %v5537 = vld [vmem:[%s5536] sm:$0xf]
        %v5538 = vld [vmem:[%s5536 + $0x4] sm:$0xf]
        %v5539 = vld [vmem:[%s5536 + $0x8] sm:$0xf]
        %v5540 = vld [vmem:[%s5536 + $0xc] sm:$0xf]
        %v5541 = vld [vmem:[%s5536 + $0x10] sm:$0xf]
        %v5542 = vld [vmem:[%s5536 + $0x14] sm:$0xf]
        %v5543 = vld [vmem:[%s5536 + $0x18] sm:$0xf]
        %v5544 = vld [vmem:[%s5536 + $0x1c] sm:$0xf]
        %v5545 = vld [vmem:[%s5536 + $0x20] sm:$0xf]
        %v5546 = vld [vmem:[%s5536 + $0x24] sm:$0xf]
        %v5547 = vld [vmem:[%s5536 + $0x28] sm:$0xf]
        %v5548 = vld [vmem:[%s5536 + $0x2c] sm:$0xf]
        %v5549 = vld [vmem:[%s5536 + $0x30] sm:$0xf]
        %v5550 = vld [vmem:[%s5536 + $0x34] sm:$0xf]
        %v5551 = vld [vmem:[%s5536 + $0x38] sm:$0xf]
        %v5552 = vld [vmem:[%s5536 + $0x3c] sm:$0xf]
        %v5569 = vunpack.c.l.b16 %v5537
        %v5570 = vunpack.c.l.b16 %v5538
        %v5571 = vunpack.c.l.b16 %v5539
        %v5572 = vunpack.c.l.b16 %v5540
        %v5573 = vunpack.c.l.b16 %v5541
        %v5574 = vunpack.c.l.b16 %v5542
        %v5575 = vunpack.c.l.b16 %v5543
        %v5576 = vunpack.c.l.b16 %v5544
        %v5577 = vunpack.c.l.b16 %v5545
        %v5578 = vunpack.c.l.b16 %v5546
        %v5579 = vunpack.c.l.b16 %v5547
        %v5580 = vunpack.c.l.b16 %v5548
        %v5581 = vunpack.c.l.b16 %v5549
        %v5582 = vunpack.c.l.b16 %v5550
        %v5583 = vunpack.c.l.b16 %v5551
        %v5584 = vunpack.c.l.b16 %v5552
        %v5585 = vpack.c.b16 %v5570, %v5569
        %v5586 = vpack.c.b16 %v5572, %v5571
        %v5587 = vpack.c.b16 %v5574, %v5573
        %v5588 = vpack.c.b16 %v5576, %v5575
        %v5589 = vpack.c.b16 %v5578, %v5577
        %v5590 = vpack.c.b16 %v5580, %v5579
        %v5591 = vpack.c.b16 %v5582, %v5581
        %v5592 = vpack.c.b16 %v5584, %v5583
        %5601 = vmatpush.bf16.msra.mxu0 %v5592
        %5602 = vmatpush.bf16.msra.mxu0 %v5591
        %5603 = vmatpush.bf16.msra.mxu0 %v5590
        %5604 = vmatpush.bf16.msra.mxu0 %v5589
        %5605 = vmatpush.bf16.msra.mxu0 %v5588
        %5606 = vmatpush.bf16.msra.mxu0 %v5587
        %5607 = vmatpush.bf16.msra.mxu0 %v5586
        %5608 = vmatpush.bf16.msra.mxu0 %v5585
        %5609 = vmatmul.bf16.gmra.mxu0 %v5527
        %v5610 = vpop.f32.mrf.mxu0
        %v5611 = vadd.f32 0.0, %v5610
        %v5612 = vpop.f32.mrf.mxu0
        %v5613 = vadd.f32 0.0, %v5612
        %5614 = vmatmul.bf16.gmra.mxu0 %v5528
        %v5615 = vpop.f32.mrf.mxu0
        %v5616 = vadd.f32 0.0, %v5615
        %v5617 = vpop.f32.mrf.mxu0
        %v5618 = vadd.f32 0.0, %v5617
        %5619 = vmatmul.bf16.gmra.mxu0 %v5529
        %v5620 = vpop.f32.mrf.mxu0
        %v5621 = vadd.f32 0.0, %v5620
        %v5622 = vpop.f32.mrf.mxu0
        %v5623 = vadd.f32 0.0, %v5622
        %5624 = vmatmul.bf16.gmra.mxu0 %v5530
        %v5625 = vpop.f32.mrf.mxu0
        %v5626 = vadd.f32 0.0, %v5625
        %v5627 = vpop.f32.mrf.mxu0
        %v5628 = vadd.f32 0.0, %v5627
        %5629 = vmatmul.bf16.gmra.mxu0 %v5531
        %v5630 = vpop.f32.mrf.mxu0
        %v5631 = vadd.f32 0.0, %v5630
        %v5632 = vpop.f32.mrf.mxu0
        %v5633 = vadd.f32 0.0, %v5632
        %5634 = vmatmul.bf16.gmra.mxu0 %v5532
        %v5635 = vpop.f32.mrf.mxu0
        %v5636 = vadd.f32 0.0, %v5635
        %v5637 = vpop.f32.mrf.mxu0
        %v5638 = vadd.f32 0.0, %v5637
        %5639 = vmatmul.bf16.gmra.mxu0 %v5533
        %v5640 = vpop.f32.mrf.mxu0
        %v5641 = vadd.f32 0.0, %v5640
        %v5642 = vpop.f32.mrf.mxu0
        %v5643 = vadd.f32 0.0, %v5642
        %5644 = vmatmul.bf16.gmra.mxu0 %v5534
        %v5645 = vpop.f32.mrf.mxu0
        %v5646 = vadd.f32 0.0, %v5645
        %v5647 = vpop.f32.mrf.mxu0
        %v5648 = vadd.f32 0.0, %v5647
        %5649 = vmatmul.bf16.gmra.mxu0 %v5535
        %v5650 = vpop.f32.mrf.mxu0
        %v5651 = vadd.f32 0.0, %v5650
        %v5652 = vpop.f32.mrf.mxu0
        %5653 = vdwg.mxu0
        %v5654 = vadd.f32 %v5493, %v5611
        %v5655 = vadd.f32 %v5494, %v5613
        %v5656 = vadd.f32 %v5495, %v5616
        %v5657 = vadd.f32 %v5496, %v5618
        %v5658 = vadd.f32 %v5497, %v5621
        %v5659 = vadd.f32 %v5498, %v5623
        %v5660 = vadd.f32 %v5499, %v5626
        %v5661 = vadd.f32 %v5500, %v5628
        %v5662 = vadd.f32 %v5501, %v5631
        %v5663 = vadd.f32 %v5502, %v5633
        %v5664 = vadd.f32 %v5503, %v5636
        %v5665 = vadd.f32 %v5504, %v5638
        %v5666 = vadd.f32 %v5505, %v5641
        %v5667 = vadd.f32 %v5506, %v5643
        %v5668 = vadd.f32 %v5507, %v5646
        %v5669 = vadd.f32 %v5508, %v5648
        %v5670 = vadd.f32 %v5509, %v5651
        %v5671 = vld [vmem:[%s4] sm:$0x1]
        %v5673 = vperm.slane %v5671, 0
        %v5675 = vadd.f32 %v5654, %v5673
        %v5676 = vadd.f32 %v5655, %v5673
        %v5677 = vadd.f32 %v5656, %v5673
        %v5678 = vadd.f32 %v5657, %v5673
        %v5679 = vadd.f32 %v5658, %v5673
        %v5680 = vadd.f32 %v5659, %v5673
        %v5681 = vadd.f32 %v5660, %v5673
        %v5682 = vadd.f32 %v5661, %v5673
        %v5683 = vadd.f32 %v5662, %v5673
        %v5684 = vadd.f32 %v5663, %v5673
        %v5685 = vadd.f32 %v5664, %v5673
        %v5686 = vadd.f32 %v5665, %v5673
        %v5687 = vadd.f32 %v5666, %v5673
        %v5688 = vadd.f32 %v5667, %v5673
        %v5689 = vadd.f32 %v5668, %v5673
        %v5690 = vadd.f32 %v5669, %v5673
        %v5691 = vadd.f32 %v5670, %v5673
        %v5692 = vmax.f32 %v5675, 0.0
        %v5693 = vmax.f32 %v5676, 0.0
        %v5694 = vmax.f32 %v5677, 0.0
        %v5695 = vmax.f32 %v5678, 0.0
        %v5696 = vmax.f32 %v5679, 0.0
        %v5697 = vmax.f32 %v5680, 0.0
        %v5698 = vmax.f32 %v5681, 0.0
        %v5699 = vmax.f32 %v5682, 0.0
        %v5700 = vmax.f32 %v5683, 0.0
        %v5701 = vmax.f32 %v5684, 0.0
        %v5702 = vmax.f32 %v5685, 0.0
        %v5703 = vmax.f32 %v5686, 0.0
        %v5704 = vmax.f32 %v5687, 0.0
        %v5705 = vmax.f32 %v5688, 0.0
        %v5706 = vmax.f32 %v5689, 0.0
        %v5707 = vmax.f32 %v5690, 0.0
        %v5708 = vmax.f32 %v5691, 0.0
        %5709 = vst [vmem:[#allocation4] sm:$0xff] %v5692
        %5710 = vst [vmem:[#allocation4 + $0x8] sm:$0xff] %v5693
        %5711 = vst [vmem:[#allocation4 + $0x10] sm:$0xff] %v5694
        %5712 = vst [vmem:[#allocation4 + $0x18] sm:$0xff] %v5695
        %5713 = vst [vmem:[#allocation4 + $0x20] sm:$0xff] %v5696
        %5714 = vst [vmem:[#allocation4 + $0x28] sm:$0xff] %v5697
        %5715 = vst [vmem:[#allocation4 + $0x30] sm:$0xff] %v5698
        %5716 = vst [vmem:[#allocation4 + $0x38] sm:$0xff] %v5699
        %5717 = vst [vmem:[#allocation4 + $0x40] sm:$0xff] %v5700
        %5718 = vst [vmem:[#allocation4 + $0x48] sm:$0xff] %v5701
        %5719 = vst [vmem:[#allocation4 + $0x50] sm:$0xff] %v5702
        %5720 = vst [vmem:[#allocation4 + $0x58] sm:$0xff] %v5703
        %5721 = vst [vmem:[#allocation4 + $0x60] sm:$0xff] %v5704
        %5722 = vst [vmem:[#allocation4 + $0x68] sm:$0xff] %v5705
        %5723 = vst [vmem:[#allocation4 + $0x70] sm:$0xff] %v5706
        %5724 = vst [vmem:[#allocation4 + $0x78] sm:$0xff] %v5707
        %5725 = vst [vmem:[#allocation4 + $0x80] sm:$0xff] %v5708
        %v5726 = vld [vmem:[#allocation4] sm:$0x1]
        %v5727 = vld [vmem:[#allocation4 + $0x1] sm:$0x1]
        %v5728 = vmax.f32 %v5726, %v5727
        %v5729 = vld [vmem:[#allocation4 + $0xe] sm:$0x1]
        %v5730 = vld [vmem:[#allocation4 + $0xf] sm:$0x1]
        %v5731 = vmax.f32 %v5729, %v5730
        %v5732 = vmax.f32 %v5728, %v5731
        %5733 = vst [vmem:[#allocation5] sm:$0x1] %v5732
        %v5734 = vld [vmem:[#allocation4 + $0x2] sm:$0x1]
        %v5735 = vld [vmem:[#allocation4 + $0x3] sm:$0x1]
        %v5736 = vmax.f32 %v5734, %v5735
        %v5737 = vld [vmem:[#allocation4 + $0x10] sm:$0x1]
        %v5738 = vld [vmem:[#allocation4 + $0x11] sm:$0x1]
        %v5739 = vmax.f32 %v5737, %v5738
        %v5740 = vmax.f32 %v5736, %v5739
        %5741 = vst [vmem:[#allocation5 + $0x8] sm:$0x1] %v5740
        %v5742 = vld [vmem:[#allocation4 + $0x4] sm:$0x1]
        %v5743 = vld [vmem:[#allocation4 + $0x5] sm:$0x1]
        %v5744 = vmax.f32 %v5742, %v5743
        %v5745 = vld [vmem:[#allocation4 + $0x12] sm:$0x1]
        %v5746 = vld [vmem:[#allocation4 + $0x13] sm:$0x1]
        %v5747 = vmax.f32 %v5745, %v5746
        %v5748 = vmax.f32 %v5744, %v5747
        %5749 = vst [vmem:[#allocation5 + $0x10] sm:$0x1] %v5748
        %v5750 = vld [vmem:[#allocation4 + $0x6] sm:$0x1]
        %v5751 = vld [vmem:[#allocation4 + $0x7] sm:$0x1]
        %v5752 = vmax.f32 %v5750, %v5751
        %v5753 = vld [vmem:[#allocation4 + $0x14] sm:$0x1]
        %v5754 = vld [vmem:[#allocation4 + $0x15] sm:$0x1]
        %v5755 = vmax.f32 %v5753, %v5754
        %v5756 = vmax.f32 %v5752, %v5755
        %5757 = vst [vmem:[#allocation5 + $0x18] sm:$0x1] %v5756
        %v5758 = vld [vmem:[#allocation4 + $0x8] sm:$0x1]
        %v5759 = vld [vmem:[#allocation4 + $0x9] sm:$0x1]
        %v5760 = vmax.f32 %v5758, %v5759
        %v5761 = vld [vmem:[#allocation4 + $0x16] sm:$0x1]
        %v5762 = vld [vmem:[#allocation4 + $0x17] sm:$0x1]
        %v5763 = vmax.f32 %v5761, %v5762
        %v5764 = vmax.f32 %v5760, %v5763
        %5765 = vst [vmem:[#allocation5 + $0x20] sm:$0x1] %v5764
        %v5766 = vld [vmem:[#allocation4 + $0x1c] sm:$0x1]
        %v5767 = vld [vmem:[#allocation4 + $0x1d] sm:$0x1]
        %v5768 = vmax.f32 %v5766, %v5767
        %v5769 = vld [vmem:[#allocation4 + $0x2a] sm:$0x1]
        %v5770 = vld [vmem:[#allocation4 + $0x2b] sm:$0x1]
        %v5771 = vmax.f32 %v5769, %v5770
        %v5772 = vmax.f32 %v5768, %v5771
        %5773 = vst [vmem:[#allocation5 + $0x28] sm:$0x1] %v5772
        %v5774 = vld [vmem:[#allocation4 + $0x1e] sm:$0x1]
        %v5775 = vld [vmem:[#allocation4 + $0x1f] sm:$0x1]
        %v5776 = vmax.f32 %v5774, %v5775
        %v5777 = vld [vmem:[#allocation4 + $0x2c] sm:$0x1]
        %v5778 = vld [vmem:[#allocation4 + $0x2d] sm:$0x1]
        %v5779 = vmax.f32 %v5777, %v5778
        %v5780 = vmax.f32 %v5776, %v5779
        %5781 = vst [vmem:[#allocation5 + $0x30] sm:$0x1] %v5780
        %v5782 = vld [vmem:[#allocation4 + $0x20] sm:$0x1]
        %v5783 = vld [vmem:[#allocation4 + $0x21] sm:$0x1]
        %v5784 = vmax.f32 %v5782, %v5783
        %v5785 = vld [vmem:[#allocation4 + $0x2e] sm:$0x1]
        %v5786 = vld [vmem:[#allocation4 + $0x2f] sm:$0x1]
        %v5787 = vmax.f32 %v5785, %v5786
        %v5788 = vmax.f32 %v5784, %v5787
        %5789 = vst [vmem:[#allocation5 + $0x38] sm:$0x1] %v5788
        %v5790 = vld [vmem:[#allocation4 + $0x22] sm:$0x1]
        %v5791 = vld [vmem:[#allocation4 + $0x23] sm:$0x1]
        %v5792 = vmax.f32 %v5790, %v5791
        %v5793 = vld [vmem:[#allocation4 + $0x30] sm:$0x1]
        %v5794 = vld [vmem:[#allocation4 + $0x31] sm:$0x1]
        %v5795 = vmax.f32 %v5793, %v5794
        %v5796 = vmax.f32 %v5792, %v5795
        %5797 = vst [vmem:[#allocation5 + $0x40] sm:$0x1] %v5796
        %v5798 = vld [vmem:[#allocation4 + $0x24] sm:$0x1]
        %v5799 = vld [vmem:[#allocation4 + $0x25] sm:$0x1]
        %v5800 = vmax.f32 %v5798, %v5799
        %v5801 = vld [vmem:[#allocation4 + $0x32] sm:$0x1]
        %v5802 = vld [vmem:[#allocation4 + $0x33] sm:$0x1]
        %v5803 = vmax.f32 %v5801, %v5802
        %v5804 = vmax.f32 %v5800, %v5803
        %5805 = vst [vmem:[#allocation5 + $0x48] sm:$0x1] %v5804
        %v5806 = vld [vmem:[#allocation4 + $0x38] sm:$0x1]
        %v5807 = vld [vmem:[#allocation4 + $0x39] sm:$0x1]
        %v5808 = vmax.f32 %v5806, %v5807
        %v5809 = vld [vmem:[#allocation4 + $0x46] sm:$0x1]
        %v5810 = vld [vmem:[#allocation4 + $0x47] sm:$0x1]
        %v5811 = vmax.f32 %v5809, %v5810
        %v5812 = vmax.f32 %v5808, %v5811
        %5813 = vst [vmem:[#allocation5 + $0x50] sm:$0x1] %v5812
        %v5814 = vld [vmem:[#allocation4 + $0x3a] sm:$0x1]
        %v5815 = vld [vmem:[#allocation4 + $0x3b] sm:$0x1]
        %v5816 = vmax.f32 %v5814, %v5815
        %v5817 = vld [vmem:[#allocation4 + $0x48] sm:$0x1]
        %v5818 = vld [vmem:[#allocation4 + $0x49] sm:$0x1]
        %v5819 = vmax.f32 %v5817, %v5818
        %v5820 = vmax.f32 %v5816, %v5819
        %5821 = vst [vmem:[#allocation5 + $0x58] sm:$0x1] %v5820
        %v5822 = vld [vmem:[#allocation4 + $0x3c] sm:$0x1]
        %v5823 = vld [vmem:[#allocation4 + $0x3d] sm:$0x1]
        %v5824 = vmax.f32 %v5822, %v5823
        %v5825 = vld [vmem:[#allocation4 + $0x4a] sm:$0x1]
        %v5826 = vld [vmem:[#allocation4 + $0x4b] sm:$0x1]
        %v5827 = vmax.f32 %v5825, %v5826
        %v5828 = vmax.f32 %v5824, %v5827
        %5829 = vst [vmem:[#allocation5 + $0x60] sm:$0x1] %v5828
        %v5830 = vld [vmem:[#allocation4 + $0x3e] sm:$0x1]
        %v5831 = vld [vmem:[#allocation4 + $0x3f] sm:$0x1]
        %v5832 = vmax.f32 %v5830, %v5831
        %v5833 = vld [vmem:[#allocation4 + $0x4c] sm:$0x1]
        %v5834 = vld [vmem:[#allocation4 + $0x4d] sm:$0x1]
        %v5835 = vmax.f32 %v5833, %v5834
        %v5836 = vmax.f32 %v5832, %v5835
        %5837 = vst [vmem:[#allocation5 + $0x68] sm:$0x1] %v5836
        %v5838 = vld [vmem:[#allocation4 + $0x40] sm:$0x1]
        %v5839 = vld [vmem:[#allocation4 + $0x41] sm:$0x1]
        %v5840 = vmax.f32 %v5838, %v5839
        %v5841 = vld [vmem:[#allocation4 + $0x4e] sm:$0x1]
        %v5842 = vld [vmem:[#allocation4 + $0x4f] sm:$0x1]
        %v5843 = vmax.f32 %v5841, %v5842
        %v5844 = vmax.f32 %v5840, %v5843
        %5845 = vst [vmem:[#allocation5 + $0x70] sm:$0x1] %v5844
        %v5846 = vld [vmem:[#allocation4 + $0x54] sm:$0x1]
        %v5847 = vld [vmem:[#allocation4 + $0x55] sm:$0x1]
        %v5848 = vmax.f32 %v5846, %v5847
        %v5849 = vld [vmem:[#allocation4 + $0x62] sm:$0x1]
        %v5850 = vld [vmem:[#allocation4 + $0x63] sm:$0x1]
        %v5851 = vmax.f32 %v5849, %v5850
        %v5852 = vmax.f32 %v5848, %v5851
        %5853 = vst [vmem:[#allocation5 + $0x78] sm:$0x1] %v5852
        %v5854 = vld [vmem:[#allocation4 + $0x56] sm:$0x1]
        %v5855 = vld [vmem:[#allocation4 + $0x57] sm:$0x1]
        %v5856 = vmax.f32 %v5854, %v5855
        %v5857 = vld [vmem:[#allocation4 + $0x64] sm:$0x1]
        %v5858 = vld [vmem:[#allocation4 + $0x65] sm:$0x1]
        %v5859 = vmax.f32 %v5857, %v5858
        %v5860 = vmax.f32 %v5856, %v5859
        %5861 = vst [vmem:[#allocation5 + $0x80] sm:$0x1] %v5860
        %v5862 = vld [vmem:[#allocation4 + $0x58] sm:$0x1]
        %v5863 = vld [vmem:[#allocation4 + $0x59] sm:$0x1]
        %v5864 = vmax.f32 %v5862, %v5863
        %v5865 = vld [vmem:[#allocation4 + $0x66] sm:$0x1]
        %v5866 = vld [vmem:[#allocation4 + $0x67] sm:$0x1]
        %v5867 = vmax.f32 %v5865, %v5866
        %v5868 = vmax.f32 %v5864, %v5867
        %5869 = vst [vmem:[#allocation5 + $0x88] sm:$0x1] %v5868
        %v5870 = vld [vmem:[#allocation4 + $0x5a] sm:$0x1]
        %v5871 = vld [vmem:[#allocation4 + $0x5b] sm:$0x1]
        %v5872 = vmax.f32 %v5870, %v5871
        %v5873 = vld [vmem:[#allocation4 + $0x68] sm:$0x1]
        %v5874 = vld [vmem:[#allocation4 + $0x69] sm:$0x1]
        %v5875 = vmax.f32 %v5873, %v5874
        %v5876 = vmax.f32 %v5872, %v5875
        %5877 = vst [vmem:[#allocation5 + $0x90] sm:$0x1] %v5876
        %v5878 = vld [vmem:[#allocation4 + $0x5c] sm:$0x1]
        %v5879 = vld [vmem:[#allocation4 + $0x5d] sm:$0x1]
        %v5880 = vmax.f32 %v5878, %v5879
        %v5881 = vld [vmem:[#allocation4 + $0x6a] sm:$0x1]
        %v5882 = vld [vmem:[#allocation4 + $0x6b] sm:$0x1]
        %v5883 = vmax.f32 %v5881, %v5882
        %v5884 = vmax.f32 %v5880, %v5883
        %5885 = vst [vmem:[#allocation5 + $0x98] sm:$0x1] %v5884
        %v5886 = vld [vmem:[#allocation4 + $0x70] sm:$0x1]
        %v5887 = vld [vmem:[#allocation4 + $0x71] sm:$0x1]
        %v5888 = vmax.f32 %v5886, %v5887
        %v5889 = vld [vmem:[#allocation4 + $0x7e] sm:$0x1]
        %v5890 = vld [vmem:[#allocation4 + $0x7f] sm:$0x1]
        %v5891 = vmax.f32 %v5889, %v5890
        %v5892 = vmax.f32 %v5888, %v5891
        %5893 = vst [vmem:[#allocation5 + $0xa0] sm:$0x1] %v5892
        %v5894 = vld [vmem:[#allocation4 + $0x72] sm:$0x1]
        %v5895 = vld [vmem:[#allocation4 + $0x73] sm:$0x1]
        %v5896 = vmax.f32 %v5894, %v5895
        %v5897 = vld [vmem:[#allocation4 + $0x80] sm:$0x1]
        %v5898 = vld [vmem:[#allocation4 + $0x81] sm:$0x1]
        %v5899 = vmax.f32 %v5897, %v5898
        %v5900 = vmax.f32 %v5896, %v5899
        %5901 = vst [vmem:[#allocation5 + $0xa8] sm:$0x1] %v5900
        %v5902 = vld [vmem:[#allocation4 + $0x74] sm:$0x1]
        %v5903 = vld [vmem:[#allocation4 + $0x75] sm:$0x1]
        %v5904 = vmax.f32 %v5902, %v5903
        %v5905 = vld [vmem:[#allocation4 + $0x82] sm:$0x1]
        %v5906 = vld [vmem:[#allocation4 + $0x83] sm:$0x1]
        %v5907 = vmax.f32 %v5905, %v5906
        %v5908 = vmax.f32 %v5904, %v5907
        %5909 = vst [vmem:[#allocation5 + $0xb0] sm:$0x1] %v5908
        %v5910 = vld [vmem:[#allocation4 + $0x76] sm:$0x1]
        %v5911 = vld [vmem:[#allocation4 + $0x77] sm:$0x1]
        %v5912 = vmax.f32 %v5910, %v5911
        %v5913 = vld [vmem:[#allocation4 + $0x84] sm:$0x1]
        %v5914 = vld [vmem:[#allocation4 + $0x85] sm:$0x1]
        %v5915 = vmax.f32 %v5913, %v5914
        %v5916 = vmax.f32 %v5912, %v5915
        %5917 = vst [vmem:[#allocation5 + $0xb8] sm:$0x1] %v5916
        %v5918 = vld [vmem:[#allocation4 + $0x78] sm:$0x1]
        %v5919 = vld [vmem:[#allocation4 + $0x79] sm:$0x1]
        %v5920 = vmax.f32 %v5918, %v5919
        %v5921 = vld [vmem:[#allocation4 + $0x86] sm:$0x1]
        %v5922 = vld [vmem:[#allocation4 + $0x87] sm:$0x1]
        %v5923 = vmax.f32 %v5921, %v5922
        %v5924 = vmax.f32 %v5920, %v5923
        %5925 = vst [vmem:[#allocation5 + $0xc0] sm:$0x1] %v5924
        %v5926 = vld [vmem:[#allocation5] ss:$8 sm:$0xf]
        %v5927 = vld [vmem:[#allocation5] ss:$8 sm:$0xf0]
        %v5928 = vor.u32 %v5926, %v5927
        %s5929 = scalar_lea.vmem [#allocation5], 64
        %v5930 = vld [vmem:[%s5929] ss:$8 sm:$0xf]
        %v5931 = vld [vmem:[%s5929] ss:$8 sm:$0xf0]
        %v5932 = vor.u32 %v5930, %v5931
        %s5933 = scalar_lea.vmem [#allocation5], 128
        %v5934 = vld [vmem:[%s5933] ss:$8 sm:$0xf]
        %v5935 = vld [vmem:[%s5933] ss:$8 sm:$0xf0]
        %v5936 = vor.u32 %v5934, %v5935
        %s5937 = scalar_lea.vmem [#allocation5], 192
        %v5938 = vld [vmem:[%s5937] ss:$8 sm:$0x1]
        %v5943 = vperm.slane %v5928, 0
        %v5944 = vperm.slane %v5928, 1
        %v5945 = vperm.slane %v5928, 2
        %v5946 = vperm.slane %v5928, 3
        %v5947 = vperm.slane %v5928, 4
        %v5948 = vperm.slane %v5928, 5
        %v5949 = vperm.slane %v5928, 6
        %v5950 = vperm.slane %v5928, 7
        %v5951 = vperm.slane %v5932, 0
        %v5952 = vperm.slane %v5932, 1
        %v5953 = vperm.slane %v5932, 2
        %v5954 = vperm.slane %v5932, 3
        %v5955 = vperm.slane %v5932, 4
        %v5956 = vperm.slane %v5932, 5
        %v5957 = vperm.slane %v5932, 6
        %v5958 = vperm.slane %v5932, 7
        %v5959 = vperm.slane %v5936, 0
        %v5960 = vperm.slane %v5936, 1
        %v5961 = vperm.slane %v5936, 2
        %v5962 = vperm.slane %v5936, 3
        %v5963 = vperm.slane %v5936, 4
        %v5964 = vperm.slane %v5936, 5
        %v5965 = vperm.slane %v5936, 6
        %v5966 = vperm.slane %v5936, 7
        %v5967 = vperm.slane %v5938, 0
        %v5993 = vpack.c.bf16 %v5943, %v5943
        %v5994 = vpack.c.bf16 %v5944, %v5944
        %v5995 = vpack.c.bf16 %v5945, %v5945
        %v5996 = vpack.c.bf16 %v5946, %v5946
        %v5997 = vpack.c.bf16 %v5947, %v5947
        %v5998 = vpack.c.bf16 %v5948, %v5948
        %v5999 = vpack.c.bf16 %v5949, %v5949
        %v6000 = vpack.c.bf16 %v5950, %v5950
        %v6001 = vpack.c.bf16 %v5951, %v5951
        %v6002 = vpack.c.bf16 %v5952, %v5952
        %v6003 = vpack.c.bf16 %v5953, %v5953
        %v6004 = vpack.c.bf16 %v5954, %v5954
        %v6005 = vpack.c.bf16 %v5955, %v5955
        %v6006 = vpack.c.bf16 %v5956, %v5956
        %v6007 = vpack.c.bf16 %v5957, %v5957
        %v6008 = vpack.c.bf16 %v5958, %v5958
        %v6009 = vpack.c.bf16 %v5959, %v5959
        %v6010 = vpack.c.bf16 %v5960, %v5960
        %v6011 = vpack.c.bf16 %v5961, %v5961
        %v6012 = vpack.c.bf16 %v5962, %v5962
        %v6013 = vpack.c.bf16 %v5963, %v5963
        %v6014 = vpack.c.bf16 %v5964, %v5964
        %v6015 = vpack.c.bf16 %v5965, %v5965
        %v6016 = vpack.c.bf16 %v5966, %v5966
        %v6017 = vpack.c.bf16 %v5967, %v5967
        %v6018 = vld [vmem:[%s5] sm:$0xf]
        %v6019 = vld [vmem:[%s5 + $0x4] sm:$0xf]
        %v6020 = vld [vmem:[%s5 + $0x8] sm:$0xf]
        %v6021 = vld [vmem:[%s5 + $0xc] sm:$0xf]
        %v6022 = vld [vmem:[%s5 + $0x10] sm:$0xf]
        %v6023 = vld [vmem:[%s5 + $0x14] sm:$0xf]
        %v6024 = vld [vmem:[%s5 + $0x18] sm:$0xf]
        %v6025 = vld [vmem:[%s5 + $0x1c] sm:$0xf]
        %v6026 = vld [vmem:[%s5 + $0x20] sm:$0xf]
        %v6027 = vld [vmem:[%s5 + $0x24] sm:$0xf]
        %v6028 = vld [vmem:[%s5 + $0x28] sm:$0xf]
        %v6029 = vld [vmem:[%s5 + $0x2c] sm:$0xf]
        %v6030 = vld [vmem:[%s5 + $0x30] sm:$0xf]
        %v6031 = vld [vmem:[%s5 + $0x34] sm:$0xf]
        %v6032 = vld [vmem:[%s5 + $0x38] sm:$0xf]
        %v6033 = vld [vmem:[%s5 + $0x3c] sm:$0xf]
        %v6034 = vld [vmem:[%s5 + $0x40] sm:$0xf]
        %v6035 = vld [vmem:[%s5 + $0x44] sm:$0xf]
        %v6036 = vld [vmem:[%s5 + $0x48] sm:$0xf]
        %v6037 = vld [vmem:[%s5 + $0x4c] sm:$0xf]
        %v6038 = vld [vmem:[%s5 + $0x50] sm:$0xf]
        %v6039 = vld [vmem:[%s5 + $0x54] sm:$0xf]
        %v6040 = vld [vmem:[%s5 + $0x58] sm:$0xf]
        %v6041 = vld [vmem:[%s5 + $0x5c] sm:$0xf]
        %v6042 = vld [vmem:[%s5 + $0x60] sm:$0xf]
        %v6043 = vld [vmem:[%s5 + $0x64] sm:$0xf]
        %v6044 = vld [vmem:[%s5 + $0x68] sm:$0xf]
        %v6045 = vld [vmem:[%s5 + $0x6c] sm:$0xf]
        %v6046 = vld [vmem:[%s5 + $0x70] sm:$0xf]
        %v6047 = vld [vmem:[%s5 + $0x74] sm:$0xf]
        %v6048 = vld [vmem:[%s5 + $0x78] sm:$0xf]
        %v6049 = vld [vmem:[%s5 + $0x7c] sm:$0xf]
        %v6050 = vld [vmem:[%s5 + $0x80] sm:$0xf]
        %v6051 = vld [vmem:[%s5 + $0x84] sm:$0xf]
        %v6052 = vld [vmem:[%s5 + $0x88] sm:$0xf]
        %v6053 = vld [vmem:[%s5 + $0x8c] sm:$0xf]
        %v6054 = vld [vmem:[%s5 + $0x90] sm:$0xf]
        %v6055 = vld [vmem:[%s5 + $0x94] sm:$0xf]
        %v6056 = vld [vmem:[%s5 + $0x98] sm:$0xf]
        %v6057 = vld [vmem:[%s5 + $0x9c] sm:$0xf]
        %v6058 = vld [vmem:[%s5 + $0xa0] sm:$0xf]
        %v6059 = vld [vmem:[%s5 + $0xa4] sm:$0xf]
        %v6060 = vld [vmem:[%s5 + $0xa8] sm:$0xf]
        %v6061 = vld [vmem:[%s5 + $0xac] sm:$0xf]
        %v6062 = vld [vmem:[%s5 + $0xb0] sm:$0xf]
        %v6063 = vld [vmem:[%s5 + $0xb4] sm:$0xf]
        %v6064 = vld [vmem:[%s5 + $0xb8] sm:$0xf]
        %v6065 = vld [vmem:[%s5 + $0xbc] sm:$0xf]
        %v6066 = vld [vmem:[%s5 + $0xc0] sm:$0xf]
        %v6067 = vld [vmem:[%s5 + $0xc4] sm:$0xf]
        %v6068 = vld [vmem:[%s5 + $0xc8] sm:$0xf]
        %v6069 = vld [vmem:[%s5 + $0xcc] sm:$0xf]
        %v6070 = vld [vmem:[%s5 + $0xd0] sm:$0xf]
        %v6071 = vld [vmem:[%s5 + $0xd4] sm:$0xf]
        %v6072 = vld [vmem:[%s5 + $0xd8] sm:$0xf]
        %v6073 = vld [vmem:[%s5 + $0xdc] sm:$0xf]
        %v6074 = vld [vmem:[%s5 + $0xe0] sm:$0xf]
        %v6075 = vld [vmem:[%s5 + $0xe4] sm:$0xf]
        %v6076 = vld [vmem:[%s5 + $0xe8] sm:$0xf]
        %v6077 = vld [vmem:[%s5 + $0xec] sm:$0xf]
        %v6078 = vld [vmem:[%s5 + $0xf0] sm:$0xf]
        %v6079 = vld [vmem:[%s5 + $0xf4] sm:$0xf]
        %v6080 = vld [vmem:[%s5 + $0xf8] sm:$0xf]
        %v6081 = vld [vmem:[%s5 + $0xfc] sm:$0xf]
        %v6082 = vld [vmem:[%s5 + $0x100] sm:$0xf]
        %v6083 = vld [vmem:[%s5 + $0x104] sm:$0xf]
        %v6084 = vld [vmem:[%s5 + $0x108] sm:$0xf]
        %v6085 = vld [vmem:[%s5 + $0x10c] sm:$0xf]
        %v6086 = vld [vmem:[%s5 + $0x110] sm:$0xf]
        %v6087 = vld [vmem:[%s5 + $0x114] sm:$0xf]
        %v6088 = vld [vmem:[%s5 + $0x118] sm:$0xf]
        %v6089 = vld [vmem:[%s5 + $0x11c] sm:$0xf]
        %v6090 = vld [vmem:[%s5 + $0x120] sm:$0xf]
        %v6091 = vld [vmem:[%s5 + $0x124] sm:$0xf]
        %v6092 = vld [vmem:[%s5 + $0x128] sm:$0xf]
        %v6093 = vld [vmem:[%s5 + $0x12c] sm:$0xf]
        %v6094 = vld [vmem:[%s5 + $0x130] sm:$0xf]
        %v6095 = vld [vmem:[%s5 + $0x134] sm:$0xf]
        %v6096 = vld [vmem:[%s5 + $0x138] sm:$0xf]
        %v6097 = vld [vmem:[%s5 + $0x13c] sm:$0xf]
        %v6098 = vld [vmem:[%s5 + $0x140] sm:$0xf]
        %v6099 = vld [vmem:[%s5 + $0x144] sm:$0xf]
        %v6100 = vld [vmem:[%s5 + $0x148] sm:$0xf]
        %v6101 = vld [vmem:[%s5 + $0x14c] sm:$0xf]
        %v6102 = vld [vmem:[%s5 + $0x150] sm:$0xf]
        %v6103 = vld [vmem:[%s5 + $0x154] sm:$0xf]
        %v6104 = vld [vmem:[%s5 + $0x158] sm:$0xf]
        %v6105 = vld [vmem:[%s5 + $0x15c] sm:$0xf]
        %v6106 = vld [vmem:[%s5 + $0x160] sm:$0xf]
        %v6107 = vld [vmem:[%s5 + $0x164] sm:$0xf]
        %v6108 = vld [vmem:[%s5 + $0x168] sm:$0xf]
        %v6109 = vld [vmem:[%s5 + $0x16c] sm:$0xf]
        %v6110 = vld [vmem:[%s5 + $0x170] sm:$0xf]
        %v6111 = vld [vmem:[%s5 + $0x174] sm:$0xf]
        %v6112 = vld [vmem:[%s5 + $0x178] sm:$0xf]
        %v6113 = vld [vmem:[%s5 + $0x17c] sm:$0xf]
        %v6114 = vld [vmem:[%s5 + $0x180] sm:$0xf]
        %v6115 = vld [vmem:[%s5 + $0x184] sm:$0xf]
        %v6116 = vld [vmem:[%s5 + $0x188] sm:$0xf]
        %v6117 = vld [vmem:[%s5 + $0x18c] sm:$0xf]
        %v6118 = vld [vmem:[%s5 + $0x190] sm:$0xf]
        %v6119 = vld [vmem:[%s5 + $0x194] sm:$0xf]
        %v6120 = vld [vmem:[%s5 + $0x198] sm:$0xf]
        %v6121 = vld [vmem:[%s5 + $0x19c] sm:$0xf]
        %v6122 = vld [vmem:[%s5 + $0x1a0] sm:$0xf]
        %v6123 = vld [vmem:[%s5 + $0x1a4] sm:$0xf]
        %v6124 = vld [vmem:[%s5 + $0x1a8] sm:$0xf]
        %v6125 = vld [vmem:[%s5 + $0x1ac] sm:$0xf]
        %v6126 = vld [vmem:[%s5 + $0x1b0] sm:$0xf]
        %v6127 = vld [vmem:[%s5 + $0x1b4] sm:$0xf]
        %v6128 = vld [vmem:[%s5 + $0x1b8] sm:$0xf]
        %v6129 = vld [vmem:[%s5 + $0x1bc] sm:$0xf]
        %v6130 = vld [vmem:[%s5 + $0x1c0] sm:$0xf]
        %v6131 = vld [vmem:[%s5 + $0x1c4] sm:$0xf]
        %v6132 = vld [vmem:[%s5 + $0x1c8] sm:$0xf]
        %v6133 = vld [vmem:[%s5 + $0x1cc] sm:$0xf]
        %v6134 = vld [vmem:[%s5 + $0x1d0] sm:$0xf]
        %v6135 = vld [vmem:[%s5 + $0x1d4] sm:$0xf]
        %v6136 = vld [vmem:[%s5 + $0x1d8] sm:$0xf]
        %v6137 = vld [vmem:[%s5 + $0x1dc] sm:$0xf]
        %v6138 = vld [vmem:[%s5 + $0x1e0] sm:$0xf]
        %v6139 = vld [vmem:[%s5 + $0x1e4] sm:$0xf]
        %v6140 = vld [vmem:[%s5 + $0x1e8] sm:$0xf]
        %v6141 = vld [vmem:[%s5 + $0x1ec] sm:$0xf]
        %v6142 = vld [vmem:[%s5 + $0x1f0] sm:$0xf]
        %v6143 = vld [vmem:[%s5 + $0x1f4] sm:$0xf]
        %v6144 = vld [vmem:[%s5 + $0x1f8] sm:$0xf]
        %v6145 = vld [vmem:[%s5 + $0x1fc] sm:$0xf]
        %v6146 = vld [vmem:[%s5 + $0x200] sm:$0xf]
        %v6147 = vld [vmem:[%s5 + $0x204] sm:$0xf]
        %v6148 = vld [vmem:[%s5 + $0x208] sm:$0xf]
        %v6149 = vld [vmem:[%s5 + $0x20c] sm:$0xf]
        %v6150 = vld [vmem:[%s5 + $0x210] sm:$0xf]
        %v6151 = vld [vmem:[%s5 + $0x214] sm:$0xf]
        %v6152 = vld [vmem:[%s5 + $0x218] sm:$0xf]
        %v6153 = vld [vmem:[%s5 + $0x21c] sm:$0xf]
        %v6154 = vld [vmem:[%s5 + $0x220] sm:$0xf]
        %v6155 = vld [vmem:[%s5 + $0x224] sm:$0xf]
        %v6156 = vld [vmem:[%s5 + $0x228] sm:$0xf]
        %v6157 = vld [vmem:[%s5 + $0x22c] sm:$0xf]
        %v6158 = vld [vmem:[%s5 + $0x230] sm:$0xf]
        %v6159 = vld [vmem:[%s5 + $0x234] sm:$0xf]
        %v6160 = vld [vmem:[%s5 + $0x238] sm:$0xf]
        %v6161 = vld [vmem:[%s5 + $0x23c] sm:$0xf]
        %v6162 = vld [vmem:[%s5 + $0x240] sm:$0xf]
        %v6163 = vld [vmem:[%s5 + $0x244] sm:$0xf]
        %v6164 = vld [vmem:[%s5 + $0x248] sm:$0xf]
        %v6165 = vld [vmem:[%s5 + $0x24c] sm:$0xf]
        %v6166 = vld [vmem:[%s5 + $0x250] sm:$0xf]
        %v6167 = vld [vmem:[%s5 + $0x254] sm:$0xf]
        %v6168 = vld [vmem:[%s5 + $0x258] sm:$0xf]
        %v6169 = vld [vmem:[%s5 + $0x25c] sm:$0xf]
        %v6170 = vld [vmem:[%s5 + $0x260] sm:$0xf]
        %v6171 = vld [vmem:[%s5 + $0x264] sm:$0xf]
        %v6172 = vld [vmem:[%s5 + $0x268] sm:$0xf]
        %v6173 = vld [vmem:[%s5 + $0x26c] sm:$0xf]
        %v6174 = vld [vmem:[%s5 + $0x270] sm:$0xf]
        %v6175 = vld [vmem:[%s5 + $0x274] sm:$0xf]
        %v6176 = vld [vmem:[%s5 + $0x278] sm:$0xf]
        %v6177 = vld [vmem:[%s5 + $0x27c] sm:$0xf]
        %v6178 = vld [vmem:[%s5 + $0x280] sm:$0xf]
        %v6179 = vld [vmem:[%s5 + $0x284] sm:$0xf]
        %v6180 = vld [vmem:[%s5 + $0x288] sm:$0xf]
        %v6181 = vld [vmem:[%s5 + $0x28c] sm:$0xf]
        %v6182 = vld [vmem:[%s5 + $0x290] sm:$0xf]
        %v6183 = vld [vmem:[%s5 + $0x294] sm:$0xf]
        %v6184 = vld [vmem:[%s5 + $0x298] sm:$0xf]
        %v6185 = vld [vmem:[%s5 + $0x29c] sm:$0xf]
        %v6186 = vld [vmem:[%s5 + $0x2a0] sm:$0xf]
        %v6187 = vld [vmem:[%s5 + $0x2a4] sm:$0xf]
        %v6188 = vld [vmem:[%s5 + $0x2a8] sm:$0xf]
        %v6189 = vld [vmem:[%s5 + $0x2ac] sm:$0xf]
        %v6190 = vld [vmem:[%s5 + $0x2b0] sm:$0xf]
        %v6191 = vld [vmem:[%s5 + $0x2b4] sm:$0xf]
        %v6192 = vld [vmem:[%s5 + $0x2b8] sm:$0xf]
        %v6193 = vld [vmem:[%s5 + $0x2bc] sm:$0xf]
        %v6194 = vld [vmem:[%s5 + $0x2c0] sm:$0xf]
        %v6195 = vld [vmem:[%s5 + $0x2c4] sm:$0xf]
        %v6196 = vld [vmem:[%s5 + $0x2c8] sm:$0xf]
        %v6197 = vld [vmem:[%s5 + $0x2cc] sm:$0xf]
        %v6198 = vld [vmem:[%s5 + $0x2d0] sm:$0xf]
        %v6199 = vld [vmem:[%s5 + $0x2d4] sm:$0xf]
        %v6200 = vld [vmem:[%s5 + $0x2d8] sm:$0xf]
        %v6201 = vld [vmem:[%s5 + $0x2dc] sm:$0xf]
        %v6202 = vld [vmem:[%s5 + $0x2e0] sm:$0xf]
        %v6203 = vld [vmem:[%s5 + $0x2e4] sm:$0xf]
        %v6204 = vld [vmem:[%s5 + $0x2e8] sm:$0xf]
        %v6205 = vld [vmem:[%s5 + $0x2ec] sm:$0xf]
        %v6206 = vld [vmem:[%s5 + $0x2f0] sm:$0xf]
        %v6207 = vld [vmem:[%s5 + $0x2f4] sm:$0xf]
        %v6208 = vld [vmem:[%s5 + $0x2f8] sm:$0xf]
        %v6209 = vld [vmem:[%s5 + $0x2fc] sm:$0xf]
        %v6210 = vld [vmem:[%s5 + $0x300] sm:$0xf]
        %v6211 = vld [vmem:[%s5 + $0x304] sm:$0xf]
        %v6212 = vld [vmem:[%s5 + $0x308] sm:$0xf]
        %v6213 = vld [vmem:[%s5 + $0x30c] sm:$0xf]
        %v6214 = vld [vmem:[%s5 + $0x310] sm:$0xf]
        %v6215 = vld [vmem:[%s5 + $0x314] sm:$0xf]
        %v6216 = vld [vmem:[%s5 + $0x318] sm:$0xf]
        %v6217 = vld [vmem:[%s5 + $0x31c] sm:$0xf]
        %v6218 = vld [vmem:[%s5 + $0x320] sm:$0xf]
        %v6219 = vld [vmem:[%s5 + $0x324] sm:$0xf]
        %v6220 = vld [vmem:[%s5 + $0x328] sm:$0xf]
        %v6221 = vld [vmem:[%s5 + $0x32c] sm:$0xf]
        %v6222 = vld [vmem:[%s5 + $0x330] sm:$0xf]
        %v6223 = vld [vmem:[%s5 + $0x334] sm:$0xf]
        %v6224 = vld [vmem:[%s5 + $0x338] sm:$0xf]
        %v6225 = vld [vmem:[%s5 + $0x33c] sm:$0xf]
        %v6226 = vld [vmem:[%s5 + $0x340] sm:$0xf]
        %v6227 = vld [vmem:[%s5 + $0x344] sm:$0xf]
        %v6228 = vld [vmem:[%s5 + $0x348] sm:$0xf]
        %v6229 = vld [vmem:[%s5 + $0x34c] sm:$0xf]
        %v6230 = vld [vmem:[%s5 + $0x350] sm:$0xf]
        %v6231 = vld [vmem:[%s5 + $0x354] sm:$0xf]
        %v6232 = vld [vmem:[%s5 + $0x358] sm:$0xf]
        %v6233 = vld [vmem:[%s5 + $0x35c] sm:$0xf]
        %v6234 = vld [vmem:[%s5 + $0x360] sm:$0xf]
        %v6235 = vld [vmem:[%s5 + $0x364] sm:$0xf]
        %v6236 = vld [vmem:[%s5 + $0x368] sm:$0xf]
        %v6237 = vld [vmem:[%s5 + $0x36c] sm:$0xf]
        %v6238 = vld [vmem:[%s5 + $0x370] sm:$0xf]
        %v6239 = vld [vmem:[%s5 + $0x374] sm:$0xf]
        %v6240 = vld [vmem:[%s5 + $0x378] sm:$0xf]
        %v6241 = vld [vmem:[%s5 + $0x37c] sm:$0xf]
        %v6242 = vld [vmem:[%s5 + $0x380] sm:$0xf]
        %v6243 = vld [vmem:[%s5 + $0x384] sm:$0xf]
        %v6244 = vld [vmem:[%s5 + $0x388] sm:$0xf]
        %v6245 = vld [vmem:[%s5 + $0x38c] sm:$0xf]
        %v6246 = vld [vmem:[%s5 + $0x390] sm:$0xf]
        %v6247 = vld [vmem:[%s5 + $0x394] sm:$0xf]
        %v6248 = vld [vmem:[%s5 + $0x398] sm:$0xf]
        %v6249 = vld [vmem:[%s5 + $0x39c] sm:$0xf]
        %v6250 = vld [vmem:[%s5 + $0x3a0] sm:$0xf]
        %v6251 = vld [vmem:[%s5 + $0x3a4] sm:$0xf]
        %v6252 = vld [vmem:[%s5 + $0x3a8] sm:$0xf]
        %v6253 = vld [vmem:[%s5 + $0x3ac] sm:$0xf]
        %v6254 = vld [vmem:[%s5 + $0x3b0] sm:$0xf]
        %v6255 = vld [vmem:[%s5 + $0x3b4] sm:$0xf]
        %v6256 = vld [vmem:[%s5 + $0x3b8] sm:$0xf]
        %v6257 = vld [vmem:[%s5 + $0x3bc] sm:$0xf]
        %v6258 = vld [vmem:[%s5 + $0x3c0] sm:$0xf]
        %v6259 = vld [vmem:[%s5 + $0x3c4] sm:$0xf]
        %v6260 = vld [vmem:[%s5 + $0x3c8] sm:$0xf]
        %v6261 = vld [vmem:[%s5 + $0x3cc] sm:$0xf]
        %v6262 = vld [vmem:[%s5 + $0x3d0] sm:$0xf]
        %v6263 = vld [vmem:[%s5 + $0x3d4] sm:$0xf]
        %v6264 = vld [vmem:[%s5 + $0x3d8] sm:$0xf]
        %v6265 = vld [vmem:[%s5 + $0x3dc] sm:$0xf]
        %v6266 = vld [vmem:[%s5 + $0x3e0] sm:$0xf]
        %v6267 = vld [vmem:[%s5 + $0x3e4] sm:$0xf]
        %v6268 = vld [vmem:[%s5 + $0x3e8] sm:$0xf]
        %v6269 = vld [vmem:[%s5 + $0x3ec] sm:$0xf]
        %v6270 = vld [vmem:[%s5 + $0x3f0] sm:$0xf]
        %v6271 = vld [vmem:[%s5 + $0x3f4] sm:$0xf]
        %v6272 = vld [vmem:[%s5 + $0x3f8] sm:$0xf]
        %v6273 = vld [vmem:[%s5 + $0x3fc] sm:$0xf]
        %v6274 = vld [vmem:[%s5 + $0x400] sm:$0xf]
        %v6275 = vld [vmem:[%s5 + $0x404] sm:$0xf]
        %v6276 = vld [vmem:[%s5 + $0x408] sm:$0xf]
        %v6277 = vld [vmem:[%s5 + $0x40c] sm:$0xf]
        %v6278 = vld [vmem:[%s5 + $0x410] sm:$0xf]
        %v6279 = vld [vmem:[%s5 + $0x414] sm:$0xf]
        %v6280 = vld [vmem:[%s5 + $0x418] sm:$0xf]
        %v6281 = vld [vmem:[%s5 + $0x41c] sm:$0xf]
        %v6282 = vld [vmem:[%s5 + $0x420] sm:$0xf]
        %v6283 = vld [vmem:[%s5 + $0x424] sm:$0xf]
        %v6284 = vld [vmem:[%s5 + $0x428] sm:$0xf]
        %v6285 = vld [vmem:[%s5 + $0x42c] sm:$0xf]
        %v6286 = vld [vmem:[%s5 + $0x430] sm:$0xf]
        %v6287 = vld [vmem:[%s5 + $0x434] sm:$0xf]
        %v6288 = vld [vmem:[%s5 + $0x438] sm:$0xf]
        %v6289 = vld [vmem:[%s5 + $0x43c] sm:$0xf]
        %v6290 = vld [vmem:[%s5 + $0x440] sm:$0xf]
        %v6291 = vld [vmem:[%s5 + $0x444] sm:$0xf]
        %v6292 = vld [vmem:[%s5 + $0x448] sm:$0xf]
        %v6293 = vld [vmem:[%s5 + $0x44c] sm:$0xf]
        %v6294 = vld [vmem:[%s5 + $0x450] sm:$0xf]
        %v6295 = vld [vmem:[%s5 + $0x454] sm:$0xf]
        %v6296 = vld [vmem:[%s5 + $0x458] sm:$0xf]
        %v6297 = vld [vmem:[%s5 + $0x45c] sm:$0xf]
        %v6298 = vld [vmem:[%s5 + $0x460] sm:$0xf]
        %v6299 = vld [vmem:[%s5 + $0x464] sm:$0xf]
        %v6300 = vld [vmem:[%s5 + $0x468] sm:$0xf]
        %v6301 = vld [vmem:[%s5 + $0x46c] sm:$0xf]
        %v6302 = vld [vmem:[%s5 + $0x470] sm:$0xf]
        %v6303 = vld [vmem:[%s5 + $0x474] sm:$0xf]
        %v6304 = vld [vmem:[%s5 + $0x478] sm:$0xf]
        %v6305 = vld [vmem:[%s5 + $0x47c] sm:$0xf]
        %v6306 = vld [vmem:[%s5 + $0x480] sm:$0xf]
        %v6307 = vld [vmem:[%s5 + $0x484] sm:$0xf]
        %v6308 = vld [vmem:[%s5 + $0x488] sm:$0xf]
        %v6309 = vld [vmem:[%s5 + $0x48c] sm:$0xf]
        %v6310 = vld [vmem:[%s5 + $0x490] sm:$0xf]
        %v6311 = vld [vmem:[%s5 + $0x494] sm:$0xf]
        %v6312 = vld [vmem:[%s5 + $0x498] sm:$0xf]
        %v6313 = vld [vmem:[%s5 + $0x49c] sm:$0xf]
        %v6314 = vld [vmem:[%s5 + $0x4a0] sm:$0xf]
        %v6315 = vld [vmem:[%s5 + $0x4a4] sm:$0xf]
        %v6316 = vld [vmem:[%s5 + $0x4a8] sm:$0xf]
        %v6317 = vld [vmem:[%s5 + $0x4ac] sm:$0xf]
        %v6318 = vld [vmem:[%s5 + $0x4b0] sm:$0xf]
        %v6319 = vld [vmem:[%s5 + $0x4b4] sm:$0xf]
        %v6320 = vld [vmem:[%s5 + $0x4b8] sm:$0xf]
        %v6321 = vld [vmem:[%s5 + $0x4bc] sm:$0xf]
        %v6322 = vld [vmem:[%s5 + $0x4c0] sm:$0xf]
        %v6323 = vld [vmem:[%s5 + $0x4c4] sm:$0xf]
        %v6324 = vld [vmem:[%s5 + $0x4c8] sm:$0xf]
        %v6325 = vld [vmem:[%s5 + $0x4cc] sm:$0xf]
        %v6326 = vld [vmem:[%s5 + $0x4d0] sm:$0xf]
        %v6327 = vld [vmem:[%s5 + $0x4d4] sm:$0xf]
        %v6328 = vld [vmem:[%s5 + $0x4d8] sm:$0xf]
        %v6329 = vld [vmem:[%s5 + $0x4dc] sm:$0xf]
        %v6330 = vld [vmem:[%s5 + $0x4e0] sm:$0xf]
        %v6331 = vld [vmem:[%s5 + $0x4e4] sm:$0xf]
        %v6332 = vld [vmem:[%s5 + $0x4e8] sm:$0xf]
        %v6333 = vld [vmem:[%s5 + $0x4ec] sm:$0xf]
        %v6334 = vld [vmem:[%s5 + $0x4f0] sm:$0xf]
        %v6335 = vld [vmem:[%s5 + $0x4f4] sm:$0xf]
        %v6336 = vld [vmem:[%s5 + $0x4f8] sm:$0xf]
        %v6337 = vld [vmem:[%s5 + $0x4fc] sm:$0xf]
        %v6338 = vld [vmem:[%s5 + $0x500] sm:$0xf]
        %v6339 = vld [vmem:[%s5 + $0x504] sm:$0xf]
        %v6340 = vld [vmem:[%s5 + $0x508] sm:$0xf]
        %v6341 = vld [vmem:[%s5 + $0x50c] sm:$0xf]
        %v6342 = vld [vmem:[%s5 + $0x510] sm:$0xf]
        %v6343 = vld [vmem:[%s5 + $0x514] sm:$0xf]
        %v6344 = vld [vmem:[%s5 + $0x518] sm:$0xf]
        %v6345 = vld [vmem:[%s5 + $0x51c] sm:$0xf]
        %v6346 = vld [vmem:[%s5 + $0x520] sm:$0xf]
        %v6347 = vld [vmem:[%s5 + $0x524] sm:$0xf]
        %v6348 = vld [vmem:[%s5 + $0x528] sm:$0xf]
        %v6349 = vld [vmem:[%s5 + $0x52c] sm:$0xf]
        %v6350 = vld [vmem:[%s5 + $0x530] sm:$0xf]
        %v6351 = vld [vmem:[%s5 + $0x534] sm:$0xf]
        %v6352 = vld [vmem:[%s5 + $0x538] sm:$0xf]
        %v6353 = vld [vmem:[%s5 + $0x53c] sm:$0xf]
        %v6354 = vld [vmem:[%s5 + $0x540] sm:$0xf]
        %v6355 = vld [vmem:[%s5 + $0x544] sm:$0xf]
        %v6356 = vld [vmem:[%s5 + $0x548] sm:$0xf]
        %v6357 = vld [vmem:[%s5 + $0x54c] sm:$0xf]
        %v6358 = vld [vmem:[%s5 + $0x550] sm:$0xf]
        %v6359 = vld [vmem:[%s5 + $0x554] sm:$0xf]
        %v6360 = vld [vmem:[%s5 + $0x558] sm:$0xf]
        %v6361 = vld [vmem:[%s5 + $0x55c] sm:$0xf]
        %v6362 = vld [vmem:[%s5 + $0x560] sm:$0xf]
        %v6363 = vld [vmem:[%s5 + $0x564] sm:$0xf]
        %v6364 = vld [vmem:[%s5 + $0x568] sm:$0xf]
        %v6365 = vld [vmem:[%s5 + $0x56c] sm:$0xf]
        %v6366 = vld [vmem:[%s5 + $0x570] sm:$0xf]
        %v6367 = vld [vmem:[%s5 + $0x574] sm:$0xf]
        %v6368 = vld [vmem:[%s5 + $0x578] sm:$0xf]
        %v6369 = vld [vmem:[%s5 + $0x57c] sm:$0xf]
        %v6370 = vld [vmem:[%s5 + $0x580] sm:$0xf]
        %v6371 = vld [vmem:[%s5 + $0x584] sm:$0xf]
        %v6372 = vld [vmem:[%s5 + $0x588] sm:$0xf]
        %v6373 = vld [vmem:[%s5 + $0x58c] sm:$0xf]
        %v6374 = vld [vmem:[%s5 + $0x590] sm:$0xf]
        %v6375 = vld [vmem:[%s5 + $0x594] sm:$0xf]
        %v6376 = vld [vmem:[%s5 + $0x598] sm:$0xf]
        %v6377 = vld [vmem:[%s5 + $0x59c] sm:$0xf]
        %v6378 = vld [vmem:[%s5 + $0x5a0] sm:$0xf]
        %v6379 = vld [vmem:[%s5 + $0x5a4] sm:$0xf]
        %v6380 = vld [vmem:[%s5 + $0x5a8] sm:$0xf]
        %v6381 = vld [vmem:[%s5 + $0x5ac] sm:$0xf]
        %v6382 = vld [vmem:[%s5 + $0x5b0] sm:$0xf]
        %v6383 = vld [vmem:[%s5 + $0x5b4] sm:$0xf]
        %v6384 = vld [vmem:[%s5 + $0x5b8] sm:$0xf]
        %v6385 = vld [vmem:[%s5 + $0x5bc] sm:$0xf]
        %v6386 = vld [vmem:[%s5 + $0x5c0] sm:$0xf]
        %v6387 = vld [vmem:[%s5 + $0x5c4] sm:$0xf]
        %v6388 = vld [vmem:[%s5 + $0x5c8] sm:$0xf]
        %v6389 = vld [vmem:[%s5 + $0x5cc] sm:$0xf]
        %v6390 = vld [vmem:[%s5 + $0x5d0] sm:$0xf]
        %v6391 = vld [vmem:[%s5 + $0x5d4] sm:$0xf]
        %v6392 = vld [vmem:[%s5 + $0x5d8] sm:$0xf]
        %v6393 = vld [vmem:[%s5 + $0x5dc] sm:$0xf]
        %v6394 = vld [vmem:[%s5 + $0x5e0] sm:$0xf]
        %v6395 = vld [vmem:[%s5 + $0x5e4] sm:$0xf]
        %v6396 = vld [vmem:[%s5 + $0x5e8] sm:$0xf]
        %v6397 = vld [vmem:[%s5 + $0x5ec] sm:$0xf]
        %v6398 = vld [vmem:[%s5 + $0x5f0] sm:$0xf]
        %v6399 = vld [vmem:[%s5 + $0x5f4] sm:$0xf]
        %v6400 = vld [vmem:[%s5 + $0x5f8] sm:$0xf]
        %v6401 = vld [vmem:[%s5 + $0x5fc] sm:$0xf]
        %v6402 = vld [vmem:[%s5 + $0x600] sm:$0xf]
        %v6403 = vld [vmem:[%s5 + $0x604] sm:$0xf]
        %v6404 = vld [vmem:[%s5 + $0x608] sm:$0xf]
        %v6405 = vld [vmem:[%s5 + $0x60c] sm:$0xf]
        %v6406 = vld [vmem:[%s5 + $0x610] sm:$0xf]
        %v6407 = vld [vmem:[%s5 + $0x614] sm:$0xf]
        %v6408 = vld [vmem:[%s5 + $0x618] sm:$0xf]
        %v6409 = vld [vmem:[%s5 + $0x61c] sm:$0xf]
        %v6410 = vld [vmem:[%s5 + $0x620] sm:$0xf]
        %v6411 = vld [vmem:[%s5 + $0x624] sm:$0xf]
        %v6412 = vld [vmem:[%s5 + $0x628] sm:$0xf]
        %v6413 = vld [vmem:[%s5 + $0x62c] sm:$0xf]
        %v6414 = vld [vmem:[%s5 + $0x630] sm:$0xf]
        %v6415 = vld [vmem:[%s5 + $0x634] sm:$0xf]
        %v6416 = vld [vmem:[%s5 + $0x638] sm:$0xf]
        %v6417 = vld [vmem:[%s5 + $0x63c] sm:$0xf]
        %v6418 = vld [vmem:[%s6] sm:$0x1]
        %v6819 = vunpack.c.l.b16 %v6018
        %v6820 = vunpack.c.l.b16 %v6019
        %v6821 = vunpack.c.l.b16 %v6020
        %v6822 = vunpack.c.l.b16 %v6021
        %v6823 = vunpack.c.l.b16 %v6022
        %v6824 = vunpack.c.l.b16 %v6023
        %v6825 = vunpack.c.l.b16 %v6024
        %v6826 = vunpack.c.l.b16 %v6025
        %v6827 = vunpack.c.l.b16 %v6026
        %v6828 = vunpack.c.l.b16 %v6027
        %v6829 = vunpack.c.l.b16 %v6028
        %v6830 = vunpack.c.l.b16 %v6029
        %v6831 = vunpack.c.l.b16 %v6030
        %v6832 = vunpack.c.l.b16 %v6031
        %v6833 = vunpack.c.l.b16 %v6032
        %v6834 = vunpack.c.l.b16 %v6033
        %v6835 = vunpack.c.l.b16 %v6034
        %v6836 = vunpack.c.l.b16 %v6035
        %v6837 = vunpack.c.l.b16 %v6036
        %v6838 = vunpack.c.l.b16 %v6037
        %v6839 = vunpack.c.l.b16 %v6038
        %v6840 = vunpack.c.l.b16 %v6039
        %v6841 = vunpack.c.l.b16 %v6040
        %v6842 = vunpack.c.l.b16 %v6041
        %v6843 = vunpack.c.l.b16 %v6042
        %v6844 = vunpack.c.l.b16 %v6043
        %v6845 = vunpack.c.l.b16 %v6044
        %v6846 = vunpack.c.l.b16 %v6045
        %v6847 = vunpack.c.l.b16 %v6046
        %v6848 = vunpack.c.l.b16 %v6047
        %v6849 = vunpack.c.l.b16 %v6048
        %v6850 = vunpack.c.l.b16 %v6049
        %v6851 = vunpack.c.l.b16 %v6050
        %v6852 = vunpack.c.l.b16 %v6051
        %v6853 = vunpack.c.l.b16 %v6052
        %v6854 = vunpack.c.l.b16 %v6053
        %v6855 = vunpack.c.l.b16 %v6054
        %v6856 = vunpack.c.l.b16 %v6055
        %v6857 = vunpack.c.l.b16 %v6056
        %v6858 = vunpack.c.l.b16 %v6057
        %v6859 = vunpack.c.l.b16 %v6058
        %v6860 = vunpack.c.l.b16 %v6059
        %v6861 = vunpack.c.l.b16 %v6060
        %v6862 = vunpack.c.l.b16 %v6061
        %v6863 = vunpack.c.l.b16 %v6062
        %v6864 = vunpack.c.l.b16 %v6063
        %v6865 = vunpack.c.l.b16 %v6064
        %v6866 = vunpack.c.l.b16 %v6065
        %v6867 = vunpack.c.l.b16 %v6066
        %v6868 = vunpack.c.l.b16 %v6067
        %v6869 = vunpack.c.l.b16 %v6068
        %v6870 = vunpack.c.l.b16 %v6069
        %v6871 = vunpack.c.l.b16 %v6070
        %v6872 = vunpack.c.l.b16 %v6071
        %v6873 = vunpack.c.l.b16 %v6072
        %v6874 = vunpack.c.l.b16 %v6073
        %v6875 = vunpack.c.l.b16 %v6074
        %v6876 = vunpack.c.l.b16 %v6075
        %v6877 = vunpack.c.l.b16 %v6076
        %v6878 = vunpack.c.l.b16 %v6077
        %v6879 = vunpack.c.l.b16 %v6078
        %v6880 = vunpack.c.l.b16 %v6079
        %v6881 = vunpack.c.l.b16 %v6080
        %v6882 = vunpack.c.l.b16 %v6081
        %v6883 = vunpack.c.l.b16 %v6082
        %v6884 = vunpack.c.l.b16 %v6083
        %v6885 = vunpack.c.l.b16 %v6084
        %v6886 = vunpack.c.l.b16 %v6085
        %v6887 = vunpack.c.l.b16 %v6086
        %v6888 = vunpack.c.l.b16 %v6087
        %v6889 = vunpack.c.l.b16 %v6088
        %v6890 = vunpack.c.l.b16 %v6089
        %v6891 = vunpack.c.l.b16 %v6090
        %v6892 = vunpack.c.l.b16 %v6091
        %v6893 = vunpack.c.l.b16 %v6092
        %v6894 = vunpack.c.l.b16 %v6093
        %v6895 = vunpack.c.l.b16 %v6094
        %v6896 = vunpack.c.l.b16 %v6095
        %v6897 = vunpack.c.l.b16 %v6096
        %v6898 = vunpack.c.l.b16 %v6097
        %v6899 = vunpack.c.l.b16 %v6098
        %v6900 = vunpack.c.l.b16 %v6099
        %v6901 = vunpack.c.l.b16 %v6100
        %v6902 = vunpack.c.l.b16 %v6101
        %v6903 = vunpack.c.l.b16 %v6102
        %v6904 = vunpack.c.l.b16 %v6103
        %v6905 = vunpack.c.l.b16 %v6104
        %v6906 = vunpack.c.l.b16 %v6105
        %v6907 = vunpack.c.l.b16 %v6106
        %v6908 = vunpack.c.l.b16 %v6107
        %v6909 = vunpack.c.l.b16 %v6108
        %v6910 = vunpack.c.l.b16 %v6109
        %v6911 = vunpack.c.l.b16 %v6110
        %v6912 = vunpack.c.l.b16 %v6111
        %v6913 = vunpack.c.l.b16 %v6112
        %v6914 = vunpack.c.l.b16 %v6113
        %v6915 = vunpack.c.l.b16 %v6114
        %v6916 = vunpack.c.l.b16 %v6115
        %v6917 = vunpack.c.l.b16 %v6116
        %v6918 = vunpack.c.l.b16 %v6117
        %v6919 = vunpack.c.l.b16 %v6118
        %v6920 = vunpack.c.l.b16 %v6119
        %v6921 = vunpack.c.l.b16 %v6120
        %v6922 = vunpack.c.l.b16 %v6121
        %v6923 = vunpack.c.l.b16 %v6122
        %v6924 = vunpack.c.l.b16 %v6123
        %v6925 = vunpack.c.l.b16 %v6124
        %v6926 = vunpack.c.l.b16 %v6125
        %v6927 = vunpack.c.l.b16 %v6126
        %v6928 = vunpack.c.l.b16 %v6127
        %v6929 = vunpack.c.l.b16 %v6128
        %v6930 = vunpack.c.l.b16 %v6129
        %v6931 = vunpack.c.l.b16 %v6130
        %v6932 = vunpack.c.l.b16 %v6131
        %v6933 = vunpack.c.l.b16 %v6132
        %v6934 = vunpack.c.l.b16 %v6133
        %v6935 = vunpack.c.l.b16 %v6134
        %v6936 = vunpack.c.l.b16 %v6135
        %v6937 = vunpack.c.l.b16 %v6136
        %v6938 = vunpack.c.l.b16 %v6137
        %v6939 = vunpack.c.l.b16 %v6138
        %v6940 = vunpack.c.l.b16 %v6139
        %v6941 = vunpack.c.l.b16 %v6140
        %v6942 = vunpack.c.l.b16 %v6141
        %v6943 = vunpack.c.l.b16 %v6142
        %v6944 = vunpack.c.l.b16 %v6143
        %v6945 = vunpack.c.l.b16 %v6144
        %v6946 = vunpack.c.l.b16 %v6145
        %v6947 = vunpack.c.l.b16 %v6146
        %v6948 = vunpack.c.l.b16 %v6147
        %v6949 = vunpack.c.l.b16 %v6148
        %v6950 = vunpack.c.l.b16 %v6149
        %v6951 = vunpack.c.l.b16 %v6150
        %v6952 = vunpack.c.l.b16 %v6151
        %v6953 = vunpack.c.l.b16 %v6152
        %v6954 = vunpack.c.l.b16 %v6153
        %v6955 = vunpack.c.l.b16 %v6154
        %v6956 = vunpack.c.l.b16 %v6155
        %v6957 = vunpack.c.l.b16 %v6156
        %v6958 = vunpack.c.l.b16 %v6157
        %v6959 = vunpack.c.l.b16 %v6158
        %v6960 = vunpack.c.l.b16 %v6159
        %v6961 = vunpack.c.l.b16 %v6160
        %v6962 = vunpack.c.l.b16 %v6161
        %v6963 = vunpack.c.l.b16 %v6162
        %v6964 = vunpack.c.l.b16 %v6163
        %v6965 = vunpack.c.l.b16 %v6164
        %v6966 = vunpack.c.l.b16 %v6165
        %v6967 = vunpack.c.l.b16 %v6166
        %v6968 = vunpack.c.l.b16 %v6167
        %v6969 = vunpack.c.l.b16 %v6168
        %v6970 = vunpack.c.l.b16 %v6169
        %v6971 = vunpack.c.l.b16 %v6170
        %v6972 = vunpack.c.l.b16 %v6171
        %v6973 = vunpack.c.l.b16 %v6172
        %v6974 = vunpack.c.l.b16 %v6173
        %v6975 = vunpack.c.l.b16 %v6174
        %v6976 = vunpack.c.l.b16 %v6175
        %v6977 = vunpack.c.l.b16 %v6176
        %v6978 = vunpack.c.l.b16 %v6177
        %v6979 = vunpack.c.l.b16 %v6178
        %v6980 = vunpack.c.l.b16 %v6179
        %v6981 = vunpack.c.l.b16 %v6180
        %v6982 = vunpack.c.l.b16 %v6181
        %v6983 = vunpack.c.l.b16 %v6182
        %v6984 = vunpack.c.l.b16 %v6183
        %v6985 = vunpack.c.l.b16 %v6184
        %v6986 = vunpack.c.l.b16 %v6185
        %v6987 = vunpack.c.l.b16 %v6186
        %v6988 = vunpack.c.l.b16 %v6187
        %v6989 = vunpack.c.l.b16 %v6188
        %v6990 = vunpack.c.l.b16 %v6189
        %v6991 = vunpack.c.l.b16 %v6190
        %v6992 = vunpack.c.l.b16 %v6191
        %v6993 = vunpack.c.l.b16 %v6192
        %v6994 = vunpack.c.l.b16 %v6193
        %v6995 = vunpack.c.l.b16 %v6194
        %v6996 = vunpack.c.l.b16 %v6195
        %v6997 = vunpack.c.l.b16 %v6196
        %v6998 = vunpack.c.l.b16 %v6197
        %v6999 = vunpack.c.l.b16 %v6198
        %v7000 = vunpack.c.l.b16 %v6199
        %v7001 = vunpack.c.l.b16 %v6200
        %v7002 = vunpack.c.l.b16 %v6201
        %v7003 = vunpack.c.l.b16 %v6202
        %v7004 = vunpack.c.l.b16 %v6203
        %v7005 = vunpack.c.l.b16 %v6204
        %v7006 = vunpack.c.l.b16 %v6205
        %v7007 = vunpack.c.l.b16 %v6206
        %v7008 = vunpack.c.l.b16 %v6207
        %v7009 = vunpack.c.l.b16 %v6208
        %v7010 = vunpack.c.l.b16 %v6209
        %v7011 = vunpack.c.l.b16 %v6210
        %v7012 = vunpack.c.l.b16 %v6211
        %v7013 = vunpack.c.l.b16 %v6212
        %v7014 = vunpack.c.l.b16 %v6213
        %v7015 = vunpack.c.l.b16 %v6214
        %v7016 = vunpack.c.l.b16 %v6215
        %v7017 = vunpack.c.l.b16 %v6216
        %v7018 = vunpack.c.l.b16 %v6217
        %v7019 = vunpack.c.l.b16 %v6218
        %v7020 = vunpack.c.l.b16 %v6219
        %v7021 = vunpack.c.l.b16 %v6220
        %v7022 = vunpack.c.l.b16 %v6221
        %v7023 = vunpack.c.l.b16 %v6222
        %v7024 = vunpack.c.l.b16 %v6223
        %v7025 = vunpack.c.l.b16 %v6224
        %v7026 = vunpack.c.l.b16 %v6225
        %v7027 = vunpack.c.l.b16 %v6226
        %v7028 = vunpack.c.l.b16 %v6227
        %v7029 = vunpack.c.l.b16 %v6228
        %v7030 = vunpack.c.l.b16 %v6229
        %v7031 = vunpack.c.l.b16 %v6230
        %v7032 = vunpack.c.l.b16 %v6231
        %v7033 = vunpack.c.l.b16 %v6232
        %v7034 = vunpack.c.l.b16 %v6233
        %v7035 = vunpack.c.l.b16 %v6234
        %v7036 = vunpack.c.l.b16 %v6235
        %v7037 = vunpack.c.l.b16 %v6236
        %v7038 = vunpack.c.l.b16 %v6237
        %v7039 = vunpack.c.l.b16 %v6238
        %v7040 = vunpack.c.l.b16 %v6239
        %v7041 = vunpack.c.l.b16 %v6240
        %v7042 = vunpack.c.l.b16 %v6241
        %v7043 = vunpack.c.l.b16 %v6242
        %v7044 = vunpack.c.l.b16 %v6243
        %v7045 = vunpack.c.l.b16 %v6244
        %v7046 = vunpack.c.l.b16 %v6245
        %v7047 = vunpack.c.l.b16 %v6246
        %v7048 = vunpack.c.l.b16 %v6247
        %v7049 = vunpack.c.l.b16 %v6248
        %v7050 = vunpack.c.l.b16 %v6249
        %v7051 = vunpack.c.l.b16 %v6250
        %v7052 = vunpack.c.l.b16 %v6251
        %v7053 = vunpack.c.l.b16 %v6252
        %v7054 = vunpack.c.l.b16 %v6253
        %v7055 = vunpack.c.l.b16 %v6254
        %v7056 = vunpack.c.l.b16 %v6255
        %v7057 = vunpack.c.l.b16 %v6256
        %v7058 = vunpack.c.l.b16 %v6257
        %v7059 = vunpack.c.l.b16 %v6258
        %v7060 = vunpack.c.l.b16 %v6259
        %v7061 = vunpack.c.l.b16 %v6260
        %v7062 = vunpack.c.l.b16 %v6261
        %v7063 = vunpack.c.l.b16 %v6262
        %v7064 = vunpack.c.l.b16 %v6263
        %v7065 = vunpack.c.l.b16 %v6264
        %v7066 = vunpack.c.l.b16 %v6265
        %v7067 = vunpack.c.l.b16 %v6266
        %v7068 = vunpack.c.l.b16 %v6267
        %v7069 = vunpack.c.l.b16 %v6268
        %v7070 = vunpack.c.l.b16 %v6269
        %v7071 = vunpack.c.l.b16 %v6270
        %v7072 = vunpack.c.l.b16 %v6271
        %v7073 = vunpack.c.l.b16 %v6272
        %v7074 = vunpack.c.l.b16 %v6273
        %v7075 = vunpack.c.l.b16 %v6274
        %v7076 = vunpack.c.l.b16 %v6275
        %v7077 = vunpack.c.l.b16 %v6276
        %v7078 = vunpack.c.l.b16 %v6277
        %v7079 = vunpack.c.l.b16 %v6278
        %v7080 = vunpack.c.l.b16 %v6279
        %v7081 = vunpack.c.l.b16 %v6280
        %v7082 = vunpack.c.l.b16 %v6281
        %v7083 = vunpack.c.l.b16 %v6282
        %v7084 = vunpack.c.l.b16 %v6283
        %v7085 = vunpack.c.l.b16 %v6284
        %v7086 = vunpack.c.l.b16 %v6285
        %v7087 = vunpack.c.l.b16 %v6286
        %v7088 = vunpack.c.l.b16 %v6287
        %v7089 = vunpack.c.l.b16 %v6288
        %v7090 = vunpack.c.l.b16 %v6289
        %v7091 = vunpack.c.l.b16 %v6290
        %v7092 = vunpack.c.l.b16 %v6291
        %v7093 = vunpack.c.l.b16 %v6292
        %v7094 = vunpack.c.l.b16 %v6293
        %v7095 = vunpack.c.l.b16 %v6294
        %v7096 = vunpack.c.l.b16 %v6295
        %v7097 = vunpack.c.l.b16 %v6296
        %v7098 = vunpack.c.l.b16 %v6297
        %v7099 = vunpack.c.l.b16 %v6298
        %v7100 = vunpack.c.l.b16 %v6299
        %v7101 = vunpack.c.l.b16 %v6300
        %v7102 = vunpack.c.l.b16 %v6301
        %v7103 = vunpack.c.l.b16 %v6302
        %v7104 = vunpack.c.l.b16 %v6303
        %v7105 = vunpack.c.l.b16 %v6304
        %v7106 = vunpack.c.l.b16 %v6305
        %v7107 = vunpack.c.l.b16 %v6306
        %v7108 = vunpack.c.l.b16 %v6307
        %v7109 = vunpack.c.l.b16 %v6308
        %v7110 = vunpack.c.l.b16 %v6309
        %v7111 = vunpack.c.l.b16 %v6310
        %v7112 = vunpack.c.l.b16 %v6311
        %v7113 = vunpack.c.l.b16 %v6312
        %v7114 = vunpack.c.l.b16 %v6313
        %v7115 = vunpack.c.l.b16 %v6314
        %v7116 = vunpack.c.l.b16 %v6315
        %v7117 = vunpack.c.l.b16 %v6316
        %v7118 = vunpack.c.l.b16 %v6317
        %v7119 = vunpack.c.l.b16 %v6318
        %v7120 = vunpack.c.l.b16 %v6319
        %v7121 = vunpack.c.l.b16 %v6320
        %v7122 = vunpack.c.l.b16 %v6321
        %v7123 = vunpack.c.l.b16 %v6322
        %v7124 = vunpack.c.l.b16 %v6323
        %v7125 = vunpack.c.l.b16 %v6324
        %v7126 = vunpack.c.l.b16 %v6325
        %v7127 = vunpack.c.l.b16 %v6326
        %v7128 = vunpack.c.l.b16 %v6327
        %v7129 = vunpack.c.l.b16 %v6328
        %v7130 = vunpack.c.l.b16 %v6329
        %v7131 = vunpack.c.l.b16 %v6330
        %v7132 = vunpack.c.l.b16 %v6331
        %v7133 = vunpack.c.l.b16 %v6332
        %v7134 = vunpack.c.l.b16 %v6333
        %v7135 = vunpack.c.l.b16 %v6334
        %v7136 = vunpack.c.l.b16 %v6335
        %v7137 = vunpack.c.l.b16 %v6336
        %v7138 = vunpack.c.l.b16 %v6337
        %v7139 = vunpack.c.l.b16 %v6338
        %v7140 = vunpack.c.l.b16 %v6339
        %v7141 = vunpack.c.l.b16 %v6340
        %v7142 = vunpack.c.l.b16 %v6341
        %v7143 = vunpack.c.l.b16 %v6342
        %v7144 = vunpack.c.l.b16 %v6343
        %v7145 = vunpack.c.l.b16 %v6344
        %v7146 = vunpack.c.l.b16 %v6345
        %v7147 = vunpack.c.l.b16 %v6346
        %v7148 = vunpack.c.l.b16 %v6347
        %v7149 = vunpack.c.l.b16 %v6348
        %v7150 = vunpack.c.l.b16 %v6349
        %v7151 = vunpack.c.l.b16 %v6350
        %v7152 = vunpack.c.l.b16 %v6351
        %v7153 = vunpack.c.l.b16 %v6352
        %v7154 = vunpack.c.l.b16 %v6353
        %v7155 = vunpack.c.l.b16 %v6354
        %v7156 = vunpack.c.l.b16 %v6355
        %v7157 = vunpack.c.l.b16 %v6356
        %v7158 = vunpack.c.l.b16 %v6357
        %v7159 = vunpack.c.l.b16 %v6358
        %v7160 = vunpack.c.l.b16 %v6359
        %v7161 = vunpack.c.l.b16 %v6360
        %v7162 = vunpack.c.l.b16 %v6361
        %v7163 = vunpack.c.l.b16 %v6362
        %v7164 = vunpack.c.l.b16 %v6363
        %v7165 = vunpack.c.l.b16 %v6364
        %v7166 = vunpack.c.l.b16 %v6365
        %v7167 = vunpack.c.l.b16 %v6366
        %v7168 = vunpack.c.l.b16 %v6367
        %v7169 = vunpack.c.l.b16 %v6368
        %v7170 = vunpack.c.l.b16 %v6369
        %v7171 = vunpack.c.l.b16 %v6370
        %v7172 = vunpack.c.l.b16 %v6371
        %v7173 = vunpack.c.l.b16 %v6372
        %v7174 = vunpack.c.l.b16 %v6373
        %v7175 = vunpack.c.l.b16 %v6374
        %v7176 = vunpack.c.l.b16 %v6375
        %v7177 = vunpack.c.l.b16 %v6376
        %v7178 = vunpack.c.l.b16 %v6377
        %v7179 = vunpack.c.l.b16 %v6378
        %v7180 = vunpack.c.l.b16 %v6379
        %v7181 = vunpack.c.l.b16 %v6380
        %v7182 = vunpack.c.l.b16 %v6381
        %v7183 = vunpack.c.l.b16 %v6382
        %v7184 = vunpack.c.l.b16 %v6383
        %v7185 = vunpack.c.l.b16 %v6384
        %v7186 = vunpack.c.l.b16 %v6385
        %v7187 = vunpack.c.l.b16 %v6386
        %v7188 = vunpack.c.l.b16 %v6387
        %v7189 = vunpack.c.l.b16 %v6388
        %v7190 = vunpack.c.l.b16 %v6389
        %v7191 = vunpack.c.l.b16 %v6390
        %v7192 = vunpack.c.l.b16 %v6391
        %v7193 = vunpack.c.l.b16 %v6392
        %v7194 = vunpack.c.l.b16 %v6393
        %v7195 = vunpack.c.l.b16 %v6394
        %v7196 = vunpack.c.l.b16 %v6395
        %v7197 = vunpack.c.l.b16 %v6396
        %v7198 = vunpack.c.l.b16 %v6397
        %v7199 = vunpack.c.l.b16 %v6398
        %v7200 = vunpack.c.l.b16 %v6399
        %v7201 = vunpack.c.l.b16 %v6400
        %v7202 = vunpack.c.l.b16 %v6401
        %v7203 = vunpack.c.l.b16 %v6402
        %v7204 = vunpack.c.l.b16 %v6403
        %v7205 = vunpack.c.l.b16 %v6404
        %v7206 = vunpack.c.l.b16 %v6405
        %v7207 = vunpack.c.l.b16 %v6406
        %v7208 = vunpack.c.l.b16 %v6407
        %v7209 = vunpack.c.l.b16 %v6408
        %v7210 = vunpack.c.l.b16 %v6409
        %v7211 = vunpack.c.l.b16 %v6410
        %v7212 = vunpack.c.l.b16 %v6411
        %v7213 = vunpack.c.l.b16 %v6412
        %v7214 = vunpack.c.l.b16 %v6413
        %v7215 = vunpack.c.l.b16 %v6414
        %v7216 = vunpack.c.l.b16 %v6415
        %v7217 = vunpack.c.l.b16 %v6416
        %v7218 = vunpack.c.l.b16 %v6417
        %v7219 = vpack.c.b16 %v6820, %v6819
        %v7220 = vpack.c.b16 %v6822, %v6821
        %v7221 = vpack.c.b16 %v6824, %v6823
        %v7222 = vpack.c.b16 %v6826, %v6825
        %v7223 = vpack.c.b16 %v6828, %v6827
        %v7224 = vpack.c.b16 %v6830, %v6829
        %v7225 = vpack.c.b16 %v6832, %v6831
        %v7226 = vpack.c.b16 %v6834, %v6833
        %v7227 = vpack.c.b16 %v6836, %v6835
        %v7228 = vpack.c.b16 %v6838, %v6837
        %v7229 = vpack.c.b16 %v6840, %v6839
        %v7230 = vpack.c.b16 %v6842, %v6841
        %v7231 = vpack.c.b16 %v6844, %v6843
        %v7232 = vpack.c.b16 %v6846, %v6845
        %v7233 = vpack.c.b16 %v6848, %v6847
        %v7234 = vpack.c.b16 %v6850, %v6849
        %v7235 = vpack.c.b16 %v6852, %v6851
        %v7236 = vpack.c.b16 %v6854, %v6853
        %v7237 = vpack.c.b16 %v6856, %v6855
        %v7238 = vpack.c.b16 %v6858, %v6857
        %v7239 = vpack.c.b16 %v6860, %v6859
        %v7240 = vpack.c.b16 %v6862, %v6861
        %v7241 = vpack.c.b16 %v6864, %v6863
        %v7242 = vpack.c.b16 %v6866, %v6865
        %v7243 = vpack.c.b16 %v6868, %v6867
        %v7244 = vpack.c.b16 %v6870, %v6869
        %v7245 = vpack.c.b16 %v6872, %v6871
        %v7246 = vpack.c.b16 %v6874, %v6873
        %v7247 = vpack.c.b16 %v6876, %v6875
        %v7248 = vpack.c.b16 %v6878, %v6877
        %v7249 = vpack.c.b16 %v6880, %v6879
        %v7250 = vpack.c.b16 %v6882, %v6881
        %v7251 = vpack.c.b16 %v6884, %v6883
        %v7252 = vpack.c.b16 %v6886, %v6885
        %v7253 = vpack.c.b16 %v6888, %v6887
        %v7254 = vpack.c.b16 %v6890, %v6889
        %v7255 = vpack.c.b16 %v6892, %v6891
        %v7256 = vpack.c.b16 %v6894, %v6893
        %v7257 = vpack.c.b16 %v6896, %v6895
        %v7258 = vpack.c.b16 %v6898, %v6897
        %v7259 = vpack.c.b16 %v6900, %v6899
        %v7260 = vpack.c.b16 %v6902, %v6901
        %v7261 = vpack.c.b16 %v6904, %v6903
        %v7262 = vpack.c.b16 %v6906, %v6905
        %v7263 = vpack.c.b16 %v6908, %v6907
        %v7264 = vpack.c.b16 %v6910, %v6909
        %v7265 = vpack.c.b16 %v6912, %v6911
        %v7266 = vpack.c.b16 %v6914, %v6913
        %v7267 = vpack.c.b16 %v6916, %v6915
        %v7268 = vpack.c.b16 %v6918, %v6917
        %v7269 = vpack.c.b16 %v6920, %v6919
        %v7270 = vpack.c.b16 %v6922, %v6921
        %v7271 = vpack.c.b16 %v6924, %v6923
        %v7272 = vpack.c.b16 %v6926, %v6925
        %v7273 = vpack.c.b16 %v6928, %v6927
        %v7274 = vpack.c.b16 %v6930, %v6929
        %v7275 = vpack.c.b16 %v6932, %v6931
        %v7276 = vpack.c.b16 %v6934, %v6933
        %v7277 = vpack.c.b16 %v6936, %v6935
        %v7278 = vpack.c.b16 %v6938, %v6937
        %v7279 = vpack.c.b16 %v6940, %v6939
        %v7280 = vpack.c.b16 %v6942, %v6941
        %v7281 = vpack.c.b16 %v6944, %v6943
        %v7282 = vpack.c.b16 %v6946, %v6945
        %v7283 = vpack.c.b16 %v6948, %v6947
        %v7284 = vpack.c.b16 %v6950, %v6949
        %v7285 = vpack.c.b16 %v6952, %v6951
        %v7286 = vpack.c.b16 %v6954, %v6953
        %v7287 = vpack.c.b16 %v6956, %v6955
        %v7288 = vpack.c.b16 %v6958, %v6957
        %v7289 = vpack.c.b16 %v6960, %v6959
        %v7290 = vpack.c.b16 %v6962, %v6961
        %v7291 = vpack.c.b16 %v6964, %v6963
        %v7292 = vpack.c.b16 %v6966, %v6965
        %v7293 = vpack.c.b16 %v6968, %v6967
        %v7294 = vpack.c.b16 %v6970, %v6969
        %v7295 = vpack.c.b16 %v6972, %v6971
        %v7296 = vpack.c.b16 %v6974, %v6973
        %v7297 = vpack.c.b16 %v6976, %v6975
        %v7298 = vpack.c.b16 %v6978, %v6977
        %v7299 = vpack.c.b16 %v6980, %v6979
        %v7300 = vpack.c.b16 %v6982, %v6981
        %v7301 = vpack.c.b16 %v6984, %v6983
        %v7302 = vpack.c.b16 %v6986, %v6985
        %v7303 = vpack.c.b16 %v6988, %v6987
        %v7304 = vpack.c.b16 %v6990, %v6989
        %v7305 = vpack.c.b16 %v6992, %v6991
        %v7306 = vpack.c.b16 %v6994, %v6993
        %v7307 = vpack.c.b16 %v6996, %v6995
        %v7308 = vpack.c.b16 %v6998, %v6997
        %v7309 = vpack.c.b16 %v7000, %v6999
        %v7310 = vpack.c.b16 %v7002, %v7001
        %v7311 = vpack.c.b16 %v7004, %v7003
        %v7312 = vpack.c.b16 %v7006, %v7005
        %v7313 = vpack.c.b16 %v7008, %v7007
        %v7314 = vpack.c.b16 %v7010, %v7009
        %v7315 = vpack.c.b16 %v7012, %v7011
        %v7316 = vpack.c.b16 %v7014, %v7013
        %v7317 = vpack.c.b16 %v7016, %v7015
        %v7318 = vpack.c.b16 %v7018, %v7017
        %v7319 = vpack.c.b16 %v7020, %v7019
        %v7320 = vpack.c.b16 %v7022, %v7021
        %v7321 = vpack.c.b16 %v7024, %v7023
        %v7322 = vpack.c.b16 %v7026, %v7025
        %v7323 = vpack.c.b16 %v7028, %v7027
        %v7324 = vpack.c.b16 %v7030, %v7029
        %v7325 = vpack.c.b16 %v7032, %v7031
        %v7326 = vpack.c.b16 %v7034, %v7033
        %v7327 = vpack.c.b16 %v7036, %v7035
        %v7328 = vpack.c.b16 %v7038, %v7037
        %v7329 = vpack.c.b16 %v7040, %v7039
        %v7330 = vpack.c.b16 %v7042, %v7041
        %v7331 = vpack.c.b16 %v7044, %v7043
        %v7332 = vpack.c.b16 %v7046, %v7045
        %v7333 = vpack.c.b16 %v7048, %v7047
        %v7334 = vpack.c.b16 %v7050, %v7049
        %v7335 = vpack.c.b16 %v7052, %v7051
        %v7336 = vpack.c.b16 %v7054, %v7053
        %v7337 = vpack.c.b16 %v7056, %v7055
        %v7338 = vpack.c.b16 %v7058, %v7057
        %v7339 = vpack.c.b16 %v7060, %v7059
        %v7340 = vpack.c.b16 %v7062, %v7061
        %v7341 = vpack.c.b16 %v7064, %v7063
        %v7342 = vpack.c.b16 %v7066, %v7065
        %v7343 = vpack.c.b16 %v7068, %v7067
        %v7344 = vpack.c.b16 %v7070, %v7069
        %v7345 = vpack.c.b16 %v7072, %v7071
        %v7346 = vpack.c.b16 %v7074, %v7073
        %v7347 = vpack.c.b16 %v7076, %v7075
        %v7348 = vpack.c.b16 %v7078, %v7077
        %v7349 = vpack.c.b16 %v7080, %v7079
        %v7350 = vpack.c.b16 %v7082, %v7081
        %v7351 = vpack.c.b16 %v7084, %v7083
        %v7352 = vpack.c.b16 %v7086, %v7085
        %v7353 = vpack.c.b16 %v7088, %v7087
        %v7354 = vpack.c.b16 %v7090, %v7089
        %v7355 = vpack.c.b16 %v7092, %v7091
        %v7356 = vpack.c.b16 %v7094, %v7093
        %v7357 = vpack.c.b16 %v7096, %v7095
        %v7358 = vpack.c.b16 %v7098, %v7097
        %v7359 = vpack.c.b16 %v7100, %v7099
        %v7360 = vpack.c.b16 %v7102, %v7101
        %v7361 = vpack.c.b16 %v7104, %v7103
        %v7362 = vpack.c.b16 %v7106, %v7105
        %v7363 = vpack.c.b16 %v7108, %v7107
        %v7364 = vpack.c.b16 %v7110, %v7109
        %v7365 = vpack.c.b16 %v7112, %v7111
        %v7366 = vpack.c.b16 %v7114, %v7113
        %v7367 = vpack.c.b16 %v7116, %v7115
        %v7368 = vpack.c.b16 %v7118, %v7117
        %v7369 = vpack.c.b16 %v7120, %v7119
        %v7370 = vpack.c.b16 %v7122, %v7121
        %v7371 = vpack.c.b16 %v7124, %v7123
        %v7372 = vpack.c.b16 %v7126, %v7125
        %v7373 = vpack.c.b16 %v7128, %v7127
        %v7374 = vpack.c.b16 %v7130, %v7129
        %v7375 = vpack.c.b16 %v7132, %v7131
        %v7376 = vpack.c.b16 %v7134, %v7133
        %v7377 = vpack.c.b16 %v7136, %v7135
        %v7378 = vpack.c.b16 %v7138, %v7137
        %v7379 = vpack.c.b16 %v7140, %v7139
        %v7380 = vpack.c.b16 %v7142, %v7141
        %v7381 = vpack.c.b16 %v7144, %v7143
        %v7382 = vpack.c.b16 %v7146, %v7145
        %v7383 = vpack.c.b16 %v7148, %v7147
        %v7384 = vpack.c.b16 %v7150, %v7149
        %v7385 = vpack.c.b16 %v7152, %v7151
        %v7386 = vpack.c.b16 %v7154, %v7153
        %v7387 = vpack.c.b16 %v7156, %v7155
        %v7388 = vpack.c.b16 %v7158, %v7157
        %v7389 = vpack.c.b16 %v7160, %v7159
        %v7390 = vpack.c.b16 %v7162, %v7161
        %v7391 = vpack.c.b16 %v7164, %v7163
        %v7392 = vpack.c.b16 %v7166, %v7165
        %v7393 = vpack.c.b16 %v7168, %v7167
        %v7394 = vpack.c.b16 %v7170, %v7169
        %v7395 = vpack.c.b16 %v7172, %v7171
        %v7396 = vpack.c.b16 %v7174, %v7173
        %v7397 = vpack.c.b16 %v7176, %v7175
        %v7398 = vpack.c.b16 %v7178, %v7177
        %v7399 = vpack.c.b16 %v7180, %v7179
        %v7400 = vpack.c.b16 %v7182, %v7181
        %v7401 = vpack.c.b16 %v7184, %v7183
        %v7402 = vpack.c.b16 %v7186, %v7185
        %v7403 = vpack.c.b16 %v7188, %v7187
        %v7404 = vpack.c.b16 %v7190, %v7189
        %v7405 = vpack.c.b16 %v7192, %v7191
        %v7406 = vpack.c.b16 %v7194, %v7193
        %v7407 = vpack.c.b16 %v7196, %v7195
        %v7408 = vpack.c.b16 %v7198, %v7197
        %v7409 = vpack.c.b16 %v7200, %v7199
        %v7410 = vpack.c.b16 %v7202, %v7201
        %v7411 = vpack.c.b16 %v7204, %v7203
        %v7412 = vpack.c.b16 %v7206, %v7205
        %v7413 = vpack.c.b16 %v7208, %v7207
        %v7414 = vpack.c.b16 %v7210, %v7209
        %v7415 = vpack.c.b16 %v7212, %v7211
        %v7416 = vpack.c.b16 %v7214, %v7213
        %v7417 = vpack.c.b16 %v7216, %v7215
        %v7418 = vpack.c.b16 %v7218, %v7217
        %7619 = vmatpush.bf16.msra.mxu0 %v7226
        %7620 = vmatpush.bf16.msra.mxu0 %v7225
        %7621 = vmatpush.bf16.msra.mxu0 %v7224
        %7622 = vmatpush.bf16.msra.mxu0 %v7223
        %7623 = vmatpush.bf16.msra.mxu0 %v7222
        %7624 = vmatpush.bf16.msra.mxu0 %v7221
        %7625 = vmatpush.bf16.msra.mxu0 %v7220
        %7626 = vmatpush.bf16.msra.mxu0 %v7219
        %7627 = vmatmul.bf16.gmra.mxu0 %v5993
        %v7628 = vpop.f32.mrf.mxu0
        %v7629 = vadd.f32 %v6418, %v7628
        %v7630 = vpop.f32.mrf.mxu0
        %7631 = vdwg.mxu0
        %7632 = vmatpush.bf16.msra.mxu0 %v7234
        %7633 = vmatpush.bf16.msra.mxu0 %v7233
        %7634 = vmatpush.bf16.msra.mxu0 %v7232
        %7635 = vmatpush.bf16.msra.mxu0 %v7231
        %7636 = vmatpush.bf16.msra.mxu0 %v7230
        %7637 = vmatpush.bf16.msra.mxu0 %v7229
        %7638 = vmatpush.bf16.msra.mxu0 %v7228
        %7639 = vmatpush.bf16.msra.mxu0 %v7227
        %7640 = vmatmul.bf16.gmra.mxu0 %v5994
        %v7641 = vpop.f32.mrf.mxu0
        %v7642 = vadd.f32 %v7629, %v7641
        %v7643 = vpop.f32.mrf.mxu0
        %7644 = vdwg.mxu0
        %7645 = vmatpush.bf16.msra.mxu0 %v7242
        %7646 = vmatpush.bf16.msra.mxu0 %v7241
        %7647 = vmatpush.bf16.msra.mxu0 %v7240
        %7648 = vmatpush.bf16.msra.mxu0 %v7239
        %7649 = vmatpush.bf16.msra.mxu0 %v7238
        %7650 = vmatpush.bf16.msra.mxu0 %v7237
        %7651 = vmatpush.bf16.msra.mxu0 %v7236
        %7652 = vmatpush.bf16.msra.mxu0 %v7235
        %7653 = vmatmul.bf16.gmra.mxu0 %v5995
        %v7654 = vpop.f32.mrf.mxu0
        %v7655 = vadd.f32 %v7642, %v7654
        %v7656 = vpop.f32.mrf.mxu0
        %7657 = vdwg.mxu0
        %7658 = vmatpush.bf16.msra.mxu0 %v7250
        %7659 = vmatpush.bf16.msra.mxu0 %v7249
        %7660 = vmatpush.bf16.msra.mxu0 %v7248
        %7661 = vmatpush.bf16.msra.mxu0 %v7247
        %7662 = vmatpush.bf16.msra.mxu0 %v7246
        %7663 = vmatpush.bf16.msra.mxu0 %v7245
        %7664 = vmatpush.bf16.msra.mxu0 %v7244
        %7665 = vmatpush.bf16.msra.mxu0 %v7243
        %7666 = vmatmul.bf16.gmra.mxu0 %v5996
        %v7667 = vpop.f32.mrf.mxu0
        %v7668 = vadd.f32 %v7655, %v7667
        %v7669 = vpop.f32.mrf.mxu0
        %7670 = vdwg.mxu0
        %7671 = vmatpush.bf16.msra.mxu0 %v7258
        %7672 = vmatpush.bf16.msra.mxu0 %v7257
        %7673 = vmatpush.bf16.msra.mxu0 %v7256
        %7674 = vmatpush.bf16.msra.mxu0 %v7255
        %7675 = vmatpush.bf16.msra.mxu0 %v7254
        %7676 = vmatpush.bf16.msra.mxu0 %v7253
        %7677 = vmatpush.bf16.msra.mxu0 %v7252
        %7678 = vmatpush.bf16.msra.mxu0 %v7251
        %7679 = vmatmul.bf16.gmra.mxu0 %v5997
        %v7680 = vpop.f32.mrf.mxu0
        %v7681 = vadd.f32 %v7668, %v7680
        %v7682 = vpop.f32.mrf.mxu0
        %7683 = vdwg.mxu0
        %7684 = vmatpush.bf16.msra.mxu0 %v7266
        %7685 = vmatpush.bf16.msra.mxu0 %v7265
        %7686 = vmatpush.bf16.msra.mxu0 %v7264
        %7687 = vmatpush.bf16.msra.mxu0 %v7263
        %7688 = vmatpush.bf16.msra.mxu0 %v7262
        %7689 = vmatpush.bf16.msra.mxu0 %v7261
        %7690 = vmatpush.bf16.msra.mxu0 %v7260
        %7691 = vmatpush.bf16.msra.mxu0 %v7259
        %7692 = vmatmul.bf16.gmra.mxu0 %v5998
        %v7693 = vpop.f32.mrf.mxu0
        %v7694 = vadd.f32 %v7681, %v7693
        %v7695 = vpop.f32.mrf.mxu0
        %7696 = vdwg.mxu0
        %7697 = vmatpush.bf16.msra.mxu0 %v7274
        %7698 = vmatpush.bf16.msra.mxu0 %v7273
        %7699 = vmatpush.bf16.msra.mxu0 %v7272
        %7700 = vmatpush.bf16.msra.mxu0 %v7271
        %7701 = vmatpush.bf16.msra.mxu0 %v7270
        %7702 = vmatpush.bf16.msra.mxu0 %v7269
        %7703 = vmatpush.bf16.msra.mxu0 %v7268
        %7704 = vmatpush.bf16.msra.mxu0 %v7267
        %7705 = vmatmul.bf16.gmra.mxu0 %v5999
        %v7706 = vpop.f32.mrf.mxu0
        %v7707 = vadd.f32 %v7694, %v7706
        %v7708 = vpop.f32.mrf.mxu0
        %7709 = vdwg.mxu0
        %7710 = vmatpush.bf16.msra.mxu0 %v7282
        %7711 = vmatpush.bf16.msra.mxu0 %v7281
        %7712 = vmatpush.bf16.msra.mxu0 %v7280
        %7713 = vmatpush.bf16.msra.mxu0 %v7279
        %7714 = vmatpush.bf16.msra.mxu0 %v7278
        %7715 = vmatpush.bf16.msra.mxu0 %v7277
        %7716 = vmatpush.bf16.msra.mxu0 %v7276
        %7717 = vmatpush.bf16.msra.mxu0 %v7275
        %7718 = vmatmul.bf16.gmra.mxu0 %v6000
        %v7719 = vpop.f32.mrf.mxu0
        %v7720 = vadd.f32 %v7707, %v7719
        %v7721 = vpop.f32.mrf.mxu0
        %7722 = vdwg.mxu0
        %7723 = vmatpush.bf16.msra.mxu0 %v7290
        %7724 = vmatpush.bf16.msra.mxu0 %v7289
        %7725 = vmatpush.bf16.msra.mxu0 %v7288
        %7726 = vmatpush.bf16.msra.mxu0 %v7287
        %7727 = vmatpush.bf16.msra.mxu0 %v7286
        %7728 = vmatpush.bf16.msra.mxu0 %v7285
        %7729 = vmatpush.bf16.msra.mxu0 %v7284
        %7730 = vmatpush.bf16.msra.mxu0 %v7283
        %7731 = vmatmul.bf16.gmra.mxu0 %v6001
        %v7732 = vpop.f32.mrf.mxu0
        %v7733 = vadd.f32 %v7720, %v7732
        %v7734 = vpop.f32.mrf.mxu0
        %7735 = vdwg.mxu0
        %7736 = vmatpush.bf16.msra.mxu0 %v7298
        %7737 = vmatpush.bf16.msra.mxu0 %v7297
        %7738 = vmatpush.bf16.msra.mxu0 %v7296
        %7739 = vmatpush.bf16.msra.mxu0 %v7295
        %7740 = vmatpush.bf16.msra.mxu0 %v7294
        %7741 = vmatpush.bf16.msra.mxu0 %v7293
        %7742 = vmatpush.bf16.msra.mxu0 %v7292
        %7743 = vmatpush.bf16.msra.mxu0 %v7291
        %7744 = vmatmul.bf16.gmra.mxu0 %v6002
        %v7745 = vpop.f32.mrf.mxu0
        %v7746 = vadd.f32 %v7733, %v7745
        %v7747 = vpop.f32.mrf.mxu0
        %7748 = vdwg.mxu0
        %7749 = vmatpush.bf16.msra.mxu0 %v7306
        %7750 = vmatpush.bf16.msra.mxu0 %v7305
        %7751 = vmatpush.bf16.msra.mxu0 %v7304
        %7752 = vmatpush.bf16.msra.mxu0 %v7303
        %7753 = vmatpush.bf16.msra.mxu0 %v7302
        %7754 = vmatpush.bf16.msra.mxu0 %v7301
        %7755 = vmatpush.bf16.msra.mxu0 %v7300
        %7756 = vmatpush.bf16.msra.mxu0 %v7299
        %7757 = vmatmul.bf16.gmra.mxu0 %v6003
        %v7758 = vpop.f32.mrf.mxu0
        %v7759 = vadd.f32 %v7746, %v7758
        %v7760 = vpop.f32.mrf.mxu0
        %7761 = vdwg.mxu0
        %7762 = vmatpush.bf16.msra.mxu0 %v7314
        %7763 = vmatpush.bf16.msra.mxu0 %v7313
        %7764 = vmatpush.bf16.msra.mxu0 %v7312
        %7765 = vmatpush.bf16.msra.mxu0 %v7311
        %7766 = vmatpush.bf16.msra.mxu0 %v7310
        %7767 = vmatpush.bf16.msra.mxu0 %v7309
        %7768 = vmatpush.bf16.msra.mxu0 %v7308
        %7769 = vmatpush.bf16.msra.mxu0 %v7307
        %7770 = vmatmul.bf16.gmra.mxu0 %v6004
        %v7771 = vpop.f32.mrf.mxu0
        %v7772 = vadd.f32 %v7759, %v7771
        %v7773 = vpop.f32.mrf.mxu0
        %7774 = vdwg.mxu0
        %7775 = vmatpush.bf16.msra.mxu0 %v7322
        %7776 = vmatpush.bf16.msra.mxu0 %v7321
        %7777 = vmatpush.bf16.msra.mxu0 %v7320
        %7778 = vmatpush.bf16.msra.mxu0 %v7319
        %7779 = vmatpush.bf16.msra.mxu0 %v7318
        %7780 = vmatpush.bf16.msra.mxu0 %v7317
        %7781 = vmatpush.bf16.msra.mxu0 %v7316
        %7782 = vmatpush.bf16.msra.mxu0 %v7315
        %7783 = vmatmul.bf16.gmra.mxu0 %v6005
        %v7784 = vpop.f32.mrf.mxu0
        %v7785 = vadd.f32 %v7772, %v7784
        %v7786 = vpop.f32.mrf.mxu0
        %7787 = vdwg.mxu0
        %7788 = vmatpush.bf16.msra.mxu0 %v7330
        %7789 = vmatpush.bf16.msra.mxu0 %v7329
        %7790 = vmatpush.bf16.msra.mxu0 %v7328
        %7791 = vmatpush.bf16.msra.mxu0 %v7327
        %7792 = vmatpush.bf16.msra.mxu0 %v7326
        %7793 = vmatpush.bf16.msra.mxu0 %v7325
        %7794 = vmatpush.bf16.msra.mxu0 %v7324
        %7795 = vmatpush.bf16.msra.mxu0 %v7323
        %7796 = vmatmul.bf16.gmra.mxu0 %v6006
        %v7797 = vpop.f32.mrf.mxu0
        %v7798 = vadd.f32 %v7785, %v7797
        %v7799 = vpop.f32.mrf.mxu0
        %7800 = vdwg.mxu0
        %7801 = vmatpush.bf16.msra.mxu0 %v7338
        %7802 = vmatpush.bf16.msra.mxu0 %v7337
        %7803 = vmatpush.bf16.msra.mxu0 %v7336
        %7804 = vmatpush.bf16.msra.mxu0 %v7335
        %7805 = vmatpush.bf16.msra.mxu0 %v7334
        %7806 = vmatpush.bf16.msra.mxu0 %v7333
        %7807 = vmatpush.bf16.msra.mxu0 %v7332
        %7808 = vmatpush.bf16.msra.mxu0 %v7331
        %7809 = vmatmul.bf16.gmra.mxu0 %v6007
        %v7810 = vpop.f32.mrf.mxu0
        %v7811 = vadd.f32 %v7798, %v7810
        %v7812 = vpop.f32.mrf.mxu0
        %7813 = vdwg.mxu0
        %7814 = vmatpush.bf16.msra.mxu0 %v7346
        %7815 = vmatpush.bf16.msra.mxu0 %v7345
        %7816 = vmatpush.bf16.msra.mxu0 %v7344
        %7817 = vmatpush.bf16.msra.mxu0 %v7343
        %7818 = vmatpush.bf16.msra.mxu0 %v7342
        %7819 = vmatpush.bf16.msra.mxu0 %v7341
        %7820 = vmatpush.bf16.msra.mxu0 %v7340
        %7821 = vmatpush.bf16.msra.mxu0 %v7339
        %7822 = vmatmul.bf16.gmra.mxu0 %v6008
        %v7823 = vpop.f32.mrf.mxu0
        %v7824 = vadd.f32 %v7811, %v7823
        %v7825 = vpop.f32.mrf.mxu0
        %7826 = vdwg.mxu0
        %7827 = vmatpush.bf16.msra.mxu0 %v7354
        %7828 = vmatpush.bf16.msra.mxu0 %v7353
        %7829 = vmatpush.bf16.msra.mxu0 %v7352
        %7830 = vmatpush.bf16.msra.mxu0 %v7351
        %7831 = vmatpush.bf16.msra.mxu0 %v7350
        %7832 = vmatpush.bf16.msra.mxu0 %v7349
        %7833 = vmatpush.bf16.msra.mxu0 %v7348
        %7834 = vmatpush.bf16.msra.mxu0 %v7347
        %7835 = vmatmul.bf16.gmra.mxu0 %v6009
        %v7836 = vpop.f32.mrf.mxu0
        %v7837 = vadd.f32 %v7824, %v7836
        %v7838 = vpop.f32.mrf.mxu0
        %7839 = vdwg.mxu0
        %7840 = vmatpush.bf16.msra.mxu0 %v7362
        %7841 = vmatpush.bf16.msra.mxu0 %v7361
        %7842 = vmatpush.bf16.msra.mxu0 %v7360
        %7843 = vmatpush.bf16.msra.mxu0 %v7359
        %7844 = vmatpush.bf16.msra.mxu0 %v7358
        %7845 = vmatpush.bf16.msra.mxu0 %v7357
        %7846 = vmatpush.bf16.msra.mxu0 %v7356
        %7847 = vmatpush.bf16.msra.mxu0 %v7355
        %7848 = vmatmul.bf16.gmra.mxu0 %v6010
        %v7849 = vpop.f32.mrf.mxu0
        %v7850 = vadd.f32 %v7837, %v7849
        %v7851 = vpop.f32.mrf.mxu0
        %7852 = vdwg.mxu0
        %7853 = vmatpush.bf16.msra.mxu0 %v7370
        %7854 = vmatpush.bf16.msra.mxu0 %v7369
        %7855 = vmatpush.bf16.msra.mxu0 %v7368
        %7856 = vmatpush.bf16.msra.mxu0 %v7367
        %7857 = vmatpush.bf16.msra.mxu0 %v7366
        %7858 = vmatpush.bf16.msra.mxu0 %v7365
        %7859 = vmatpush.bf16.msra.mxu0 %v7364
        %7860 = vmatpush.bf16.msra.mxu0 %v7363
        %7861 = vmatmul.bf16.gmra.mxu0 %v6011
        %v7862 = vpop.f32.mrf.mxu0
        %v7863 = vadd.f32 %v7850, %v7862
        %v7864 = vpop.f32.mrf.mxu0
        %7865 = vdwg.mxu0
        %7866 = vmatpush.bf16.msra.mxu0 %v7378
        %7867 = vmatpush.bf16.msra.mxu0 %v7377
        %7868 = vmatpush.bf16.msra.mxu0 %v7376
        %7869 = vmatpush.bf16.msra.mxu0 %v7375
        %7870 = vmatpush.bf16.msra.mxu0 %v7374
        %7871 = vmatpush.bf16.msra.mxu0 %v7373
        %7872 = vmatpush.bf16.msra.mxu0 %v7372
        %7873 = vmatpush.bf16.msra.mxu0 %v7371
        %7874 = vmatmul.bf16.gmra.mxu0 %v6012
        %v7875 = vpop.f32.mrf.mxu0
        %v7876 = vadd.f32 %v7863, %v7875
        %v7877 = vpop.f32.mrf.mxu0
        %7878 = vdwg.mxu0
        %7879 = vmatpush.bf16.msra.mxu0 %v7386
        %7880 = vmatpush.bf16.msra.mxu0 %v7385
        %7881 = vmatpush.bf16.msra.mxu0 %v7384
        %7882 = vmatpush.bf16.msra.mxu0 %v7383
        %7883 = vmatpush.bf16.msra.mxu0 %v7382
        %7884 = vmatpush.bf16.msra.mxu0 %v7381
        %7885 = vmatpush.bf16.msra.mxu0 %v7380
        %7886 = vmatpush.bf16.msra.mxu0 %v7379
        %7887 = vmatmul.bf16.gmra.mxu0 %v6013
        %v7888 = vpop.f32.mrf.mxu0
        %v7889 = vadd.f32 %v7876, %v7888
        %v7890 = vpop.f32.mrf.mxu0
        %7891 = vdwg.mxu0
        %7892 = vmatpush.bf16.msra.mxu0 %v7394
        %7893 = vmatpush.bf16.msra.mxu0 %v7393
        %7894 = vmatpush.bf16.msra.mxu0 %v7392
        %7895 = vmatpush.bf16.msra.mxu0 %v7391
        %7896 = vmatpush.bf16.msra.mxu0 %v7390
        %7897 = vmatpush.bf16.msra.mxu0 %v7389
        %7898 = vmatpush.bf16.msra.mxu0 %v7388
        %7899 = vmatpush.bf16.msra.mxu0 %v7387
        %7900 = vmatmul.bf16.gmra.mxu0 %v6014
        %v7901 = vpop.f32.mrf.mxu0
        %v7902 = vadd.f32 %v7889, %v7901
        %v7903 = vpop.f32.mrf.mxu0
        %7904 = vdwg.mxu0
        %7905 = vmatpush.bf16.msra.mxu0 %v7402
        %7906 = vmatpush.bf16.msra.mxu0 %v7401
        %7907 = vmatpush.bf16.msra.mxu0 %v7400
        %7908 = vmatpush.bf16.msra.mxu0 %v7399
        %7909 = vmatpush.bf16.msra.mxu0 %v7398
        %7910 = vmatpush.bf16.msra.mxu0 %v7397
        %7911 = vmatpush.bf16.msra.mxu0 %v7396
        %7912 = vmatpush.bf16.msra.mxu0 %v7395
        %7913 = vmatmul.bf16.gmra.mxu0 %v6015
        %v7914 = vpop.f32.mrf.mxu0
        %v7915 = vadd.f32 %v7902, %v7914
        %v7916 = vpop.f32.mrf.mxu0
        %7917 = vdwg.mxu0
        %7918 = vmatpush.bf16.msra.mxu0 %v7410
        %7919 = vmatpush.bf16.msra.mxu0 %v7409
        %7920 = vmatpush.bf16.msra.mxu0 %v7408
        %7921 = vmatpush.bf16.msra.mxu0 %v7407
        %7922 = vmatpush.bf16.msra.mxu0 %v7406
        %7923 = vmatpush.bf16.msra.mxu0 %v7405
        %7924 = vmatpush.bf16.msra.mxu0 %v7404
        %7925 = vmatpush.bf16.msra.mxu0 %v7403
        %7926 = vmatmul.bf16.gmra.mxu0 %v6016
        %v7927 = vpop.f32.mrf.mxu0
        %v7928 = vadd.f32 %v7915, %v7927
        %v7929 = vpop.f32.mrf.mxu0
        %7930 = vdwg.mxu0
        %7931 = vmatpush.bf16.msra.mxu0 %v7418
        %7932 = vmatpush.bf16.msra.mxu0 %v7417
        %7933 = vmatpush.bf16.msra.mxu0 %v7416
        %7934 = vmatpush.bf16.msra.mxu0 %v7415
        %7935 = vmatpush.bf16.msra.mxu0 %v7414
        %7936 = vmatpush.bf16.msra.mxu0 %v7413
        %7937 = vmatpush.bf16.msra.mxu0 %v7412
        %7938 = vmatpush.bf16.msra.mxu0 %v7411
        %7939 = vmatmul.bf16.gmra.mxu0 %v6017
        %v7940 = vpop.f32.mrf.mxu0
        %v7941 = vadd.f32 %v7928, %v7940
        %v7942 = vpop.f32.mrf.mxu0
        %7943 = vdwg.mxu0
        %v7944 = vmax.f32 %v7941, 0.0
        %v7945 = vpack.c.bf16 %v7944, %v7944
        %v7946 = vld [vmem:[%s7] sm:$0xf]
        %v7947 = vld [vmem:[%s7 + $0x4] sm:$0xf]
        %v7948 = vld [vmem:[%s7 + $0x8] sm:$0xf]
        %v7949 = vld [vmem:[%s7 + $0xc] sm:$0xf]
        %v7950 = vld [vmem:[%s7 + $0x10] sm:$0xf]
        %v7951 = vld [vmem:[%s7 + $0x14] sm:$0xf]
        %v7952 = vld [vmem:[%s7 + $0x18] sm:$0xf]
        %v7953 = vld [vmem:[%s7 + $0x1c] sm:$0xf]
        %v7954 = vld [vmem:[%s7 + $0x20] sm:$0xf]
        %v7955 = vld [vmem:[%s7 + $0x24] sm:$0xf]
        %v7956 = vld [vmem:[%s7 + $0x28] sm:$0xf]
        %v7957 = vld [vmem:[%s7 + $0x2c] sm:$0xf]
        %v7958 = vld [vmem:[%s7 + $0x30] sm:$0xf]
        %v7959 = vld [vmem:[%s7 + $0x34] sm:$0xf]
        %v7960 = vld [vmem:[%s7 + $0x38] sm:$0xf]
        %v7961 = vld [vmem:[%s7 + $0x3c] sm:$0xf]
        %v7962 = vld [vmem:[%s8] sm:$0x1]
        %v7979 = vunpack.c.l.b16 %v7946
        %v7980 = vunpack.c.l.b16 %v7947
        %v7981 = vunpack.c.l.b16 %v7948
        %v7982 = vunpack.c.l.b16 %v7949
        %v7983 = vunpack.c.l.b16 %v7950
        %v7984 = vunpack.c.l.b16 %v7951
        %v7985 = vunpack.c.l.b16 %v7952
        %v7986 = vunpack.c.l.b16 %v7953
        %v7987 = vunpack.c.l.b16 %v7954
        %v7988 = vunpack.c.l.b16 %v7955
        %v7989 = vunpack.c.l.b16 %v7956
        %v7990 = vunpack.c.l.b16 %v7957
        %v7991 = vunpack.c.l.b16 %v7958
        %v7992 = vunpack.c.l.b16 %v7959
        %v7993 = vunpack.c.l.b16 %v7960
        %v7994 = vunpack.c.l.b16 %v7961
        %v7995 = vpack.c.b16 %v7980, %v7979
        %v7996 = vpack.c.b16 %v7982, %v7981
        %v7997 = vpack.c.b16 %v7984, %v7983
        %v7998 = vpack.c.b16 %v7986, %v7985
        %v7999 = vpack.c.b16 %v7988, %v7987
        %v8000 = vpack.c.b16 %v7990, %v7989
        %v8001 = vpack.c.b16 %v7992, %v7991
        %v8002 = vpack.c.b16 %v7994, %v7993
        %8011 = vmatpush.bf16.msra.mxu0 %v8002
        %8012 = vmatpush.bf16.msra.mxu0 %v8001
        %8013 = vmatpush.bf16.msra.mxu0 %v8000
        %8014 = vmatpush.bf16.msra.mxu0 %v7999
        %8015 = vmatpush.bf16.msra.mxu0 %v7998
        %8016 = vmatpush.bf16.msra.mxu0 %v7997
        %8017 = vmatpush.bf16.msra.mxu0 %v7996
        %8018 = vmatpush.bf16.msra.mxu0 %v7995
        %8019 = vmatmul.bf16.gmra.mxu0 %v7945
        %v8020 = vpop.f32.mrf.mxu0
        %v8021 = vadd.f32 %v7962, %v8020
        %v8022 = vpop.f32.mrf.mxu0
        %8023 = vdwg.mxu0
        %v8024 = vmax.f32 %v8021, 0.0
        %v8025 = vpack.c.bf16 %v8024, %v8024
        %v8026 = vld [vmem:[%s9] sm:$0xf]
        %v8027 = vld [vmem:[%s9 + $0x4] sm:$0xf]
        %v8028 = vld [vmem:[%s9 + $0x8] sm:$0xf]
        %v8029 = vld [vmem:[%s9 + $0xc] sm:$0xf]
        %v8030 = vld [vmem:[%s9 + $0x10] sm:$0xf]
        %v8031 = vld [vmem:[%s9 + $0x14] sm:$0xf]
        %v8032 = vld [vmem:[%s9 + $0x18] sm:$0xf]
        %v8033 = vld [vmem:[%s9 + $0x1c] sm:$0xf]
        %v8034 = vld [vmem:[%s9 + $0x20] sm:$0xf]
        %v8035 = vld [vmem:[%s9 + $0x24] sm:$0xf]
        %v8036 = vld [vmem:[%s9 + $0x28] sm:$0xf]
        %v8037 = vld [vmem:[%s9 + $0x2c] sm:$0xf]
        %v8038 = vld [vmem:[%s9 + $0x30] sm:$0xf]
        %v8039 = vld [vmem:[%s9 + $0x34] sm:$0xf]
        %v8040 = vld [vmem:[%s9 + $0x38] sm:$0xf]
        %v8041 = vld [vmem:[%s9 + $0x3c] sm:$0xf]
        %v8042 = vld [vmem:[%s10] sm:$0x1]
        %v8059 = vunpack.c.l.b16 %v8026
        %v8060 = vunpack.c.l.b16 %v8027
        %v8061 = vunpack.c.l.b16 %v8028
        %v8062 = vunpack.c.l.b16 %v8029
        %v8063 = vunpack.c.l.b16 %v8030
        %v8064 = vunpack.c.l.b16 %v8031
        %v8065 = vunpack.c.l.b16 %v8032
        %v8066 = vunpack.c.l.b16 %v8033
        %v8067 = vunpack.c.l.b16 %v8034
        %v8068 = vunpack.c.l.b16 %v8035
        %v8069 = vunpack.c.l.b16 %v8036
        %v8070 = vunpack.c.l.b16 %v8037
        %v8071 = vunpack.c.l.b16 %v8038
        %v8072 = vunpack.c.l.b16 %v8039
        %v8073 = vunpack.c.l.b16 %v8040
        %v8074 = vunpack.c.l.b16 %v8041
        %v8075 = vpack.c.b16 %v8060, %v8059
        %v8076 = vpack.c.b16 %v8062, %v8061
        %v8077 = vpack.c.b16 %v8064, %v8063
        %v8078 = vpack.c.b16 %v8066, %v8065
        %v8079 = vpack.c.b16 %v8068, %v8067
        %v8080 = vpack.c.b16 %v8070, %v8069
        %v8081 = vpack.c.b16 %v8072, %v8071
        %v8082 = vpack.c.b16 %v8074, %v8073
        %8091 = vmatpush.bf16.msra.mxu0 %v8082
        %8092 = vmatpush.bf16.msra.mxu0 %v8081
        %8093 = vmatpush.bf16.msra.mxu0 %v8080
        %8094 = vmatpush.bf16.msra.mxu0 %v8079
        %8095 = vmatpush.bf16.msra.mxu0 %v8078
        %8096 = vmatpush.bf16.msra.mxu0 %v8077
        %8097 = vmatpush.bf16.msra.mxu0 %v8076
        %8098 = vmatpush.bf16.msra.mxu0 %v8075
        %8099 = vmatmul.bf16.gmra.mxu0 %v8025
        %v8100 = vpop.f32.mrf.mxu0
        %v8101 = vadd.f32 %v8042, %v8100
        %v8102 = vpop.f32.mrf.mxu0
        %8103 = vdwg.mxu0
        %8104 = vst [vmem:[%s378] sm:$0x1] %v8101
        %s8105 = sand.u32 %s269, 1
        %s8106 = scalar_lea.sflag [#allocation7], %s8105
        %s8107 = sand.u32 %s269, 1
        %s8108 = scalar_lea.vmem [#allocation6], %s8107
        // Predicated region
        $region65: #{bayes_lenet5_forward.1} parent=63 // pred_check
          %p8109 = pneg %p279
        $region66: #{bayes_lenet5_forward.1} parent=63 // pred_check_branch
          %8111 = sbr.rel (%p8109) target = $region68
        $region67: #{bayes_lenet5_forward.1} parent=63 // pred_region
          %8113 = vsyncadd %s8106, 0
          %s8114 = scalar_lea.hbm %s11, %s25
          %s8116 = sshll.u32 %s8108, 4
          %s8117 = int_to_ptr.vmem [resolvable:$true] %s8116
          %s8118 = sshll.u32 %s8114, 4
          %s8119 = int_to_ptr.hbm [resolvable:$true] %s8118
          %8121 = dma.vmem_to_hbm [thread:$0]  %s8117, 16, %s8119, %s8106
        $region68: #{bayes_lenet5_forward.1} parent=63 // pred_fallthru
          _
      $region64: #{bayes_lenet5_forward.1} parent=5 // pred_fallthru
        _
      %p8122 = scmp.le.s32.totalorder 2, %s20
      // Predicated region
      $region69: #{bayes_lenet5_forward.1} parent=5 // pred_check
        %p8123 = pneg %p8122
      $region70: #{bayes_lenet5_forward.1} parent=5 // pred_check_branch
        %8125 = sbr.rel (%p8123) target = $region72
      $region71: #{bayes_lenet5_forward.1} parent=5 // pred_region
        %s8126 = ssub.s32 %s20, 2
        // Predicated region
        $region73: #{bayes_lenet5_forward.1} parent=71 // pred_check
          %p8127 = pneg %p285
        $region74: #{bayes_lenet5_forward.1} parent=71 // pred_check_branch
          %8129 = sbr.rel (%p8127) target = $region76
        $region75: #{bayes_lenet5_forward.1} parent=71 // pred_region
          %s8130 = sand.u32 %s270, 1
          %s8131 = scalar_lea.sflag [#allocation7], %s8130
          %s8132 = sand.u32 %s270, 1
          %s8133 = scalar_lea.vmem [#allocation6], %s8132
          %8135 = dma.done %s8131, 16
        $region76: #{bayes_lenet5_forward.1} parent=71 // pred_fallthru
          _
      $region72: #{bayes_lenet5_forward.1} parent=5 // pred_fallthru
        _
    $region6: #{bayes_lenet5_forward.1} parent=1 // loop_footer
      %s24 = sadd.s32 1, %s20
    $region7: #{bayes_lenet5_forward.1} parent=1 // loop_footer_branch
      %19 = sbr.rel target = $region3
    $region8: #{bayes_lenet5_forward.1} parent=1 // loop_exit
      _
    %8136 = vsyncpa [#allocation7], 1
    %s8137 = scalar_lea.sflag [#allocation7], 1
    %8138 = vsyncpa %s8137, 1

</llo_original>
